<compile_context>
chip_gen: v7x
topology: tpu7x:2x2x1
jax: 0.10.0
libtpu: 0.0.40
codegen_flags: <defaults>
</compile_context>

<pallas_src>
import jax
import jax.numpy as jnp
import numpy as np
from jax.experimental import pallas as pl
from jax.experimental.pallas import tpu as pltpu


# ---------------------------------------------------------------------------
# Fused kernel: all layers + both directions + GELU + Linear
# ---------------------------------------------------------------------------
def _make_fused_kernel(S, B, H, num_layers):
    H2 = 2 * H
    f32 = jnp.float32
    INV_SQRT2 = 0.7071067811865476

    def kernel(*refs):
        # inputs: x2, xr2, then (wxf, wxb, wh, b) per layer, then reg_wT, reg_b
        x2_ref, xr2_ref = refs[0], refs[1]
        pos = 2
        layers = []
        for _ in range(num_layers):
            layers.append(refs[pos:pos + 4])
            pos += 4
        regw_ref, regb_ref = refs[pos], refs[pos + 1]
        out_ref = refs[pos + 2]
        gx_ref, act3_ref, act2_ref, actr2_ref = refs[pos + 3:pos + 7]

        for l, (wxf_ref, wxb_ref, wh_ref, b_ref) in enumerate(layers):
            if l == 0:
                inp2, inr2 = x2_ref[...], xr2_ref[...]        # (S*B, Din) natural / reversed
            else:
                inp2, inr2 = act2_ref[...], actr2_ref[...]    # (S*B, 2H)

            # ---- hoisted input projection: one wide matmul per gate, off the serial
            #      path.  Lanes [0,H) = fwd contribution at time t, lanes [H,2H) = bwd
            #      contribution at time S-1-t (bwd weights act on the reversed input). ----
            for k in range(4):
                gk = (jnp.dot(inp2, wxf_ref[k], preferred_element_type=f32)
                      + jnp.dot(inr2, wxb_ref[k], preferred_element_type=f32)
                      + b_ref[k])                             # (S*B, 2H)
                for t in range(S):
                    gx_ref[k, t] = gk[t * B:(t + 1) * B, :]

            # ---- recurrence: fwd (lanes 0:H) and bwd (lanes H:2H) advance together.
            #      Block-diagonal recurrent weights -> one (B,2H)@(2H,2H) matmul per gate,
            #      whole-tile activations, fully unrolled (S is small). ----
            wh0, wh1, wh2, wh3 = wh_ref[0], wh_ref[1], wh_ref[2], wh_ref[3]
            h = jnp.zeros((B, H2), f32)
            c = jnp.zeros((B, H2), f32)
            for s in range(S):
                i_g = jax.nn.sigmoid(jnp.dot(h, wh0, preferred_element_type=f32) + gx_ref[0, s])
                f_g = jax.nn.sigmoid(jnp.dot(h, wh1, preferred_element_type=f32) + gx_ref[1, s])
                g_g = jnp.tanh(jnp.dot(h, wh2, preferred_element_type=f32) + gx_ref[2, s])
                o_g = jax.nn.sigmoid(jnp.dot(h, wh3, preferred_element_type=f32) + gx_ref[3, s])
                c = f_g * c + i_g * g_g
                h = o_g * jnp.tanh(c)
                act3_ref[s, :, 0:H] = h[:, 0:H]               # fwd output at time s
                act3_ref[S - 1 - s, :, H:H2] = h[:, H:H2]     # bwd output at time S-1-s

            # ---- bridge to the flattened (S*B, 2H) layout used by the next layer's
            #      projection and by the epilogue (static, lane-dense copies in VMEM). ----
            for t in range(S):
                row = act3_ref[t]                             # (B, 2H)
                act2_ref[t * B:(t + 1) * B, :] = row
                if l + 1 < num_layers:
                    actr2_ref[(S - 1 - t) * B:(S - t) * B, :] = row

        # ---- fused epilogue: exact (erf) GELU + Linear, single matmul, single store ----
        a = act2_ref[...]                                      # (S*B, 2H)
        g = 0.5 * a * (1.0 + jax.lax.erf(a * INV_SQRT2))
        out_ref[...] = (jnp.dot(g, regw_ref[...], preferred_element_type=f32)
                        + regb_ref[...])

    return kernel


# ---------------------------------------------------------------------------
# Host-side weight packing (PyTorch gate order: i, f, g, o)
# ---------------------------------------------------------------------------
def _prep_layer(w_ih_f, w_hh_f, b_f, w_ih_b, w_hh_b, b_b):
    """Per-gate packed weights:
       wxf[k]: (Din, 2H) input->gate k, fwd weights in lanes [0,H), zeros elsewhere
       wxb[k]: (Din, 2H) input->gate k, bwd weights in lanes [H,2H)  (applied to x reversed)
       wh[k] : (2H, 2H)  block-diagonal recurrent weights (fwd | bwd)
       b[k]  : (1, 2H)   combined biases [b_f_k | b_b_k]
    """
    H = w_hh_f.shape[1]
    din = w_ih_f.shape[1]
    zx = jnp.zeros((din, H), jnp.float32)
    zh = jnp.zeros((H, H), jnp.float32)
    wxf, wxb, wh, bb = [], [], [], []
    for k in range(4):
        sl = slice(k * H, (k + 1) * H)
        wxf.append(jnp.concatenate([w_ih_f[sl].T, zx], axis=1))
        wxb.append(jnp.concatenate([zx, w_ih_b[sl].T], axis=1))
        top = jnp.concatenate([w_hh_f[sl].T, zh], axis=1)
        bot = jnp.concatenate([zh, w_hh_b[sl].T], axis=1)
        wh.append(jnp.concatenate([top, bot], axis=0))
        bb.append(jnp.concatenate([b_f[sl], b_b[sl]])[None, :])
    return jnp.stack(wxf), jnp.stack(wxb), jnp.stack(wh), jnp.stack(bb)


# ---------------------------------------------------------------------------
# Full forward: lstm_reg.forward
# ---------------------------------------------------------------------------
def lstm_reg_forward(x, params):
    S, B, din0 = x.shape
    H = params["lstm"][0]["w_hh_f"].shape[1]
    L = len(params["lstm"])
    O = params["reg_w"].shape[0]

    args = [x.reshape(S * B, din0), x[::-1].reshape(S * B, din0)]
    for layer in params["lstm"]:
        args.extend(_prep_layer(layer["w_ih_f"], layer["w_hh_f"], layer["b_f"],
                                layer["w_ih_b"], layer["w_hh_b"], layer["b_b"]))
    args.append(jnp.transpose(params["reg_w"]))          # (2H, O)
    args.append(params["reg_b"].reshape(1, O))           # (1, O)

    y = pl.pallas_call(
        _make_fused_kernel(S, B, H, L),
        out_shape=jax.ShapeDtypeStruct((S * B, O), jnp.float32),
        scratch_shapes=[
            pltpu.VMEM((4, S, B, 2 * H), jnp.float32),   # per-gate hoisted projections
            pltpu.VMEM((S, B, 2 * H), jnp.float32),      # layer output, time-major
            pltpu.VMEM((S * B, 2 * H), jnp.float32),     # layer output, flattened
            pltpu.VMEM((S * B, 2 * H), jnp.float32),     # layer output, flattened reversed
        ],
    )(*args)
    return y.reshape(S, B, O)


# ---------------------------------------------------------------------------
# Pure-JAX reference (for correctness check only)
# ---------------------------------------------------------------------------
def _ref_lstm_dir(x, w_ih, w_hh, b, reverse):
    H = w_hh.shape[1]
    B = x.shape[1]

    def step(carry, xt):
        h, c = carry
        gates = xt @ w_ih.T + h @ w_hh.T + b
        i = jax.nn.sigmoid(gates[:, :H])
        f = jax.nn.sigmoid(gates[:, H:2 * H])
        g = jnp.tanh(gates[:, 2 * H:3 * H])
        o = jax.nn.sigmoid(gates[:, 3 * H:])
        c = f * c + i * g
        h = o * jnp.tanh(c)
        return (h, c), h

    init = (jnp.zeros((B, H), jnp.float32), jnp.zeros((B, H), jnp.float32))
    xs = x[::-1] if reverse else x
    _, hs = jax.lax.scan(step, init, xs)
    return hs[::-1] if reverse else hs


def lstm_reg_reference(x, params):
    h = x
    for layer in params["lstm"]:
        fwd = _ref_lstm_dir(h, layer["w_ih_f"], layer["w_hh_f"], layer["b_f"], False)
        bwd = _ref_lstm_dir(h, layer["w_ih_b"], layer["w_hh_b"], layer["b_b"], True)
        h = jnp.concatenate([fwd, bwd], axis=-1)
    g = 0.5 * h * (1.0 + jax.lax.erf(h * 0.7071067811865476))
    S, B, F = h.shape
    y = g.reshape(S * B, F) @ params["reg_w"].T + params["reg_b"]
    return y.reshape(S, B, -1)


# ---------------------------------------------------------------------------
if __name__ == "__main__":
    SEQ, BATCH = 8, 2
    INPUT_SIZE, HIDDEN, OUTPUT_SIZE, NUM_LAYERS = 4, 32, 1, 2

    key = jax.random.PRNGKey(0)
    k = float(1.0 / np.sqrt(HIDDEN))

    def u(kk, shape, bound):
        return jax.random.uniform(kk, shape, jnp.float32, -bound, bound)

    params = {"lstm": []}
    for layer_idx in range(NUM_LAYERS):
        din = INPUT_SIZE if layer_idx == 0 else 2 * HIDDEN
        keys = jax.random.split(key, 9)
        key = keys[0]
        params["lstm"].append({
            "w_ih_f": u(keys[1], (4 * HIDDEN, din), k),
            "w_hh_f": u(keys[2], (4 * HIDDEN, HIDDEN), k),
            "b_f":    u(keys[3], (4 * HIDDEN,), k) + u(keys[4], (4 * HIDDEN,), k),  # b_ih + b_hh
            "w_ih_b": u(keys[5], (4 * HIDDEN, din), k),
            "w_hh_b": u(keys[6], (4 * HIDDEN, HIDDEN), k),
            "b_b":    u(keys[7], (4 * HIDDEN,), k) + u(keys[8], (4 * HIDDEN,), k),
        })

    keys = jax.random.split(key, 4)
    kr = float(1.0 / np.sqrt(2 * HIDDEN))
    params["reg_w"] = u(keys[1], (OUTPUT_SIZE, 2 * HIDDEN), kr)
    params["reg_b"] = u(keys[2], (OUTPUT_SIZE,), kr)

    x = jax.random.normal(keys[3], (SEQ, BATCH, INPUT_SIZE), jnp.float32)

    out = lstm_reg_forward(x, params)
    out = jax.block_until_ready(out)
    assert out.shape == (SEQ, BATCH, OUTPUT_SIZE)

    ref = lstm_reg_reference(x, params)
    np.testing.assert_allclose(np.asarray(out), np.asarray(ref), atol=5e-3, rtol=5e-3)

    print("KERNEL_OK")
</pallas_src>

<mosaic_0001>
module attributes {stable_mosaic.version = 11 : i64} {
  func.func @kernel(%arg0: memref<16x4xf32, #tpu.memory_space<vmem>>, %arg1: memref<16x4xf32, #tpu.memory_space<vmem>>, %arg2: memref<4x4x64xf32, #tpu.memory_space<vmem>>, %arg3: memref<4x4x64xf32, #tpu.memory_space<vmem>>, %arg4: memref<4x64x64xf32, #tpu.memory_space<vmem>>, %arg5: memref<4x1x64xf32, #tpu.memory_space<vmem>>, %arg6: memref<4x64x64xf32, #tpu.memory_space<vmem>>, %arg7: memref<4x64x64xf32, #tpu.memory_space<vmem>>, %arg8: memref<4x64x64xf32, #tpu.memory_space<vmem>>, %arg9: memref<4x1x64xf32, #tpu.memory_space<vmem>>, %arg10: memref<64x1xf32, #tpu.memory_space<vmem>>, %arg11: memref<1x1xf32, #tpu.memory_space<vmem>>, %arg12: memref<16x1xf32, #tpu.memory_space<vmem>>, %arg13: memref<4x8x2x64xf32, #tpu.memory_space<vmem>>, %arg14: memref<8x2x64xf32, #tpu.memory_space<vmem>>, %arg15: memref<16x64xf32, #tpu.memory_space<vmem>>, %arg16: memref<16x64xf32, #tpu.memory_space<vmem>>) attributes {dimension_semantics = [], scalar_prefetch = 0 : i64, scratch_operands = 4 : i64, tpu.core_type = #tpu.core_type<tc>} {
    %c0 = arith.constant 0 : index
    %c0_0 = arith.constant 0 : index
    %0 = vector.load %arg0[%c0, %c0_0] : memref<16x4xf32, #tpu.memory_space<vmem>>, vector<16x4xf32>
    %c0_1 = arith.constant 0 : index
    %c0_2 = arith.constant 0 : index
    %1 = vector.load %arg1[%c0_1, %c0_2] : memref<16x4xf32, #tpu.memory_space<vmem>>, vector<16x4xf32>
    %c0_3 = arith.constant 0 : index
    %c0_4 = arith.constant 0 : index
    %c0_5 = arith.constant 0 : index
    %2 = vector.load %arg2[%c0_3, %c0_4, %c0_5] : memref<4x4x64xf32, #tpu.memory_space<vmem>>, vector<1x4x64xf32>
    %3 = vector.shape_cast %2 : vector<1x4x64xf32> to vector<4x64xf32>
    %cst = arith.constant dense<0.000000e+00> : vector<16x64xf32>
    %4 = tpu.matmul %0, %3, %cst {dimension_numbers = #tpu.dot_dimension_numbers<[1], [0], [0], [1], [0, 0, 1, 1], [], []>} : vector<16x4xf32>, vector<4x64xf32>, vector<16x64xf32> -> vector<16x64xf32>
    %c0_6 = arith.constant 0 : index
    %c0_7 = arith.constant 0 : index
    %c0_8 = arith.constant 0 : index
    %5 = vector.load %arg3[%c0_6, %c0_7, %c0_8] : memref<4x4x64xf32, #tpu.memory_space<vmem>>, vector<1x4x64xf32>
    %6 = vector.shape_cast %5 : vector<1x4x64xf32> to vector<4x64xf32>
    %cst_9 = arith.constant dense<0.000000e+00> : vector<16x64xf32>
    %7 = tpu.matmul %1, %6, %cst_9 {dimension_numbers = #tpu.dot_dimension_numbers<[1], [0], [0], [1], [0, 0, 1, 1], [], []>} : vector<16x4xf32>, vector<4x64xf32>, vector<16x64xf32> -> vector<16x64xf32>
    %8 = arith.addf %4, %7 : vector<16x64xf32>
    %c0_10 = arith.constant 0 : index
    %c0_11 = arith.constant 0 : index
    %c0_12 = arith.constant 0 : index
    %9 = vector.load %arg5[%c0_10, %c0_11, %c0_12] : memref<4x1x64xf32, #tpu.memory_space<vmem>>, vector<1x1x64xf32>
    %10 = vector.shape_cast %9 : vector<1x1x64xf32> to vector<1x64xf32>
    %11 = vector.broadcast %10 : vector<1x64xf32> to vector<16x64xf32>
    %12 = arith.addf %8, %11 : vector<16x64xf32>
    %13 = vector.extract_strided_slice %12 {offsets = [0, 0], sizes = [2, 64], strides = [1, 1]} : vector<16x64xf32> to vector<2x64xf32>
    %c0_13 = arith.constant 0 : index
    %c0_14 = arith.constant 0 : index
    %c0_15 = arith.constant 0 : index
    %c0_16 = arith.constant 0 : index
    %14 = vector.load %arg13[%c0_13, %c0_14, %c0_15, %c0_16] : memref<4x8x2x64xf32, #tpu.memory_space<vmem>>, vector<1x1x2x64xf32>
    %15 = vector.shape_cast %14 : vector<1x1x2x64xf32> to vector<2x64xf32>
    %16 = vector.shape_cast %13 : vector<2x64xf32> to vector<1x1x2x64xf32>
    tpu.vector_store %arg13[%c0_13, %c0_14, %c0_15, %c0_16], %16 {strides = array<i32>} : memref<4x8x2x64xf32, #tpu.memory_space<vmem>>, vector<1x1x2x64xf32>,
    %17 = vector.extract_strided_slice %12 {offsets = [2, 0], sizes = [2, 64], strides = [1, 1]} : vector<16x64xf32> to vector<2x64xf32>
    %c0_17 = arith.constant 0 : index
    %c1 = arith.constant 1 : index
    %c0_18 = arith.constant 0 : index
    %c0_19 = arith.constant 0 : index
    %18 = vector.load %arg13[%c0_17, %c1, %c0_18, %c0_19] : memref<4x8x2x64xf32, #tpu.memory_space<vmem>>, vector<1x1x2x64xf32>
    %19 = vector.shape_cast %18 : vector<1x1x2x64xf32> to vector<2x64xf32>
    %20 = vector.shape_cast %17 : vector<2x64xf32> to vector<1x1x2x64xf32>
    tpu.vector_store %arg13[%c0_17, %c1, %c0_18, %c0_19], %20 {strides = array<i32>} : memref<4x8x2x64xf32, #tpu.memory_space<vmem>>, vector<1x1x2x64xf32>,
    %21 = vector.extract_strided_slice %12 {offsets = [4, 0], sizes = [2, 64], strides = [1, 1]} : vector<16x64xf32> to vector<2x64xf32>
    %c0_20 = arith.constant 0 : index
    %c2 = arith.constant 2 : index
    %c0_21 = arith.constant 0 : index
    %c0_22 = arith.constant 0 : index
    %22 = vector.load %arg13[%c0_20, %c2, %c0_21, %c0_22] : memref<4x8x2x64xf32, #tpu.memory_space<vmem>>, vector<1x1x2x64xf32>
    %23 = vector.shape_cast %22 : vector<1x1x2x64xf32> to vector<2x64xf32>
    %24 = vector.shape_cast %21 : vector<2x64xf32> to vector<1x1x2x64xf32>
    tpu.vector_store %arg13[%c0_20, %c2, %c0_21, %c0_22], %24 {strides = array<i32>} : memref<4x8x2x64xf32, #tpu.memory_space<vmem>>, vector<1x1x2x64xf32>,
    %25 = vector.extract_strided_slice %12 {offsets = [6, 0], sizes = [2, 64], strides = [1, 1]} : vector<16x64xf32> to vector<2x64xf32>
    %c0_23 = arith.constant 0 : index
    %c3 = arith.constant 3 : index
    %c0_24 = arith.constant 0 : index
    %c0_25 = arith.constant 0 : index
    %26 = vector.load %arg13[%c0_23, %c3, %c0_24, %c0_25] : memref<4x8x2x64xf32, #tpu.memory_space<vmem>>, vector<1x1x2x64xf32>
    %27 = vector.shape_cast %26 : vector<1x1x2x64xf32> to vector<2x64xf32>
    %28 = vector.shape_cast %25 : vector<2x64xf32> to vector<1x1x2x64xf32>
    tpu.vector_store %arg13[%c0_23, %c3, %c0_24, %c0_25], %28 {strides = array<i32>} : memref<4x8x2x64xf32, #tpu.memory_space<vmem>>, vector<1x1x2x64xf32>,
    %29 = vector.extract_strided_slice %12 {offsets = [8, 0], sizes = [2, 64], strides = [1, 1]} : vector<16x64xf32> to vector<2x64xf32>
    %c0_26 = arith.constant 0 : index
    %c4 = arith.constant 4 : index
    %c0_27 = arith.constant 0 : index
    %c0_28 = arith.constant 0 : index
    %30 = vector.load %arg13[%c0_26, %c4, %c0_27, %c0_28] : memref<4x8x2x64xf32, #tpu.memory_space<vmem>>, vector<1x1x2x64xf32>
    %31 = vector.shape_cast %30 : vector<1x1x2x64xf32> to vector<2x64xf32>
    %32 = vector.shape_cast %29 : vector<2x64xf32> to vector<1x1x2x64xf32>
    tpu.vector_store %arg13[%c0_26, %c4, %c0_27, %c0_28], %32 {strides = array<i32>} : memref<4x8x2x64xf32, #tpu.memory_space<vmem>>, vector<1x1x2x64xf32>,
    %33 = vector.extract_strided_slice %12 {offsets = [10, 0], sizes = [2, 64], strides = [1, 1]} : vector<16x64xf32> to vector<2x64xf32>
    %c0_29 = arith.constant 0 : index
    %c5 = arith.constant 5 : index
    %c0_30 = arith.constant 0 : index
    %c0_31 = arith.constant 0 : index
    %34 = vector.load %arg13[%c0_29, %c5, %c0_30, %c0_31] : memref<4x8x2x64xf32, #tpu.memory_space<vmem>>, vector<1x1x2x64xf32>
    %35 = vector.shape_cast %34 : vector<1x1x2x64xf32> to vector<2x64xf32>
    %36 = vector.shape_cast %33 : vector<2x64xf32> to vector<1x1x2x64xf32>
    tpu.vector_store %arg13[%c0_29, %c5, %c0_30, %c0_31], %36 {strides = array<i32>} : memref<4x8x2x64xf32, #tpu.memory_space<vmem>>, vector<1x1x2x64xf32>,
    %37 = vector.extract_strided_slice %12 {offsets = [12, 0], sizes = [2, 64], strides = [1, 1]} : vector<16x64xf32> to vector<2x64xf32>
    %c0_32 = arith.constant 0 : index
    %c6 = arith.constant 6 : index
    %c0_33 = arith.constant 0 : index
    %c0_34 = arith.constant 0 : index
    %38 = vector.load %arg13[%c0_32, %c6, %c0_33, %c0_34] : memref<4x8x2x64xf32, #tpu.memory_space<vmem>>, vector<1x1x2x64xf32>
    %39 = vector.shape_cast %38 : vector<1x1x2x64xf32> to vector<2x64xf32>
    %40 = vector.shape_cast %37 : vector<2x64xf32> to vector<1x1x2x64xf32>
    tpu.vector_store %arg13[%c0_32, %c6, %c0_33, %c0_34], %40 {strides = array<i32>} : memref<4x8x2x64xf32, #tpu.memory_space<vmem>>, vector<1x1x2x64xf32>,
    %41 = vector.extract_strided_slice %12 {offsets = [14, 0], sizes = [2, 64], strides = [1, 1]} : vector<16x64xf32> to vector<2x64xf32>
    %c0_35 = arith.constant 0 : index
    %c7 = arith.constant 7 : index
    %c0_36 = arith.constant 0 : index
    %c0_37 = arith.constant 0 : index
    %42 = vector.load %arg13[%c0_35, %c7, %c0_36, %c0_37] : memref<4x8x2x64xf32, #tpu.memory_space<vmem>>, vector<1x1x2x64xf32>
    %43 = vector.shape_cast %42 : vector<1x1x2x64xf32> to vector<2x64xf32>
    %44 = vector.shape_cast %41 : vector<2x64xf32> to vector<1x1x2x64xf32>
    tpu.vector_store %arg13[%c0_35, %c7, %c0_36, %c0_37], %44 {strides = array<i32>} : memref<4x8x2x64xf32, #tpu.memory_space<vmem>>, vector<1x1x2x64xf32>,
    %c1_38 = arith.constant 1 : index
    %c0_39 = arith.constant 0 : index
    %c0_40 = arith.constant 0 : index
    %45 = vector.load %arg2[%c1_38, %c0_39, %c0_40] : memref<4x4x64xf32, #tpu.memory_space<vmem>>, vector<1x4x64xf32>
    %46 = vector.shape_cast %45 : vector<1x4x64xf32> to vector<4x64xf32>
    %cst_41 = arith.constant dense<0.000000e+00> : vector<16x64xf32>
    %47 = tpu.matmul %0, %46, %cst_41 {dimension_numbers = #tpu.dot_dimension_numbers<[1], [0], [0], [1], [0, 0, 1, 1], [], []>} : vector<16x4xf32>, vector<4x64xf32>, vector<16x64xf32> -> vector<16x64xf32>
    %c1_42 = arith.constant 1 : index
    %c0_43 = arith.constant 0 : index
    %c0_44 = arith.constant 0 : index
    %48 = vector.load %arg3[%c1_42, %c0_43, %c0_44] : memref<4x4x64xf32, #tpu.memory_space<vmem>>, vector<1x4x64xf32>
    %49 = vector.shape_cast %48 : vector<1x4x64xf32> to vector<4x64xf32>
    %cst_45 = arith.constant dense<0.000000e+00> : vector<16x64xf32>
    %50 = tpu.matmul %1, %49, %cst_45 {dimension_numbers = #tpu.dot_dimension_numbers<[1], [0], [0], [1], [0, 0, 1, 1], [], []>} : vector<16x4xf32>, vector<4x64xf32>, vector<16x64xf32> -> vector<16x64xf32>
    %51 = arith.addf %47, %50 : vector<16x64xf32>
    %c1_46 = arith.constant 1 : index
    %c0_47 = arith.constant 0 : index
    %c0_48 = arith.constant 0 : index
    %52 = vector.load %arg5[%c1_46, %c0_47, %c0_48] : memref<4x1x64xf32, #tpu.memory_space<vmem>>, vector<1x1x64xf32>
    %53 = vector.shape_cast %52 : vector<1x1x64xf32> to vector<1x64xf32>
    %54 = vector.broadcast %53 : vector<1x64xf32> to vector<16x64xf32>
    %55 = arith.addf %51, %54 : vector<16x64xf32>
    %56 = vector.extract_strided_slice %55 {offsets = [0, 0], sizes = [2, 64], strides = [1, 1]} : vector<16x64xf32> to vector<2x64xf32>
    %c1_49 = arith.constant 1 : index
    %c0_50 = arith.constant 0 : index
    %c0_51 = arith.constant 0 : index
    %c0_52 = arith.constant 0 : index
    %57 = vector.load %arg13[%c1_49, %c0_50, %c0_51, %c0_52] : memref<4x8x2x64xf32, #tpu.memory_space<vmem>>, vector<1x1x2x64xf32>
    %58 = vector.shape_cast %57 : vector<1x1x2x64xf32> to vector<2x64xf32>
    %59 = vector.shape_cast %56 : vector<2x64xf32> to vector<1x1x2x64xf32>
    tpu.vector_store %arg13[%c1_49, %c0_50, %c0_51, %c0_52], %59 {strides = array<i32>} : memref<4x8x2x64xf32, #tpu.memory_space<vmem>>, vector<1x1x2x64xf32>,
    %60 = vector.extract_strided_slice %55 {offsets = [2, 0], sizes = [2, 64], strides = [1, 1]} : vector<16x64xf32> to vector<2x64xf32>
    %c1_53 = arith.constant 1 : index
    %c1_54 = arith.constant 1 : index
    %c0_55 = arith.constant 0 : index
    %c0_56 = arith.constant 0 : index
    %61 = vector.load %arg13[%c1_53, %c1_54, %c0_55, %c0_56] : memref<4x8x2x64xf32, #tpu.memory_space<vmem>>, vector<1x1x2x64xf32>
    %62 = vector.shape_cast %61 : vector<1x1x2x64xf32> to vector<2x64xf32>
    %63 = vector.shape_cast %60 : vector<2x64xf32> to vector<1x1x2x64xf32>
    tpu.vector_store %arg13[%c1_53, %c1_54, %c0_55, %c0_56], %63 {strides = array<i32>} : memref<4x8x2x64xf32, #tpu.memory_space<vmem>>, vector<1x1x2x64xf32>,
    %64 = vector.extract_strided_slice %55 {offsets = [4, 0], sizes = [2, 64], strides = [1, 1]} : vector<16x64xf32> to vector<2x64xf32>
    %c1_57 = arith.constant 1 : index
    %c2_58 = arith.constant 2 : index
    %c0_59 = arith.constant 0 : index
    %c0_60 = arith.constant 0 : index
    %65 = vector.load %arg13[%c1_57, %c2_58, %c0_59, %c0_60] : memref<4x8x2x64xf32, #tpu.memory_space<vmem>>, vector<1x1x2x64xf32>
    %66 = vector.shape_cast %65 : vector<1x1x2x64xf32> to vector<2x64xf32>
    %67 = vector.shape_cast %64 : vector<2x64xf32> to vector<1x1x2x64xf32>
    tpu.vector_store %arg13[%c1_57, %c2_58, %c0_59, %c0_60], %67 {strides = array<i32>} : memref<4x8x2x64xf32, #tpu.memory_space<vmem>>, vector<1x1x2x64xf32>,
    %68 = vector.extract_strided_slice %55 {offsets = [6, 0], sizes = [2, 64], strides = [1, 1]} : vector<16x64xf32> to vector<2x64xf32>
    %c1_61 = arith.constant 1 : index
    %c3_62 = arith.constant 3 : index
    %c0_63 = arith.constant 0 : index
    %c0_64 = arith.constant 0 : index
    %69 = vector.load %arg13[%c1_61, %c3_62, %c0_63, %c0_64] : memref<4x8x2x64xf32, #tpu.memory_space<vmem>>, vector<1x1x2x64xf32>
    %70 = vector.shape_cast %69 : vector<1x1x2x64xf32> to vector<2x64xf32>
    %71 = vector.shape_cast %68 : vector<2x64xf32> to vector<1x1x2x64xf32>
    tpu.vector_store %arg13[%c1_61, %c3_62, %c0_63, %c0_64], %71 {strides = array<i32>} : memref<4x8x2x64xf32, #tpu.memory_space<vmem>>, vector<1x1x2x64xf32>,
    %72 = vector.extract_strided_slice %55 {offsets = [8, 0], sizes = [2, 64], strides = [1, 1]} : vector<16x64xf32> to vector<2x64xf32>
    %c1_65 = arith.constant 1 : index
    %c4_66 = arith.constant 4 : index
    %c0_67 = arith.constant 0 : index
    %c0_68 = arith.constant 0 : index
    %73 = vector.load %arg13[%c1_65, %c4_66, %c0_67, %c0_68] : memref<4x8x2x64xf32, #tpu.memory_space<vmem>>, vector<1x1x2x64xf32>
    %74 = vector.shape_cast %73 : vector<1x1x2x64xf32> to vector<2x64xf32>
    %75 = vector.shape_cast %72 : vector<2x64xf32> to vector<1x1x2x64xf32>
    tpu.vector_store %arg13[%c1_65, %c4_66, %c0_67, %c0_68], %75 {strides = array<i32>} : memref<4x8x2x64xf32, #tpu.memory_space<vmem>>, vector<1x1x2x64xf32>,
    %76 = vector.extract_strided_slice %55 {offsets = [10, 0], sizes = [2, 64], strides = [1, 1]} : vector<16x64xf32> to vector<2x64xf32>
    %c1_69 = arith.constant 1 : index
    %c5_70 = arith.constant 5 : index
    %c0_71 = arith.constant 0 : index
    %c0_72 = arith.constant 0 : index
    %77 = vector.load %arg13[%c1_69, %c5_70, %c0_71, %c0_72] : memref<4x8x2x64xf32, #tpu.memory_space<vmem>>, vector<1x1x2x64xf32>
    %78 = vector.shape_cast %77 : vector<1x1x2x64xf32> to vector<2x64xf32>
    %79 = vector.shape_cast %76 : vector<2x64xf32> to vector<1x1x2x64xf32>
    tpu.vector_store %arg13[%c1_69, %c5_70, %c0_71, %c0_72], %79 {strides = array<i32>} : memref<4x8x2x64xf32, #tpu.memory_space<vmem>>, vector<1x1x2x64xf32>,
    %80 = vector.extract_strided_slice %55 {offsets = [12, 0], sizes = [2, 64], strides = [1, 1]} : vector<16x64xf32> to vector<2x64xf32>
    %c1_73 = arith.constant 1 : index
    %c6_74 = arith.constant 6 : index
    %c0_75 = arith.constant 0 : index
    %c0_76 = arith.constant 0 : index
    %81 = vector.load %arg13[%c1_73, %c6_74, %c0_75, %c0_76] : memref<4x8x2x64xf32, #tpu.memory_space<vmem>>, vector<1x1x2x64xf32>
    %82 = vector.shape_cast %81 : vector<1x1x2x64xf32> to vector<2x64xf32>
    %83 = vector.shape_cast %80 : vector<2x64xf32> to vector<1x1x2x64xf32>
    tpu.vector_store %arg13[%c1_73, %c6_74, %c0_75, %c0_76], %83 {strides = array<i32>} : memref<4x8x2x64xf32, #tpu.memory_space<vmem>>, vector<1x1x2x64xf32>,
    %84 = vector.extract_strided_slice %55 {offsets = [14, 0], sizes = [2, 64], strides = [1, 1]} : vector<16x64xf32> to vector<2x64xf32>
    %c1_77 = arith.constant 1 : index
    %c7_78 = arith.constant 7 : index
    %c0_79 = arith.constant 0 : index
    %c0_80 = arith.constant 0 : index
    %85 = vector.load %arg13[%c1_77, %c7_78, %c0_79, %c0_80] : memref<4x8x2x64xf32, #tpu.memory_space<vmem>>, vector<1x1x2x64xf32>
    %86 = vector.shape_cast %85 : vector<1x1x2x64xf32> to vector<2x64xf32>
    %87 = vector.shape_cast %84 : vector<2x64xf32> to vector<1x1x2x64xf32>
    tpu.vector_store %arg13[%c1_77, %c7_78, %c0_79, %c0_80], %87 {strides = array<i32>} : memref<4x8x2x64xf32, #tpu.memory_space<vmem>>, vector<1x1x2x64xf32>,
    %c2_81 = arith.constant 2 : index
    %c0_82 = arith.constant 0 : index
    %c0_83 = arith.constant 0 : index
    %88 = vector.load %arg2[%c2_81, %c0_82, %c0_83] : memref<4x4x64xf32, #tpu.memory_space<vmem>>, vector<1x4x64xf32>
    %89 = vector.shape_cast %88 : vector<1x4x64xf32> to vector<4x64xf32>
    %cst_84 = arith.constant dense<0.000000e+00> : vector<16x64xf32>
    %90 = tpu.matmul %0, %89, %cst_84 {dimension_numbers = #tpu.dot_dimension_numbers<[1], [0], [0], [1], [0, 0, 1, 1], [], []>} : vector<16x4xf32>, vector<4x64xf32>, vector<16x64xf32> -> vector<16x64xf32>
    %c2_85 = arith.constant 2 : index
    %c0_86 = arith.constant 0 : index
    %c0_87 = arith.constant 0 : index
    %91 = vector.load %arg3[%c2_85, %c0_86, %c0_87] : memref<4x4x64xf32, #tpu.memory_space<vmem>>, vector<1x4x64xf32>
    %92 = vector.shape_cast %91 : vector<1x4x64xf32> to vector<4x64xf32>
    %cst_88 = arith.constant dense<0.000000e+00> : vector<16x64xf32>
    %93 = tpu.matmul %1, %92, %cst_88 {dimension_numbers = #tpu.dot_dimension_numbers<[1], [0], [0], [1], [0, 0, 1, 1], [], []>} : vector<16x4xf32>, vector<4x64xf32>, vector<16x64xf32> -> vector<16x64xf32>
    %94 = arith.addf %90, %93 : vector<16x64xf32>
    %c2_89 = arith.constant 2 : index
    %c0_90 = arith.constant 0 : index
    %c0_91 = arith.constant 0 : index
    %95 = vector.load %arg5[%c2_89, %c0_90, %c0_91] : memref<4x1x64xf32, #tpu.memory_space<vmem>>, vector<1x1x64xf32>
    %96 = vector.shape_cast %95 : vector<1x1x64xf32> to vector<1x64xf32>
    %97 = vector.broadcast %96 : vector<1x64xf32> to vector<16x64xf32>
    %98 = arith.addf %94, %97 : vector<16x64xf32>
    %99 = vector.extract_strided_slice %98 {offsets = [0, 0], sizes = [2, 64], strides = [1, 1]} : vector<16x64xf32> to vector<2x64xf32>
    %c2_92 = arith.constant 2 : index
    %c0_93 = arith.constant 0 : index
    %c0_94 = arith.constant 0 : index
    %c0_95 = arith.constant 0 : index
    %100 = vector.load %arg13[%c2_92, %c0_93, %c0_94, %c0_95] : memref<4x8x2x64xf32, #tpu.memory_space<vmem>>, vector<1x1x2x64xf32>
    %101 = vector.shape_cast %100 : vector<1x1x2x64xf32> to vector<2x64xf32>
    %102 = vector.shape_cast %99 : vector<2x64xf32> to vector<1x1x2x64xf32>
    tpu.vector_store %arg13[%c2_92, %c0_93, %c0_94, %c0_95], %102 {strides = array<i32>} : memref<4x8x2x64xf32, #tpu.memory_space<vmem>>, vector<1x1x2x64xf32>,
    %103 = vector.extract_strided_slice %98 {offsets = [2, 0], sizes = [2, 64], strides = [1, 1]} : vector<16x64xf32> to vector<2x64xf32>
    %c2_96 = arith.constant 2 : index
    %c1_97 = arith.constant 1 : index
    %c0_98 = arith.constant 0 : index
    %c0_99 = arith.constant 0 : index
    %104 = vector.load %arg13[%c2_96, %c1_97, %c0_98, %c0_99] : memref<4x8x2x64xf32, #tpu.memory_space<vmem>>, vector<1x1x2x64xf32>
    %105 = vector.shape_cast %104 : vector<1x1x2x64xf32> to vector<2x64xf32>
    %106 = vector.shape_cast %103 : vector<2x64xf32> to vector<1x1x2x64xf32>
    tpu.vector_store %arg13[%c2_96, %c1_97, %c0_98, %c0_99], %106 {strides = array<i32>} : memref<4x8x2x64xf32, #tpu.memory_space<vmem>>, vector<1x1x2x64xf32>,
    %107 = vector.extract_strided_slice %98 {offsets = [4, 0], sizes = [2, 64], strides = [1, 1]} : vector<16x64xf32> to vector<2x64xf32>
    %c2_100 = arith.constant 2 : index
    %c2_101 = arith.constant 2 : index
    %c0_102 = arith.constant 0 : index
    %c0_103 = arith.constant 0 : index
    %108 = vector.load %arg13[%c2_100, %c2_101, %c0_102, %c0_103] : memref<4x8x2x64xf32, #tpu.memory_space<vmem>>, vector<1x1x2x64xf32>
    %109 = vector.shape_cast %108 : vector<1x1x2x64xf32> to vector<2x64xf32>
    %110 = vector.shape_cast %107 : vector<2x64xf32> to vector<1x1x2x64xf32>
    tpu.vector_store %arg13[%c2_100, %c2_101, %c0_102, %c0_103], %110 {strides = array<i32>} : memref<4x8x2x64xf32, #tpu.memory_space<vmem>>, vector<1x1x2x64xf32>,
    %111 = vector.extract_strided_slice %98 {offsets = [6, 0], sizes = [2, 64], strides = [1, 1]} : vector<16x64xf32> to vector<2x64xf32>
    %c2_104 = arith.constant 2 : index
    %c3_105 = arith.constant 3 : index
    %c0_106 = arith.constant 0 : index
    %c0_107 = arith.constant 0 : index
    %112 = vector.load %arg13[%c2_104, %c3_105, %c0_106, %c0_107] : memref<4x8x2x64xf32, #tpu.memory_space<vmem>>, vector<1x1x2x64xf32>
    %113 = vector.shape_cast %112 : vector<1x1x2x64xf32> to vector<2x64xf32>
    %114 = vector.shape_cast %111 : vector<2x64xf32> to vector<1x1x2x64xf32>
    tpu.vector_store %arg13[%c2_104, %c3_105, %c0_106, %c0_107], %114 {strides = array<i32>} : memref<4x8x2x64xf32, #tpu.memory_space<vmem>>, vector<1x1x2x64xf32>,
    %115 = vector.extract_strided_slice %98 {offsets = [8, 0], sizes = [2, 64], strides = [1, 1]} : vector<16x64xf32> to vector<2x64xf32>
    %c2_108 = arith.constant 2 : index
    %c4_109 = arith.constant 4 : index
    %c0_110 = arith.constant 0 : index
    %c0_111 = arith.constant 0 : index
    %116 = vector.load %arg13[%c2_108, %c4_109, %c0_110, %c0_111] : memref<4x8x2x64xf32, #tpu.memory_space<vmem>>, vector<1x1x2x64xf32>
    %117 = vector.shape_cast %116 : vector<1x1x2x64xf32> to vector<2x64xf32>
    %118 = vector.shape_cast %115 : vector<2x64xf32> to vector<1x1x2x64xf32>
    tpu.vector_store %arg13[%c2_108, %c4_109, %c0_110, %c0_111], %118 {strides = array<i32>} : memref<4x8x2x64xf32, #tpu.memory_space<vmem>>, vector<1x1x2x64xf32>,
    %119 = vector.extract_strided_slice %98 {offsets = [10, 0], sizes = [2, 64], strides = [1, 1]} : vector<16x64xf32> to vector<2x64xf32>
    %c2_112 = arith.constant 2 : index
    %c5_113 = arith.constant 5 : index
    %c0_114 = arith.constant 0 : index
    %c0_115 = arith.constant 0 : index
    %120 = vector.load %arg13[%c2_112, %c5_113, %c0_114, %c0_115] : memref<4x8x2x64xf32, #tpu.memory_space<vmem>>, vector<1x1x2x64xf32>
    %121 = vector.shape_cast %120 : vector<1x1x2x64xf32> to vector<2x64xf32>
    %122 = vector.shape_cast %119 : vector<2x64xf32> to vector<1x1x2x64xf32>
    tpu.vector_store %arg13[%c2_112, %c5_113, %c0_114, %c0_115], %122 {strides = array<i32>} : memref<4x8x2x64xf32, #tpu.memory_space<vmem>>, vector<1x1x2x64xf32>,
    %123 = vector.extract_strided_slice %98 {offsets = [12, 0], sizes = [2, 64], strides = [1, 1]} : vector<16x64xf32> to vector<2x64xf32>
    %c2_116 = arith.constant 2 : index
    %c6_117 = arith.constant 6 : index
    %c0_118 = arith.constant 0 : index
    %c0_119 = arith.constant 0 : index
    %124 = vector.load %arg13[%c2_116, %c6_117, %c0_118, %c0_119] : memref<4x8x2x64xf32, #tpu.memory_space<vmem>>, vector<1x1x2x64xf32>
    %125 = vector.shape_cast %124 : vector<1x1x2x64xf32> to vector<2x64xf32>
    %126 = vector.shape_cast %123 : vector<2x64xf32> to vector<1x1x2x64xf32>
    tpu.vector_store %arg13[%c2_116, %c6_117, %c0_118, %c0_119], %126 {strides = array<i32>} : memref<4x8x2x64xf32, #tpu.memory_space<vmem>>, vector<1x1x2x64xf32>,
    %127 = vector.extract_strided_slice %98 {offsets = [14, 0], sizes = [2, 64], strides = [1, 1]} : vector<16x64xf32> to vector<2x64xf32>
    %c2_120 = arith.constant 2 : index
    %c7_121 = arith.constant 7 : index
    %c0_122 = arith.constant 0 : index
    %c0_123 = arith.constant 0 : index
    %128 = vector.load %arg13[%c2_120, %c7_121, %c0_122, %c0_123] : memref<4x8x2x64xf32, #tpu.memory_space<vmem>>, vector<1x1x2x64xf32>
    %129 = vector.shape_cast %128 : vector<1x1x2x64xf32> to vector<2x64xf32>
    %130 = vector.shape_cast %127 : vector<2x64xf32> to vector<1x1x2x64xf32>
    tpu.vector_store %arg13[%c2_120, %c7_121, %c0_122, %c0_123], %130 {strides = array<i32>} : memref<4x8x2x64xf32, #tpu.memory_space<vmem>>, vector<1x1x2x64xf32>,
    %c3_124 = arith.constant 3 : index
    %c0_125 = arith.constant 0 : index
    %c0_126 = arith.constant 0 : index
    %131 = vector.load %arg2[%c3_124, %c0_125, %c0_126] : memref<4x4x64xf32, #tpu.memory_space<vmem>>, vector<1x4x64xf32>
    %132 = vector.shape_cast %131 : vector<1x4x64xf32> to vector<4x64xf32>
    %cst_127 = arith.constant dense<0.000000e+00> : vector<16x64xf32>
    %133 = tpu.matmul %0, %132, %cst_127 {dimension_numbers = #tpu.dot_dimension_numbers<[1], [0], [0], [1], [0, 0, 1, 1], [], []>} : vector<16x4xf32>, vector<4x64xf32>, vector<16x64xf32> -> vector<16x64xf32>
    %c3_128 = arith.constant 3 : index
    %c0_129 = arith.constant 0 : index
    %c0_130 = arith.constant 0 : index
    %134 = vector.load %arg3[%c3_128, %c0_129, %c0_130] : memref<4x4x64xf32, #tpu.memory_space<vmem>>, vector<1x4x64xf32>
    %135 = vector.shape_cast %134 : vector<1x4x64xf32> to vector<4x64xf32>
    %cst_131 = arith.constant dense<0.000000e+00> : vector<16x64xf32>
    %136 = tpu.matmul %1, %135, %cst_131 {dimension_numbers = #tpu.dot_dimension_numbers<[1], [0], [0], [1], [0, 0, 1, 1], [], []>} : vector<16x4xf32>, vector<4x64xf32>, vector<16x64xf32> -> vector<16x64xf32>
    %137 = arith.addf %133, %136 : vector<16x64xf32>
    %c3_132 = arith.constant 3 : index
    %c0_133 = arith.constant 0 : index
    %c0_134 = arith.constant 0 : index
    %138 = vector.load %arg5[%c3_132, %c0_133, %c0_134] : memref<4x1x64xf32, #tpu.memory_space<vmem>>, vector<1x1x64xf32>
    %139 = vector.shape_cast %138 : vector<1x1x64xf32> to vector<1x64xf32>
    %140 = vector.broadcast %139 : vector<1x64xf32> to vector<16x64xf32>
    %141 = arith.addf %137, %140 : vector<16x64xf32>
    %142 = vector.extract_strided_slice %141 {offsets = [0, 0], sizes = [2, 64], strides = [1, 1]} : vector<16x64xf32> to vector<2x64xf32>
    %c3_135 = arith.constant 3 : index
    %c0_136 = arith.constant 0 : index
    %c0_137 = arith.constant 0 : index
    %c0_138 = arith.constant 0 : index
    %143 = vector.load %arg13[%c3_135, %c0_136, %c0_137, %c0_138] : memref<4x8x2x64xf32, #tpu.memory_space<vmem>>, vector<1x1x2x64xf32>
    %144 = vector.shape_cast %143 : vector<1x1x2x64xf32> to vector<2x64xf32>
    %145 = vector.shape_cast %142 : vector<2x64xf32> to vector<1x1x2x64xf32>
    tpu.vector_store %arg13[%c3_135, %c0_136, %c0_137, %c0_138], %145 {strides = array<i32>} : memref<4x8x2x64xf32, #tpu.memory_space<vmem>>, vector<1x1x2x64xf32>,
    %146 = vector.extract_strided_slice %141 {offsets = [2, 0], sizes = [2, 64], strides = [1, 1]} : vector<16x64xf32> to vector<2x64xf32>
    %c3_139 = arith.constant 3 : index
    %c1_140 = arith.constant 1 : index
    %c0_141 = arith.constant 0 : index
    %c0_142 = arith.constant 0 : index
    %147 = vector.load %arg13[%c3_139, %c1_140, %c0_141, %c0_142] : memref<4x8x2x64xf32, #tpu.memory_space<vmem>>, vector<1x1x2x64xf32>
    %148 = vector.shape_cast %147 : vector<1x1x2x64xf32> to vector<2x64xf32>
    %149 = vector.shape_cast %146 : vector<2x64xf32> to vector<1x1x2x64xf32>
    tpu.vector_store %arg13[%c3_139, %c1_140, %c0_141, %c0_142], %149 {strides = array<i32>} : memref<4x8x2x64xf32, #tpu.memory_space<vmem>>, vector<1x1x2x64xf32>,
    %150 = vector.extract_strided_slice %141 {offsets = [4, 0], sizes = [2, 64], strides = [1, 1]} : vector<16x64xf32> to vector<2x64xf32>
    %c3_143 = arith.constant 3 : index
    %c2_144 = arith.constant 2 : index
    %c0_145 = arith.constant 0 : index
    %c0_146 = arith.constant 0 : index
    %151 = vector.load %arg13[%c3_143, %c2_144, %c0_145, %c0_146] : memref<4x8x2x64xf32, #tpu.memory_space<vmem>>, vector<1x1x2x64xf32>
    %152 = vector.shape_cast %151 : vector<1x1x2x64xf32> to vector<2x64xf32>
    %153 = vector.shape_cast %150 : vector<2x64xf32> to vector<1x1x2x64xf32>
    tpu.vector_store %arg13[%c3_143, %c2_144, %c0_145, %c0_146], %153 {strides = array<i32>} : memref<4x8x2x64xf32, #tpu.memory_space<vmem>>, vector<1x1x2x64xf32>,
    %154 = vector.extract_strided_slice %141 {offsets = [6, 0], sizes = [2, 64], strides = [1, 1]} : vector<16x64xf32> to vector<2x64xf32>
    %c3_147 = arith.constant 3 : index
    %c3_148 = arith.constant 3 : index
    %c0_149 = arith.constant 0 : index
    %c0_150 = arith.constant 0 : index
    %155 = vector.load %arg13[%c3_147, %c3_148, %c0_149, %c0_150] : memref<4x8x2x64xf32, #tpu.memory_space<vmem>>, vector<1x1x2x64xf32>
    %156 = vector.shape_cast %155 : vector<1x1x2x64xf32> to vector<2x64xf32>
    %157 = vector.shape_cast %154 : vector<2x64xf32> to vector<1x1x2x64xf32>
    tpu.vector_store %arg13[%c3_147, %c3_148, %c0_149, %c0_150], %157 {strides = array<i32>} : memref<4x8x2x64xf32, #tpu.memory_space<vmem>>, vector<1x1x2x64xf32>,
    %158 = vector.extract_strided_slice %141 {offsets = [8, 0], sizes = [2, 64], strides = [1, 1]} : vector<16x64xf32> to vector<2x64xf32>
    %c3_151 = arith.constant 3 : index
    %c4_152 = arith.constant 4 : index
    %c0_153 = arith.constant 0 : index
    %c0_154 = arith.constant 0 : index
    %159 = vector.load %arg13[%c3_151, %c4_152, %c0_153, %c0_154] : memref<4x8x2x64xf32, #tpu.memory_space<vmem>>, vector<1x1x2x64xf32>
    %160 = vector.shape_cast %159 : vector<1x1x2x64xf32> to vector<2x64xf32>
    %161 = vector.shape_cast %158 : vector<2x64xf32> to vector<1x1x2x64xf32>
    tpu.vector_store %arg13[%c3_151, %c4_152, %c0_153, %c0_154], %161 {strides = array<i32>} : memref<4x8x2x64xf32, #tpu.memory_space<vmem>>, vector<1x1x2x64xf32>,
    %162 = vector.extract_strided_slice %141 {offsets = [10, 0], sizes = [2, 64], strides = [1, 1]} : vector<16x64xf32> to vector<2x64xf32>
    %c3_155 = arith.constant 3 : index
    %c5_156 = arith.constant 5 : index
    %c0_157 = arith.constant 0 : index
    %c0_158 = arith.constant 0 : index
    %163 = vector.load %arg13[%c3_155, %c5_156, %c0_157, %c0_158] : memref<4x8x2x64xf32, #tpu.memory_space<vmem>>, vector<1x1x2x64xf32>
    %164 = vector.shape_cast %163 : vector<1x1x2x64xf32> to vector<2x64xf32>
    %165 = vector.shape_cast %162 : vector<2x64xf32> to vector<1x1x2x64xf32>
    tpu.vector_store %arg13[%c3_155, %c5_156, %c0_157, %c0_158], %165 {strides = array<i32>} : memref<4x8x2x64xf32, #tpu.memory_space<vmem>>, vector<1x1x2x64xf32>,
    %166 = vector.extract_strided_slice %141 {offsets = [12, 0], sizes = [2, 64], strides = [1, 1]} : vector<16x64xf32> to vector<2x64xf32>
    %c3_159 = arith.constant 3 : index
    %c6_160 = arith.constant 6 : index
    %c0_161 = arith.constant 0 : index
    %c0_162 = arith.constant 0 : index
    %167 = vector.load %arg13[%c3_159, %c6_160, %c0_161, %c0_162] : memref<4x8x2x64xf32, #tpu.memory_space<vmem>>, vector<1x1x2x64xf32>
    %168 = vector.shape_cast %167 : vector<1x1x2x64xf32> to vector<2x64xf32>
    %169 = vector.shape_cast %166 : vector<2x64xf32> to vector<1x1x2x64xf32>
    tpu.vector_store %arg13[%c3_159, %c6_160, %c0_161, %c0_162], %169 {strides = array<i32>} : memref<4x8x2x64xf32, #tpu.memory_space<vmem>>, vector<1x1x2x64xf32>,
    %170 = vector.extract_strided_slice %141 {offsets = [14, 0], sizes = [2, 64], strides = [1, 1]} : vector<16x64xf32> to vector<2x64xf32>
    %c3_163 = arith.constant 3 : index
    %c7_164 = arith.constant 7 : index
    %c0_165 = arith.constant 0 : index
    %c0_166 = arith.constant 0 : index
    %171 = vector.load %arg13[%c3_163, %c7_164, %c0_165, %c0_166] : memref<4x8x2x64xf32, #tpu.memory_space<vmem>>, vector<1x1x2x64xf32>
    %172 = vector.shape_cast %171 : vector<1x1x2x64xf32> to vector<2x64xf32>
    %173 = vector.shape_cast %170 : vector<2x64xf32> to vector<1x1x2x64xf32>
    tpu.vector_store %arg13[%c3_163, %c7_164, %c0_165, %c0_166], %173 {strides = array<i32>} : memref<4x8x2x64xf32, #tpu.memory_space<vmem>>, vector<1x1x2x64xf32>,
    %c0_167 = arith.constant 0 : index
    %c0_168 = arith.constant 0 : index
    %c0_169 = arith.constant 0 : index
    %174 = vector.load %arg4[%c0_167, %c0_168, %c0_169] : memref<4x64x64xf32, #tpu.memory_space<vmem>>, vector<1x64x64xf32>
    %175 = vector.shape_cast %174 : vector<1x64x64xf32> to vector<64x64xf32>
    %c1_170 = arith.constant 1 : index
    %c0_171 = arith.constant 0 : index
    %c0_172 = arith.constant 0 : index
    %176 = vector.load %arg4[%c1_170, %c0_171, %c0_172] : memref<4x64x64xf32, #tpu.memory_space<vmem>>, vector<1x64x64xf32>
    %177 = vector.shape_cast %176 : vector<1x64x64xf32> to vector<64x64xf32>
    %c2_173 = arith.constant 2 : index
    %c0_174 = arith.constant 0 : index
    %c0_175 = arith.constant 0 : index
    %178 = vector.load %arg4[%c2_173, %c0_174, %c0_175] : memref<4x64x64xf32, #tpu.memory_space<vmem>>, vector<1x64x64xf32>
    %179 = vector.shape_cast %178 : vector<1x64x64xf32> to vector<64x64xf32>
    %c3_176 = arith.constant 3 : index
    %c0_177 = arith.constant 0 : index
    %c0_178 = arith.constant 0 : index
    %180 = vector.load %arg4[%c3_176, %c0_177, %c0_178] : memref<4x64x64xf32, #tpu.memory_space<vmem>>, vector<1x64x64xf32>
    %181 = vector.shape_cast %180 : vector<1x64x64xf32> to vector<64x64xf32>
    %cst_179 = arith.constant 0.000000e+00 : f32
    %182 = vector.broadcast %cst_179 : f32 to vector<2x64xf32>
    %cst_180 = arith.constant 0.000000e+00 : f32
    %183 = vector.broadcast %cst_180 : f32 to vector<2x64xf32>
    %cst_181 = arith.constant dense<0.000000e+00> : vector<2x64xf32>
    %184 = tpu.matmul %182, %175, %cst_181 {dimension_numbers = #tpu.dot_dimension_numbers<[1], [0], [0], [1], [0, 0, 1, 1], [], []>} : vector<2x64xf32>, vector<64x64xf32>, vector<2x64xf32> -> vector<2x64xf32>
    %c0_182 = arith.constant 0 : index
    %c0_183 = arith.constant 0 : index
    %c0_184 = arith.constant 0 : index
    %c0_185 = arith.constant 0 : index
    %185 = vector.load %arg13[%c0_182, %c0_183, %c0_184, %c0_185] : memref<4x8x2x64xf32, #tpu.memory_space<vmem>>, vector<1x1x2x64xf32>
    %186 = vector.shape_cast %185 : vector<1x1x2x64xf32> to vector<2x64xf32>
    %187 = arith.addf %184, %186 : vector<2x64xf32>
    %188 = arith.negf %187 : vector<2x64xf32>
    %189 = math.exp %188 : vector<2x64xf32>
    %cst_186 = arith.constant 1.000000e+00 : f32
    %190 = vector.broadcast %cst_186 : f32 to vector<2x64xf32>
    %191 = arith.addf %190, %189 : vector<2x64xf32>
    %192 = arith.divf %190, %191 : vector<2x64xf32>
    %cst_187 = arith.constant dense<0.000000e+00> : vector<2x64xf32>
    %193 = tpu.matmul %182, %177, %cst_187 {dimension_numbers = #tpu.dot_dimension_numbers<[1], [0], [0], [1], [0, 0, 1, 1], [], []>} : vector<2x64xf32>, vector<64x64xf32>, vector<2x64xf32> -> vector<2x64xf32>
    %c1_188 = arith.constant 1 : index
    %c0_189 = arith.constant 0 : index
    %c0_190 = arith.constant 0 : index
    %c0_191 = arith.constant 0 : index
    %194 = vector.load %arg13[%c1_188, %c0_189, %c0_190, %c0_191] : memref<4x8x2x64xf32, #tpu.memory_space<vmem>>, vector<1x1x2x64xf32>
    %195 = vector.shape_cast %194 : vector<1x1x2x64xf32> to vector<2x64xf32>
    %196 = arith.addf %193, %195 : vector<2x64xf32>
    %197 = arith.negf %196 : vector<2x64xf32>
    %198 = math.exp %197 : vector<2x64xf32>
    %cst_192 = arith.constant 1.000000e+00 : f32
    %199 = vector.broadcast %cst_192 : f32 to vector<2x64xf32>
    %200 = arith.addf %199, %198 : vector<2x64xf32>
    %201 = arith.divf %199, %200 : vector<2x64xf32>
    %cst_193 = arith.constant dense<0.000000e+00> : vector<2x64xf32>
    %202 = tpu.matmul %182, %179, %cst_193 {dimension_numbers = #tpu.dot_dimension_numbers<[1], [0], [0], [1], [0, 0, 1, 1], [], []>} : vector<2x64xf32>, vector<64x64xf32>, vector<2x64xf32> -> vector<2x64xf32>
    %c2_194 = arith.constant 2 : index
    %c0_195 = arith.constant 0 : index
    %c0_196 = arith.constant 0 : index
    %c0_197 = arith.constant 0 : index
    %203 = vector.load %arg13[%c2_194, %c0_195, %c0_196, %c0_197] : memref<4x8x2x64xf32, #tpu.memory_space<vmem>>, vector<1x1x2x64xf32>
    %204 = vector.shape_cast %203 : vector<1x1x2x64xf32> to vector<2x64xf32>
    %205 = arith.addf %202, %204 : vector<2x64xf32>
    %206 = math.tanh %205 : vector<2x64xf32>
    %cst_198 = arith.constant dense<0.000000e+00> : vector<2x64xf32>
    %207 = tpu.matmul %182, %181, %cst_198 {dimension_numbers = #tpu.dot_dimension_numbers<[1], [0], [0], [1], [0, 0, 1, 1], [], []>} : vector<2x64xf32>, vector<64x64xf32>, vector<2x64xf32> -> vector<2x64xf32>
    %c3_199 = arith.constant 3 : index
    %c0_200 = arith.constant 0 : index
    %c0_201 = arith.constant 0 : index
    %c0_202 = arith.constant 0 : index
    %208 = vector.load %arg13[%c3_199, %c0_200, %c0_201, %c0_202] : memref<4x8x2x64xf32, #tpu.memory_space<vmem>>, vector<1x1x2x64xf32>
    %209 = vector.shape_cast %208 : vector<1x1x2x64xf32> to vector<2x64xf32>
    %210 = arith.addf %207, %209 : vector<2x64xf32>
    %211 = arith.negf %210 : vector<2x64xf32>
    %212 = math.exp %211 : vector<2x64xf32>
    %cst_203 = arith.constant 1.000000e+00 : f32
    %213 = vector.broadcast %cst_203 : f32 to vector<2x64xf32>
    %214 = arith.addf %213, %212 : vector<2x64xf32>
    %215 = arith.divf %213, %214 : vector<2x64xf32>
    %216 = arith.mulf %201, %183 : vector<2x64xf32>
    %217 = arith.mulf %192, %206 : vector<2x64xf32>
    %218 = arith.addf %216, %217 : vector<2x64xf32>
    %219 = math.tanh %218 : vector<2x64xf32>
    %220 = arith.mulf %215, %219 : vector<2x64xf32>
    %221 = vector.extract_strided_slice %220 {offsets = [0, 0], sizes = [2, 32], strides = [1, 1]} : vector<2x64xf32> to vector<2x32xf32>
    %c0_204 = arith.constant 0 : index
    %c0_205 = arith.constant 0 : index
    %c0_206 = arith.constant 0 : index
    %222 = vector.load %arg14[%c0_204, %c0_205, %c0_206] : memref<8x2x64xf32, #tpu.memory_space<vmem>>, vector<1x2x32xf32>
    %223 = vector.shape_cast %222 : vector<1x2x32xf32> to vector<2x32xf32>
    %224 = vector.shape_cast %221 : vector<2x32xf32> to vector<1x2x32xf32>
    tpu.vector_store %arg14[%c0_204, %c0_205, %c0_206], %224 {strides = array<i32>} : memref<8x2x64xf32, #tpu.memory_space<vmem>>, vector<1x2x32xf32>,
    %225 = vector.extract_strided_slice %220 {offsets = [0, 32], sizes = [2, 32], strides = [1, 1]} : vector<2x64xf32> to vector<2x32xf32>
    %c7_207 = arith.constant 7 : index
    %c0_208 = arith.constant 0 : index
    %c32 = arith.constant 32 : index
    %226 = vector.load %arg14[%c7_207, %c0_208, %c32] : memref<8x2x64xf32, #tpu.memory_space<vmem>>, vector<1x2x32xf32>
    %227 = vector.shape_cast %226 : vector<1x2x32xf32> to vector<2x32xf32>
    %228 = vector.shape_cast %225 : vector<2x32xf32> to vector<1x2x32xf32>
    tpu.vector_store %arg14[%c7_207, %c0_208, %c32], %228 {strides = array<i32>} : memref<8x2x64xf32, #tpu.memory_space<vmem>>, vector<1x2x32xf32>,
    %cst_209 = arith.constant dense<0.000000e+00> : vector<2x64xf32>
    %229 = tpu.matmul %220, %175, %cst_209 {dimension_numbers = #tpu.dot_dimension_numbers<[1], [0], [0], [1], [0, 0, 1, 1], [], []>} : vector<2x64xf32>, vector<64x64xf32>, vector<2x64xf32> -> vector<2x64xf32>
    %c0_210 = arith.constant 0 : index
    %c1_211 = arith.constant 1 : index
    %c0_212 = arith.constant 0 : index
    %c0_213 = arith.constant 0 : index
    %230 = vector.load %arg13[%c0_210, %c1_211, %c0_212, %c0_213] : memref<4x8x2x64xf32, #tpu.memory_space<vmem>>, vector<1x1x2x64xf32>
    %231 = vector.shape_cast %230 : vector<1x1x2x64xf32> to vector<2x64xf32>
    %232 = arith.addf %229, %231 : vector<2x64xf32>
    %233 = arith.negf %232 : vector<2x64xf32>
    %234 = math.exp %233 : vector<2x64xf32>
    %cst_214 = arith.constant 1.000000e+00 : f32
    %235 = vector.broadcast %cst_214 : f32 to vector<2x64xf32>
    %236 = arith.addf %235, %234 : vector<2x64xf32>
    %237 = arith.divf %235, %236 : vector<2x64xf32>
    %cst_215 = arith.constant dense<0.000000e+00> : vector<2x64xf32>
    %238 = tpu.matmul %220, %177, %cst_215 {dimension_numbers = #tpu.dot_dimension_numbers<[1], [0], [0], [1], [0, 0, 1, 1], [], []>} : vector<2x64xf32>, vector<64x64xf32>, vector<2x64xf32> -> vector<2x64xf32>
    %c1_216 = arith.constant 1 : index
    %c1_217 = arith.constant 1 : index
    %c0_218 = arith.constant 0 : index
    %c0_219 = arith.constant 0 : index
    %239 = vector.load %arg13[%c1_216, %c1_217, %c0_218, %c0_219] : memref<4x8x2x64xf32, #tpu.memory_space<vmem>>, vector<1x1x2x64xf32>
    %240 = vector.shape_cast %239 : vector<1x1x2x64xf32> to vector<2x64xf32>
    %241 = arith.addf %238, %240 : vector<2x64xf32>
    %242 = arith.negf %241 : vector<2x64xf32>
    %243 = math.exp %242 : vector<2x64xf32>
    %cst_220 = arith.constant 1.000000e+00 : f32
    %244 = vector.broadcast %cst_220 : f32 to vector<2x64xf32>
    %245 = arith.addf %244, %243 : vector<2x64xf32>
    %246 = arith.divf %244, %245 : vector<2x64xf32>
    %cst_221 = arith.constant dense<0.000000e+00> : vector<2x64xf32>
    %247 = tpu.matmul %220, %179, %cst_221 {dimension_numbers = #tpu.dot_dimension_numbers<[1], [0], [0], [1], [0, 0, 1, 1], [], []>} : vector<2x64xf32>, vector<64x64xf32>, vector<2x64xf32> -> vector<2x64xf32>
    %c2_222 = arith.constant 2 : index
    %c1_223 = arith.constant 1 : index
    %c0_224 = arith.constant 0 : index
    %c0_225 = arith.constant 0 : index
    %248 = vector.load %arg13[%c2_222, %c1_223, %c0_224, %c0_225] : memref<4x8x2x64xf32, #tpu.memory_space<vmem>>, vector<1x1x2x64xf32>
    %249 = vector.shape_cast %248 : vector<1x1x2x64xf32> to vector<2x64xf32>
    %250 = arith.addf %247, %249 : vector<2x64xf32>
    %251 = math.tanh %250 : vector<2x64xf32>
    %cst_226 = arith.constant dense<0.000000e+00> : vector<2x64xf32>
    %252 = tpu.matmul %220, %181, %cst_226 {dimension_numbers = #tpu.dot_dimension_numbers<[1], [0], [0], [1], [0, 0, 1, 1], [], []>} : vector<2x64xf32>, vector<64x64xf32>, vector<2x64xf32> -> vector<2x64xf32>
    %c3_227 = arith.constant 3 : index
    %c1_228 = arith.constant 1 : index
    %c0_229 = arith.constant 0 : index
    %c0_230 = arith.constant 0 : index
    %253 = vector.load %arg13[%c3_227, %c1_228, %c0_229, %c0_230] : memref<4x8x2x64xf32, #tpu.memory_space<vmem>>, vector<1x1x2x64xf32>
    %254 = vector.shape_cast %253 : vector<1x1x2x64xf32> to vector<2x64xf32>
    %255 = arith.addf %252, %254 : vector<2x64xf32>
    %256 = arith.negf %255 : vector<2x64xf32>
    %257 = math.exp %256 : vector<2x64xf32>
    %cst_231 = arith.constant 1.000000e+00 : f32
    %258 = vector.broadcast %cst_231 : f32 to vector<2x64xf32>
    %259 = arith.addf %258, %257 : vector<2x64xf32>
    %260 = arith.divf %258, %259 : vector<2x64xf32>
    %261 = arith.mulf %246, %218 : vector<2x64xf32>
    %262 = arith.mulf %237, %251 : vector<2x64xf32>
    %263 = arith.addf %261, %262 : vector<2x64xf32>
    %264 = math.tanh %263 : vector<2x64xf32>
    %265 = arith.mulf %260, %264 : vector<2x64xf32>
    %266 = vector.extract_strided_slice %265 {offsets = [0, 0], sizes = [2, 32], strides = [1, 1]} : vector<2x64xf32> to vector<2x32xf32>
    %c1_232 = arith.constant 1 : index
    %c0_233 = arith.constant 0 : index
    %c0_234 = arith.constant 0 : index
    %267 = vector.load %arg14[%c1_232, %c0_233, %c0_234] : memref<8x2x64xf32, #tpu.memory_space<vmem>>, vector<1x2x32xf32>
    %268 = vector.shape_cast %267 : vector<1x2x32xf32> to vector<2x32xf32>
    %269 = vector.shape_cast %266 : vector<2x32xf32> to vector<1x2x32xf32>
    tpu.vector_store %arg14[%c1_232, %c0_233, %c0_234], %269 {strides = array<i32>} : memref<8x2x64xf32, #tpu.memory_space<vmem>>, vector<1x2x32xf32>,
    %270 = vector.extract_strided_slice %265 {offsets = [0, 32], sizes = [2, 32], strides = [1, 1]} : vector<2x64xf32> to vector<2x32xf32>
    %c6_235 = arith.constant 6 : index
    %c0_236 = arith.constant 0 : index
    %c32_237 = arith.constant 32 : index
    %271 = vector.load %arg14[%c6_235, %c0_236, %c32_237] : memref<8x2x64xf32, #tpu.memory_space<vmem>>, vector<1x2x32xf32>
    %272 = vector.shape_cast %271 : vector<1x2x32xf32> to vector<2x32xf32>
    %273 = vector.shape_cast %270 : vector<2x32xf32> to vector<1x2x32xf32>
    tpu.vector_store %arg14[%c6_235, %c0_236, %c32_237], %273 {strides = array<i32>} : memref<8x2x64xf32, #tpu.memory_space<vmem>>, vector<1x2x32xf32>,
    %cst_238 = arith.constant dense<0.000000e+00> : vector<2x64xf32>
    %274 = tpu.matmul %265, %175, %cst_238 {dimension_numbers = #tpu.dot_dimension_numbers<[1], [0], [0], [1], [0, 0, 1, 1], [], []>} : vector<2x64xf32>, vector<64x64xf32>, vector<2x64xf32> -> vector<2x64xf32>
    %c0_239 = arith.constant 0 : index
    %c2_240 = arith.constant 2 : index
    %c0_241 = arith.constant 0 : index
    %c0_242 = arith.constant 0 : index
    %275 = vector.load %arg13[%c0_239, %c2_240, %c0_241, %c0_242] : memref<4x8x2x64xf32, #tpu.memory_space<vmem>>, vector<1x1x2x64xf32>
    %276 = vector.shape_cast %275 : vector<1x1x2x64xf32> to vector<2x64xf32>
    %277 = arith.addf %274, %276 : vector<2x64xf32>
    %278 = arith.negf %277 : vector<2x64xf32>
    %279 = math.exp %278 : vector<2x64xf32>
    %cst_243 = arith.constant 1.000000e+00 : f32
    %280 = vector.broadcast %cst_243 : f32 to vector<2x64xf32>
    %281 = arith.addf %280, %279 : vector<2x64xf32>
    %282 = arith.divf %280, %281 : vector<2x64xf32>
    %cst_244 = arith.constant dense<0.000000e+00> : vector<2x64xf32>
    %283 = tpu.matmul %265, %177, %cst_244 {dimension_numbers = #tpu.dot_dimension_numbers<[1], [0], [0], [1], [0, 0, 1, 1], [], []>} : vector<2x64xf32>, vector<64x64xf32>, vector<2x64xf32> -> vector<2x64xf32>
    %c1_245 = arith.constant 1 : index
    %c2_246 = arith.constant 2 : index
    %c0_247 = arith.constant 0 : index
    %c0_248 = arith.constant 0 : index
    %284 = vector.load %arg13[%c1_245, %c2_246, %c0_247, %c0_248] : memref<4x8x2x64xf32, #tpu.memory_space<vmem>>, vector<1x1x2x64xf32>
    %285 = vector.shape_cast %284 : vector<1x1x2x64xf32> to vector<2x64xf32>
    %286 = arith.addf %283, %285 : vector<2x64xf32>
    %287 = arith.negf %286 : vector<2x64xf32>
    %288 = math.exp %287 : vector<2x64xf32>
    %cst_249 = arith.constant 1.000000e+00 : f32
    %289 = vector.broadcast %cst_249 : f32 to vector<2x64xf32>
    %290 = arith.addf %289, %288 : vector<2x64xf32>
    %291 = arith.divf %289, %290 : vector<2x64xf32>
    %cst_250 = arith.constant dense<0.000000e+00> : vector<2x64xf32>
    %292 = tpu.matmul %265, %179, %cst_250 {dimension_numbers = #tpu.dot_dimension_numbers<[1], [0], [0], [1], [0, 0, 1, 1], [], []>} : vector<2x64xf32>, vector<64x64xf32>, vector<2x64xf32> -> vector<2x64xf32>
    %c2_251 = arith.constant 2 : index
    %c2_252 = arith.constant 2 : index
    %c0_253 = arith.constant 0 : index
    %c0_254 = arith.constant 0 : index
    %293 = vector.load %arg13[%c2_251, %c2_252, %c0_253, %c0_254] : memref<4x8x2x64xf32, #tpu.memory_space<vmem>>, vector<1x1x2x64xf32>
    %294 = vector.shape_cast %293 : vector<1x1x2x64xf32> to vector<2x64xf32>
    %295 = arith.addf %292, %294 : vector<2x64xf32>
    %296 = math.tanh %295 : vector<2x64xf32>
    %cst_255 = arith.constant dense<0.000000e+00> : vector<2x64xf32>
    %297 = tpu.matmul %265, %181, %cst_255 {dimension_numbers = #tpu.dot_dimension_numbers<[1], [0], [0], [1], [0, 0, 1, 1], [], []>} : vector<2x64xf32>, vector<64x64xf32>, vector<2x64xf32> -> vector<2x64xf32>
    %c3_256 = arith.constant 3 : index
    %c2_257 = arith.constant 2 : index
    %c0_258 = arith.constant 0 : index
    %c0_259 = arith.constant 0 : index
    %298 = vector.load %arg13[%c3_256, %c2_257, %c0_258, %c0_259] : memref<4x8x2x64xf32, #tpu.memory_space<vmem>>, vector<1x1x2x64xf32>
    %299 = vector.shape_cast %298 : vector<1x1x2x64xf32> to vector<2x64xf32>
    %300 = arith.addf %297, %299 : vector<2x64xf32>
    %301 = arith.negf %300 : vector<2x64xf32>
    %302 = math.exp %301 : vector<2x64xf32>
    %cst_260 = arith.constant 1.000000e+00 : f32
    %303 = vector.broadcast %cst_260 : f32 to vector<2x64xf32>
    %304 = arith.addf %303, %302 : vector<2x64xf32>
    %305 = arith.divf %303, %304 : vector<2x64xf32>
    %306 = arith.mulf %291, %263 : vector<2x64xf32>
    %307 = arith.mulf %282, %296 : vector<2x64xf32>
    %308 = arith.addf %306, %307 : vector<2x64xf32>
    %309 = math.tanh %308 : vector<2x64xf32>
    %310 = arith.mulf %305, %309 : vector<2x64xf32>
    %311 = vector.extract_strided_slice %310 {offsets = [0, 0], sizes = [2, 32], strides = [1, 1]} : vector<2x64xf32> to vector<2x32xf32>
    %c2_261 = arith.constant 2 : index
    %c0_262 = arith.constant 0 : index
    %c0_263 = arith.constant 0 : index
    %312 = vector.load %arg14[%c2_261, %c0_262, %c0_263] : memref<8x2x64xf32, #tpu.memory_space<vmem>>, vector<1x2x32xf32>
    %313 = vector.shape_cast %312 : vector<1x2x32xf32> to vector<2x32xf32>
    %314 = vector.shape_cast %311 : vector<2x32xf32> to vector<1x2x32xf32>
    tpu.vector_store %arg14[%c2_261, %c0_262, %c0_263], %314 {strides = array<i32>} : memref<8x2x64xf32, #tpu.memory_space<vmem>>, vector<1x2x32xf32>,
    %315 = vector.extract_strided_slice %310 {offsets = [0, 32], sizes = [2, 32], strides = [1, 1]} : vector<2x64xf32> to vector<2x32xf32>
    %c5_264 = arith.constant 5 : index
    %c0_265 = arith.constant 0 : index
    %c32_266 = arith.constant 32 : index
    %316 = vector.load %arg14[%c5_264, %c0_265, %c32_266] : memref<8x2x64xf32, #tpu.memory_space<vmem>>, vector<1x2x32xf32>
    %317 = vector.shape_cast %316 : vector<1x2x32xf32> to vector<2x32xf32>
    %318 = vector.shape_cast %315 : vector<2x32xf32> to vector<1x2x32xf32>
    tpu.vector_store %arg14[%c5_264, %c0_265, %c32_266], %318 {strides = array<i32>} : memref<8x2x64xf32, #tpu.memory_space<vmem>>, vector<1x2x32xf32>,
    %cst_267 = arith.constant dense<0.000000e+00> : vector<2x64xf32>
    %319 = tpu.matmul %310, %175, %cst_267 {dimension_numbers = #tpu.dot_dimension_numbers<[1], [0], [0], [1], [0, 0, 1, 1], [], []>} : vector<2x64xf32>, vector<64x64xf32>, vector<2x64xf32> -> vector<2x64xf32>
    %c0_268 = arith.constant 0 : index
    %c3_269 = arith.constant 3 : index
    %c0_270 = arith.constant 0 : index
    %c0_271 = arith.constant 0 : index
    %320 = vector.load %arg13[%c0_268, %c3_269, %c0_270, %c0_271] : memref<4x8x2x64xf32, #tpu.memory_space<vmem>>, vector<1x1x2x64xf32>
    %321 = vector.shape_cast %320 : vector<1x1x2x64xf32> to vector<2x64xf32>
    %322 = arith.addf %319, %321 : vector<2x64xf32>
    %323 = arith.negf %322 : vector<2x64xf32>
    %324 = math.exp %323 : vector<2x64xf32>
    %cst_272 = arith.constant 1.000000e+00 : f32
    %325 = vector.broadcast %cst_272 : f32 to vector<2x64xf32>
    %326 = arith.addf %325, %324 : vector<2x64xf32>
    %327 = arith.divf %325, %326 : vector<2x64xf32>
    %cst_273 = arith.constant dense<0.000000e+00> : vector<2x64xf32>
    %328 = tpu.matmul %310, %177, %cst_273 {dimension_numbers = #tpu.dot_dimension_numbers<[1], [0], [0], [1], [0, 0, 1, 1], [], []>} : vector<2x64xf32>, vector<64x64xf32>, vector<2x64xf32> -> vector<2x64xf32>
    %c1_274 = arith.constant 1 : index
    %c3_275 = arith.constant 3 : index
    %c0_276 = arith.constant 0 : index
    %c0_277 = arith.constant 0 : index
    %329 = vector.load %arg13[%c1_274, %c3_275, %c0_276, %c0_277] : memref<4x8x2x64xf32, #tpu.memory_space<vmem>>, vector<1x1x2x64xf32>
    %330 = vector.shape_cast %329 : vector<1x1x2x64xf32> to vector<2x64xf32>
    %331 = arith.addf %328, %330 : vector<2x64xf32>
    %332 = arith.negf %331 : vector<2x64xf32>
    %333 = math.exp %332 : vector<2x64xf32>
    %cst_278 = arith.constant 1.000000e+00 : f32
    %334 = vector.broadcast %cst_278 : f32 to vector<2x64xf32>
    %335 = arith.addf %334, %333 : vector<2x64xf32>
    %336 = arith.divf %334, %335 : vector<2x64xf32>
    %cst_279 = arith.constant dense<0.000000e+00> : vector<2x64xf32>
    %337 = tpu.matmul %310, %179, %cst_279 {dimension_numbers = #tpu.dot_dimension_numbers<[1], [0], [0], [1], [0, 0, 1, 1], [], []>} : vector<2x64xf32>, vector<64x64xf32>, vector<2x64xf32> -> vector<2x64xf32>
    %c2_280 = arith.constant 2 : index
    %c3_281 = arith.constant 3 : index
    %c0_282 = arith.constant 0 : index
    %c0_283 = arith.constant 0 : index
    %338 = vector.load %arg13[%c2_280, %c3_281, %c0_282, %c0_283] : memref<4x8x2x64xf32, #tpu.memory_space<vmem>>, vector<1x1x2x64xf32>
    %339 = vector.shape_cast %338 : vector<1x1x2x64xf32> to vector<2x64xf32>
    %340 = arith.addf %337, %339 : vector<2x64xf32>
    %341 = math.tanh %340 : vector<2x64xf32>
    %cst_284 = arith.constant dense<0.000000e+00> : vector<2x64xf32>
    %342 = tpu.matmul %310, %181, %cst_284 {dimension_numbers = #tpu.dot_dimension_numbers<[1], [0], [0], [1], [0, 0, 1, 1], [], []>} : vector<2x64xf32>, vector<64x64xf32>, vector<2x64xf32> -> vector<2x64xf32>
    %c3_285 = arith.constant 3 : index
    %c3_286 = arith.constant 3 : index
    %c0_287 = arith.constant 0 : index
    %c0_288 = arith.constant 0 : index
    %343 = vector.load %arg13[%c3_285, %c3_286, %c0_287, %c0_288] : memref<4x8x2x64xf32, #tpu.memory_space<vmem>>, vector<1x1x2x64xf32>
    %344 = vector.shape_cast %343 : vector<1x1x2x64xf32> to vector<2x64xf32>
    %345 = arith.addf %342, %344 : vector<2x64xf32>
    %346 = arith.negf %345 : vector<2x64xf32>
    %347 = math.exp %346 : vector<2x64xf32>
    %cst_289 = arith.constant 1.000000e+00 : f32
    %348 = vector.broadcast %cst_289 : f32 to vector<2x64xf32>
    %349 = arith.addf %348, %347 : vector<2x64xf32>
    %350 = arith.divf %348, %349 : vector<2x64xf32>
    %351 = arith.mulf %336, %308 : vector<2x64xf32>
    %352 = arith.mulf %327, %341 : vector<2x64xf32>
    %353 = arith.addf %351, %352 : vector<2x64xf32>
    %354 = math.tanh %353 : vector<2x64xf32>
    %355 = arith.mulf %350, %354 : vector<2x64xf32>
    %356 = vector.extract_strided_slice %355 {offsets = [0, 0], sizes = [2, 32], strides = [1, 1]} : vector<2x64xf32> to vector<2x32xf32>
    %c3_290 = arith.constant 3 : index
    %c0_291 = arith.constant 0 : index
    %c0_292 = arith.constant 0 : index
    %357 = vector.load %arg14[%c3_290, %c0_291, %c0_292] : memref<8x2x64xf32, #tpu.memory_space<vmem>>, vector<1x2x32xf32>
    %358 = vector.shape_cast %357 : vector<1x2x32xf32> to vector<2x32xf32>
    %359 = vector.shape_cast %356 : vector<2x32xf32> to vector<1x2x32xf32>
    tpu.vector_store %arg14[%c3_290, %c0_291, %c0_292], %359 {strides = array<i32>} : memref<8x2x64xf32, #tpu.memory_space<vmem>>, vector<1x2x32xf32>,
    %360 = vector.extract_strided_slice %355 {offsets = [0, 32], sizes = [2, 32], strides = [1, 1]} : vector<2x64xf32> to vector<2x32xf32>
    %c4_293 = arith.constant 4 : index
    %c0_294 = arith.constant 0 : index
    %c32_295 = arith.constant 32 : index
    %361 = vector.load %arg14[%c4_293, %c0_294, %c32_295] : memref<8x2x64xf32, #tpu.memory_space<vmem>>, vector<1x2x32xf32>
    %362 = vector.shape_cast %361 : vector<1x2x32xf32> to vector<2x32xf32>
    %363 = vector.shape_cast %360 : vector<2x32xf32> to vector<1x2x32xf32>
    tpu.vector_store %arg14[%c4_293, %c0_294, %c32_295], %363 {strides = array<i32>} : memref<8x2x64xf32, #tpu.memory_space<vmem>>, vector<1x2x32xf32>,
    %cst_296 = arith.constant dense<0.000000e+00> : vector<2x64xf32>
    %364 = tpu.matmul %355, %175, %cst_296 {dimension_numbers = #tpu.dot_dimension_numbers<[1], [0], [0], [1], [0, 0, 1, 1], [], []>} : vector<2x64xf32>, vector<64x64xf32>, vector<2x64xf32> -> vector<2x64xf32>
    %c0_297 = arith.constant 0 : index
    %c4_298 = arith.constant 4 : index
    %c0_299 = arith.constant 0 : index
    %c0_300 = arith.constant 0 : index
    %365 = vector.load %arg13[%c0_297, %c4_298, %c0_299, %c0_300] : memref<4x8x2x64xf32, #tpu.memory_space<vmem>>, vector<1x1x2x64xf32>
    %366 = vector.shape_cast %365 : vector<1x1x2x64xf32> to vector<2x64xf32>
    %367 = arith.addf %364, %366 : vector<2x64xf32>
    %368 = arith.negf %367 : vector<2x64xf32>
    %369 = math.exp %368 : vector<2x64xf32>
    %cst_301 = arith.constant 1.000000e+00 : f32
    %370 = vector.broadcast %cst_301 : f32 to vector<2x64xf32>
    %371 = arith.addf %370, %369 : vector<2x64xf32>
    %372 = arith.divf %370, %371 : vector<2x64xf32>
    %cst_302 = arith.constant dense<0.000000e+00> : vector<2x64xf32>
    %373 = tpu.matmul %355, %177, %cst_302 {dimension_numbers = #tpu.dot_dimension_numbers<[1], [0], [0], [1], [0, 0, 1, 1], [], []>} : vector<2x64xf32>, vector<64x64xf32>, vector<2x64xf32> -> vector<2x64xf32>
    %c1_303 = arith.constant 1 : index
    %c4_304 = arith.constant 4 : index
    %c0_305 = arith.constant 0 : index
    %c0_306 = arith.constant 0 : index
    %374 = vector.load %arg13[%c1_303, %c4_304, %c0_305, %c0_306] : memref<4x8x2x64xf32, #tpu.memory_space<vmem>>, vector<1x1x2x64xf32>
    %375 = vector.shape_cast %374 : vector<1x1x2x64xf32> to vector<2x64xf32>
    %376 = arith.addf %373, %375 : vector<2x64xf32>
    %377 = arith.negf %376 : vector<2x64xf32>
    %378 = math.exp %377 : vector<2x64xf32>
    %cst_307 = arith.constant 1.000000e+00 : f32
    %379 = vector.broadcast %cst_307 : f32 to vector<2x64xf32>
    %380 = arith.addf %379, %378 : vector<2x64xf32>
    %381 = arith.divf %379, %380 : vector<2x64xf32>
    %cst_308 = arith.constant dense<0.000000e+00> : vector<2x64xf32>
    %382 = tpu.matmul %355, %179, %cst_308 {dimension_numbers = #tpu.dot_dimension_numbers<[1], [0], [0], [1], [0, 0, 1, 1], [], []>} : vector<2x64xf32>, vector<64x64xf32>, vector<2x64xf32> -> vector<2x64xf32>
    %c2_309 = arith.constant 2 : index
    %c4_310 = arith.constant 4 : index
    %c0_311 = arith.constant 0 : index
    %c0_312 = arith.constant 0 : index
    %383 = vector.load %arg13[%c2_309, %c4_310, %c0_311, %c0_312] : memref<4x8x2x64xf32, #tpu.memory_space<vmem>>, vector<1x1x2x64xf32>
    %384 = vector.shape_cast %383 : vector<1x1x2x64xf32> to vector<2x64xf32>
    %385 = arith.addf %382, %384 : vector<2x64xf32>
    %386 = math.tanh %385 : vector<2x64xf32>
    %cst_313 = arith.constant dense<0.000000e+00> : vector<2x64xf32>
    %387 = tpu.matmul %355, %181, %cst_313 {dimension_numbers = #tpu.dot_dimension_numbers<[1], [0], [0], [1], [0, 0, 1, 1], [], []>} : vector<2x64xf32>, vector<64x64xf32>, vector<2x64xf32> -> vector<2x64xf32>
    %c3_314 = arith.constant 3 : index
    %c4_315 = arith.constant 4 : index
    %c0_316 = arith.constant 0 : index
    %c0_317 = arith.constant 0 : index
    %388 = vector.load %arg13[%c3_314, %c4_315, %c0_316, %c0_317] : memref<4x8x2x64xf32, #tpu.memory_space<vmem>>, vector<1x1x2x64xf32>
    %389 = vector.shape_cast %388 : vector<1x1x2x64xf32> to vector<2x64xf32>
    %390 = arith.addf %387, %389 : vector<2x64xf32>
    %391 = arith.negf %390 : vector<2x64xf32>
    %392 = math.exp %391 : vector<2x64xf32>
    %cst_318 = arith.constant 1.000000e+00 : f32
    %393 = vector.broadcast %cst_318 : f32 to vector<2x64xf32>
    %394 = arith.addf %393, %392 : vector<2x64xf32>
    %395 = arith.divf %393, %394 : vector<2x64xf32>
    %396 = arith.mulf %381, %353 : vector<2x64xf32>
    %397 = arith.mulf %372, %386 : vector<2x64xf32>
    %398 = arith.addf %396, %397 : vector<2x64xf32>
    %399 = math.tanh %398 : vector<2x64xf32>
    %400 = arith.mulf %395, %399 : vector<2x64xf32>
    %401 = vector.extract_strided_slice %400 {offsets = [0, 0], sizes = [2, 32], strides = [1, 1]} : vector<2x64xf32> to vector<2x32xf32>
    %c4_319 = arith.constant 4 : index
    %c0_320 = arith.constant 0 : index
    %c0_321 = arith.constant 0 : index
    %402 = vector.load %arg14[%c4_319, %c0_320, %c0_321] : memref<8x2x64xf32, #tpu.memory_space<vmem>>, vector<1x2x32xf32>
    %403 = vector.shape_cast %402 : vector<1x2x32xf32> to vector<2x32xf32>
    %404 = vector.shape_cast %401 : vector<2x32xf32> to vector<1x2x32xf32>
    tpu.vector_store %arg14[%c4_319, %c0_320, %c0_321], %404 {strides = array<i32>} : memref<8x2x64xf32, #tpu.memory_space<vmem>>, vector<1x2x32xf32>,
    %405 = vector.extract_strided_slice %400 {offsets = [0, 32], sizes = [2, 32], strides = [1, 1]} : vector<2x64xf32> to vector<2x32xf32>
    %c3_322 = arith.constant 3 : index
    %c0_323 = arith.constant 0 : index
    %c32_324 = arith.constant 32 : index
    %406 = vector.load %arg14[%c3_322, %c0_323, %c32_324] : memref<8x2x64xf32, #tpu.memory_space<vmem>>, vector<1x2x32xf32>
    %407 = vector.shape_cast %406 : vector<1x2x32xf32> to vector<2x32xf32>
    %408 = vector.shape_cast %405 : vector<2x32xf32> to vector<1x2x32xf32>
    tpu.vector_store %arg14[%c3_322, %c0_323, %c32_324], %408 {strides = array<i32>} : memref<8x2x64xf32, #tpu.memory_space<vmem>>, vector<1x2x32xf32>,
    %cst_325 = arith.constant dense<0.000000e+00> : vector<2x64xf32>
    %409 = tpu.matmul %400, %175, %cst_325 {dimension_numbers = #tpu.dot_dimension_numbers<[1], [0], [0], [1], [0, 0, 1, 1], [], []>} : vector<2x64xf32>, vector<64x64xf32>, vector<2x64xf32> -> vector<2x64xf32>
    %c0_326 = arith.constant 0 : index
    %c5_327 = arith.constant 5 : index
    %c0_328 = arith.constant 0 : index
    %c0_329 = arith.constant 0 : index
    %410 = vector.load %arg13[%c0_326, %c5_327, %c0_328, %c0_329] : memref<4x8x2x64xf32, #tpu.memory_space<vmem>>, vector<1x1x2x64xf32>
    %411 = vector.shape_cast %410 : vector<1x1x2x64xf32> to vector<2x64xf32>
    %412 = arith.addf %409, %411 : vector<2x64xf32>
    %413 = arith.negf %412 : vector<2x64xf32>
    %414 = math.exp %413 : vector<2x64xf32>
    %cst_330 = arith.constant 1.000000e+00 : f32
    %415 = vector.broadcast %cst_330 : f32 to vector<2x64xf32>
    %416 = arith.addf %415, %414 : vector<2x64xf32>
    %417 = arith.divf %415, %416 : vector<2x64xf32>
    %cst_331 = arith.constant dense<0.000000e+00> : vector<2x64xf32>
    %418 = tpu.matmul %400, %177, %cst_331 {dimension_numbers = #tpu.dot_dimension_numbers<[1], [0], [0], [1], [0, 0, 1, 1], [], []>} : vector<2x64xf32>, vector<64x64xf32>, vector<2x64xf32> -> vector<2x64xf32>
    %c1_332 = arith.constant 1 : index
    %c5_333 = arith.constant 5 : index
    %c0_334 = arith.constant 0 : index
    %c0_335 = arith.constant 0 : index
    %419 = vector.load %arg13[%c1_332, %c5_333, %c0_334, %c0_335] : memref<4x8x2x64xf32, #tpu.memory_space<vmem>>, vector<1x1x2x64xf32>
    %420 = vector.shape_cast %419 : vector<1x1x2x64xf32> to vector<2x64xf32>
    %421 = arith.addf %418, %420 : vector<2x64xf32>
    %422 = arith.negf %421 : vector<2x64xf32>
    %423 = math.exp %422 : vector<2x64xf32>
    %cst_336 = arith.constant 1.000000e+00 : f32
    %424 = vector.broadcast %cst_336 : f32 to vector<2x64xf32>
    %425 = arith.addf %424, %423 : vector<2x64xf32>
    %426 = arith.divf %424, %425 : vector<2x64xf32>
    %cst_337 = arith.constant dense<0.000000e+00> : vector<2x64xf32>
    %427 = tpu.matmul %400, %179, %cst_337 {dimension_numbers = #tpu.dot_dimension_numbers<[1], [0], [0], [1], [0, 0, 1, 1], [], []>} : vector<2x64xf32>, vector<64x64xf32>, vector<2x64xf32> -> vector<2x64xf32>
    %c2_338 = arith.constant 2 : index
    %c5_339 = arith.constant 5 : index
    %c0_340 = arith.constant 0 : index
    %c0_341 = arith.constant 0 : index
    %428 = vector.load %arg13[%c2_338, %c5_339, %c0_340, %c0_341] : memref<4x8x2x64xf32, #tpu.memory_space<vmem>>, vector<1x1x2x64xf32>
    %429 = vector.shape_cast %428 : vector<1x1x2x64xf32> to vector<2x64xf32>
    %430 = arith.addf %427, %429 : vector<2x64xf32>
    %431 = math.tanh %430 : vector<2x64xf32>
    %cst_342 = arith.constant dense<0.000000e+00> : vector<2x64xf32>
    %432 = tpu.matmul %400, %181, %cst_342 {dimension_numbers = #tpu.dot_dimension_numbers<[1], [0], [0], [1], [0, 0, 1, 1], [], []>} : vector<2x64xf32>, vector<64x64xf32>, vector<2x64xf32> -> vector<2x64xf32>
    %c3_343 = arith.constant 3 : index
    %c5_344 = arith.constant 5 : index
    %c0_345 = arith.constant 0 : index
    %c0_346 = arith.constant 0 : index
    %433 = vector.load %arg13[%c3_343, %c5_344, %c0_345, %c0_346] : memref<4x8x2x64xf32, #tpu.memory_space<vmem>>, vector<1x1x2x64xf32>
    %434 = vector.shape_cast %433 : vector<1x1x2x64xf32> to vector<2x64xf32>
    %435 = arith.addf %432, %434 : vector<2x64xf32>
    %436 = arith.negf %435 : vector<2x64xf32>
    %437 = math.exp %436 : vector<2x64xf32>
    %cst_347 = arith.constant 1.000000e+00 : f32
    %438 = vector.broadcast %cst_347 : f32 to vector<2x64xf32>
    %439 = arith.addf %438, %437 : vector<2x64xf32>
    %440 = arith.divf %438, %439 : vector<2x64xf32>
    %441 = arith.mulf %426, %398 : vector<2x64xf32>
    %442 = arith.mulf %417, %431 : vector<2x64xf32>
    %443 = arith.addf %441, %442 : vector<2x64xf32>
    %444 = math.tanh %443 : vector<2x64xf32>
    %445 = arith.mulf %440, %444 : vector<2x64xf32>
    %446 = vector.extract_strided_slice %445 {offsets = [0, 0], sizes = [2, 32], strides = [1, 1]} : vector<2x64xf32> to vector<2x32xf32>
    %c5_348 = arith.constant 5 : index
    %c0_349 = arith.constant 0 : index
    %c0_350 = arith.constant 0 : index
    %447 = vector.load %arg14[%c5_348, %c0_349, %c0_350] : memref<8x2x64xf32, #tpu.memory_space<vmem>>, vector<1x2x32xf32>
    %448 = vector.shape_cast %447 : vector<1x2x32xf32> to vector<2x32xf32>
    %449 = vector.shape_cast %446 : vector<2x32xf32> to vector<1x2x32xf32>
    tpu.vector_store %arg14[%c5_348, %c0_349, %c0_350], %449 {strides = array<i32>} : memref<8x2x64xf32, #tpu.memory_space<vmem>>, vector<1x2x32xf32>,
    %450 = vector.extract_strided_slice %445 {offsets = [0, 32], sizes = [2, 32], strides = [1, 1]} : vector<2x64xf32> to vector<2x32xf32>
    %c2_351 = arith.constant 2 : index
    %c0_352 = arith.constant 0 : index
    %c32_353 = arith.constant 32 : index
    %451 = vector.load %arg14[%c2_351, %c0_352, %c32_353] : memref<8x2x64xf32, #tpu.memory_space<vmem>>, vector<1x2x32xf32>
    %452 = vector.shape_cast %451 : vector<1x2x32xf32> to vector<2x32xf32>
    %453 = vector.shape_cast %450 : vector<2x32xf32> to vector<1x2x32xf32>
    tpu.vector_store %arg14[%c2_351, %c0_352, %c32_353], %453 {strides = array<i32>} : memref<8x2x64xf32, #tpu.memory_space<vmem>>, vector<1x2x32xf32>,
    %cst_354 = arith.constant dense<0.000000e+00> : vector<2x64xf32>
    %454 = tpu.matmul %445, %175, %cst_354 {dimension_numbers = #tpu.dot_dimension_numbers<[1], [0], [0], [1], [0, 0, 1, 1], [], []>} : vector<2x64xf32>, vector<64x64xf32>, vector<2x64xf32> -> vector<2x64xf32>
    %c0_355 = arith.constant 0 : index
    %c6_356 = arith.constant 6 : index
    %c0_357 = arith.constant 0 : index
    %c0_358 = arith.constant 0 : index
    %455 = vector.load %arg13[%c0_355, %c6_356, %c0_357, %c0_358] : memref<4x8x2x64xf32, #tpu.memory_space<vmem>>, vector<1x1x2x64xf32>
    %456 = vector.shape_cast %455 : vector<1x1x2x64xf32> to vector<2x64xf32>
    %457 = arith.addf %454, %456 : vector<2x64xf32>
    %458 = arith.negf %457 : vector<2x64xf32>
    %459 = math.exp %458 : vector<2x64xf32>
    %cst_359 = arith.constant 1.000000e+00 : f32
    %460 = vector.broadcast %cst_359 : f32 to vector<2x64xf32>
    %461 = arith.addf %460, %459 : vector<2x64xf32>
    %462 = arith.divf %460, %461 : vector<2x64xf32>
    %cst_360 = arith.constant dense<0.000000e+00> : vector<2x64xf32>
    %463 = tpu.matmul %445, %177, %cst_360 {dimension_numbers = #tpu.dot_dimension_numbers<[1], [0], [0], [1], [0, 0, 1, 1], [], []>} : vector<2x64xf32>, vector<64x64xf32>, vector<2x64xf32> -> vector<2x64xf32>
    %c1_361 = arith.constant 1 : index
    %c6_362 = arith.constant 6 : index
    %c0_363 = arith.constant 0 : index
    %c0_364 = arith.constant 0 : index
    %464 = vector.load %arg13[%c1_361, %c6_362, %c0_363, %c0_364] : memref<4x8x2x64xf32, #tpu.memory_space<vmem>>, vector<1x1x2x64xf32>
    %465 = vector.shape_cast %464 : vector<1x1x2x64xf32> to vector<2x64xf32>
    %466 = arith.addf %463, %465 : vector<2x64xf32>
    %467 = arith.negf %466 : vector<2x64xf32>
    %468 = math.exp %467 : vector<2x64xf32>
    %cst_365 = arith.constant 1.000000e+00 : f32
    %469 = vector.broadcast %cst_365 : f32 to vector<2x64xf32>
    %470 = arith.addf %469, %468 : vector<2x64xf32>
    %471 = arith.divf %469, %470 : vector<2x64xf32>
    %cst_366 = arith.constant dense<0.000000e+00> : vector<2x64xf32>
    %472 = tpu.matmul %445, %179, %cst_366 {dimension_numbers = #tpu.dot_dimension_numbers<[1], [0], [0], [1], [0, 0, 1, 1], [], []>} : vector<2x64xf32>, vector<64x64xf32>, vector<2x64xf32> -> vector<2x64xf32>
    %c2_367 = arith.constant 2 : index
    %c6_368 = arith.constant 6 : index
    %c0_369 = arith.constant 0 : index
    %c0_370 = arith.constant 0 : index
    %473 = vector.load %arg13[%c2_367, %c6_368, %c0_369, %c0_370] : memref<4x8x2x64xf32, #tpu.memory_space<vmem>>, vector<1x1x2x64xf32>
    %474 = vector.shape_cast %473 : vector<1x1x2x64xf32> to vector<2x64xf32>
    %475 = arith.addf %472, %474 : vector<2x64xf32>
    %476 = math.tanh %475 : vector<2x64xf32>
    %cst_371 = arith.constant dense<0.000000e+00> : vector<2x64xf32>
    %477 = tpu.matmul %445, %181, %cst_371 {dimension_numbers = #tpu.dot_dimension_numbers<[1], [0], [0], [1], [0, 0, 1, 1], [], []>} : vector<2x64xf32>, vector<64x64xf32>, vector<2x64xf32> -> vector<2x64xf32>
    %c3_372 = arith.constant 3 : index
    %c6_373 = arith.constant 6 : index
    %c0_374 = arith.constant 0 : index
    %c0_375 = arith.constant 0 : index
    %478 = vector.load %arg13[%c3_372, %c6_373, %c0_374, %c0_375] : memref<4x8x2x64xf32, #tpu.memory_space<vmem>>, vector<1x1x2x64xf32>
    %479 = vector.shape_cast %478 : vector<1x1x2x64xf32> to vector<2x64xf32>
    %480 = arith.addf %477, %479 : vector<2x64xf32>
    %481 = arith.negf %480 : vector<2x64xf32>
    %482 = math.exp %481 : vector<2x64xf32>
    %cst_376 = arith.constant 1.000000e+00 : f32
    %483 = vector.broadcast %cst_376 : f32 to vector<2x64xf32>
    %484 = arith.addf %483, %482 : vector<2x64xf32>
    %485 = arith.divf %483, %484 : vector<2x64xf32>
    %486 = arith.mulf %471, %443 : vector<2x64xf32>
    %487 = arith.mulf %462, %476 : vector<2x64xf32>
    %488 = arith.addf %486, %487 : vector<2x64xf32>
    %489 = math.tanh %488 : vector<2x64xf32>
    %490 = arith.mulf %485, %489 : vector<2x64xf32>
    %491 = vector.extract_strided_slice %490 {offsets = [0, 0], sizes = [2, 32], strides = [1, 1]} : vector<2x64xf32> to vector<2x32xf32>
    %c6_377 = arith.constant 6 : index
    %c0_378 = arith.constant 0 : index
    %c0_379 = arith.constant 0 : index
    %492 = vector.load %arg14[%c6_377, %c0_378, %c0_379] : memref<8x2x64xf32, #tpu.memory_space<vmem>>, vector<1x2x32xf32>
    %493 = vector.shape_cast %492 : vector<1x2x32xf32> to vector<2x32xf32>
    %494 = vector.shape_cast %491 : vector<2x32xf32> to vector<1x2x32xf32>
    tpu.vector_store %arg14[%c6_377, %c0_378, %c0_379], %494 {strides = array<i32>} : memref<8x2x64xf32, #tpu.memory_space<vmem>>, vector<1x2x32xf32>,
    %495 = vector.extract_strided_slice %490 {offsets = [0, 32], sizes = [2, 32], strides = [1, 1]} : vector<2x64xf32> to vector<2x32xf32>
    %c1_380 = arith.constant 1 : index
    %c0_381 = arith.constant 0 : index
    %c32_382 = arith.constant 32 : index
    %496 = vector.load %arg14[%c1_380, %c0_381, %c32_382] : memref<8x2x64xf32, #tpu.memory_space<vmem>>, vector<1x2x32xf32>
    %497 = vector.shape_cast %496 : vector<1x2x32xf32> to vector<2x32xf32>
    %498 = vector.shape_cast %495 : vector<2x32xf32> to vector<1x2x32xf32>
    tpu.vector_store %arg14[%c1_380, %c0_381, %c32_382], %498 {strides = array<i32>} : memref<8x2x64xf32, #tpu.memory_space<vmem>>, vector<1x2x32xf32>,
    %cst_383 = arith.constant dense<0.000000e+00> : vector<2x64xf32>
    %499 = tpu.matmul %490, %175, %cst_383 {dimension_numbers = #tpu.dot_dimension_numbers<[1], [0], [0], [1], [0, 0, 1, 1], [], []>} : vector<2x64xf32>, vector<64x64xf32>, vector<2x64xf32> -> vector<2x64xf32>
    %c0_384 = arith.constant 0 : index
    %c7_385 = arith.constant 7 : index
    %c0_386 = arith.constant 0 : index
    %c0_387 = arith.constant 0 : index
    %500 = vector.load %arg13[%c0_384, %c7_385, %c0_386, %c0_387] : memref<4x8x2x64xf32, #tpu.memory_space<vmem>>, vector<1x1x2x64xf32>
    %501 = vector.shape_cast %500 : vector<1x1x2x64xf32> to vector<2x64xf32>
    %502 = arith.addf %499, %501 : vector<2x64xf32>
    %503 = arith.negf %502 : vector<2x64xf32>
    %504 = math.exp %503 : vector<2x64xf32>
    %cst_388 = arith.constant 1.000000e+00 : f32
    %505 = vector.broadcast %cst_388 : f32 to vector<2x64xf32>
    %506 = arith.addf %505, %504 : vector<2x64xf32>
    %507 = arith.divf %505, %506 : vector<2x64xf32>
    %cst_389 = arith.constant dense<0.000000e+00> : vector<2x64xf32>
    %508 = tpu.matmul %490, %177, %cst_389 {dimension_numbers = #tpu.dot_dimension_numbers<[1], [0], [0], [1], [0, 0, 1, 1], [], []>} : vector<2x64xf32>, vector<64x64xf32>, vector<2x64xf32> -> vector<2x64xf32>
    %c1_390 = arith.constant 1 : index
    %c7_391 = arith.constant 7 : index
    %c0_392 = arith.constant 0 : index
    %c0_393 = arith.constant 0 : index
    %509 = vector.load %arg13[%c1_390, %c7_391, %c0_392, %c0_393] : memref<4x8x2x64xf32, #tpu.memory_space<vmem>>, vector<1x1x2x64xf32>
    %510 = vector.shape_cast %509 : vector<1x1x2x64xf32> to vector<2x64xf32>
    %511 = arith.addf %508, %510 : vector<2x64xf32>
    %512 = arith.negf %511 : vector<2x64xf32>
    %513 = math.exp %512 : vector<2x64xf32>
    %cst_394 = arith.constant 1.000000e+00 : f32
    %514 = vector.broadcast %cst_394 : f32 to vector<2x64xf32>
    %515 = arith.addf %514, %513 : vector<2x64xf32>
    %516 = arith.divf %514, %515 : vector<2x64xf32>
    %cst_395 = arith.constant dense<0.000000e+00> : vector<2x64xf32>
    %517 = tpu.matmul %490, %179, %cst_395 {dimension_numbers = #tpu.dot_dimension_numbers<[1], [0], [0], [1], [0, 0, 1, 1], [], []>} : vector<2x64xf32>, vector<64x64xf32>, vector<2x64xf32> -> vector<2x64xf32>
    %c2_396 = arith.constant 2 : index
    %c7_397 = arith.constant 7 : index
    %c0_398 = arith.constant 0 : index
    %c0_399 = arith.constant 0 : index
    %518 = vector.load %arg13[%c2_396, %c7_397, %c0_398, %c0_399] : memref<4x8x2x64xf32, #tpu.memory_space<vmem>>, vector<1x1x2x64xf32>
    %519 = vector.shape_cast %518 : vector<1x1x2x64xf32> to vector<2x64xf32>
    %520 = arith.addf %517, %519 : vector<2x64xf32>
    %521 = math.tanh %520 : vector<2x64xf32>
    %cst_400 = arith.constant dense<0.000000e+00> : vector<2x64xf32>
    %522 = tpu.matmul %490, %181, %cst_400 {dimension_numbers = #tpu.dot_dimension_numbers<[1], [0], [0], [1], [0, 0, 1, 1], [], []>} : vector<2x64xf32>, vector<64x64xf32>, vector<2x64xf32> -> vector<2x64xf32>
    %c3_401 = arith.constant 3 : index
    %c7_402 = arith.constant 7 : index
    %c0_403 = arith.constant 0 : index
    %c0_404 = arith.constant 0 : index
    %523 = vector.load %arg13[%c3_401, %c7_402, %c0_403, %c0_404] : memref<4x8x2x64xf32, #tpu.memory_space<vmem>>, vector<1x1x2x64xf32>
    %524 = vector.shape_cast %523 : vector<1x1x2x64xf32> to vector<2x64xf32>
    %525 = arith.addf %522, %524 : vector<2x64xf32>
    %526 = arith.negf %525 : vector<2x64xf32>
    %527 = math.exp %526 : vector<2x64xf32>
    %cst_405 = arith.constant 1.000000e+00 : f32
    %528 = vector.broadcast %cst_405 : f32 to vector<2x64xf32>
    %529 = arith.addf %528, %527 : vector<2x64xf32>
    %530 = arith.divf %528, %529 : vector<2x64xf32>
    %531 = arith.mulf %516, %488 : vector<2x64xf32>
    %532 = arith.mulf %507, %521 : vector<2x64xf32>
    %533 = arith.addf %531, %532 : vector<2x64xf32>
    %534 = math.tanh %533 : vector<2x64xf32>
    %535 = arith.mulf %530, %534 : vector<2x64xf32>
    %536 = vector.extract_strided_slice %535 {offsets = [0, 0], sizes = [2, 32], strides = [1, 1]} : vector<2x64xf32> to vector<2x32xf32>
    %c7_406 = arith.constant 7 : index
    %c0_407 = arith.constant 0 : index
    %c0_408 = arith.constant 0 : index
    %537 = vector.load %arg14[%c7_406, %c0_407, %c0_408] : memref<8x2x64xf32, #tpu.memory_space<vmem>>, vector<1x2x32xf32>
    %538 = vector.shape_cast %537 : vector<1x2x32xf32> to vector<2x32xf32>
    %539 = vector.shape_cast %536 : vector<2x32xf32> to vector<1x2x32xf32>
    tpu.vector_store %arg14[%c7_406, %c0_407, %c0_408], %539 {strides = array<i32>} : memref<8x2x64xf32, #tpu.memory_space<vmem>>, vector<1x2x32xf32>,
    %540 = vector.extract_strided_slice %535 {offsets = [0, 32], sizes = [2, 32], strides = [1, 1]} : vector<2x64xf32> to vector<2x32xf32>
    %c0_409 = arith.constant 0 : index
    %c0_410 = arith.constant 0 : index
    %c32_411 = arith.constant 32 : index
    %541 = vector.load %arg14[%c0_409, %c0_410, %c32_411] : memref<8x2x64xf32, #tpu.memory_space<vmem>>, vector<1x2x32xf32>
    %542 = vector.shape_cast %541 : vector<1x2x32xf32> to vector<2x32xf32>
    %543 = vector.shape_cast %540 : vector<2x32xf32> to vector<1x2x32xf32>
    tpu.vector_store %arg14[%c0_409, %c0_410, %c32_411], %543 {strides = array<i32>} : memref<8x2x64xf32, #tpu.memory_space<vmem>>, vector<1x2x32xf32>,
    %c0_412 = arith.constant 0 : index
    %c0_413 = arith.constant 0 : index
    %c0_414 = arith.constant 0 : index
    %544 = vector.load %arg14[%c0_412, %c0_413, %c0_414] : memref<8x2x64xf32, #tpu.memory_space<vmem>>, vector<1x2x64xf32>
    %545 = vector.shape_cast %544 : vector<1x2x64xf32> to vector<2x64xf32>
    %c0_415 = arith.constant 0 : index
    %c0_416 = arith.constant 0 : index
    %546 = vector.load %arg15[%c0_415, %c0_416] : memref<16x64xf32, #tpu.memory_space<vmem>>, vector<2x64xf32>
    tpu.vector_store %arg15[%c0_415, %c0_416], %545 {strides = array<i32>} : memref<16x64xf32, #tpu.memory_space<vmem>>, vector<2x64xf32>,
    %c14 = arith.constant 14 : index
    %c0_417 = arith.constant 0 : index
    %547 = vector.load %arg16[%c14, %c0_417] : memref<16x64xf32, #tpu.memory_space<vmem>>, vector<2x64xf32>
    tpu.vector_store %arg16[%c14, %c0_417], %545 {strides = array<i32>} : memref<16x64xf32, #tpu.memory_space<vmem>>, vector<2x64xf32>,
    %c1_418 = arith.constant 1 : index
    %c0_419 = arith.constant 0 : index
    %c0_420 = arith.constant 0 : index
    %548 = vector.load %arg14[%c1_418, %c0_419, %c0_420] : memref<8x2x64xf32, #tpu.memory_space<vmem>>, vector<1x2x64xf32>
    %549 = vector.shape_cast %548 : vector<1x2x64xf32> to vector<2x64xf32>
    %c2_421 = arith.constant 2 : index
    %c0_422 = arith.constant 0 : index
    %550 = vector.load %arg15[%c2_421, %c0_422] : memref<16x64xf32, #tpu.memory_space<vmem>>, vector<2x64xf32>
    tpu.vector_store %arg15[%c2_421, %c0_422], %549 {strides = array<i32>} : memref<16x64xf32, #tpu.memory_space<vmem>>, vector<2x64xf32>,
    %c12 = arith.constant 12 : index
    %c0_423 = arith.constant 0 : index
    %551 = vector.load %arg16[%c12, %c0_423] : memref<16x64xf32, #tpu.memory_space<vmem>>, vector<2x64xf32>
    tpu.vector_store %arg16[%c12, %c0_423], %549 {strides = array<i32>} : memref<16x64xf32, #tpu.memory_space<vmem>>, vector<2x64xf32>,
    %c2_424 = arith.constant 2 : index
    %c0_425 = arith.constant 0 : index
    %c0_426 = arith.constant 0 : index
    %552 = vector.load %arg14[%c2_424, %c0_425, %c0_426] : memref<8x2x64xf32, #tpu.memory_space<vmem>>, vector<1x2x64xf32>
    %553 = vector.shape_cast %552 : vector<1x2x64xf32> to vector<2x64xf32>
    %c4_427 = arith.constant 4 : index
    %c0_428 = arith.constant 0 : index
    %554 = vector.load %arg15[%c4_427, %c0_428] : memref<16x64xf32, #tpu.memory_space<vmem>>, vector<2x64xf32>
    tpu.vector_store %arg15[%c4_427, %c0_428], %553 {strides = array<i32>} : memref<16x64xf32, #tpu.memory_space<vmem>>, vector<2x64xf32>,
    %c10 = arith.constant 10 : index
    %c0_429 = arith.constant 0 : index
    %555 = vector.load %arg16[%c10, %c0_429] : memref<16x64xf32, #tpu.memory_space<vmem>>, vector<2x64xf32>
    tpu.vector_store %arg16[%c10, %c0_429], %553 {strides = array<i32>} : memref<16x64xf32, #tpu.memory_space<vmem>>, vector<2x64xf32>,
    %c3_430 = arith.constant 3 : index
    %c0_431 = arith.constant 0 : index
    %c0_432 = arith.constant 0 : index
    %556 = vector.load %arg14[%c3_430, %c0_431, %c0_432] : memref<8x2x64xf32, #tpu.memory_space<vmem>>, vector<1x2x64xf32>
    %557 = vector.shape_cast %556 : vector<1x2x64xf32> to vector<2x64xf32>
    %c6_433 = arith.constant 6 : index
    %c0_434 = arith.constant 0 : index
    %558 = vector.load %arg15[%c6_433, %c0_434] : memref<16x64xf32, #tpu.memory_space<vmem>>, vector<2x64xf32>
    tpu.vector_store %arg15[%c6_433, %c0_434], %557 {strides = array<i32>} : memref<16x64xf32, #tpu.memory_space<vmem>>, vector<2x64xf32>,
    %c8 = arith.constant 8 : index
    %c0_435 = arith.constant 0 : index
    %559 = vector.load %arg16[%c8, %c0_435] : memref<16x64xf32, #tpu.memory_space<vmem>>, vector<2x64xf32>
    tpu.vector_store %arg16[%c8, %c0_435], %557 {strides = array<i32>} : memref<16x64xf32, #tpu.memory_space<vmem>>, vector<2x64xf32>,
    %c4_436 = arith.constant 4 : index
    %c0_437 = arith.constant 0 : index
    %c0_438 = arith.constant 0 : index
    %560 = vector.load %arg14[%c4_436, %c0_437, %c0_438] : memref<8x2x64xf32, #tpu.memory_space<vmem>>, vector<1x2x64xf32>
    %561 = vector.shape_cast %560 : vector<1x2x64xf32> to vector<2x64xf32>
    %c8_439 = arith.constant 8 : index
    %c0_440 = arith.constant 0 : index
    %562 = vector.load %arg15[%c8_439, %c0_440] : memref<16x64xf32, #tpu.memory_space<vmem>>, vector<2x64xf32>
    tpu.vector_store %arg15[%c8_439, %c0_440], %561 {strides = array<i32>} : memref<16x64xf32, #tpu.memory_space<vmem>>, vector<2x64xf32>,
    %c6_441 = arith.constant 6 : index
    %c0_442 = arith.constant 0 : index
    %563 = vector.load %arg16[%c6_441, %c0_442] : memref<16x64xf32, #tpu.memory_space<vmem>>, vector<2x64xf32>
    tpu.vector_store %arg16[%c6_441, %c0_442], %561 {strides = array<i32>} : memref<16x64xf32, #tpu.memory_space<vmem>>, vector<2x64xf32>,
    %c5_443 = arith.constant 5 : index
    %c0_444 = arith.constant 0 : index
    %c0_445 = arith.constant 0 : index
    %564 = vector.load %arg14[%c5_443, %c0_444, %c0_445] : memref<8x2x64xf32, #tpu.memory_space<vmem>>, vector<1x2x64xf32>
    %565 = vector.shape_cast %564 : vector<1x2x64xf32> to vector<2x64xf32>
    %c10_446 = arith.constant 10 : index
    %c0_447 = arith.constant 0 : index
    %566 = vector.load %arg15[%c10_446, %c0_447] : memref<16x64xf32, #tpu.memory_space<vmem>>, vector<2x64xf32>
    tpu.vector_store %arg15[%c10_446, %c0_447], %565 {strides = array<i32>} : memref<16x64xf32, #tpu.memory_space<vmem>>, vector<2x64xf32>,
    %c4_448 = arith.constant 4 : index
    %c0_449 = arith.constant 0 : index
    %567 = vector.load %arg16[%c4_448, %c0_449] : memref<16x64xf32, #tpu.memory_space<vmem>>, vector<2x64xf32>
    tpu.vector_store %arg16[%c4_448, %c0_449], %565 {strides = array<i32>} : memref<16x64xf32, #tpu.memory_space<vmem>>, vector<2x64xf32>,
    %c6_450 = arith.constant 6 : index
    %c0_451 = arith.constant 0 : index
    %c0_452 = arith.constant 0 : index
    %568 = vector.load %arg14[%c6_450, %c0_451, %c0_452] : memref<8x2x64xf32, #tpu.memory_space<vmem>>, vector<1x2x64xf32>
    %569 = vector.shape_cast %568 : vector<1x2x64xf32> to vector<2x64xf32>
    %c12_453 = arith.constant 12 : index
    %c0_454 = arith.constant 0 : index
    %570 = vector.load %arg15[%c12_453, %c0_454] : memref<16x64xf32, #tpu.memory_space<vmem>>, vector<2x64xf32>
    tpu.vector_store %arg15[%c12_453, %c0_454], %569 {strides = array<i32>} : memref<16x64xf32, #tpu.memory_space<vmem>>, vector<2x64xf32>,
    %c2_455 = arith.constant 2 : index
    %c0_456 = arith.constant 0 : index
    %571 = vector.load %arg16[%c2_455, %c0_456] : memref<16x64xf32, #tpu.memory_space<vmem>>, vector<2x64xf32>
    tpu.vector_store %arg16[%c2_455, %c0_456], %569 {strides = array<i32>} : memref<16x64xf32, #tpu.memory_space<vmem>>, vector<2x64xf32>,
    %c7_457 = arith.constant 7 : index
    %c0_458 = arith.constant 0 : index
    %c0_459 = arith.constant 0 : index
    %572 = vector.load %arg14[%c7_457, %c0_458, %c0_459] : memref<8x2x64xf32, #tpu.memory_space<vmem>>, vector<1x2x64xf32>
    %573 = vector.shape_cast %572 : vector<1x2x64xf32> to vector<2x64xf32>
    %c14_460 = arith.constant 14 : index
    %c0_461 = arith.constant 0 : index
    %574 = vector.load %arg15[%c14_460, %c0_461] : memref<16x64xf32, #tpu.memory_space<vmem>>, vector<2x64xf32>
    tpu.vector_store %arg15[%c14_460, %c0_461], %573 {strides = array<i32>} : memref<16x64xf32, #tpu.memory_space<vmem>>, vector<2x64xf32>,
    %c0_462 = arith.constant 0 : index
    %c0_463 = arith.constant 0 : index
    %575 = vector.load %arg16[%c0_462, %c0_463] : memref<16x64xf32, #tpu.memory_space<vmem>>, vector<2x64xf32>
    tpu.vector_store %arg16[%c0_462, %c0_463], %573 {strides = array<i32>} : memref<16x64xf32, #tpu.memory_space<vmem>>, vector<2x64xf32>,
    %c0_464 = arith.constant 0 : index
    %c0_465 = arith.constant 0 : index
    %576 = vector.load %arg15[%c0_464, %c0_465] : memref<16x64xf32, #tpu.memory_space<vmem>>, vector<16x64xf32>
    %c0_466 = arith.constant 0 : index
    %c0_467 = arith.constant 0 : index
    %577 = vector.load %arg16[%c0_466, %c0_467] : memref<16x64xf32, #tpu.memory_space<vmem>>, vector<16x64xf32>
    %c0_468 = arith.constant 0 : index
    %c0_469 = arith.constant 0 : index
    %c0_470 = arith.constant 0 : index
    %578 = vector.load %arg6[%c0_468, %c0_469, %c0_470] : memref<4x64x64xf32, #tpu.memory_space<vmem>>, vector<1x64x64xf32>
    %579 = vector.shape_cast %578 : vector<1x64x64xf32> to vector<64x64xf32>
    %cst_471 = arith.constant dense<0.000000e+00> : vector<16x64xf32>
    %580 = tpu.matmul %576, %579, %cst_471 {dimension_numbers = #tpu.dot_dimension_numbers<[1], [0], [0], [1], [0, 0, 1, 1], [], []>} : vector<16x64xf32>, vector<64x64xf32>, vector<16x64xf32> -> vector<16x64xf32>
    %c0_472 = arith.constant 0 : index
    %c0_473 = arith.constant 0 : index
    %c0_474 = arith.constant 0 : index
    %581 = vector.load %arg7[%c0_472, %c0_473, %c0_474] : memref<4x64x64xf32, #tpu.memory_space<vmem>>, vector<1x64x64xf32>
    %582 = vector.shape_cast %581 : vector<1x64x64xf32> to vector<64x64xf32>
    %cst_475 = arith.constant dense<0.000000e+00> : vector<16x64xf32>
    %583 = tpu.matmul %577, %582, %cst_475 {dimension_numbers = #tpu.dot_dimension_numbers<[1], [0], [0], [1], [0, 0, 1, 1], [], []>} : vector<16x64xf32>, vector<64x64xf32>, vector<16x64xf32> -> vector<16x64xf32>
    %584 = arith.addf %580, %583 : vector<16x64xf32>
    %c0_476 = arith.constant 0 : index
    %c0_477 = arith.constant 0 : index
    %c0_478 = arith.constant 0 : index
    %585 = vector.load %arg9[%c0_476, %c0_477, %c0_478] : memref<4x1x64xf32, #tpu.memory_space<vmem>>, vector<1x1x64xf32>
    %586 = vector.shape_cast %585 : vector<1x1x64xf32> to vector<1x64xf32>
    %587 = vector.broadcast %586 : vector<1x64xf32> to vector<16x64xf32>
    %588 = arith.addf %584, %587 : vector<16x64xf32>
    %589 = vector.extract_strided_slice %588 {offsets = [0, 0], sizes = [2, 64], strides = [1, 1]} : vector<16x64xf32> to vector<2x64xf32>
    %c0_479 = arith.constant 0 : index
    %c0_480 = arith.constant 0 : index
    %c0_481 = arith.constant 0 : index
    %c0_482 = arith.constant 0 : index
    %590 = vector.load %arg13[%c0_479, %c0_480, %c0_481, %c0_482] : memref<4x8x2x64xf32, #tpu.memory_space<vmem>>, vector<1x1x2x64xf32>
    %591 = vector.shape_cast %590 : vector<1x1x2x64xf32> to vector<2x64xf32>
    %592 = vector.shape_cast %589 : vector<2x64xf32> to vector<1x1x2x64xf32>
    tpu.vector_store %arg13[%c0_479, %c0_480, %c0_481, %c0_482], %592 {strides = array<i32>} : memref<4x8x2x64xf32, #tpu.memory_space<vmem>>, vector<1x1x2x64xf32>,
    %593 = vector.extract_strided_slice %588 {offsets = [2, 0], sizes = [2, 64], strides = [1, 1]} : vector<16x64xf32> to vector<2x64xf32>
    %c0_483 = arith.constant 0 : index
    %c1_484 = arith.constant 1 : index
    %c0_485 = arith.constant 0 : index
    %c0_486 = arith.constant 0 : index
    %594 = vector.load %arg13[%c0_483, %c1_484, %c0_485, %c0_486] : memref<4x8x2x64xf32, #tpu.memory_space<vmem>>, vector<1x1x2x64xf32>
    %595 = vector.shape_cast %594 : vector<1x1x2x64xf32> to vector<2x64xf32>
    %596 = vector.shape_cast %593 : vector<2x64xf32> to vector<1x1x2x64xf32>
    tpu.vector_store %arg13[%c0_483, %c1_484, %c0_485, %c0_486], %596 {strides = array<i32>} : memref<4x8x2x64xf32, #tpu.memory_space<vmem>>, vector<1x1x2x64xf32>,
    %597 = vector.extract_strided_slice %588 {offsets = [4, 0], sizes = [2, 64], strides = [1, 1]} : vector<16x64xf32> to vector<2x64xf32>
    %c0_487 = arith.constant 0 : index
    %c2_488 = arith.constant 2 : index
    %c0_489 = arith.constant 0 : index
    %c0_490 = arith.constant 0 : index
    %598 = vector.load %arg13[%c0_487, %c2_488, %c0_489, %c0_490] : memref<4x8x2x64xf32, #tpu.memory_space<vmem>>, vector<1x1x2x64xf32>
    %599 = vector.shape_cast %598 : vector<1x1x2x64xf32> to vector<2x64xf32>
    %600 = vector.shape_cast %597 : vector<2x64xf32> to vector<1x1x2x64xf32>
    tpu.vector_store %arg13[%c0_487, %c2_488, %c0_489, %c0_490], %600 {strides = array<i32>} : memref<4x8x2x64xf32, #tpu.memory_space<vmem>>, vector<1x1x2x64xf32>,
    %601 = vector.extract_strided_slice %588 {offsets = [6, 0], sizes = [2, 64], strides = [1, 1]} : vector<16x64xf32> to vector<2x64xf32>
    %c0_491 = arith.constant 0 : index
    %c3_492 = arith.constant 3 : index
    %c0_493 = arith.constant 0 : index
    %c0_494 = arith.constant 0 : index
    %602 = vector.load %arg13[%c0_491, %c3_492, %c0_493, %c0_494] : memref<4x8x2x64xf32, #tpu.memory_space<vmem>>, vector<1x1x2x64xf32>
    %603 = vector.shape_cast %602 : vector<1x1x2x64xf32> to vector<2x64xf32>
    %604 = vector.shape_cast %601 : vector<2x64xf32> to vector<1x1x2x64xf32>
    tpu.vector_store %arg13[%c0_491, %c3_492, %c0_493, %c0_494], %604 {strides = array<i32>} : memref<4x8x2x64xf32, #tpu.memory_space<vmem>>, vector<1x1x2x64xf32>,
    %605 = vector.extract_strided_slice %588 {offsets = [8, 0], sizes = [2, 64], strides = [1, 1]} : vector<16x64xf32> to vector<2x64xf32>
    %c0_495 = arith.constant 0 : index
    %c4_496 = arith.constant 4 : index
    %c0_497 = arith.constant 0 : index
    %c0_498 = arith.constant 0 : index
    %606 = vector.load %arg13[%c0_495, %c4_496, %c0_497, %c0_498] : memref<4x8x2x64xf32, #tpu.memory_space<vmem>>, vector<1x1x2x64xf32>
    %607 = vector.shape_cast %606 : vector<1x1x2x64xf32> to vector<2x64xf32>
    %608 = vector.shape_cast %605 : vector<2x64xf32> to vector<1x1x2x64xf32>
    tpu.vector_store %arg13[%c0_495, %c4_496, %c0_497, %c0_498], %608 {strides = array<i32>} : memref<4x8x2x64xf32, #tpu.memory_space<vmem>>, vector<1x1x2x64xf32>,
    %609 = vector.extract_strided_slice %588 {offsets = [10, 0], sizes = [2, 64], strides = [1, 1]} : vector<16x64xf32> to vector<2x64xf32>
    %c0_499 = arith.constant 0 : index
    %c5_500 = arith.constant 5 : index
    %c0_501 = arith.constant 0 : index
    %c0_502 = arith.constant 0 : index
    %610 = vector.load %arg13[%c0_499, %c5_500, %c0_501, %c0_502] : memref<4x8x2x64xf32, #tpu.memory_space<vmem>>, vector<1x1x2x64xf32>
    %611 = vector.shape_cast %610 : vector<1x1x2x64xf32> to vector<2x64xf32>
    %612 = vector.shape_cast %609 : vector<2x64xf32> to vector<1x1x2x64xf32>
    tpu.vector_store %arg13[%c0_499, %c5_500, %c0_501, %c0_502], %612 {strides = array<i32>} : memref<4x8x2x64xf32, #tpu.memory_space<vmem>>, vector<1x1x2x64xf32>,
    %613 = vector.extract_strided_slice %588 {offsets = [12, 0], sizes = [2, 64], strides = [1, 1]} : vector<16x64xf32> to vector<2x64xf32>
    %c0_503 = arith.constant 0 : index
    %c6_504 = arith.constant 6 : index
    %c0_505 = arith.constant 0 : index
    %c0_506 = arith.constant 0 : index
    %614 = vector.load %arg13[%c0_503, %c6_504, %c0_505, %c0_506] : memref<4x8x2x64xf32, #tpu.memory_space<vmem>>, vector<1x1x2x64xf32>
    %615 = vector.shape_cast %614 : vector<1x1x2x64xf32> to vector<2x64xf32>
    %616 = vector.shape_cast %613 : vector<2x64xf32> to vector<1x1x2x64xf32>
    tpu.vector_store %arg13[%c0_503, %c6_504, %c0_505, %c0_506], %616 {strides = array<i32>} : memref<4x8x2x64xf32, #tpu.memory_space<vmem>>, vector<1x1x2x64xf32>,
    %617 = vector.extract_strided_slice %588 {offsets = [14, 0], sizes = [2, 64], strides = [1, 1]} : vector<16x64xf32> to vector<2x64xf32>
    %c0_507 = arith.constant 0 : index
    %c7_508 = arith.constant 7 : index
    %c0_509 = arith.constant 0 : index
    %c0_510 = arith.constant 0 : index
    %618 = vector.load %arg13[%c0_507, %c7_508, %c0_509, %c0_510] : memref<4x8x2x64xf32, #tpu.memory_space<vmem>>, vector<1x1x2x64xf32>
    %619 = vector.shape_cast %618 : vector<1x1x2x64xf32> to vector<2x64xf32>
    %620 = vector.shape_cast %617 : vector<2x64xf32> to vector<1x1x2x64xf32>
    tpu.vector_store %arg13[%c0_507, %c7_508, %c0_509, %c0_510], %620 {strides = array<i32>} : memref<4x8x2x64xf32, #tpu.memory_space<vmem>>, vector<1x1x2x64xf32>,
    %c1_511 = arith.constant 1 : index
    %c0_512 = arith.constant 0 : index
    %c0_513 = arith.constant 0 : index
    %621 = vector.load %arg6[%c1_511, %c0_512, %c0_513] : memref<4x64x64xf32, #tpu.memory_space<vmem>>, vector<1x64x64xf32>
    %622 = vector.shape_cast %621 : vector<1x64x64xf32> to vector<64x64xf32>
    %cst_514 = arith.constant dense<0.000000e+00> : vector<16x64xf32>
    %623 = tpu.matmul %576, %622, %cst_514 {dimension_numbers = #tpu.dot_dimension_numbers<[1], [0], [0], [1], [0, 0, 1, 1], [], []>} : vector<16x64xf32>, vector<64x64xf32>, vector<16x64xf32> -> vector<16x64xf32>
    %c1_515 = arith.constant 1 : index
    %c0_516 = arith.constant 0 : index
    %c0_517 = arith.constant 0 : index
    %624 = vector.load %arg7[%c1_515, %c0_516, %c0_517] : memref<4x64x64xf32, #tpu.memory_space<vmem>>, vector<1x64x64xf32>
    %625 = vector.shape_cast %624 : vector<1x64x64xf32> to vector<64x64xf32>
    %cst_518 = arith.constant dense<0.000000e+00> : vector<16x64xf32>
    %626 = tpu.matmul %577, %625, %cst_518 {dimension_numbers = #tpu.dot_dimension_numbers<[1], [0], [0], [1], [0, 0, 1, 1], [], []>} : vector<16x64xf32>, vector<64x64xf32>, vector<16x64xf32> -> vector<16x64xf32>
    %627 = arith.addf %623, %626 : vector<16x64xf32>
    %c1_519 = arith.constant 1 : index
    %c0_520 = arith.constant 0 : index
    %c0_521 = arith.constant 0 : index
    %628 = vector.load %arg9[%c1_519, %c0_520, %c0_521] : memref<4x1x64xf32, #tpu.memory_space<vmem>>, vector<1x1x64xf32>
    %629 = vector.shape_cast %628 : vector<1x1x64xf32> to vector<1x64xf32>
    %630 = vector.broadcast %629 : vector<1x64xf32> to vector<16x64xf32>
    %631 = arith.addf %627, %630 : vector<16x64xf32>
    %632 = vector.extract_strided_slice %631 {offsets = [0, 0], sizes = [2, 64], strides = [1, 1]} : vector<16x64xf32> to vector<2x64xf32>
    %c1_522 = arith.constant 1 : index
    %c0_523 = arith.constant 0 : index
    %c0_524 = arith.constant 0 : index
    %c0_525 = arith.constant 0 : index
    %633 = vector.load %arg13[%c1_522, %c0_523, %c0_524, %c0_525] : memref<4x8x2x64xf32, #tpu.memory_space<vmem>>, vector<1x1x2x64xf32>
    %634 = vector.shape_cast %633 : vector<1x1x2x64xf32> to vector<2x64xf32>
    %635 = vector.shape_cast %632 : vector<2x64xf32> to vector<1x1x2x64xf32>
    tpu.vector_store %arg13[%c1_522, %c0_523, %c0_524, %c0_525], %635 {strides = array<i32>} : memref<4x8x2x64xf32, #tpu.memory_space<vmem>>, vector<1x1x2x64xf32>,
    %636 = vector.extract_strided_slice %631 {offsets = [2, 0], sizes = [2, 64], strides = [1, 1]} : vector<16x64xf32> to vector<2x64xf32>
    %c1_526 = arith.constant 1 : index
    %c1_527 = arith.constant 1 : index
    %c0_528 = arith.constant 0 : index
    %c0_529 = arith.constant 0 : index
    %637 = vector.load %arg13[%c1_526, %c1_527, %c0_528, %c0_529] : memref<4x8x2x64xf32, #tpu.memory_space<vmem>>, vector<1x1x2x64xf32>
    %638 = vector.shape_cast %637 : vector<1x1x2x64xf32> to vector<2x64xf32>
    %639 = vector.shape_cast %636 : vector<2x64xf32> to vector<1x1x2x64xf32>
    tpu.vector_store %arg13[%c1_526, %c1_527, %c0_528, %c0_529], %639 {strides = array<i32>} : memref<4x8x2x64xf32, #tpu.memory_space<vmem>>, vector<1x1x2x64xf32>,
    %640 = vector.extract_strided_slice %631 {offsets = [4, 0], sizes = [2, 64], strides = [1, 1]} : vector<16x64xf32> to vector<2x64xf32>
    %c1_530 = arith.constant 1 : index
    %c2_531 = arith.constant 2 : index
    %c0_532 = arith.constant 0 : index
    %c0_533 = arith.constant 0 : index
    %641 = vector.load %arg13[%c1_530, %c2_531, %c0_532, %c0_533] : memref<4x8x2x64xf32, #tpu.memory_space<vmem>>, vector<1x1x2x64xf32>
    %642 = vector.shape_cast %641 : vector<1x1x2x64xf32> to vector<2x64xf32>
    %643 = vector.shape_cast %640 : vector<2x64xf32> to vector<1x1x2x64xf32>
    tpu.vector_store %arg13[%c1_530, %c2_531, %c0_532, %c0_533], %643 {strides = array<i32>} : memref<4x8x2x64xf32, #tpu.memory_space<vmem>>, vector<1x1x2x64xf32>,
    %644 = vector.extract_strided_slice %631 {offsets = [6, 0], sizes = [2, 64], strides = [1, 1]} : vector<16x64xf32> to vector<2x64xf32>
    %c1_534 = arith.constant 1 : index
    %c3_535 = arith.constant 3 : index
    %c0_536 = arith.constant 0 : index
    %c0_537 = arith.constant 0 : index
    %645 = vector.load %arg13[%c1_534, %c3_535, %c0_536, %c0_537] : memref<4x8x2x64xf32, #tpu.memory_space<vmem>>, vector<1x1x2x64xf32>
    %646 = vector.shape_cast %645 : vector<1x1x2x64xf32> to vector<2x64xf32>
    %647 = vector.shape_cast %644 : vector<2x64xf32> to vector<1x1x2x64xf32>
    tpu.vector_store %arg13[%c1_534, %c3_535, %c0_536, %c0_537], %647 {strides = array<i32>} : memref<4x8x2x64xf32, #tpu.memory_space<vmem>>, vector<1x1x2x64xf32>,
    %648 = vector.extract_strided_slice %631 {offsets = [8, 0], sizes = [2, 64], strides = [1, 1]} : vector<16x64xf32> to vector<2x64xf32>
    %c1_538 = arith.constant 1 : index
    %c4_539 = arith.constant 4 : index
    %c0_540 = arith.constant 0 : index
    %c0_541 = arith.constant 0 : index
    %649 = vector.load %arg13[%c1_538, %c4_539, %c0_540, %c0_541] : memref<4x8x2x64xf32, #tpu.memory_space<vmem>>, vector<1x1x2x64xf32>
    %650 = vector.shape_cast %649 : vector<1x1x2x64xf32> to vector<2x64xf32>
    %651 = vector.shape_cast %648 : vector<2x64xf32> to vector<1x1x2x64xf32>
    tpu.vector_store %arg13[%c1_538, %c4_539, %c0_540, %c0_541], %651 {strides = array<i32>} : memref<4x8x2x64xf32, #tpu.memory_space<vmem>>, vector<1x1x2x64xf32>,
    %652 = vector.extract_strided_slice %631 {offsets = [10, 0], sizes = [2, 64], strides = [1, 1]} : vector<16x64xf32> to vector<2x64xf32>
    %c1_542 = arith.constant 1 : index
    %c5_543 = arith.constant 5 : index
    %c0_544 = arith.constant 0 : index
    %c0_545 = arith.constant 0 : index
    %653 = vector.load %arg13[%c1_542, %c5_543, %c0_544, %c0_545] : memref<4x8x2x64xf32, #tpu.memory_space<vmem>>, vector<1x1x2x64xf32>
    %654 = vector.shape_cast %653 : vector<1x1x2x64xf32> to vector<2x64xf32>
    %655 = vector.shape_cast %652 : vector<2x64xf32> to vector<1x1x2x64xf32>
    tpu.vector_store %arg13[%c1_542, %c5_543, %c0_544, %c0_545], %655 {strides = array<i32>} : memref<4x8x2x64xf32, #tpu.memory_space<vmem>>, vector<1x1x2x64xf32>,
    %656 = vector.extract_strided_slice %631 {offsets = [12, 0], sizes = [2, 64], strides = [1, 1]} : vector<16x64xf32> to vector<2x64xf32>
    %c1_546 = arith.constant 1 : index
    %c6_547 = arith.constant 6 : index
    %c0_548 = arith.constant 0 : index
    %c0_549 = arith.constant 0 : index
    %657 = vector.load %arg13[%c1_546, %c6_547, %c0_548, %c0_549] : memref<4x8x2x64xf32, #tpu.memory_space<vmem>>, vector<1x1x2x64xf32>
    %658 = vector.shape_cast %657 : vector<1x1x2x64xf32> to vector<2x64xf32>
    %659 = vector.shape_cast %656 : vector<2x64xf32> to vector<1x1x2x64xf32>
    tpu.vector_store %arg13[%c1_546, %c6_547, %c0_548, %c0_549], %659 {strides = array<i32>} : memref<4x8x2x64xf32, #tpu.memory_space<vmem>>, vector<1x1x2x64xf32>,
    %660 = vector.extract_strided_slice %631 {offsets = [14, 0], sizes = [2, 64], strides = [1, 1]} : vector<16x64xf32> to vector<2x64xf32>
    %c1_550 = arith.constant 1 : index
    %c7_551 = arith.constant 7 : index
    %c0_552 = arith.constant 0 : index
    %c0_553 = arith.constant 0 : index
    %661 = vector.load %arg13[%c1_550, %c7_551, %c0_552, %c0_553] : memref<4x8x2x64xf32, #tpu.memory_space<vmem>>, vector<1x1x2x64xf32>
    %662 = vector.shape_cast %661 : vector<1x1x2x64xf32> to vector<2x64xf32>
    %663 = vector.shape_cast %660 : vector<2x64xf32> to vector<1x1x2x64xf32>
    tpu.vector_store %arg13[%c1_550, %c7_551, %c0_552, %c0_553], %663 {strides = array<i32>} : memref<4x8x2x64xf32, #tpu.memory_space<vmem>>, vector<1x1x2x64xf32>,
    %c2_554 = arith.constant 2 : index
    %c0_555 = arith.constant 0 : index
    %c0_556 = arith.constant 0 : index
    %664 = vector.load %arg6[%c2_554, %c0_555, %c0_556] : memref<4x64x64xf32, #tpu.memory_space<vmem>>, vector<1x64x64xf32>
    %665 = vector.shape_cast %664 : vector<1x64x64xf32> to vector<64x64xf32>
    %cst_557 = arith.constant dense<0.000000e+00> : vector<16x64xf32>
    %666 = tpu.matmul %576, %665, %cst_557 {dimension_numbers = #tpu.dot_dimension_numbers<[1], [0], [0], [1], [0, 0, 1, 1], [], []>} : vector<16x64xf32>, vector<64x64xf32>, vector<16x64xf32> -> vector<16x64xf32>
    %c2_558 = arith.constant 2 : index
    %c0_559 = arith.constant 0 : index
    %c0_560 = arith.constant 0 : index
    %667 = vector.load %arg7[%c2_558, %c0_559, %c0_560] : memref<4x64x64xf32, #tpu.memory_space<vmem>>, vector<1x64x64xf32>
    %668 = vector.shape_cast %667 : vector<1x64x64xf32> to vector<64x64xf32>
    %cst_561 = arith.constant dense<0.000000e+00> : vector<16x64xf32>
    %669 = tpu.matmul %577, %668, %cst_561 {dimension_numbers = #tpu.dot_dimension_numbers<[1], [0], [0], [1], [0, 0, 1, 1], [], []>} : vector<16x64xf32>, vector<64x64xf32>, vector<16x64xf32> -> vector<16x64xf32>
    %670 = arith.addf %666, %669 : vector<16x64xf32>
    %c2_562 = arith.constant 2 : index
    %c0_563 = arith.constant 0 : index
    %c0_564 = arith.constant 0 : index
    %671 = vector.load %arg9[%c2_562, %c0_563, %c0_564] : memref<4x1x64xf32, #tpu.memory_space<vmem>>, vector<1x1x64xf32>
    %672 = vector.shape_cast %671 : vector<1x1x64xf32> to vector<1x64xf32>
    %673 = vector.broadcast %672 : vector<1x64xf32> to vector<16x64xf32>
    %674 = arith.addf %670, %673 : vector<16x64xf32>
    %675 = vector.extract_strided_slice %674 {offsets = [0, 0], sizes = [2, 64], strides = [1, 1]} : vector<16x64xf32> to vector<2x64xf32>
    %c2_565 = arith.constant 2 : index
    %c0_566 = arith.constant 0 : index
    %c0_567 = arith.constant 0 : index
    %c0_568 = arith.constant 0 : index
    %676 = vector.load %arg13[%c2_565, %c0_566, %c0_567, %c0_568] : memref<4x8x2x64xf32, #tpu.memory_space<vmem>>, vector<1x1x2x64xf32>
    %677 = vector.shape_cast %676 : vector<1x1x2x64xf32> to vector<2x64xf32>
    %678 = vector.shape_cast %675 : vector<2x64xf32> to vector<1x1x2x64xf32>
    tpu.vector_store %arg13[%c2_565, %c0_566, %c0_567, %c0_568], %678 {strides = array<i32>} : memref<4x8x2x64xf32, #tpu.memory_space<vmem>>, vector<1x1x2x64xf32>,
    %679 = vector.extract_strided_slice %674 {offsets = [2, 0], sizes = [2, 64], strides = [1, 1]} : vector<16x64xf32> to vector<2x64xf32>
    %c2_569 = arith.constant 2 : index
    %c1_570 = arith.constant 1 : index
    %c0_571 = arith.constant 0 : index
    %c0_572 = arith.constant 0 : index
    %680 = vector.load %arg13[%c2_569, %c1_570, %c0_571, %c0_572] : memref<4x8x2x64xf32, #tpu.memory_space<vmem>>, vector<1x1x2x64xf32>
    %681 = vector.shape_cast %680 : vector<1x1x2x64xf32> to vector<2x64xf32>
    %682 = vector.shape_cast %679 : vector<2x64xf32> to vector<1x1x2x64xf32>
    tpu.vector_store %arg13[%c2_569, %c1_570, %c0_571, %c0_572], %682 {strides = array<i32>} : memref<4x8x2x64xf32, #tpu.memory_space<vmem>>, vector<1x1x2x64xf32>,
    %683 = vector.extract_strided_slice %674 {offsets = [4, 0], sizes = [2, 64], strides = [1, 1]} : vector<16x64xf32> to vector<2x64xf32>
    %c2_573 = arith.constant 2 : index
    %c2_574 = arith.constant 2 : index
    %c0_575 = arith.constant 0 : index
    %c0_576 = arith.constant 0 : index
    %684 = vector.load %arg13[%c2_573, %c2_574, %c0_575, %c0_576] : memref<4x8x2x64xf32, #tpu.memory_space<vmem>>, vector<1x1x2x64xf32>
    %685 = vector.shape_cast %684 : vector<1x1x2x64xf32> to vector<2x64xf32>
    %686 = vector.shape_cast %683 : vector<2x64xf32> to vector<1x1x2x64xf32>
    tpu.vector_store %arg13[%c2_573, %c2_574, %c0_575, %c0_576], %686 {strides = array<i32>} : memref<4x8x2x64xf32, #tpu.memory_space<vmem>>, vector<1x1x2x64xf32>,
    %687 = vector.extract_strided_slice %674 {offsets = [6, 0], sizes = [2, 64], strides = [1, 1]} : vector<16x64xf32> to vector<2x64xf32>
    %c2_577 = arith.constant 2 : index
    %c3_578 = arith.constant 3 : index
    %c0_579 = arith.constant 0 : index
    %c0_580 = arith.constant 0 : index
    %688 = vector.load %arg13[%c2_577, %c3_578, %c0_579, %c0_580] : memref<4x8x2x64xf32, #tpu.memory_space<vmem>>, vector<1x1x2x64xf32>
    %689 = vector.shape_cast %688 : vector<1x1x2x64xf32> to vector<2x64xf32>
    %690 = vector.shape_cast %687 : vector<2x64xf32> to vector<1x1x2x64xf32>
    tpu.vector_store %arg13[%c2_577, %c3_578, %c0_579, %c0_580], %690 {strides = array<i32>} : memref<4x8x2x64xf32, #tpu.memory_space<vmem>>, vector<1x1x2x64xf32>,
    %691 = vector.extract_strided_slice %674 {offsets = [8, 0], sizes = [2, 64], strides = [1, 1]} : vector<16x64xf32> to vector<2x64xf32>
    %c2_581 = arith.constant 2 : index
    %c4_582 = arith.constant 4 : index
    %c0_583 = arith.constant 0 : index
    %c0_584 = arith.constant 0 : index
    %692 = vector.load %arg13[%c2_581, %c4_582, %c0_583, %c0_584] : memref<4x8x2x64xf32, #tpu.memory_space<vmem>>, vector<1x1x2x64xf32>
    %693 = vector.shape_cast %692 : vector<1x1x2x64xf32> to vector<2x64xf32>
    %694 = vector.shape_cast %691 : vector<2x64xf32> to vector<1x1x2x64xf32>
    tpu.vector_store %arg13[%c2_581, %c4_582, %c0_583, %c0_584], %694 {strides = array<i32>} : memref<4x8x2x64xf32, #tpu.memory_space<vmem>>, vector<1x1x2x64xf32>,
    %695 = vector.extract_strided_slice %674 {offsets = [10, 0], sizes = [2, 64], strides = [1, 1]} : vector<16x64xf32> to vector<2x64xf32>
    %c2_585 = arith.constant 2 : index
    %c5_586 = arith.constant 5 : index
    %c0_587 = arith.constant 0 : index
    %c0_588 = arith.constant 0 : index
    %696 = vector.load %arg13[%c2_585, %c5_586, %c0_587, %c0_588] : memref<4x8x2x64xf32, #tpu.memory_space<vmem>>, vector<1x1x2x64xf32>
    %697 = vector.shape_cast %696 : vector<1x1x2x64xf32> to vector<2x64xf32>
    %698 = vector.shape_cast %695 : vector<2x64xf32> to vector<1x1x2x64xf32>
    tpu.vector_store %arg13[%c2_585, %c5_586, %c0_587, %c0_588], %698 {strides = array<i32>} : memref<4x8x2x64xf32, #tpu.memory_space<vmem>>, vector<1x1x2x64xf32>,
    %699 = vector.extract_strided_slice %674 {offsets = [12, 0], sizes = [2, 64], strides = [1, 1]} : vector<16x64xf32> to vector<2x64xf32>
    %c2_589 = arith.constant 2 : index
    %c6_590 = arith.constant 6 : index
    %c0_591 = arith.constant 0 : index
    %c0_592 = arith.constant 0 : index
    %700 = vector.load %arg13[%c2_589, %c6_590, %c0_591, %c0_592] : memref<4x8x2x64xf32, #tpu.memory_space<vmem>>, vector<1x1x2x64xf32>
    %701 = vector.shape_cast %700 : vector<1x1x2x64xf32> to vector<2x64xf32>
    %702 = vector.shape_cast %699 : vector<2x64xf32> to vector<1x1x2x64xf32>
    tpu.vector_store %arg13[%c2_589, %c6_590, %c0_591, %c0_592], %702 {strides = array<i32>} : memref<4x8x2x64xf32, #tpu.memory_space<vmem>>, vector<1x1x2x64xf32>,
    %703 = vector.extract_strided_slice %674 {offsets = [14, 0], sizes = [2, 64], strides = [1, 1]} : vector<16x64xf32> to vector<2x64xf32>
    %c2_593 = arith.constant 2 : index
    %c7_594 = arith.constant 7 : index
    %c0_595 = arith.constant 0 : index
    %c0_596 = arith.constant 0 : index
    %704 = vector.load %arg13[%c2_593, %c7_594, %c0_595, %c0_596] : memref<4x8x2x64xf32, #tpu.memory_space<vmem>>, vector<1x1x2x64xf32>
    %705 = vector.shape_cast %704 : vector<1x1x2x64xf32> to vector<2x64xf32>
    %706 = vector.shape_cast %703 : vector<2x64xf32> to vector<1x1x2x64xf32>
    tpu.vector_store %arg13[%c2_593, %c7_594, %c0_595, %c0_596], %706 {strides = array<i32>} : memref<4x8x2x64xf32, #tpu.memory_space<vmem>>, vector<1x1x2x64xf32>,
    %c3_597 = arith.constant 3 : index
    %c0_598 = arith.constant 0 : index
    %c0_599 = arith.constant 0 : index
    %707 = vector.load %arg6[%c3_597, %c0_598, %c0_599] : memref<4x64x64xf32, #tpu.memory_space<vmem>>, vector<1x64x64xf32>
    %708 = vector.shape_cast %707 : vector<1x64x64xf32> to vector<64x64xf32>
    %cst_600 = arith.constant dense<0.000000e+00> : vector<16x64xf32>
    %709 = tpu.matmul %576, %708, %cst_600 {dimension_numbers = #tpu.dot_dimension_numbers<[1], [0], [0], [1], [0, 0, 1, 1], [], []>} : vector<16x64xf32>, vector<64x64xf32>, vector<16x64xf32> -> vector<16x64xf32>
    %c3_601 = arith.constant 3 : index
    %c0_602 = arith.constant 0 : index
    %c0_603 = arith.constant 0 : index
    %710 = vector.load %arg7[%c3_601, %c0_602, %c0_603] : memref<4x64x64xf32, #tpu.memory_space<vmem>>, vector<1x64x64xf32>
    %711 = vector.shape_cast %710 : vector<1x64x64xf32> to vector<64x64xf32>
    %cst_604 = arith.constant dense<0.000000e+00> : vector<16x64xf32>
    %712 = tpu.matmul %577, %711, %cst_604 {dimension_numbers = #tpu.dot_dimension_numbers<[1], [0], [0], [1], [0, 0, 1, 1], [], []>} : vector<16x64xf32>, vector<64x64xf32>, vector<16x64xf32> -> vector<16x64xf32>
    %713 = arith.addf %709, %712 : vector<16x64xf32>
    %c3_605 = arith.constant 3 : index
    %c0_606 = arith.constant 0 : index
    %c0_607 = arith.constant 0 : index
    %714 = vector.load %arg9[%c3_605, %c0_606, %c0_607] : memref<4x1x64xf32, #tpu.memory_space<vmem>>, vector<1x1x64xf32>
    %715 = vector.shape_cast %714 : vector<1x1x64xf32> to vector<1x64xf32>
    %716 = vector.broadcast %715 : vector<1x64xf32> to vector<16x64xf32>
    %717 = arith.addf %713, %716 : vector<16x64xf32>
    %718 = vector.extract_strided_slice %717 {offsets = [0, 0], sizes = [2, 64], strides = [1, 1]} : vector<16x64xf32> to vector<2x64xf32>
    %c3_608 = arith.constant 3 : index
    %c0_609 = arith.constant 0 : index
    %c0_610 = arith.constant 0 : index
    %c0_611 = arith.constant 0 : index
    %719 = vector.load %arg13[%c3_608, %c0_609, %c0_610, %c0_611] : memref<4x8x2x64xf32, #tpu.memory_space<vmem>>, vector<1x1x2x64xf32>
    %720 = vector.shape_cast %719 : vector<1x1x2x64xf32> to vector<2x64xf32>
    %721 = vector.shape_cast %718 : vector<2x64xf32> to vector<1x1x2x64xf32>
    tpu.vector_store %arg13[%c3_608, %c0_609, %c0_610, %c0_611], %721 {strides = array<i32>} : memref<4x8x2x64xf32, #tpu.memory_space<vmem>>, vector<1x1x2x64xf32>,
    %722 = vector.extract_strided_slice %717 {offsets = [2, 0], sizes = [2, 64], strides = [1, 1]} : vector<16x64xf32> to vector<2x64xf32>
    %c3_612 = arith.constant 3 : index
    %c1_613 = arith.constant 1 : index
    %c0_614 = arith.constant 0 : index
    %c0_615 = arith.constant 0 : index
    %723 = vector.load %arg13[%c3_612, %c1_613, %c0_614, %c0_615] : memref<4x8x2x64xf32, #tpu.memory_space<vmem>>, vector<1x1x2x64xf32>
    %724 = vector.shape_cast %723 : vector<1x1x2x64xf32> to vector<2x64xf32>
    %725 = vector.shape_cast %722 : vector<2x64xf32> to vector<1x1x2x64xf32>
    tpu.vector_store %arg13[%c3_612, %c1_613, %c0_614, %c0_615], %725 {strides = array<i32>} : memref<4x8x2x64xf32, #tpu.memory_space<vmem>>, vector<1x1x2x64xf32>,
    %726 = vector.extract_strided_slice %717 {offsets = [4, 0], sizes = [2, 64], strides = [1, 1]} : vector<16x64xf32> to vector<2x64xf32>
    %c3_616 = arith.constant 3 : index
    %c2_617 = arith.constant 2 : index
    %c0_618 = arith.constant 0 : index
    %c0_619 = arith.constant 0 : index
    %727 = vector.load %arg13[%c3_616, %c2_617, %c0_618, %c0_619] : memref<4x8x2x64xf32, #tpu.memory_space<vmem>>, vector<1x1x2x64xf32>
    %728 = vector.shape_cast %727 : vector<1x1x2x64xf32> to vector<2x64xf32>
    %729 = vector.shape_cast %726 : vector<2x64xf32> to vector<1x1x2x64xf32>
    tpu.vector_store %arg13[%c3_616, %c2_617, %c0_618, %c0_619], %729 {strides = array<i32>} : memref<4x8x2x64xf32, #tpu.memory_space<vmem>>, vector<1x1x2x64xf32>,
    %730 = vector.extract_strided_slice %717 {offsets = [6, 0], sizes = [2, 64], strides = [1, 1]} : vector<16x64xf32> to vector<2x64xf32>
    %c3_620 = arith.constant 3 : index
    %c3_621 = arith.constant 3 : index
    %c0_622 = arith.constant 0 : index
    %c0_623 = arith.constant 0 : index
    %731 = vector.load %arg13[%c3_620, %c3_621, %c0_622, %c0_623] : memref<4x8x2x64xf32, #tpu.memory_space<vmem>>, vector<1x1x2x64xf32>
    %732 = vector.shape_cast %731 : vector<1x1x2x64xf32> to vector<2x64xf32>
    %733 = vector.shape_cast %730 : vector<2x64xf32> to vector<1x1x2x64xf32>
    tpu.vector_store %arg13[%c3_620, %c3_621, %c0_622, %c0_623], %733 {strides = array<i32>} : memref<4x8x2x64xf32, #tpu.memory_space<vmem>>, vector<1x1x2x64xf32>,
    %734 = vector.extract_strided_slice %717 {offsets = [8, 0], sizes = [2, 64], strides = [1, 1]} : vector<16x64xf32> to vector<2x64xf32>
    %c3_624 = arith.constant 3 : index
    %c4_625 = arith.constant 4 : index
    %c0_626 = arith.constant 0 : index
    %c0_627 = arith.constant 0 : index
    %735 = vector.load %arg13[%c3_624, %c4_625, %c0_626, %c0_627] : memref<4x8x2x64xf32, #tpu.memory_space<vmem>>, vector<1x1x2x64xf32>
    %736 = vector.shape_cast %735 : vector<1x1x2x64xf32> to vector<2x64xf32>
    %737 = vector.shape_cast %734 : vector<2x64xf32> to vector<1x1x2x64xf32>
    tpu.vector_store %arg13[%c3_624, %c4_625, %c0_626, %c0_627], %737 {strides = array<i32>} : memref<4x8x2x64xf32, #tpu.memory_space<vmem>>, vector<1x1x2x64xf32>,
    %738 = vector.extract_strided_slice %717 {offsets = [10, 0], sizes = [2, 64], strides = [1, 1]} : vector<16x64xf32> to vector<2x64xf32>
    %c3_628 = arith.constant 3 : index
    %c5_629 = arith.constant 5 : index
    %c0_630 = arith.constant 0 : index
    %c0_631 = arith.constant 0 : index
    %739 = vector.load %arg13[%c3_628, %c5_629, %c0_630, %c0_631] : memref<4x8x2x64xf32, #tpu.memory_space<vmem>>, vector<1x1x2x64xf32>
    %740 = vector.shape_cast %739 : vector<1x1x2x64xf32> to vector<2x64xf32>
    %741 = vector.shape_cast %738 : vector<2x64xf32> to vector<1x1x2x64xf32>
    tpu.vector_store %arg13[%c3_628, %c5_629, %c0_630, %c0_631], %741 {strides = array<i32>} : memref<4x8x2x64xf32, #tpu.memory_space<vmem>>, vector<1x1x2x64xf32>,
    %742 = vector.extract_strided_slice %717 {offsets = [12, 0], sizes = [2, 64], strides = [1, 1]} : vector<16x64xf32> to vector<2x64xf32>
    %c3_632 = arith.constant 3 : index
    %c6_633 = arith.constant 6 : index
    %c0_634 = arith.constant 0 : index
    %c0_635 = arith.constant 0 : index
    %743 = vector.load %arg13[%c3_632, %c6_633, %c0_634, %c0_635] : memref<4x8x2x64xf32, #tpu.memory_space<vmem>>, vector<1x1x2x64xf32>
    %744 = vector.shape_cast %743 : vector<1x1x2x64xf32> to vector<2x64xf32>
    %745 = vector.shape_cast %742 : vector<2x64xf32> to vector<1x1x2x64xf32>
    tpu.vector_store %arg13[%c3_632, %c6_633, %c0_634, %c0_635], %745 {strides = array<i32>} : memref<4x8x2x64xf32, #tpu.memory_space<vmem>>, vector<1x1x2x64xf32>,
    %746 = vector.extract_strided_slice %717 {offsets = [14, 0], sizes = [2, 64], strides = [1, 1]} : vector<16x64xf32> to vector<2x64xf32>
    %c3_636 = arith.constant 3 : index
    %c7_637 = arith.constant 7 : index
    %c0_638 = arith.constant 0 : index
    %c0_639 = arith.constant 0 : index
    %747 = vector.load %arg13[%c3_636, %c7_637, %c0_638, %c0_639] : memref<4x8x2x64xf32, #tpu.memory_space<vmem>>, vector<1x1x2x64xf32>
    %748 = vector.shape_cast %747 : vector<1x1x2x64xf32> to vector<2x64xf32>
    %749 = vector.shape_cast %746 : vector<2x64xf32> to vector<1x1x2x64xf32>
    tpu.vector_store %arg13[%c3_636, %c7_637, %c0_638, %c0_639], %749 {strides = array<i32>} : memref<4x8x2x64xf32, #tpu.memory_space<vmem>>, vector<1x1x2x64xf32>,
    %c0_640 = arith.constant 0 : index
    %c0_641 = arith.constant 0 : index
    %c0_642 = arith.constant 0 : index
    %750 = vector.load %arg8[%c0_640, %c0_641, %c0_642] : memref<4x64x64xf32, #tpu.memory_space<vmem>>, vector<1x64x64xf32>
    %751 = vector.shape_cast %750 : vector<1x64x64xf32> to vector<64x64xf32>
    %c1_643 = arith.constant 1 : index
    %c0_644 = arith.constant 0 : index
    %c0_645 = arith.constant 0 : index
    %752 = vector.load %arg8[%c1_643, %c0_644, %c0_645] : memref<4x64x64xf32, #tpu.memory_space<vmem>>, vector<1x64x64xf32>
    %753 = vector.shape_cast %752 : vector<1x64x64xf32> to vector<64x64xf32>
    %c2_646 = arith.constant 2 : index
    %c0_647 = arith.constant 0 : index
    %c0_648 = arith.constant 0 : index
    %754 = vector.load %arg8[%c2_646, %c0_647, %c0_648] : memref<4x64x64xf32, #tpu.memory_space<vmem>>, vector<1x64x64xf32>
    %755 = vector.shape_cast %754 : vector<1x64x64xf32> to vector<64x64xf32>
    %c3_649 = arith.constant 3 : index
    %c0_650 = arith.constant 0 : index
    %c0_651 = arith.constant 0 : index
    %756 = vector.load %arg8[%c3_649, %c0_650, %c0_651] : memref<4x64x64xf32, #tpu.memory_space<vmem>>, vector<1x64x64xf32>
    %757 = vector.shape_cast %756 : vector<1x64x64xf32> to vector<64x64xf32>
    %cst_652 = arith.constant 0.000000e+00 : f32
    %758 = vector.broadcast %cst_652 : f32 to vector<2x64xf32>
    %cst_653 = arith.constant 0.000000e+00 : f32
    %759 = vector.broadcast %cst_653 : f32 to vector<2x64xf32>
    %cst_654 = arith.constant dense<0.000000e+00> : vector<2x64xf32>
    %760 = tpu.matmul %758, %751, %cst_654 {dimension_numbers = #tpu.dot_dimension_numbers<[1], [0], [0], [1], [0, 0, 1, 1], [], []>} : vector<2x64xf32>, vector<64x64xf32>, vector<2x64xf32> -> vector<2x64xf32>
    %c0_655 = arith.constant 0 : index
    %c0_656 = arith.constant 0 : index
    %c0_657 = arith.constant 0 : index
    %c0_658 = arith.constant 0 : index
    %761 = vector.load %arg13[%c0_655, %c0_656, %c0_657, %c0_658] : memref<4x8x2x64xf32, #tpu.memory_space<vmem>>, vector<1x1x2x64xf32>
    %762 = vector.shape_cast %761 : vector<1x1x2x64xf32> to vector<2x64xf32>
    %763 = arith.addf %760, %762 : vector<2x64xf32>
    %764 = arith.negf %763 : vector<2x64xf32>
    %765 = math.exp %764 : vector<2x64xf32>
    %cst_659 = arith.constant 1.000000e+00 : f32
    %766 = vector.broadcast %cst_659 : f32 to vector<2x64xf32>
    %767 = arith.addf %766, %765 : vector<2x64xf32>
    %768 = arith.divf %766, %767 : vector<2x64xf32>
    %cst_660 = arith.constant dense<0.000000e+00> : vector<2x64xf32>
    %769 = tpu.matmul %758, %753, %cst_660 {dimension_numbers = #tpu.dot_dimension_numbers<[1], [0], [0], [1], [0, 0, 1, 1], [], []>} : vector<2x64xf32>, vector<64x64xf32>, vector<2x64xf32> -> vector<2x64xf32>
    %c1_661 = arith.constant 1 : index
    %c0_662 = arith.constant 0 : index
    %c0_663 = arith.constant 0 : index
    %c0_664 = arith.constant 0 : index
    %770 = vector.load %arg13[%c1_661, %c0_662, %c0_663, %c0_664] : memref<4x8x2x64xf32, #tpu.memory_space<vmem>>, vector<1x1x2x64xf32>
    %771 = vector.shape_cast %770 : vector<1x1x2x64xf32> to vector<2x64xf32>
    %772 = arith.addf %769, %771 : vector<2x64xf32>
    %773 = arith.negf %772 : vector<2x64xf32>
    %774 = math.exp %773 : vector<2x64xf32>
    %cst_665 = arith.constant 1.000000e+00 : f32
    %775 = vector.broadcast %cst_665 : f32 to vector<2x64xf32>
    %776 = arith.addf %775, %774 : vector<2x64xf32>
    %777 = arith.divf %775, %776 : vector<2x64xf32>
    %cst_666 = arith.constant dense<0.000000e+00> : vector<2x64xf32>
    %778 = tpu.matmul %758, %755, %cst_666 {dimension_numbers = #tpu.dot_dimension_numbers<[1], [0], [0], [1], [0, 0, 1, 1], [], []>} : vector<2x64xf32>, vector<64x64xf32>, vector<2x64xf32> -> vector<2x64xf32>
    %c2_667 = arith.constant 2 : index
    %c0_668 = arith.constant 0 : index
    %c0_669 = arith.constant 0 : index
    %c0_670 = arith.constant 0 : index
    %779 = vector.load %arg13[%c2_667, %c0_668, %c0_669, %c0_670] : memref<4x8x2x64xf32, #tpu.memory_space<vmem>>, vector<1x1x2x64xf32>
    %780 = vector.shape_cast %779 : vector<1x1x2x64xf32> to vector<2x64xf32>
    %781 = arith.addf %778, %780 : vector<2x64xf32>
    %782 = math.tanh %781 : vector<2x64xf32>
    %cst_671 = arith.constant dense<0.000000e+00> : vector<2x64xf32>
    %783 = tpu.matmul %758, %757, %cst_671 {dimension_numbers = #tpu.dot_dimension_numbers<[1], [0], [0], [1], [0, 0, 1, 1], [], []>} : vector<2x64xf32>, vector<64x64xf32>, vector<2x64xf32> -> vector<2x64xf32>
    %c3_672 = arith.constant 3 : index
    %c0_673 = arith.constant 0 : index
    %c0_674 = arith.constant 0 : index
    %c0_675 = arith.constant 0 : index
    %784 = vector.load %arg13[%c3_672, %c0_673, %c0_674, %c0_675] : memref<4x8x2x64xf32, #tpu.memory_space<vmem>>, vector<1x1x2x64xf32>
    %785 = vector.shape_cast %784 : vector<1x1x2x64xf32> to vector<2x64xf32>
    %786 = arith.addf %783, %785 : vector<2x64xf32>
    %787 = arith.negf %786 : vector<2x64xf32>
    %788 = math.exp %787 : vector<2x64xf32>
    %cst_676 = arith.constant 1.000000e+00 : f32
    %789 = vector.broadcast %cst_676 : f32 to vector<2x64xf32>
    %790 = arith.addf %789, %788 : vector<2x64xf32>
    %791 = arith.divf %789, %790 : vector<2x64xf32>
    %792 = arith.mulf %777, %759 : vector<2x64xf32>
    %793 = arith.mulf %768, %782 : vector<2x64xf32>
    %794 = arith.addf %792, %793 : vector<2x64xf32>
    %795 = math.tanh %794 : vector<2x64xf32>
    %796 = arith.mulf %791, %795 : vector<2x64xf32>
    %797 = vector.extract_strided_slice %796 {offsets = [0, 0], sizes = [2, 32], strides = [1, 1]} : vector<2x64xf32> to vector<2x32xf32>
    %c0_677 = arith.constant 0 : index
    %c0_678 = arith.constant 0 : index
    %c0_679 = arith.constant 0 : index
    %798 = vector.load %arg14[%c0_677, %c0_678, %c0_679] : memref<8x2x64xf32, #tpu.memory_space<vmem>>, vector<1x2x32xf32>
    %799 = vector.shape_cast %798 : vector<1x2x32xf32> to vector<2x32xf32>
    %800 = vector.shape_cast %797 : vector<2x32xf32> to vector<1x2x32xf32>
    tpu.vector_store %arg14[%c0_677, %c0_678, %c0_679], %800 {strides = array<i32>} : memref<8x2x64xf32, #tpu.memory_space<vmem>>, vector<1x2x32xf32>,
    %801 = vector.extract_strided_slice %796 {offsets = [0, 32], sizes = [2, 32], strides = [1, 1]} : vector<2x64xf32> to vector<2x32xf32>
    %c7_680 = arith.constant 7 : index
    %c0_681 = arith.constant 0 : index
    %c32_682 = arith.constant 32 : index
    %802 = vector.load %arg14[%c7_680, %c0_681, %c32_682] : memref<8x2x64xf32, #tpu.memory_space<vmem>>, vector<1x2x32xf32>
    %803 = vector.shape_cast %802 : vector<1x2x32xf32> to vector<2x32xf32>
    %804 = vector.shape_cast %801 : vector<2x32xf32> to vector<1x2x32xf32>
    tpu.vector_store %arg14[%c7_680, %c0_681, %c32_682], %804 {strides = array<i32>} : memref<8x2x64xf32, #tpu.memory_space<vmem>>, vector<1x2x32xf32>,
    %cst_683 = arith.constant dense<0.000000e+00> : vector<2x64xf32>
    %805 = tpu.matmul %796, %751, %cst_683 {dimension_numbers = #tpu.dot_dimension_numbers<[1], [0], [0], [1], [0, 0, 1, 1], [], []>} : vector<2x64xf32>, vector<64x64xf32>, vector<2x64xf32> -> vector<2x64xf32>
    %c0_684 = arith.constant 0 : index
    %c1_685 = arith.constant 1 : index
    %c0_686 = arith.constant 0 : index
    %c0_687 = arith.constant 0 : index
    %806 = vector.load %arg13[%c0_684, %c1_685, %c0_686, %c0_687] : memref<4x8x2x64xf32, #tpu.memory_space<vmem>>, vector<1x1x2x64xf32>
    %807 = vector.shape_cast %806 : vector<1x1x2x64xf32> to vector<2x64xf32>
    %808 = arith.addf %805, %807 : vector<2x64xf32>
    %809 = arith.negf %808 : vector<2x64xf32>
    %810 = math.exp %809 : vector<2x64xf32>
    %cst_688 = arith.constant 1.000000e+00 : f32
    %811 = vector.broadcast %cst_688 : f32 to vector<2x64xf32>
    %812 = arith.addf %811, %810 : vector<2x64xf32>
    %813 = arith.divf %811, %812 : vector<2x64xf32>
    %cst_689 = arith.constant dense<0.000000e+00> : vector<2x64xf32>
    %814 = tpu.matmul %796, %753, %cst_689 {dimension_numbers = #tpu.dot_dimension_numbers<[1], [0], [0], [1], [0, 0, 1, 1], [], []>} : vector<2x64xf32>, vector<64x64xf32>, vector<2x64xf32> -> vector<2x64xf32>
    %c1_690 = arith.constant 1 : index
    %c1_691 = arith.constant 1 : index
    %c0_692 = arith.constant 0 : index
    %c0_693 = arith.constant 0 : index
    %815 = vector.load %arg13[%c1_690, %c1_691, %c0_692, %c0_693] : memref<4x8x2x64xf32, #tpu.memory_space<vmem>>, vector<1x1x2x64xf32>
    %816 = vector.shape_cast %815 : vector<1x1x2x64xf32> to vector<2x64xf32>
    %817 = arith.addf %814, %816 : vector<2x64xf32>
    %818 = arith.negf %817 : vector<2x64xf32>
    %819 = math.exp %818 : vector<2x64xf32>
    %cst_694 = arith.constant 1.000000e+00 : f32
    %820 = vector.broadcast %cst_694 : f32 to vector<2x64xf32>
    %821 = arith.addf %820, %819 : vector<2x64xf32>
    %822 = arith.divf %820, %821 : vector<2x64xf32>
    %cst_695 = arith.constant dense<0.000000e+00> : vector<2x64xf32>
    %823 = tpu.matmul %796, %755, %cst_695 {dimension_numbers = #tpu.dot_dimension_numbers<[1], [0], [0], [1], [0, 0, 1, 1], [], []>} : vector<2x64xf32>, vector<64x64xf32>, vector<2x64xf32> -> vector<2x64xf32>
    %c2_696 = arith.constant 2 : index
    %c1_697 = arith.constant 1 : index
    %c0_698 = arith.constant 0 : index
    %c0_699 = arith.constant 0 : index
    %824 = vector.load %arg13[%c2_696, %c1_697, %c0_698, %c0_699] : memref<4x8x2x64xf32, #tpu.memory_space<vmem>>, vector<1x1x2x64xf32>
    %825 = vector.shape_cast %824 : vector<1x1x2x64xf32> to vector<2x64xf32>
    %826 = arith.addf %823, %825 : vector<2x64xf32>
    %827 = math.tanh %826 : vector<2x64xf32>
    %cst_700 = arith.constant dense<0.000000e+00> : vector<2x64xf32>
    %828 = tpu.matmul %796, %757, %cst_700 {dimension_numbers = #tpu.dot_dimension_numbers<[1], [0], [0], [1], [0, 0, 1, 1], [], []>} : vector<2x64xf32>, vector<64x64xf32>, vector<2x64xf32> -> vector<2x64xf32>
    %c3_701 = arith.constant 3 : index
    %c1_702 = arith.constant 1 : index
    %c0_703 = arith.constant 0 : index
    %c0_704 = arith.constant 0 : index
    %829 = vector.load %arg13[%c3_701, %c1_702, %c0_703, %c0_704] : memref<4x8x2x64xf32, #tpu.memory_space<vmem>>, vector<1x1x2x64xf32>
    %830 = vector.shape_cast %829 : vector<1x1x2x64xf32> to vector<2x64xf32>
    %831 = arith.addf %828, %830 : vector<2x64xf32>
    %832 = arith.negf %831 : vector<2x64xf32>
    %833 = math.exp %832 : vector<2x64xf32>
    %cst_705 = arith.constant 1.000000e+00 : f32
    %834 = vector.broadcast %cst_705 : f32 to vector<2x64xf32>
    %835 = arith.addf %834, %833 : vector<2x64xf32>
    %836 = arith.divf %834, %835 : vector<2x64xf32>
    %837 = arith.mulf %822, %794 : vector<2x64xf32>
    %838 = arith.mulf %813, %827 : vector<2x64xf32>
    %839 = arith.addf %837, %838 : vector<2x64xf32>
    %840 = math.tanh %839 : vector<2x64xf32>
    %841 = arith.mulf %836, %840 : vector<2x64xf32>
    %842 = vector.extract_strided_slice %841 {offsets = [0, 0], sizes = [2, 32], strides = [1, 1]} : vector<2x64xf32> to vector<2x32xf32>
    %c1_706 = arith.constant 1 : index
    %c0_707 = arith.constant 0 : index
    %c0_708 = arith.constant 0 : index
    %843 = vector.load %arg14[%c1_706, %c0_707, %c0_708] : memref<8x2x64xf32, #tpu.memory_space<vmem>>, vector<1x2x32xf32>
    %844 = vector.shape_cast %843 : vector<1x2x32xf32> to vector<2x32xf32>
    %845 = vector.shape_cast %842 : vector<2x32xf32> to vector<1x2x32xf32>
    tpu.vector_store %arg14[%c1_706, %c0_707, %c0_708], %845 {strides = array<i32>} : memref<8x2x64xf32, #tpu.memory_space<vmem>>, vector<1x2x32xf32>,
    %846 = vector.extract_strided_slice %841 {offsets = [0, 32], sizes = [2, 32], strides = [1, 1]} : vector<2x64xf32> to vector<2x32xf32>
    %c6_709 = arith.constant 6 : index
    %c0_710 = arith.constant 0 : index
    %c32_711 = arith.constant 32 : index
    %847 = vector.load %arg14[%c6_709, %c0_710, %c32_711] : memref<8x2x64xf32, #tpu.memory_space<vmem>>, vector<1x2x32xf32>
    %848 = vector.shape_cast %847 : vector<1x2x32xf32> to vector<2x32xf32>
    %849 = vector.shape_cast %846 : vector<2x32xf32> to vector<1x2x32xf32>
    tpu.vector_store %arg14[%c6_709, %c0_710, %c32_711], %849 {strides = array<i32>} : memref<8x2x64xf32, #tpu.memory_space<vmem>>, vector<1x2x32xf32>,
    %cst_712 = arith.constant dense<0.000000e+00> : vector<2x64xf32>
    %850 = tpu.matmul %841, %751, %cst_712 {dimension_numbers = #tpu.dot_dimension_numbers<[1], [0], [0], [1], [0, 0, 1, 1], [], []>} : vector<2x64xf32>, vector<64x64xf32>, vector<2x64xf32> -> vector<2x64xf32>
    %c0_713 = arith.constant 0 : index
    %c2_714 = arith.constant 2 : index
    %c0_715 = arith.constant 0 : index
    %c0_716 = arith.constant 0 : index
    %851 = vector.load %arg13[%c0_713, %c2_714, %c0_715, %c0_716] : memref<4x8x2x64xf32, #tpu.memory_space<vmem>>, vector<1x1x2x64xf32>
    %852 = vector.shape_cast %851 : vector<1x1x2x64xf32> to vector<2x64xf32>
    %853 = arith.addf %850, %852 : vector<2x64xf32>
    %854 = arith.negf %853 : vector<2x64xf32>
    %855 = math.exp %854 : vector<2x64xf32>
    %cst_717 = arith.constant 1.000000e+00 : f32
    %856 = vector.broadcast %cst_717 : f32 to vector<2x64xf32>
    %857 = arith.addf %856, %855 : vector<2x64xf32>
    %858 = arith.divf %856, %857 : vector<2x64xf32>
    %cst_718 = arith.constant dense<0.000000e+00> : vector<2x64xf32>
    %859 = tpu.matmul %841, %753, %cst_718 {dimension_numbers = #tpu.dot_dimension_numbers<[1], [0], [0], [1], [0, 0, 1, 1], [], []>} : vector<2x64xf32>, vector<64x64xf32>, vector<2x64xf32> -> vector<2x64xf32>
    %c1_719 = arith.constant 1 : index
    %c2_720 = arith.constant 2 : index
    %c0_721 = arith.constant 0 : index
    %c0_722 = arith.constant 0 : index
    %860 = vector.load %arg13[%c1_719, %c2_720, %c0_721, %c0_722] : memref<4x8x2x64xf32, #tpu.memory_space<vmem>>, vector<1x1x2x64xf32>
    %861 = vector.shape_cast %860 : vector<1x1x2x64xf32> to vector<2x64xf32>
    %862 = arith.addf %859, %861 : vector<2x64xf32>
    %863 = arith.negf %862 : vector<2x64xf32>
    %864 = math.exp %863 : vector<2x64xf32>
    %cst_723 = arith.constant 1.000000e+00 : f32
    %865 = vector.broadcast %cst_723 : f32 to vector<2x64xf32>
    %866 = arith.addf %865, %864 : vector<2x64xf32>
    %867 = arith.divf %865, %866 : vector<2x64xf32>
    %cst_724 = arith.constant dense<0.000000e+00> : vector<2x64xf32>
    %868 = tpu.matmul %841, %755, %cst_724 {dimension_numbers = #tpu.dot_dimension_numbers<[1], [0], [0], [1], [0, 0, 1, 1], [], []>} : vector<2x64xf32>, vector<64x64xf32>, vector<2x64xf32> -> vector<2x64xf32>
    %c2_725 = arith.constant 2 : index
    %c2_726 = arith.constant 2 : index
    %c0_727 = arith.constant 0 : index
    %c0_728 = arith.constant 0 : index
    %869 = vector.load %arg13[%c2_725, %c2_726, %c0_727, %c0_728] : memref<4x8x2x64xf32, #tpu.memory_space<vmem>>, vector<1x1x2x64xf32>
    %870 = vector.shape_cast %869 : vector<1x1x2x64xf32> to vector<2x64xf32>
    %871 = arith.addf %868, %870 : vector<2x64xf32>
    %872 = math.tanh %871 : vector<2x64xf32>
    %cst_729 = arith.constant dense<0.000000e+00> : vector<2x64xf32>
    %873 = tpu.matmul %841, %757, %cst_729 {dimension_numbers = #tpu.dot_dimension_numbers<[1], [0], [0], [1], [0, 0, 1, 1], [], []>} : vector<2x64xf32>, vector<64x64xf32>, vector<2x64xf32> -> vector<2x64xf32>
    %c3_730 = arith.constant 3 : index
    %c2_731 = arith.constant 2 : index
    %c0_732 = arith.constant 0 : index
    %c0_733 = arith.constant 0 : index
    %874 = vector.load %arg13[%c3_730, %c2_731, %c0_732, %c0_733] : memref<4x8x2x64xf32, #tpu.memory_space<vmem>>, vector<1x1x2x64xf32>
    %875 = vector.shape_cast %874 : vector<1x1x2x64xf32> to vector<2x64xf32>
    %876 = arith.addf %873, %875 : vector<2x64xf32>
    %877 = arith.negf %876 : vector<2x64xf32>
    %878 = math.exp %877 : vector<2x64xf32>
    %cst_734 = arith.constant 1.000000e+00 : f32
    %879 = vector.broadcast %cst_734 : f32 to vector<2x64xf32>
    %880 = arith.addf %879, %878 : vector<2x64xf32>
    %881 = arith.divf %879, %880 : vector<2x64xf32>
    %882 = arith.mulf %867, %839 : vector<2x64xf32>
    %883 = arith.mulf %858, %872 : vector<2x64xf32>
    %884 = arith.addf %882, %883 : vector<2x64xf32>
    %885 = math.tanh %884 : vector<2x64xf32>
    %886 = arith.mulf %881, %885 : vector<2x64xf32>
    %887 = vector.extract_strided_slice %886 {offsets = [0, 0], sizes = [2, 32], strides = [1, 1]} : vector<2x64xf32> to vector<2x32xf32>
    %c2_735 = arith.constant 2 : index
    %c0_736 = arith.constant 0 : index
    %c0_737 = arith.constant 0 : index
    %888 = vector.load %arg14[%c2_735, %c0_736, %c0_737] : memref<8x2x64xf32, #tpu.memory_space<vmem>>, vector<1x2x32xf32>
    %889 = vector.shape_cast %888 : vector<1x2x32xf32> to vector<2x32xf32>
    %890 = vector.shape_cast %887 : vector<2x32xf32> to vector<1x2x32xf32>
    tpu.vector_store %arg14[%c2_735, %c0_736, %c0_737], %890 {strides = array<i32>} : memref<8x2x64xf32, #tpu.memory_space<vmem>>, vector<1x2x32xf32>,
    %891 = vector.extract_strided_slice %886 {offsets = [0, 32], sizes = [2, 32], strides = [1, 1]} : vector<2x64xf32> to vector<2x32xf32>
    %c5_738 = arith.constant 5 : index
    %c0_739 = arith.constant 0 : index
    %c32_740 = arith.constant 32 : index
    %892 = vector.load %arg14[%c5_738, %c0_739, %c32_740] : memref<8x2x64xf32, #tpu.memory_space<vmem>>, vector<1x2x32xf32>
    %893 = vector.shape_cast %892 : vector<1x2x32xf32> to vector<2x32xf32>
    %894 = vector.shape_cast %891 : vector<2x32xf32> to vector<1x2x32xf32>
    tpu.vector_store %arg14[%c5_738, %c0_739, %c32_740], %894 {strides = array<i32>} : memref<8x2x64xf32, #tpu.memory_space<vmem>>, vector<1x2x32xf32>,
    %cst_741 = arith.constant dense<0.000000e+00> : vector<2x64xf32>
    %895 = tpu.matmul %886, %751, %cst_741 {dimension_numbers = #tpu.dot_dimension_numbers<[1], [0], [0], [1], [0, 0, 1, 1], [], []>} : vector<2x64xf32>, vector<64x64xf32>, vector<2x64xf32> -> vector<2x64xf32>
    %c0_742 = arith.constant 0 : index
    %c3_743 = arith.constant 3 : index
    %c0_744 = arith.constant 0 : index
    %c0_745 = arith.constant 0 : index
    %896 = vector.load %arg13[%c0_742, %c3_743, %c0_744, %c0_745] : memref<4x8x2x64xf32, #tpu.memory_space<vmem>>, vector<1x1x2x64xf32>
    %897 = vector.shape_cast %896 : vector<1x1x2x64xf32> to vector<2x64xf32>
    %898 = arith.addf %895, %897 : vector<2x64xf32>
    %899 = arith.negf %898 : vector<2x64xf32>
    %900 = math.exp %899 : vector<2x64xf32>
    %cst_746 = arith.constant 1.000000e+00 : f32
    %901 = vector.broadcast %cst_746 : f32 to vector<2x64xf32>
    %902 = arith.addf %901, %900 : vector<2x64xf32>
    %903 = arith.divf %901, %902 : vector<2x64xf32>
    %cst_747 = arith.constant dense<0.000000e+00> : vector<2x64xf32>
    %904 = tpu.matmul %886, %753, %cst_747 {dimension_numbers = #tpu.dot_dimension_numbers<[1], [0], [0], [1], [0, 0, 1, 1], [], []>} : vector<2x64xf32>, vector<64x64xf32>, vector<2x64xf32> -> vector<2x64xf32>
    %c1_748 = arith.constant 1 : index
    %c3_749 = arith.constant 3 : index
    %c0_750 = arith.constant 0 : index
    %c0_751 = arith.constant 0 : index
    %905 = vector.load %arg13[%c1_748, %c3_749, %c0_750, %c0_751] : memref<4x8x2x64xf32, #tpu.memory_space<vmem>>, vector<1x1x2x64xf32>
    %906 = vector.shape_cast %905 : vector<1x1x2x64xf32> to vector<2x64xf32>
    %907 = arith.addf %904, %906 : vector<2x64xf32>
    %908 = arith.negf %907 : vector<2x64xf32>
    %909 = math.exp %908 : vector<2x64xf32>
    %cst_752 = arith.constant 1.000000e+00 : f32
    %910 = vector.broadcast %cst_752 : f32 to vector<2x64xf32>
    %911 = arith.addf %910, %909 : vector<2x64xf32>
    %912 = arith.divf %910, %911 : vector<2x64xf32>
    %cst_753 = arith.constant dense<0.000000e+00> : vector<2x64xf32>
    %913 = tpu.matmul %886, %755, %cst_753 {dimension_numbers = #tpu.dot_dimension_numbers<[1], [0], [0], [1], [0, 0, 1, 1], [], []>} : vector<2x64xf32>, vector<64x64xf32>, vector<2x64xf32> -> vector<2x64xf32>
    %c2_754 = arith.constant 2 : index
    %c3_755 = arith.constant 3 : index
    %c0_756 = arith.constant 0 : index
    %c0_757 = arith.constant 0 : index
    %914 = vector.load %arg13[%c2_754, %c3_755, %c0_756, %c0_757] : memref<4x8x2x64xf32, #tpu.memory_space<vmem>>, vector<1x1x2x64xf32>
    %915 = vector.shape_cast %914 : vector<1x1x2x64xf32> to vector<2x64xf32>
    %916 = arith.addf %913, %915 : vector<2x64xf32>
    %917 = math.tanh %916 : vector<2x64xf32>
    %cst_758 = arith.constant dense<0.000000e+00> : vector<2x64xf32>
    %918 = tpu.matmul %886, %757, %cst_758 {dimension_numbers = #tpu.dot_dimension_numbers<[1], [0], [0], [1], [0, 0, 1, 1], [], []>} : vector<2x64xf32>, vector<64x64xf32>, vector<2x64xf32> -> vector<2x64xf32>
    %c3_759 = arith.constant 3 : index
    %c3_760 = arith.constant 3 : index
    %c0_761 = arith.constant 0 : index
    %c0_762 = arith.constant 0 : index
    %919 = vector.load %arg13[%c3_759, %c3_760, %c0_761, %c0_762] : memref<4x8x2x64xf32, #tpu.memory_space<vmem>>, vector<1x1x2x64xf32>
    %920 = vector.shape_cast %919 : vector<1x1x2x64xf32> to vector<2x64xf32>
    %921 = arith.addf %918, %920 : vector<2x64xf32>
    %922 = arith.negf %921 : vector<2x64xf32>
    %923 = math.exp %922 : vector<2x64xf32>
    %cst_763 = arith.constant 1.000000e+00 : f32
    %924 = vector.broadcast %cst_763 : f32 to vector<2x64xf32>
    %925 = arith.addf %924, %923 : vector<2x64xf32>
    %926 = arith.divf %924, %925 : vector<2x64xf32>
    %927 = arith.mulf %912, %884 : vector<2x64xf32>
    %928 = arith.mulf %903, %917 : vector<2x64xf32>
    %929 = arith.addf %927, %928 : vector<2x64xf32>
    %930 = math.tanh %929 : vector<2x64xf32>
    %931 = arith.mulf %926, %930 : vector<2x64xf32>
    %932 = vector.extract_strided_slice %931 {offsets = [0, 0], sizes = [2, 32], strides = [1, 1]} : vector<2x64xf32> to vector<2x32xf32>
    %c3_764 = arith.constant 3 : index
    %c0_765 = arith.constant 0 : index
    %c0_766 = arith.constant 0 : index
    %933 = vector.load %arg14[%c3_764, %c0_765, %c0_766] : memref<8x2x64xf32, #tpu.memory_space<vmem>>, vector<1x2x32xf32>
    %934 = vector.shape_cast %933 : vector<1x2x32xf32> to vector<2x32xf32>
    %935 = vector.shape_cast %932 : vector<2x32xf32> to vector<1x2x32xf32>
    tpu.vector_store %arg14[%c3_764, %c0_765, %c0_766], %935 {strides = array<i32>} : memref<8x2x64xf32, #tpu.memory_space<vmem>>, vector<1x2x32xf32>,
    %936 = vector.extract_strided_slice %931 {offsets = [0, 32], sizes = [2, 32], strides = [1, 1]} : vector<2x64xf32> to vector<2x32xf32>
    %c4_767 = arith.constant 4 : index
    %c0_768 = arith.constant 0 : index
    %c32_769 = arith.constant 32 : index
    %937 = vector.load %arg14[%c4_767, %c0_768, %c32_769] : memref<8x2x64xf32, #tpu.memory_space<vmem>>, vector<1x2x32xf32>
    %938 = vector.shape_cast %937 : vector<1x2x32xf32> to vector<2x32xf32>
    %939 = vector.shape_cast %936 : vector<2x32xf32> to vector<1x2x32xf32>
    tpu.vector_store %arg14[%c4_767, %c0_768, %c32_769], %939 {strides = array<i32>} : memref<8x2x64xf32, #tpu.memory_space<vmem>>, vector<1x2x32xf32>,
    %cst_770 = arith.constant dense<0.000000e+00> : vector<2x64xf32>
    %940 = tpu.matmul %931, %751, %cst_770 {dimension_numbers = #tpu.dot_dimension_numbers<[1], [0], [0], [1], [0, 0, 1, 1], [], []>} : vector<2x64xf32>, vector<64x64xf32>, vector<2x64xf32> -> vector<2x64xf32>
    %c0_771 = arith.constant 0 : index
    %c4_772 = arith.constant 4 : index
    %c0_773 = arith.constant 0 : index
    %c0_774 = arith.constant 0 : index
    %941 = vector.load %arg13[%c0_771, %c4_772, %c0_773, %c0_774] : memref<4x8x2x64xf32, #tpu.memory_space<vmem>>, vector<1x1x2x64xf32>
    %942 = vector.shape_cast %941 : vector<1x1x2x64xf32> to vector<2x64xf32>
    %943 = arith.addf %940, %942 : vector<2x64xf32>
    %944 = arith.negf %943 : vector<2x64xf32>
    %945 = math.exp %944 : vector<2x64xf32>
    %cst_775 = arith.constant 1.000000e+00 : f32
    %946 = vector.broadcast %cst_775 : f32 to vector<2x64xf32>
    %947 = arith.addf %946, %945 : vector<2x64xf32>
    %948 = arith.divf %946, %947 : vector<2x64xf32>
    %cst_776 = arith.constant dense<0.000000e+00> : vector<2x64xf32>
    %949 = tpu.matmul %931, %753, %cst_776 {dimension_numbers = #tpu.dot_dimension_numbers<[1], [0], [0], [1], [0, 0, 1, 1], [], []>} : vector<2x64xf32>, vector<64x64xf32>, vector<2x64xf32> -> vector<2x64xf32>
    %c1_777 = arith.constant 1 : index
    %c4_778 = arith.constant 4 : index
    %c0_779 = arith.constant 0 : index
    %c0_780 = arith.constant 0 : index
    %950 = vector.load %arg13[%c1_777, %c4_778, %c0_779, %c0_780] : memref<4x8x2x64xf32, #tpu.memory_space<vmem>>, vector<1x1x2x64xf32>
    %951 = vector.shape_cast %950 : vector<1x1x2x64xf32> to vector<2x64xf32>
    %952 = arith.addf %949, %951 : vector<2x64xf32>
    %953 = arith.negf %952 : vector<2x64xf32>
    %954 = math.exp %953 : vector<2x64xf32>
    %cst_781 = arith.constant 1.000000e+00 : f32
    %955 = vector.broadcast %cst_781 : f32 to vector<2x64xf32>
    %956 = arith.addf %955, %954 : vector<2x64xf32>
    %957 = arith.divf %955, %956 : vector<2x64xf32>
    %cst_782 = arith.constant dense<0.000000e+00> : vector<2x64xf32>
    %958 = tpu.matmul %931, %755, %cst_782 {dimension_numbers = #tpu.dot_dimension_numbers<[1], [0], [0], [1], [0, 0, 1, 1], [], []>} : vector<2x64xf32>, vector<64x64xf32>, vector<2x64xf32> -> vector<2x64xf32>
    %c2_783 = arith.constant 2 : index
    %c4_784 = arith.constant 4 : index
    %c0_785 = arith.constant 0 : index
    %c0_786 = arith.constant 0 : index
    %959 = vector.load %arg13[%c2_783, %c4_784, %c0_785, %c0_786] : memref<4x8x2x64xf32, #tpu.memory_space<vmem>>, vector<1x1x2x64xf32>
    %960 = vector.shape_cast %959 : vector<1x1x2x64xf32> to vector<2x64xf32>
    %961 = arith.addf %958, %960 : vector<2x64xf32>
    %962 = math.tanh %961 : vector<2x64xf32>
    %cst_787 = arith.constant dense<0.000000e+00> : vector<2x64xf32>
    %963 = tpu.matmul %931, %757, %cst_787 {dimension_numbers = #tpu.dot_dimension_numbers<[1], [0], [0], [1], [0, 0, 1, 1], [], []>} : vector<2x64xf32>, vector<64x64xf32>, vector<2x64xf32> -> vector<2x64xf32>
    %c3_788 = arith.constant 3 : index
    %c4_789 = arith.constant 4 : index
    %c0_790 = arith.constant 0 : index
    %c0_791 = arith.constant 0 : index
    %964 = vector.load %arg13[%c3_788, %c4_789, %c0_790, %c0_791] : memref<4x8x2x64xf32, #tpu.memory_space<vmem>>, vector<1x1x2x64xf32>
    %965 = vector.shape_cast %964 : vector<1x1x2x64xf32> to vector<2x64xf32>
    %966 = arith.addf %963, %965 : vector<2x64xf32>
    %967 = arith.negf %966 : vector<2x64xf32>
    %968 = math.exp %967 : vector<2x64xf32>
    %cst_792 = arith.constant 1.000000e+00 : f32
    %969 = vector.broadcast %cst_792 : f32 to vector<2x64xf32>
    %970 = arith.addf %969, %968 : vector<2x64xf32>
    %971 = arith.divf %969, %970 : vector<2x64xf32>
    %972 = arith.mulf %957, %929 : vector<2x64xf32>
    %973 = arith.mulf %948, %962 : vector<2x64xf32>
    %974 = arith.addf %972, %973 : vector<2x64xf32>
    %975 = math.tanh %974 : vector<2x64xf32>
    %976 = arith.mulf %971, %975 : vector<2x64xf32>
    %977 = vector.extract_strided_slice %976 {offsets = [0, 0], sizes = [2, 32], strides = [1, 1]} : vector<2x64xf32> to vector<2x32xf32>
    %c4_793 = arith.constant 4 : index
    %c0_794 = arith.constant 0 : index
    %c0_795 = arith.constant 0 : index
    %978 = vector.load %arg14[%c4_793, %c0_794, %c0_795] : memref<8x2x64xf32, #tpu.memory_space<vmem>>, vector<1x2x32xf32>
    %979 = vector.shape_cast %978 : vector<1x2x32xf32> to vector<2x32xf32>
    %980 = vector.shape_cast %977 : vector<2x32xf32> to vector<1x2x32xf32>
    tpu.vector_store %arg14[%c4_793, %c0_794, %c0_795], %980 {strides = array<i32>} : memref<8x2x64xf32, #tpu.memory_space<vmem>>, vector<1x2x32xf32>,
    %981 = vector.extract_strided_slice %976 {offsets = [0, 32], sizes = [2, 32], strides = [1, 1]} : vector<2x64xf32> to vector<2x32xf32>
    %c3_796 = arith.constant 3 : index
    %c0_797 = arith.constant 0 : index
    %c32_798 = arith.constant 32 : index
    %982 = vector.load %arg14[%c3_796, %c0_797, %c32_798] : memref<8x2x64xf32, #tpu.memory_space<vmem>>, vector<1x2x32xf32>
    %983 = vector.shape_cast %982 : vector<1x2x32xf32> to vector<2x32xf32>
    %984 = vector.shape_cast %981 : vector<2x32xf32> to vector<1x2x32xf32>
    tpu.vector_store %arg14[%c3_796, %c0_797, %c32_798], %984 {strides = array<i32>} : memref<8x2x64xf32, #tpu.memory_space<vmem>>, vector<1x2x32xf32>,
    %cst_799 = arith.constant dense<0.000000e+00> : vector<2x64xf32>
    %985 = tpu.matmul %976, %751, %cst_799 {dimension_numbers = #tpu.dot_dimension_numbers<[1], [0], [0], [1], [0, 0, 1, 1], [], []>} : vector<2x64xf32>, vector<64x64xf32>, vector<2x64xf32> -> vector<2x64xf32>
    %c0_800 = arith.constant 0 : index
    %c5_801 = arith.constant 5 : index
    %c0_802 = arith.constant 0 : index
    %c0_803 = arith.constant 0 : index
    %986 = vector.load %arg13[%c0_800, %c5_801, %c0_802, %c0_803] : memref<4x8x2x64xf32, #tpu.memory_space<vmem>>, vector<1x1x2x64xf32>
    %987 = vector.shape_cast %986 : vector<1x1x2x64xf32> to vector<2x64xf32>
    %988 = arith.addf %985, %987 : vector<2x64xf32>
    %989 = arith.negf %988 : vector<2x64xf32>
    %990 = math.exp %989 : vector<2x64xf32>
    %cst_804 = arith.constant 1.000000e+00 : f32
    %991 = vector.broadcast %cst_804 : f32 to vector<2x64xf32>
    %992 = arith.addf %991, %990 : vector<2x64xf32>
    %993 = arith.divf %991, %992 : vector<2x64xf32>
    %cst_805 = arith.constant dense<0.000000e+00> : vector<2x64xf32>
    %994 = tpu.matmul %976, %753, %cst_805 {dimension_numbers = #tpu.dot_dimension_numbers<[1], [0], [0], [1], [0, 0, 1, 1], [], []>} : vector<2x64xf32>, vector<64x64xf32>, vector<2x64xf32> -> vector<2x64xf32>
    %c1_806 = arith.constant 1 : index
    %c5_807 = arith.constant 5 : index
    %c0_808 = arith.constant 0 : index
    %c0_809 = arith.constant 0 : index
    %995 = vector.load %arg13[%c1_806, %c5_807, %c0_808, %c0_809] : memref<4x8x2x64xf32, #tpu.memory_space<vmem>>, vector<1x1x2x64xf32>
    %996 = vector.shape_cast %995 : vector<1x1x2x64xf32> to vector<2x64xf32>
    %997 = arith.addf %994, %996 : vector<2x64xf32>
    %998 = arith.negf %997 : vector<2x64xf32>
    %999 = math.exp %998 : vector<2x64xf32>
    %cst_810 = arith.constant 1.000000e+00 : f32
    %1000 = vector.broadcast %cst_810 : f32 to vector<2x64xf32>
    %1001 = arith.addf %1000, %999 : vector<2x64xf32>
    %1002 = arith.divf %1000, %1001 : vector<2x64xf32>
    %cst_811 = arith.constant dense<0.000000e+00> : vector<2x64xf32>
    %1003 = tpu.matmul %976, %755, %cst_811 {dimension_numbers = #tpu.dot_dimension_numbers<[1], [0], [0], [1], [0, 0, 1, 1], [], []>} : vector<2x64xf32>, vector<64x64xf32>, vector<2x64xf32> -> vector<2x64xf32>
    %c2_812 = arith.constant 2 : index
    %c5_813 = arith.constant 5 : index
    %c0_814 = arith.constant 0 : index
    %c0_815 = arith.constant 0 : index
    %1004 = vector.load %arg13[%c2_812, %c5_813, %c0_814, %c0_815] : memref<4x8x2x64xf32, #tpu.memory_space<vmem>>, vector<1x1x2x64xf32>
    %1005 = vector.shape_cast %1004 : vector<1x1x2x64xf32> to vector<2x64xf32>
    %1006 = arith.addf %1003, %1005 : vector<2x64xf32>
    %1007 = math.tanh %1006 : vector<2x64xf32>
    %cst_816 = arith.constant dense<0.000000e+00> : vector<2x64xf32>
    %1008 = tpu.matmul %976, %757, %cst_816 {dimension_numbers = #tpu.dot_dimension_numbers<[1], [0], [0], [1], [0, 0, 1, 1], [], []>} : vector<2x64xf32>, vector<64x64xf32>, vector<2x64xf32> -> vector<2x64xf32>
    %c3_817 = arith.constant 3 : index
    %c5_818 = arith.constant 5 : index
    %c0_819 = arith.constant 0 : index
    %c0_820 = arith.constant 0 : index
    %1009 = vector.load %arg13[%c3_817, %c5_818, %c0_819, %c0_820] : memref<4x8x2x64xf32, #tpu.memory_space<vmem>>, vector<1x1x2x64xf32>
    %1010 = vector.shape_cast %1009 : vector<1x1x2x64xf32> to vector<2x64xf32>
    %1011 = arith.addf %1008, %1010 : vector<2x64xf32>
    %1012 = arith.negf %1011 : vector<2x64xf32>
    %1013 = math.exp %1012 : vector<2x64xf32>
    %cst_821 = arith.constant 1.000000e+00 : f32
    %1014 = vector.broadcast %cst_821 : f32 to vector<2x64xf32>
    %1015 = arith.addf %1014, %1013 : vector<2x64xf32>
    %1016 = arith.divf %1014, %1015 : vector<2x64xf32>
    %1017 = arith.mulf %1002, %974 : vector<2x64xf32>
    %1018 = arith.mulf %993, %1007 : vector<2x64xf32>
    %1019 = arith.addf %1017, %1018 : vector<2x64xf32>
    %1020 = math.tanh %1019 : vector<2x64xf32>
    %1021 = arith.mulf %1016, %1020 : vector<2x64xf32>
    %1022 = vector.extract_strided_slice %1021 {offsets = [0, 0], sizes = [2, 32], strides = [1, 1]} : vector<2x64xf32> to vector<2x32xf32>
    %c5_822 = arith.constant 5 : index
    %c0_823 = arith.constant 0 : index
    %c0_824 = arith.constant 0 : index
    %1023 = vector.load %arg14[%c5_822, %c0_823, %c0_824] : memref<8x2x64xf32, #tpu.memory_space<vmem>>, vector<1x2x32xf32>
    %1024 = vector.shape_cast %1023 : vector<1x2x32xf32> to vector<2x32xf32>
    %1025 = vector.shape_cast %1022 : vector<2x32xf32> to vector<1x2x32xf32>
    tpu.vector_store %arg14[%c5_822, %c0_823, %c0_824], %1025 {strides = array<i32>} : memref<8x2x64xf32, #tpu.memory_space<vmem>>, vector<1x2x32xf32>,
    %1026 = vector.extract_strided_slice %1021 {offsets = [0, 32], sizes = [2, 32], strides = [1, 1]} : vector<2x64xf32> to vector<2x32xf32>
    %c2_825 = arith.constant 2 : index
    %c0_826 = arith.constant 0 : index
    %c32_827 = arith.constant 32 : index
    %1027 = vector.load %arg14[%c2_825, %c0_826, %c32_827] : memref<8x2x64xf32, #tpu.memory_space<vmem>>, vector<1x2x32xf32>
    %1028 = vector.shape_cast %1027 : vector<1x2x32xf32> to vector<2x32xf32>
    %1029 = vector.shape_cast %1026 : vector<2x32xf32> to vector<1x2x32xf32>
    tpu.vector_store %arg14[%c2_825, %c0_826, %c32_827], %1029 {strides = array<i32>} : memref<8x2x64xf32, #tpu.memory_space<vmem>>, vector<1x2x32xf32>,
    %cst_828 = arith.constant dense<0.000000e+00> : vector<2x64xf32>
    %1030 = tpu.matmul %1021, %751, %cst_828 {dimension_numbers = #tpu.dot_dimension_numbers<[1], [0], [0], [1], [0, 0, 1, 1], [], []>} : vector<2x64xf32>, vector<64x64xf32>, vector<2x64xf32> -> vector<2x64xf32>
    %c0_829 = arith.constant 0 : index
    %c6_830 = arith.constant 6 : index
    %c0_831 = arith.constant 0 : index
    %c0_832 = arith.constant 0 : index
    %1031 = vector.load %arg13[%c0_829, %c6_830, %c0_831, %c0_832] : memref<4x8x2x64xf32, #tpu.memory_space<vmem>>, vector<1x1x2x64xf32>
    %1032 = vector.shape_cast %1031 : vector<1x1x2x64xf32> to vector<2x64xf32>
    %1033 = arith.addf %1030, %1032 : vector<2x64xf32>
    %1034 = arith.negf %1033 : vector<2x64xf32>
    %1035 = math.exp %1034 : vector<2x64xf32>
    %cst_833 = arith.constant 1.000000e+00 : f32
    %1036 = vector.broadcast %cst_833 : f32 to vector<2x64xf32>
    %1037 = arith.addf %1036, %1035 : vector<2x64xf32>
    %1038 = arith.divf %1036, %1037 : vector<2x64xf32>
    %cst_834 = arith.constant dense<0.000000e+00> : vector<2x64xf32>
    %1039 = tpu.matmul %1021, %753, %cst_834 {dimension_numbers = #tpu.dot_dimension_numbers<[1], [0], [0], [1], [0, 0, 1, 1], [], []>} : vector<2x64xf32>, vector<64x64xf32>, vector<2x64xf32> -> vector<2x64xf32>
    %c1_835 = arith.constant 1 : index
    %c6_836 = arith.constant 6 : index
    %c0_837 = arith.constant 0 : index
    %c0_838 = arith.constant 0 : index
    %1040 = vector.load %arg13[%c1_835, %c6_836, %c0_837, %c0_838] : memref<4x8x2x64xf32, #tpu.memory_space<vmem>>, vector<1x1x2x64xf32>
    %1041 = vector.shape_cast %1040 : vector<1x1x2x64xf32> to vector<2x64xf32>
    %1042 = arith.addf %1039, %1041 : vector<2x64xf32>
    %1043 = arith.negf %1042 : vector<2x64xf32>
    %1044 = math.exp %1043 : vector<2x64xf32>
    %cst_839 = arith.constant 1.000000e+00 : f32
    %1045 = vector.broadcast %cst_839 : f32 to vector<2x64xf32>
    %1046 = arith.addf %1045, %1044 : vector<2x64xf32>
    %1047 = arith.divf %1045, %1046 : vector<2x64xf32>
    %cst_840 = arith.constant dense<0.000000e+00> : vector<2x64xf32>
    %1048 = tpu.matmul %1021, %755, %cst_840 {dimension_numbers = #tpu.dot_dimension_numbers<[1], [0], [0], [1], [0, 0, 1, 1], [], []>} : vector<2x64xf32>, vector<64x64xf32>, vector<2x64xf32> -> vector<2x64xf32>
    %c2_841 = arith.constant 2 : index
    %c6_842 = arith.constant 6 : index
    %c0_843 = arith.constant 0 : index
    %c0_844 = arith.constant 0 : index
    %1049 = vector.load %arg13[%c2_841, %c6_842, %c0_843, %c0_844] : memref<4x8x2x64xf32, #tpu.memory_space<vmem>>, vector<1x1x2x64xf32>
    %1050 = vector.shape_cast %1049 : vector<1x1x2x64xf32> to vector<2x64xf32>
    %1051 = arith.addf %1048, %1050 : vector<2x64xf32>
    %1052 = math.tanh %1051 : vector<2x64xf32>
    %cst_845 = arith.constant dense<0.000000e+00> : vector<2x64xf32>
    %1053 = tpu.matmul %1021, %757, %cst_845 {dimension_numbers = #tpu.dot_dimension_numbers<[1], [0], [0], [1], [0, 0, 1, 1], [], []>} : vector<2x64xf32>, vector<64x64xf32>, vector<2x64xf32> -> vector<2x64xf32>
    %c3_846 = arith.constant 3 : index
    %c6_847 = arith.constant 6 : index
    %c0_848 = arith.constant 0 : index
    %c0_849 = arith.constant 0 : index
    %1054 = vector.load %arg13[%c3_846, %c6_847, %c0_848, %c0_849] : memref<4x8x2x64xf32, #tpu.memory_space<vmem>>, vector<1x1x2x64xf32>
    %1055 = vector.shape_cast %1054 : vector<1x1x2x64xf32> to vector<2x64xf32>
    %1056 = arith.addf %1053, %1055 : vector<2x64xf32>
    %1057 = arith.negf %1056 : vector<2x64xf32>
    %1058 = math.exp %1057 : vector<2x64xf32>
    %cst_850 = arith.constant 1.000000e+00 : f32
    %1059 = vector.broadcast %cst_850 : f32 to vector<2x64xf32>
    %1060 = arith.addf %1059, %1058 : vector<2x64xf32>
    %1061 = arith.divf %1059, %1060 : vector<2x64xf32>
    %1062 = arith.mulf %1047, %1019 : vector<2x64xf32>
    %1063 = arith.mulf %1038, %1052 : vector<2x64xf32>
    %1064 = arith.addf %1062, %1063 : vector<2x64xf32>
    %1065 = math.tanh %1064 : vector<2x64xf32>
    %1066 = arith.mulf %1061, %1065 : vector<2x64xf32>
    %1067 = vector.extract_strided_slice %1066 {offsets = [0, 0], sizes = [2, 32], strides = [1, 1]} : vector<2x64xf32> to vector<2x32xf32>
    %c6_851 = arith.constant 6 : index
    %c0_852 = arith.constant 0 : index
    %c0_853 = arith.constant 0 : index
    %1068 = vector.load %arg14[%c6_851, %c0_852, %c0_853] : memref<8x2x64xf32, #tpu.memory_space<vmem>>, vector<1x2x32xf32>
    %1069 = vector.shape_cast %1068 : vector<1x2x32xf32> to vector<2x32xf32>
    %1070 = vector.shape_cast %1067 : vector<2x32xf32> to vector<1x2x32xf32>
    tpu.vector_store %arg14[%c6_851, %c0_852, %c0_853], %1070 {strides = array<i32>} : memref<8x2x64xf32, #tpu.memory_space<vmem>>, vector<1x2x32xf32>,
    %1071 = vector.extract_strided_slice %1066 {offsets = [0, 32], sizes = [2, 32], strides = [1, 1]} : vector<2x64xf32> to vector<2x32xf32>
    %c1_854 = arith.constant 1 : index
    %c0_855 = arith.constant 0 : index
    %c32_856 = arith.constant 32 : index
    %1072 = vector.load %arg14[%c1_854, %c0_855, %c32_856] : memref<8x2x64xf32, #tpu.memory_space<vmem>>, vector<1x2x32xf32>
    %1073 = vector.shape_cast %1072 : vector<1x2x32xf32> to vector<2x32xf32>
    %1074 = vector.shape_cast %1071 : vector<2x32xf32> to vector<1x2x32xf32>
    tpu.vector_store %arg14[%c1_854, %c0_855, %c32_856], %1074 {strides = array<i32>} : memref<8x2x64xf32, #tpu.memory_space<vmem>>, vector<1x2x32xf32>,
    %cst_857 = arith.constant dense<0.000000e+00> : vector<2x64xf32>
    %1075 = tpu.matmul %1066, %751, %cst_857 {dimension_numbers = #tpu.dot_dimension_numbers<[1], [0], [0], [1], [0, 0, 1, 1], [], []>} : vector<2x64xf32>, vector<64x64xf32>, vector<2x64xf32> -> vector<2x64xf32>
    %c0_858 = arith.constant 0 : index
    %c7_859 = arith.constant 7 : index
    %c0_860 = arith.constant 0 : index
    %c0_861 = arith.constant 0 : index
    %1076 = vector.load %arg13[%c0_858, %c7_859, %c0_860, %c0_861] : memref<4x8x2x64xf32, #tpu.memory_space<vmem>>, vector<1x1x2x64xf32>
    %1077 = vector.shape_cast %1076 : vector<1x1x2x64xf32> to vector<2x64xf32>
    %1078 = arith.addf %1075, %1077 : vector<2x64xf32>
    %1079 = arith.negf %1078 : vector<2x64xf32>
    %1080 = math.exp %1079 : vector<2x64xf32>
    %cst_862 = arith.constant 1.000000e+00 : f32
    %1081 = vector.broadcast %cst_862 : f32 to vector<2x64xf32>
    %1082 = arith.addf %1081, %1080 : vector<2x64xf32>
    %1083 = arith.divf %1081, %1082 : vector<2x64xf32>
    %cst_863 = arith.constant dense<0.000000e+00> : vector<2x64xf32>
    %1084 = tpu.matmul %1066, %753, %cst_863 {dimension_numbers = #tpu.dot_dimension_numbers<[1], [0], [0], [1], [0, 0, 1, 1], [], []>} : vector<2x64xf32>, vector<64x64xf32>, vector<2x64xf32> -> vector<2x64xf32>
    %c1_864 = arith.constant 1 : index
    %c7_865 = arith.constant 7 : index
    %c0_866 = arith.constant 0 : index
    %c0_867 = arith.constant 0 : index
    %1085 = vector.load %arg13[%c1_864, %c7_865, %c0_866, %c0_867] : memref<4x8x2x64xf32, #tpu.memory_space<vmem>>, vector<1x1x2x64xf32>
    %1086 = vector.shape_cast %1085 : vector<1x1x2x64xf32> to vector<2x64xf32>
    %1087 = arith.addf %1084, %1086 : vector<2x64xf32>
    %1088 = arith.negf %1087 : vector<2x64xf32>
    %1089 = math.exp %1088 : vector<2x64xf32>
    %cst_868 = arith.constant 1.000000e+00 : f32
    %1090 = vector.broadcast %cst_868 : f32 to vector<2x64xf32>
    %1091 = arith.addf %1090, %1089 : vector<2x64xf32>
    %1092 = arith.divf %1090, %1091 : vector<2x64xf32>
    %cst_869 = arith.constant dense<0.000000e+00> : vector<2x64xf32>
    %1093 = tpu.matmul %1066, %755, %cst_869 {dimension_numbers = #tpu.dot_dimension_numbers<[1], [0], [0], [1], [0, 0, 1, 1], [], []>} : vector<2x64xf32>, vector<64x64xf32>, vector<2x64xf32> -> vector<2x64xf32>
    %c2_870 = arith.constant 2 : index
    %c7_871 = arith.constant 7 : index
    %c0_872 = arith.constant 0 : index
    %c0_873 = arith.constant 0 : index
    %1094 = vector.load %arg13[%c2_870, %c7_871, %c0_872, %c0_873] : memref<4x8x2x64xf32, #tpu.memory_space<vmem>>, vector<1x1x2x64xf32>
    %1095 = vector.shape_cast %1094 : vector<1x1x2x64xf32> to vector<2x64xf32>
    %1096 = arith.addf %1093, %1095 : vector<2x64xf32>
    %1097 = math.tanh %1096 : vector<2x64xf32>
    %cst_874 = arith.constant dense<0.000000e+00> : vector<2x64xf32>
    %1098 = tpu.matmul %1066, %757, %cst_874 {dimension_numbers = #tpu.dot_dimension_numbers<[1], [0], [0], [1], [0, 0, 1, 1], [], []>} : vector<2x64xf32>, vector<64x64xf32>, vector<2x64xf32> -> vector<2x64xf32>
    %c3_875 = arith.constant 3 : index
    %c7_876 = arith.constant 7 : index
    %c0_877 = arith.constant 0 : index
    %c0_878 = arith.constant 0 : index
    %1099 = vector.load %arg13[%c3_875, %c7_876, %c0_877, %c0_878] : memref<4x8x2x64xf32, #tpu.memory_space<vmem>>, vector<1x1x2x64xf32>
    %1100 = vector.shape_cast %1099 : vector<1x1x2x64xf32> to vector<2x64xf32>
    %1101 = arith.addf %1098, %1100 : vector<2x64xf32>
    %1102 = arith.negf %1101 : vector<2x64xf32>
    %1103 = math.exp %1102 : vector<2x64xf32>
    %cst_879 = arith.constant 1.000000e+00 : f32
    %1104 = vector.broadcast %cst_879 : f32 to vector<2x64xf32>
    %1105 = arith.addf %1104, %1103 : vector<2x64xf32>
    %1106 = arith.divf %1104, %1105 : vector<2x64xf32>
    %1107 = arith.mulf %1092, %1064 : vector<2x64xf32>
    %1108 = arith.mulf %1083, %1097 : vector<2x64xf32>
    %1109 = arith.addf %1107, %1108 : vector<2x64xf32>
    %1110 = math.tanh %1109 : vector<2x64xf32>
    %1111 = arith.mulf %1106, %1110 : vector<2x64xf32>
    %1112 = vector.extract_strided_slice %1111 {offsets = [0, 0], sizes = [2, 32], strides = [1, 1]} : vector<2x64xf32> to vector<2x32xf32>
    %c7_880 = arith.constant 7 : index
    %c0_881 = arith.constant 0 : index
    %c0_882 = arith.constant 0 : index
    %1113 = vector.load %arg14[%c7_880, %c0_881, %c0_882] : memref<8x2x64xf32, #tpu.memory_space<vmem>>, vector<1x2x32xf32>
    %1114 = vector.shape_cast %1113 : vector<1x2x32xf32> to vector<2x32xf32>
    %1115 = vector.shape_cast %1112 : vector<2x32xf32> to vector<1x2x32xf32>
    tpu.vector_store %arg14[%c7_880, %c0_881, %c0_882], %1115 {strides = array<i32>} : memref<8x2x64xf32, #tpu.memory_space<vmem>>, vector<1x2x32xf32>,
    %1116 = vector.extract_strided_slice %1111 {offsets = [0, 32], sizes = [2, 32], strides = [1, 1]} : vector<2x64xf32> to vector<2x32xf32>
    %c0_883 = arith.constant 0 : index
    %c0_884 = arith.constant 0 : index
    %c32_885 = arith.constant 32 : index
    %1117 = vector.load %arg14[%c0_883, %c0_884, %c32_885] : memref<8x2x64xf32, #tpu.memory_space<vmem>>, vector<1x2x32xf32>
    %1118 = vector.shape_cast %1117 : vector<1x2x32xf32> to vector<2x32xf32>
    %1119 = vector.shape_cast %1116 : vector<2x32xf32> to vector<1x2x32xf32>
    tpu.vector_store %arg14[%c0_883, %c0_884, %c32_885], %1119 {strides = array<i32>} : memref<8x2x64xf32, #tpu.memory_space<vmem>>, vector<1x2x32xf32>,
    %c0_886 = arith.constant 0 : index
    %c0_887 = arith.constant 0 : index
    %c0_888 = arith.constant 0 : index
    %1120 = vector.load %arg14[%c0_886, %c0_887, %c0_888] : memref<8x2x64xf32, #tpu.memory_space<vmem>>, vector<1x2x64xf32>
    %1121 = vector.shape_cast %1120 : vector<1x2x64xf32> to vector<2x64xf32>
    %c0_889 = arith.constant 0 : index
    %c0_890 = arith.constant 0 : index
    %1122 = vector.load %arg15[%c0_889, %c0_890] : memref<16x64xf32, #tpu.memory_space<vmem>>, vector<2x64xf32>
    tpu.vector_store %arg15[%c0_889, %c0_890], %1121 {strides = array<i32>} : memref<16x64xf32, #tpu.memory_space<vmem>>, vector<2x64xf32>,
    %c1_891 = arith.constant 1 : index
    %c0_892 = arith.constant 0 : index
    %c0_893 = arith.constant 0 : index
    %1123 = vector.load %arg14[%c1_891, %c0_892, %c0_893] : memref<8x2x64xf32, #tpu.memory_space<vmem>>, vector<1x2x64xf32>
    %1124 = vector.shape_cast %1123 : vector<1x2x64xf32> to vector<2x64xf32>
    %c2_894 = arith.constant 2 : index
    %c0_895 = arith.constant 0 : index
    %1125 = vector.load %arg15[%c2_894, %c0_895] : memref<16x64xf32, #tpu.memory_space<vmem>>, vector<2x64xf32>
    tpu.vector_store %arg15[%c2_894, %c0_895], %1124 {strides = array<i32>} : memref<16x64xf32, #tpu.memory_space<vmem>>, vector<2x64xf32>,
    %c2_896 = arith.constant 2 : index
    %c0_897 = arith.constant 0 : index
    %c0_898 = arith.constant 0 : index
    %1126 = vector.load %arg14[%c2_896, %c0_897, %c0_898] : memref<8x2x64xf32, #tpu.memory_space<vmem>>, vector<1x2x64xf32>
    %1127 = vector.shape_cast %1126 : vector<1x2x64xf32> to vector<2x64xf32>
    %c4_899 = arith.constant 4 : index
    %c0_900 = arith.constant 0 : index
    %1128 = vector.load %arg15[%c4_899, %c0_900] : memref<16x64xf32, #tpu.memory_space<vmem>>, vector<2x64xf32>
    tpu.vector_store %arg15[%c4_899, %c0_900], %1127 {strides = array<i32>} : memref<16x64xf32, #tpu.memory_space<vmem>>, vector<2x64xf32>,
    %c3_901 = arith.constant 3 : index
    %c0_902 = arith.constant 0 : index
    %c0_903 = arith.constant 0 : index
    %1129 = vector.load %arg14[%c3_901, %c0_902, %c0_903] : memref<8x2x64xf32, #tpu.memory_space<vmem>>, vector<1x2x64xf32>
    %1130 = vector.shape_cast %1129 : vector<1x2x64xf32> to vector<2x64xf32>
    %c6_904 = arith.constant 6 : index
    %c0_905 = arith.constant 0 : index
    %1131 = vector.load %arg15[%c6_904, %c0_905] : memref<16x64xf32, #tpu.memory_space<vmem>>, vector<2x64xf32>
    tpu.vector_store %arg15[%c6_904, %c0_905], %1130 {strides = array<i32>} : memref<16x64xf32, #tpu.memory_space<vmem>>, vector<2x64xf32>,
    %c4_906 = arith.constant 4 : index
    %c0_907 = arith.constant 0 : index
    %c0_908 = arith.constant 0 : index
    %1132 = vector.load %arg14[%c4_906, %c0_907, %c0_908] : memref<8x2x64xf32, #tpu.memory_space<vmem>>, vector<1x2x64xf32>
    %1133 = vector.shape_cast %1132 : vector<1x2x64xf32> to vector<2x64xf32>
    %c8_909 = arith.constant 8 : index
    %c0_910 = arith.constant 0 : index
    %1134 = vector.load %arg15[%c8_909, %c0_910] : memref<16x64xf32, #tpu.memory_space<vmem>>, vector<2x64xf32>
    tpu.vector_store %arg15[%c8_909, %c0_910], %1133 {strides = array<i32>} : memref<16x64xf32, #tpu.memory_space<vmem>>, vector<2x64xf32>,
    %c5_911 = arith.constant 5 : index
    %c0_912 = arith.constant 0 : index
    %c0_913 = arith.constant 0 : index
    %1135 = vector.load %arg14[%c5_911, %c0_912, %c0_913] : memref<8x2x64xf32, #tpu.memory_space<vmem>>, vector<1x2x64xf32>
    %1136 = vector.shape_cast %1135 : vector<1x2x64xf32> to vector<2x64xf32>
    %c10_914 = arith.constant 10 : index
    %c0_915 = arith.constant 0 : index
    %1137 = vector.load %arg15[%c10_914, %c0_915] : memref<16x64xf32, #tpu.memory_space<vmem>>, vector<2x64xf32>
    tpu.vector_store %arg15[%c10_914, %c0_915], %1136 {strides = array<i32>} : memref<16x64xf32, #tpu.memory_space<vmem>>, vector<2x64xf32>,
    %c6_916 = arith.constant 6 : index
    %c0_917 = arith.constant 0 : index
    %c0_918 = arith.constant 0 : index
    %1138 = vector.load %arg14[%c6_916, %c0_917, %c0_918] : memref<8x2x64xf32, #tpu.memory_space<vmem>>, vector<1x2x64xf32>
    %1139 = vector.shape_cast %1138 : vector<1x2x64xf32> to vector<2x64xf32>
    %c12_919 = arith.constant 12 : index
    %c0_920 = arith.constant 0 : index
    %1140 = vector.load %arg15[%c12_919, %c0_920] : memref<16x64xf32, #tpu.memory_space<vmem>>, vector<2x64xf32>
    tpu.vector_store %arg15[%c12_919, %c0_920], %1139 {strides = array<i32>} : memref<16x64xf32, #tpu.memory_space<vmem>>, vector<2x64xf32>,
    %c7_921 = arith.constant 7 : index
    %c0_922 = arith.constant 0 : index
    %c0_923 = arith.constant 0 : index
    %1141 = vector.load %arg14[%c7_921, %c0_922, %c0_923] : memref<8x2x64xf32, #tpu.memory_space<vmem>>, vector<1x2x64xf32>
    %1142 = vector.shape_cast %1141 : vector<1x2x64xf32> to vector<2x64xf32>
    %c14_924 = arith.constant 14 : index
    %c0_925 = arith.constant 0 : index
    %1143 = vector.load %arg15[%c14_924, %c0_925] : memref<16x64xf32, #tpu.memory_space<vmem>>, vector<2x64xf32>
    tpu.vector_store %arg15[%c14_924, %c0_925], %1142 {strides = array<i32>} : memref<16x64xf32, #tpu.memory_space<vmem>>, vector<2x64xf32>,
    %c0_926 = arith.constant 0 : index
    %c0_927 = arith.constant 0 : index
    %1144 = vector.load %arg15[%c0_926, %c0_927] : memref<16x64xf32, #tpu.memory_space<vmem>>, vector<16x64xf32>
    %cst_928 = arith.constant 5.000000e-01 : f32
    %1145 = vector.broadcast %cst_928 : f32 to vector<16x64xf32>
    %1146 = arith.mulf %1145, %1144 : vector<16x64xf32>
    %cst_929 = arith.constant 0.707106769 : f32
    %1147 = vector.broadcast %cst_929 : f32 to vector<16x64xf32>
    %1148 = arith.mulf %1144, %1147 : vector<16x64xf32>
    %1149 = math.erf %1148 : vector<16x64xf32>
    %cst_930 = arith.constant 1.000000e+00 : f32
    %1150 = vector.broadcast %cst_930 : f32 to vector<16x64xf32>
    %1151 = arith.addf %1150, %1149 : vector<16x64xf32>
    %1152 = arith.mulf %1146, %1151 : vector<16x64xf32>
    %c0_931 = arith.constant 0 : index
    %c0_932 = arith.constant 0 : index
    %1153 = vector.load %arg10[%c0_931, %c0_932] : memref<64x1xf32, #tpu.memory_space<vmem>>, vector<64x1xf32>
    %cst_933 = arith.constant dense<0.000000e+00> : vector<16x1xf32>
    %1154 = tpu.matmul %1152, %1153, %cst_933 {dimension_numbers = #tpu.dot_dimension_numbers<[1], [0], [0], [1], [0, 0, 1, 1], [], []>} : vector<16x64xf32>, vector<64x1xf32>, vector<16x1xf32> -> vector<16x1xf32>
    %c0_934 = arith.constant 0 : index
    %c0_935 = arith.constant 0 : index
    %1155 = vector.load %arg11[%c0_934, %c0_935] : memref<1x1xf32, #tpu.memory_space<vmem>>, vector<1x1xf32>
    %1156 = vector.broadcast %1155 : vector<1x1xf32> to vector<16x1xf32>
    %1157 = arith.addf %1154, %1156 : vector<16x1xf32>
    %c0_936 = arith.constant 0 : index
    %c0_937 = arith.constant 0 : index
    %1158 = vector.load %arg12[%c0_936, %c0_937] : memref<16x1xf32, #tpu.memory_space<vmem>>, vector<16x1xf32>
    tpu.vector_store %arg12[%c0_936, %c0_937], %1157 {strides = array<i32>} : memref<16x1xf32, #tpu.memory_space<vmem>>, vector<16x1xf32>,
    return
  }
}

</mosaic_0001>

<llo_original>
// kernel: tpu_custom_call.1
$region0: #{tpu_custom_call.1}
  #allocation0 [shape = 'u32[]', space=smem, size = 0x4, offset = 0x4, fixed_abs, tag = 'smem constant byte address 0x4 - core index']
  #allocation1 [shape = 'u32[144,128]{1,0:T(1,128)}', space=vmem, size = 0x12000, scoped, tag = 'internal scratch']
  #allocation2 [shape = 'f32[4,8,2,64]{3,2,1,0:T(2,128)}', space=vmem, size = 0x8000, scoped, tag = 'scratch operand']
  #allocation3 [shape = 'f32[8,2,64]{2,1,0:T(2,128)}', space=vmem, size = 0x2000, scoped, tag = 'scratch operand']
  #allocation4 [shape = 'f32[16,64]{1,0:T(8,128)}', space=vmem, size = 0x2000, scoped, tag = 'scratch operand']
  #allocation5 [shape = 'f32[16,64]{1,0:T(8,128)}', space=vmem, size = 0x2000, scoped, tag = 'scratch operand']
  #allocation6 [shape = 'f32[1,1]{1,0:T(1,128)S(1)}', space=vmem, size = 0x200, scoped, tag = 'scoped memory for tpu_custom_call.1']
  %s0 = inlined_call_operand.vmem [shape: f32[16,4], index: 0, kind: input, shape index: {}]
  %s1 = inlined_call_operand.vmem [shape: f32[16,4], index: 1, kind: input, shape index: {}]
  %s2 = inlined_call_operand.vmem [shape: f32[4,4,64], index: 2, kind: input, shape index: {}]
  %s3 = inlined_call_operand.vmem [shape: f32[4,4,64], index: 3, kind: input, shape index: {}]
  %s4 = inlined_call_operand.hbm [shape: f32[4,64,64], index: 4, kind: input, shape index: {}]
  %s5 = inlined_call_operand.vmem [shape: f32[4,1,64], index: 5, kind: input, shape index: {}]
  %s6 = inlined_call_operand.hbm [shape: f32[4,64,64], index: 6, kind: input, shape index: {}]
  %s7 = inlined_call_operand.hbm [shape: f32[4,64,64], index: 7, kind: input, shape index: {}]
  %s8 = inlined_call_operand.hbm [shape: f32[4,64,64], index: 8, kind: input, shape index: {}]
  %s9 = inlined_call_operand.vmem [shape: f32[4,1,64], index: 9, kind: input, shape index: {}]
  %s10 = inlined_call_operand.vmem [shape: f32[64,1], index: 10, kind: input, shape index: {}]
  %s11 = inlined_call_operand.<no memory space> [shape: f32[1,1], index: 11, kind: input, shape index: {}]
  %s12 = inlined_call_operand.vmem [shape: f32[16,1], index: 12, kind: output, shape index: {}]
  %s13 = sld [smem:[#allocation0]]
  $region74: #{tpu_custom_call.1} parent=0
    _
  %s15 = ssub.s32 1, %s13
  %s16 = scalar_select 0, %s15, %s13
  %v17 = vstv %s11
  %18 = vst [vmem:[#allocation6] sm:$0x1] %v17
  $region1: #{tpu_custom_call.1} parent=0
    #allocation7 [shape = 'u8[131072]{0}', space=vmem, size = 0x20000, scoped, tag = 'input window, operand 4, single buffered']
    #allocation8 [shape = 's32[1]{0}', space=sflag, size = 0x4, scoped, tag = 'scoped memory for tpu_custom_call.1']
    #allocation9 [shape = 'u8[131072]{0}', space=vmem, size = 0x20000, scoped, tag = 'input window, operand 6, single buffered']
    #allocation10 [shape = 's32[1]{0}', space=sflag, size = 0x4, scoped, tag = 'scoped memory for tpu_custom_call.1']
    #allocation11 [shape = 'u8[131072]{0}', space=vmem, size = 0x20000, scoped, tag = 'input window, operand 7, single buffered']
    #allocation12 [shape = 'u8[131072]{0}', space=vmem, size = 0x20000, scoped, tag = 'input window, operand 8, single buffered']
    #allocation13 [shape = 's32[1]{0}', space=sflag, size = 0x4, scoped, tag = 'scoped memory for tpu_custom_call.1']
    %19 = vsyncpa [#allocation8], 0
    %20 = vsyncpa [#allocation10], 0
    %21 = vsyncpa [#allocation13], 0
    // Predicated region
    $region2: #{tpu_custom_call.1} parent=1 // pred_check
      _
    $region3: #{tpu_custom_call.1} parent=1 // pred_check_branch
      %23 = sbr.rel (0) target = $region5
    $region4: #{tpu_custom_call.1} parent=1 // pred_region
      _
    $region5: #{tpu_custom_call.1} parent=1 // pred_fallthru
      _
    // Predicated region
    $region6: #{tpu_custom_call.1} parent=1 // pred_check
      _
    $region7: #{tpu_custom_call.1} parent=1 // pred_check_branch
      %25 = sbr.rel (0) target = $region9
    $region8: #{tpu_custom_call.1} parent=1 // pred_region
      _
    $region9: #{tpu_custom_call.1} parent=1 // pred_fallthru
      _
    // Predicated region
    $region10: #{tpu_custom_call.1} parent=1 // pred_check
      _
    $region11: #{tpu_custom_call.1} parent=1 // pred_check_branch
      %27 = sbr.rel (0) target = $region13
    $region12: #{tpu_custom_call.1} parent=1 // pred_region
      _
    $region13: #{tpu_custom_call.1} parent=1 // pred_fallthru
      _
    // Predicated region
    $region14: #{tpu_custom_call.1} parent=1 // pred_check
      _
    $region15: #{tpu_custom_call.1} parent=1 // pred_check_branch
      %29 = sbr.rel (0) target = $region17
    $region16: #{tpu_custom_call.1} parent=1 // pred_region
      _
    $region17: #{tpu_custom_call.1} parent=1 // pred_fallthru
      _
    // Predicated region
    $region18: #{tpu_custom_call.1} parent=1 // pred_check
      _
    $region19: #{tpu_custom_call.1} parent=1 // pred_check_branch
      %31 = sbr.rel (0) target = $region21
    $region20: #{tpu_custom_call.1} parent=1 // pred_region
      %s33 = ssub.s32 4096, 4096
      %34 = vsyncadd [#allocation8], %s33
      %s35 = sshll.u32 [#allocation7], 4
      %s36 = int_to_ptr.vmem [resolvable:$true] %s35
      %41 = dma.hbm_to_vmem [thread:$0]  %s4, 4096, %s36, [#allocation8], 128, 128, 8
    $region21: #{tpu_custom_call.1} parent=1 // pred_fallthru
      _
    // Predicated region
    $region22: #{tpu_custom_call.1} parent=1 // pred_check
      _
    $region23: #{tpu_custom_call.1} parent=1 // pred_check_branch
      %43 = sbr.rel (0) target = $region25
    $region24: #{tpu_custom_call.1} parent=1 // pred_region
      _
    $region25: #{tpu_custom_call.1} parent=1 // pred_fallthru
      _
    // Predicated region
    $region26: #{tpu_custom_call.1} parent=1 // pred_check
      _
    $region27: #{tpu_custom_call.1} parent=1 // pred_check_branch
      %45 = sbr.rel (0) target = $region29
    $region28: #{tpu_custom_call.1} parent=1 // pred_region
      %s47 = ssub.s32 4096, 4096
      %48 = vsyncadd [#allocation10], %s47
      %s49 = sshll.u32 [#allocation9], 4
      %s50 = int_to_ptr.vmem [resolvable:$true] %s49
      %55 = dma.hbm_to_vmem [thread:$0]  %s6, 4096, %s50, [#allocation10], 128, 128, 8
    $region29: #{tpu_custom_call.1} parent=1 // pred_fallthru
      _
    // Predicated region
    $region30: #{tpu_custom_call.1} parent=1 // pred_check
      _
    $region31: #{tpu_custom_call.1} parent=1 // pred_check_branch
      %57 = sbr.rel (0) target = $region33
    $region32: #{tpu_custom_call.1} parent=1 // pred_region
      %s59 = ssub.s32 4096, 4096
      %60 = vsyncadd [#allocation10], %s59
      %s61 = sshll.u32 [#allocation11], 4
      %s62 = int_to_ptr.vmem [resolvable:$true] %s61
      %67 = dma.hbm_to_vmem [thread:$0]  %s7, 4096, %s62, [#allocation10], 128, 128, 8
    $region33: #{tpu_custom_call.1} parent=1 // pred_fallthru
      _
    // Predicated region
    $region34: #{tpu_custom_call.1} parent=1 // pred_check
      _
    $region35: #{tpu_custom_call.1} parent=1 // pred_check_branch
      %69 = sbr.rel (0) target = $region37
    $region36: #{tpu_custom_call.1} parent=1 // pred_region
      %s71 = ssub.s32 4096, 4096
      %72 = vsyncadd [#allocation13], %s71
      %s73 = sshll.u32 [#allocation12], 4
      %s74 = int_to_ptr.vmem [resolvable:$true] %s73
      %79 = dma.hbm_to_vmem [thread:$0]  %s8, 4096, %s74, [#allocation13], 128, 128, 8
    $region37: #{tpu_custom_call.1} parent=1 // pred_fallthru
      _
    // Predicated region
    $region38: #{tpu_custom_call.1} parent=1 // pred_check
      _
    $region39: #{tpu_custom_call.1} parent=1 // pred_check_branch
      %81 = sbr.rel (0) target = $region41
    $region40: #{tpu_custom_call.1} parent=1 // pred_region
      _
    $region41: #{tpu_custom_call.1} parent=1 // pred_fallthru
      _
    // Predicated region
    $region42: #{tpu_custom_call.1} parent=1 // pred_check
      _
    $region43: #{tpu_custom_call.1} parent=1 // pred_check_branch
      %83 = sbr.rel (0) target = $region45
    $region44: #{tpu_custom_call.1} parent=1 // pred_region
      _
    $region45: #{tpu_custom_call.1} parent=1 // pred_fallthru
      _
    // Predicated region
    $region46: #{tpu_custom_call.1} parent=1 // pred_check
      _
    $region47: #{tpu_custom_call.1} parent=1 // pred_check_branch
      %85 = sbr.rel (0) target = $region49
    $region48: #{tpu_custom_call.1} parent=1 // pred_region
      _
    $region49: #{tpu_custom_call.1} parent=1 // pred_fallthru
      _
    // Predicated region
    $region50: #{tpu_custom_call.1} parent=1 // pred_check
      _
    $region51: #{tpu_custom_call.1} parent=1 // pred_check_branch
      %87 = sbr.rel (0) target = $region53
    $region52: #{tpu_custom_call.1} parent=1 // pred_region
      %88 = dma.done [#allocation8], 4096
    $region53: #{tpu_custom_call.1} parent=1 // pred_fallthru
      _
    // Predicated region
    $region54: #{tpu_custom_call.1} parent=1 // pred_check
      _
    $region55: #{tpu_custom_call.1} parent=1 // pred_check_branch
      %90 = sbr.rel (0) target = $region57
    $region56: #{tpu_custom_call.1} parent=1 // pred_region
      %91 = dma.done [#allocation10], 4096
    $region57: #{tpu_custom_call.1} parent=1 // pred_fallthru
      _
    // Predicated region
    $region58: #{tpu_custom_call.1} parent=1 // pred_check
      _
    $region59: #{tpu_custom_call.1} parent=1 // pred_check_branch
      %93 = sbr.rel (0) target = $region61
    $region60: #{tpu_custom_call.1} parent=1 // pred_region
      %94 = dma.done [#allocation10], 4096
    $region61: #{tpu_custom_call.1} parent=1 // pred_fallthru
      _
    // Predicated region
    $region62: #{tpu_custom_call.1} parent=1 // pred_check
      _
    $region63: #{tpu_custom_call.1} parent=1 // pred_check_branch
      %96 = sbr.rel (0) target = $region65
    $region64: #{tpu_custom_call.1} parent=1 // pred_region
      %97 = dma.done [#allocation13], 4096
    $region65: #{tpu_custom_call.1} parent=1 // pred_fallthru
      _
    %v98 = vld [vmem:[%s0] sm:$0xff]
    %v99 = vld [vmem:[%s0 + $0x8] sm:$0xff]
    %v100 = vld [vmem:[%s1] sm:$0xff]
    %v101 = vld [vmem:[%s1 + $0x8] sm:$0xff]
    %v102 = vld [vmem:[%s2] sm:$0xf]
    %v103 = vld [vmem:[%s3] sm:$0xf]
    %vm104 = vcmask 31744
    %v106 = vsel %vm104, %v100, 0
    %v109 = vsel %vm104, %v101, 0
    %vm111 = vcmask 1043456
    %v113 = vsel %vm111, %v103, 0
    %115 = vmatprep.subr.mxu0 0.0
    %116 = vmatpush1.msra.mxu0 %v113
    %117 = vmatprep.subr.mxu0 0.0
    %118 = vmatpush1.msra.mxu0 0.0
    %119 = vmatprep.subr.mxu0 0.0
    %120 = vmatpush1.msra.mxu0 0.0
    %121 = vmatprep.subr.mxu0 0.0
    %122 = vmatpush1.msra.mxu0 0.0
    %123 = vmatprep.subr.mxu0 0.0
    %124 = vmatpush1.msra.mxu0 0.0
    %125 = vmatprep.subr.mxu0 0.0
    %126 = vmatpush1.msra.mxu0 0.0
    %127 = vmatprep.subr.mxu0 0.0
    %128 = vmatpush1.msra.mxu0 0.0
    %129 = vmatprep.subr.mxu0 0.0
    %130 = vmatpush1.msra.mxu0 0.0
    %131 = vmatprep.subr.mxu0 0.0
    %132 = vmatpush1.msra.mxu0 0.0
    %133 = vmatprep.subr.mxu0 0.0
    %134 = vmatpush1.msra.mxu0 0.0
    %135 = vmatprep.subr.mxu0 0.0
    %136 = vmatpush1.msra.mxu0 0.0
    %137 = vmatprep.subr.mxu0 0.0
    %138 = vmatpush1.msra.mxu0 0.0
    %139 = vmatprep.subr.mxu0 0.0
    %140 = vmatpush1.msra.mxu0 0.0
    %141 = vmatprep.subr.mxu0 0.0
    %142 = vmatpush1.msra.mxu0 0.0
    %143 = vmatprep.subr.mxu0 0.0
    %144 = vmatpush1.msra.mxu0 0.0
    %145 = vmatprep.subr.mxu0 0.0
    %146 = vmatpush1.msra.mxu0 0.0
    %147 = vmatprep.subr.mxu0 0.0
    %148 = vmatpush1.msra.mxu0 0.0
    %149 = vmatprep.subr.mxu0 0.0
    %150 = vmatpush1.msra.mxu0 0.0
    %151 = vmatprep.subr.mxu0 0.0
    %152 = vmatpush1.msra.mxu0 0.0
    %153 = vmatprep.subr.mxu0 0.0
    %154 = vmatpush1.msra.mxu0 0.0
    %155 = vmatprep.subr.mxu0 0.0
    %156 = vmatpush1.msra.mxu0 0.0
    %157 = vmatprep.subr.mxu0 0.0
    %158 = vmatpush1.msra.mxu0 0.0
    %159 = vmatprep.subr.mxu0 0.0
    %160 = vmatpush1.msra.mxu0 0.0
    %161 = vmatprep.subr.mxu0 0.0
    %162 = vmatpush1.msra.mxu0 0.0
    %163 = vmatprep.subr.mxu0 0.0
    %164 = vmatpush1.msra.mxu0 0.0
    %165 = vmatprep.subr.mxu0 0.0
    %166 = vmatpush1.msra.mxu0 0.0
    %167 = vmatprep.subr.mxu0 0.0
    %168 = vmatpush1.msra.mxu0 0.0
    %169 = vmatprep.subr.mxu0 0.0
    %170 = vmatpush1.msra.mxu0 0.0
    %171 = vmatprep.subr.mxu0 0.0
    %172 = vmatpush1.msra.mxu0 0.0
    %173 = vmatprep.subr.mxu0 0.0
    %174 = vmatpush1.msra.mxu0 0.0
    %175 = vmatprep.subr.mxu0 0.0
    %176 = vmatpush1.msra.mxu0 0.0
    %177 = vmatprep.subr.mxu0 0.0
    %178 = vmatpush1.msra.mxu0 0.0
    %179 = vmatprep.mubr.f32.mxu0 0.0
    %180 = vmatmul.mubr.f32.gmra.mrb[0].mxu0 %v106
    %v181 = vpop.f32.mrb[0].mxu0
    %v182 = vadd.f32 0.0, %v181
    %v183 = vpop.f32.mrb[0].mxu0
    %184 = vmatprep.mubr.f32.mxu0 0.0
    %185 = vmatmul.mubr.f32.gmra.mrb[0].mxu0 %v109
    %v186 = vpop.f32.mrb[0].mxu0
    %v187 = vadd.f32 0.0, %v186
    %v188 = vpop.f32.mrb[0].mxu0
    %189 = vdwg.mxu0
    %v191 = vsel %vm104, %v98, 0
    %v194 = vsel %vm104, %v99, 0
    %v197 = vsel %vm111, %v102, 0
    %199 = vmatprep.subr.mxu0 0.0
    %200 = vmatpush1.msra.mxu0 %v197
    %201 = vmatprep.subr.mxu0 0.0
    %202 = vmatpush1.msra.mxu0 0.0
    %203 = vmatprep.subr.mxu0 0.0
    %204 = vmatpush1.msra.mxu0 0.0
    %205 = vmatprep.subr.mxu0 0.0
    %206 = vmatpush1.msra.mxu0 0.0
    %207 = vmatprep.subr.mxu0 0.0
    %208 = vmatpush1.msra.mxu0 0.0
    %209 = vmatprep.subr.mxu0 0.0
    %210 = vmatpush1.msra.mxu0 0.0
    %211 = vmatprep.subr.mxu0 0.0
    %212 = vmatpush1.msra.mxu0 0.0
    %213 = vmatprep.subr.mxu0 0.0
    %214 = vmatpush1.msra.mxu0 0.0
    %215 = vmatprep.subr.mxu0 0.0
    %216 = vmatpush1.msra.mxu0 0.0
    %217 = vmatprep.subr.mxu0 0.0
    %218 = vmatpush1.msra.mxu0 0.0
    %219 = vmatprep.subr.mxu0 0.0
    %220 = vmatpush1.msra.mxu0 0.0
    %221 = vmatprep.subr.mxu0 0.0
    %222 = vmatpush1.msra.mxu0 0.0
    %223 = vmatprep.subr.mxu0 0.0
    %224 = vmatpush1.msra.mxu0 0.0
    %225 = vmatprep.subr.mxu0 0.0
    %226 = vmatpush1.msra.mxu0 0.0
    %227 = vmatprep.subr.mxu0 0.0
    %228 = vmatpush1.msra.mxu0 0.0
    %229 = vmatprep.subr.mxu0 0.0
    %230 = vmatpush1.msra.mxu0 0.0
    %231 = vmatprep.subr.mxu0 0.0
    %232 = vmatpush1.msra.mxu0 0.0
    %233 = vmatprep.subr.mxu0 0.0
    %234 = vmatpush1.msra.mxu0 0.0
    %235 = vmatprep.subr.mxu0 0.0
    %236 = vmatpush1.msra.mxu0 0.0
    %237 = vmatprep.subr.mxu0 0.0
    %238 = vmatpush1.msra.mxu0 0.0
    %239 = vmatprep.subr.mxu0 0.0
    %240 = vmatpush1.msra.mxu0 0.0
    %241 = vmatprep.subr.mxu0 0.0
    %242 = vmatpush1.msra.mxu0 0.0
    %243 = vmatprep.subr.mxu0 0.0
    %244 = vmatpush1.msra.mxu0 0.0
    %245 = vmatprep.subr.mxu0 0.0
    %246 = vmatpush1.msra.mxu0 0.0
    %247 = vmatprep.subr.mxu0 0.0
    %248 = vmatpush1.msra.mxu0 0.0
    %249 = vmatprep.subr.mxu0 0.0
    %250 = vmatpush1.msra.mxu0 0.0
    %251 = vmatprep.subr.mxu0 0.0
    %252 = vmatpush1.msra.mxu0 0.0
    %253 = vmatprep.subr.mxu0 0.0
    %254 = vmatpush1.msra.mxu0 0.0
    %255 = vmatprep.subr.mxu0 0.0
    %256 = vmatpush1.msra.mxu0 0.0
    %257 = vmatprep.subr.mxu0 0.0
    %258 = vmatpush1.msra.mxu0 0.0
    %259 = vmatprep.subr.mxu0 0.0
    %260 = vmatpush1.msra.mxu0 0.0
    %261 = vmatprep.subr.mxu0 0.0
    %262 = vmatpush1.msra.mxu0 0.0
    %263 = vmatprep.mubr.f32.mxu0 0.0
    %264 = vmatmul.mubr.f32.gmra.mrb[0].mxu0 %v191
    %v265 = vpop.f32.mrb[0].mxu0
    %v266 = vadd.f32 %v182, %v265
    %v267 = vpop.f32.mrb[0].mxu0
    %268 = vmatprep.mubr.f32.mxu0 0.0
    %269 = vmatmul.mubr.f32.gmra.mrb[0].mxu0 %v194
    %v270 = vpop.f32.mrb[0].mxu0
    %v271 = vadd.f32 %v187, %v270
    %v272 = vpop.f32.mrb[0].mxu0
    %273 = vdwg.mxu0
    %v274 = vld [vmem:[%s5] sm:$0x1]
    %v276 = vlaneseq
    %v277 = vshrl.u32 %v276, 7
    %v278 = vsub.s32 0, %v277
    %v279 = vrot.slane %v274, %v278
    %v281 = vadd.f32 %v266, %v279
    %v282 = vadd.f32 %v271, %v279
    %vm283 = vcmask 517120
    %284 = vst.msk [vmem:[#allocation2] sm:$0x3] %vm283, %v281
    %s285 = scalar_lea.vmem [#allocation2], 2
    %vm286 = vcmask 519170
    %287 = vst.msk [vmem:[%s285 - $0x2] sm:$0xc] %vm286, %v281
    %s288 = scalar_lea.vmem [#allocation2], 4
    %vm289 = vcmask 521220
    %290 = vst.msk [vmem:[%s288 - $0x4] sm:$0x30] %vm289, %v281
    %s291 = scalar_lea.vmem [#allocation2], 6
    %vm292 = vcmask 523270
    %293 = vst.msk [vmem:[%s291 - $0x6] sm:$0xc0] %vm292, %v281
    %s294 = scalar_lea.vmem [#allocation2], 8
    %295 = vst.msk [vmem:[%s294] sm:$0x3] %vm283, %v282
    %s296 = scalar_lea.vmem [#allocation2], 10
    %297 = vst.msk [vmem:[%s296 - $0x2] sm:$0xc] %vm286, %v282
    %s298 = scalar_lea.vmem [#allocation2], 12
    %299 = vst.msk [vmem:[%s298 - $0x4] sm:$0x30] %vm289, %v282
    %s300 = scalar_lea.vmem [#allocation2], 14
    %301 = vst.msk [vmem:[%s300 - $0x6] sm:$0xc0] %vm292, %v282
    %s302 = scalar_lea.vmem %s2, 4
    %v303 = vld [vmem:[%s302] sm:$0xf]
    %s304 = scalar_lea.vmem %s3, 4
    %v305 = vld [vmem:[%s304] sm:$0xf]
    %v307 = vsel %vm111, %v305, 0
    %309 = vmatprep.subr.mxu0 0.0
    %310 = vmatpush1.msra.mxu0 %v307
    %311 = vmatprep.subr.mxu0 0.0
    %312 = vmatpush1.msra.mxu0 0.0
    %313 = vmatprep.subr.mxu0 0.0
    %314 = vmatpush1.msra.mxu0 0.0
    %315 = vmatprep.subr.mxu0 0.0
    %316 = vmatpush1.msra.mxu0 0.0
    %317 = vmatprep.subr.mxu0 0.0
    %318 = vmatpush1.msra.mxu0 0.0
    %319 = vmatprep.subr.mxu0 0.0
    %320 = vmatpush1.msra.mxu0 0.0
    %321 = vmatprep.subr.mxu0 0.0
    %322 = vmatpush1.msra.mxu0 0.0
    %323 = vmatprep.subr.mxu0 0.0
    %324 = vmatpush1.msra.mxu0 0.0
    %325 = vmatprep.subr.mxu0 0.0
    %326 = vmatpush1.msra.mxu0 0.0
    %327 = vmatprep.subr.mxu0 0.0
    %328 = vmatpush1.msra.mxu0 0.0
    %329 = vmatprep.subr.mxu0 0.0
    %330 = vmatpush1.msra.mxu0 0.0
    %331 = vmatprep.subr.mxu0 0.0
    %332 = vmatpush1.msra.mxu0 0.0
    %333 = vmatprep.subr.mxu0 0.0
    %334 = vmatpush1.msra.mxu0 0.0
    %335 = vmatprep.subr.mxu0 0.0
    %336 = vmatpush1.msra.mxu0 0.0
    %337 = vmatprep.subr.mxu0 0.0
    %338 = vmatpush1.msra.mxu0 0.0
    %339 = vmatprep.subr.mxu0 0.0
    %340 = vmatpush1.msra.mxu0 0.0
    %341 = vmatprep.subr.mxu0 0.0
    %342 = vmatpush1.msra.mxu0 0.0
    %343 = vmatprep.subr.mxu0 0.0
    %344 = vmatpush1.msra.mxu0 0.0
    %345 = vmatprep.subr.mxu0 0.0
    %346 = vmatpush1.msra.mxu0 0.0
    %347 = vmatprep.subr.mxu0 0.0
    %348 = vmatpush1.msra.mxu0 0.0
    %349 = vmatprep.subr.mxu0 0.0
    %350 = vmatpush1.msra.mxu0 0.0
    %351 = vmatprep.subr.mxu0 0.0
    %352 = vmatpush1.msra.mxu0 0.0
    %353 = vmatprep.subr.mxu0 0.0
    %354 = vmatpush1.msra.mxu0 0.0
    %355 = vmatprep.subr.mxu0 0.0
    %356 = vmatpush1.msra.mxu0 0.0
    %357 = vmatprep.subr.mxu0 0.0
    %358 = vmatpush1.msra.mxu0 0.0
    %359 = vmatprep.subr.mxu0 0.0
    %360 = vmatpush1.msra.mxu0 0.0
    %361 = vmatprep.subr.mxu0 0.0
    %362 = vmatpush1.msra.mxu0 0.0
    %363 = vmatprep.subr.mxu0 0.0
    %364 = vmatpush1.msra.mxu0 0.0
    %365 = vmatprep.subr.mxu0 0.0
    %366 = vmatpush1.msra.mxu0 0.0
    %367 = vmatprep.subr.mxu0 0.0
    %368 = vmatpush1.msra.mxu0 0.0
    %369 = vmatprep.subr.mxu0 0.0
    %370 = vmatpush1.msra.mxu0 0.0
    %371 = vmatprep.subr.mxu0 0.0
    %372 = vmatpush1.msra.mxu0 0.0
    %373 = vmatprep.mubr.f32.mxu0 0.0
    %374 = vmatmul.mubr.f32.gmra.mrb[0].mxu0 %v106
    %v375 = vpop.f32.mrb[0].mxu0
    %v376 = vadd.f32 0.0, %v375
    %v377 = vpop.f32.mrb[0].mxu0
    %378 = vmatprep.mubr.f32.mxu0 0.0
    %379 = vmatmul.mubr.f32.gmra.mrb[0].mxu0 %v109
    %v380 = vpop.f32.mrb[0].mxu0
    %v381 = vadd.f32 0.0, %v380
    %v382 = vpop.f32.mrb[0].mxu0
    %383 = vdwg.mxu0
    %v385 = vsel %vm111, %v303, 0
    %387 = vmatprep.subr.mxu0 0.0
    %388 = vmatpush1.msra.mxu0 %v385
    %389 = vmatprep.subr.mxu0 0.0
    %390 = vmatpush1.msra.mxu0 0.0
    %391 = vmatprep.subr.mxu0 0.0
    %392 = vmatpush1.msra.mxu0 0.0
    %393 = vmatprep.subr.mxu0 0.0
    %394 = vmatpush1.msra.mxu0 0.0
    %395 = vmatprep.subr.mxu0 0.0
    %396 = vmatpush1.msra.mxu0 0.0
    %397 = vmatprep.subr.mxu0 0.0
    %398 = vmatpush1.msra.mxu0 0.0
    %399 = vmatprep.subr.mxu0 0.0
    %400 = vmatpush1.msra.mxu0 0.0
    %401 = vmatprep.subr.mxu0 0.0
    %402 = vmatpush1.msra.mxu0 0.0
    %403 = vmatprep.subr.mxu0 0.0
    %404 = vmatpush1.msra.mxu0 0.0
    %405 = vmatprep.subr.mxu0 0.0
    %406 = vmatpush1.msra.mxu0 0.0
    %407 = vmatprep.subr.mxu0 0.0
    %408 = vmatpush1.msra.mxu0 0.0
    %409 = vmatprep.subr.mxu0 0.0
    %410 = vmatpush1.msra.mxu0 0.0
    %411 = vmatprep.subr.mxu0 0.0
    %412 = vmatpush1.msra.mxu0 0.0
    %413 = vmatprep.subr.mxu0 0.0
    %414 = vmatpush1.msra.mxu0 0.0
    %415 = vmatprep.subr.mxu0 0.0
    %416 = vmatpush1.msra.mxu0 0.0
    %417 = vmatprep.subr.mxu0 0.0
    %418 = vmatpush1.msra.mxu0 0.0
    %419 = vmatprep.subr.mxu0 0.0
    %420 = vmatpush1.msra.mxu0 0.0
    %421 = vmatprep.subr.mxu0 0.0
    %422 = vmatpush1.msra.mxu0 0.0
    %423 = vmatprep.subr.mxu0 0.0
    %424 = vmatpush1.msra.mxu0 0.0
    %425 = vmatprep.subr.mxu0 0.0
    %426 = vmatpush1.msra.mxu0 0.0
    %427 = vmatprep.subr.mxu0 0.0
    %428 = vmatpush1.msra.mxu0 0.0
    %429 = vmatprep.subr.mxu0 0.0
    %430 = vmatpush1.msra.mxu0 0.0
    %431 = vmatprep.subr.mxu0 0.0
    %432 = vmatpush1.msra.mxu0 0.0
    %433 = vmatprep.subr.mxu0 0.0
    %434 = vmatpush1.msra.mxu0 0.0
    %435 = vmatprep.subr.mxu0 0.0
    %436 = vmatpush1.msra.mxu0 0.0
    %437 = vmatprep.subr.mxu0 0.0
    %438 = vmatpush1.msra.mxu0 0.0
    %439 = vmatprep.subr.mxu0 0.0
    %440 = vmatpush1.msra.mxu0 0.0
    %441 = vmatprep.subr.mxu0 0.0
    %442 = vmatpush1.msra.mxu0 0.0
    %443 = vmatprep.subr.mxu0 0.0
    %444 = vmatpush1.msra.mxu0 0.0
    %445 = vmatprep.subr.mxu0 0.0
    %446 = vmatpush1.msra.mxu0 0.0
    %447 = vmatprep.subr.mxu0 0.0
    %448 = vmatpush1.msra.mxu0 0.0
    %449 = vmatprep.subr.mxu0 0.0
    %450 = vmatpush1.msra.mxu0 0.0
    %451 = vmatprep.mubr.f32.mxu0 0.0
    %452 = vmatmul.mubr.f32.gmra.mrb[0].mxu0 %v191
    %v453 = vpop.f32.mrb[0].mxu0
    %v454 = vadd.f32 %v376, %v453
    %v455 = vpop.f32.mrb[0].mxu0
    %456 = vmatprep.mubr.f32.mxu0 0.0
    %457 = vmatmul.mubr.f32.gmra.mrb[0].mxu0 %v194
    %v458 = vpop.f32.mrb[0].mxu0
    %v459 = vadd.f32 %v381, %v458
    %v460 = vpop.f32.mrb[0].mxu0
    %461 = vdwg.mxu0
    %s462 = scalar_lea.vmem %s5, 1
    %v463 = vld [vmem:[%s462] sm:$0x1]
    %v465 = vlaneseq
    %v466 = vshrl.u32 %v465, 7
    %v467 = vsub.s32 0, %v466
    %v468 = vrot.slane %v463, %v467
    %v470 = vadd.f32 %v454, %v468
    %v471 = vadd.f32 %v459, %v468
    %s472 = scalar_lea.vmem [#allocation2], 16
    %473 = vst.msk [vmem:[%s472] sm:$0x3] %vm283, %v470
    %s474 = scalar_lea.vmem [#allocation2], 18
    %475 = vst.msk [vmem:[%s474 - $0x2] sm:$0xc] %vm286, %v470
    %s476 = scalar_lea.vmem [#allocation2], 20
    %477 = vst.msk [vmem:[%s476 - $0x4] sm:$0x30] %vm289, %v470
    %s478 = scalar_lea.vmem [#allocation2], 22
    %479 = vst.msk [vmem:[%s478 - $0x6] sm:$0xc0] %vm292, %v470
    %s480 = scalar_lea.vmem [#allocation2], 24
    %481 = vst.msk [vmem:[%s480] sm:$0x3] %vm283, %v471
    %s482 = scalar_lea.vmem [#allocation2], 26
    %483 = vst.msk [vmem:[%s482 - $0x2] sm:$0xc] %vm286, %v471
    %s484 = scalar_lea.vmem [#allocation2], 28
    %485 = vst.msk [vmem:[%s484 - $0x4] sm:$0x30] %vm289, %v471
    %s486 = scalar_lea.vmem [#allocation2], 30
    %487 = vst.msk [vmem:[%s486 - $0x6] sm:$0xc0] %vm292, %v471
    %s488 = scalar_lea.vmem %s2, 8
    %v489 = vld [vmem:[%s488] sm:$0xf]
    %s490 = scalar_lea.vmem %s3, 8
    %v491 = vld [vmem:[%s490] sm:$0xf]
    %v493 = vsel %vm111, %v491, 0
    %495 = vmatprep.subr.mxu0 0.0
    %496 = vmatpush1.msra.mxu0 %v493
    %497 = vmatprep.subr.mxu0 0.0
    %498 = vmatpush1.msra.mxu0 0.0
    %499 = vmatprep.subr.mxu0 0.0
    %500 = vmatpush1.msra.mxu0 0.0
    %501 = vmatprep.subr.mxu0 0.0
    %502 = vmatpush1.msra.mxu0 0.0
    %503 = vmatprep.subr.mxu0 0.0
    %504 = vmatpush1.msra.mxu0 0.0
    %505 = vmatprep.subr.mxu0 0.0
    %506 = vmatpush1.msra.mxu0 0.0
    %507 = vmatprep.subr.mxu0 0.0
    %508 = vmatpush1.msra.mxu0 0.0
    %509 = vmatprep.subr.mxu0 0.0
    %510 = vmatpush1.msra.mxu0 0.0
    %511 = vmatprep.subr.mxu0 0.0
    %512 = vmatpush1.msra.mxu0 0.0
    %513 = vmatprep.subr.mxu0 0.0
    %514 = vmatpush1.msra.mxu0 0.0
    %515 = vmatprep.subr.mxu0 0.0
    %516 = vmatpush1.msra.mxu0 0.0
    %517 = vmatprep.subr.mxu0 0.0
    %518 = vmatpush1.msra.mxu0 0.0
    %519 = vmatprep.subr.mxu0 0.0
    %520 = vmatpush1.msra.mxu0 0.0
    %521 = vmatprep.subr.mxu0 0.0
    %522 = vmatpush1.msra.mxu0 0.0
    %523 = vmatprep.subr.mxu0 0.0
    %524 = vmatpush1.msra.mxu0 0.0
    %525 = vmatprep.subr.mxu0 0.0
    %526 = vmatpush1.msra.mxu0 0.0
    %527 = vmatprep.subr.mxu0 0.0
    %528 = vmatpush1.msra.mxu0 0.0
    %529 = vmatprep.subr.mxu0 0.0
    %530 = vmatpush1.msra.mxu0 0.0
    %531 = vmatprep.subr.mxu0 0.0
    %532 = vmatpush1.msra.mxu0 0.0
    %533 = vmatprep.subr.mxu0 0.0
    %534 = vmatpush1.msra.mxu0 0.0
    %535 = vmatprep.subr.mxu0 0.0
    %536 = vmatpush1.msra.mxu0 0.0
    %537 = vmatprep.subr.mxu0 0.0
    %538 = vmatpush1.msra.mxu0 0.0
    %539 = vmatprep.subr.mxu0 0.0
    %540 = vmatpush1.msra.mxu0 0.0
    %541 = vmatprep.subr.mxu0 0.0
    %542 = vmatpush1.msra.mxu0 0.0
    %543 = vmatprep.subr.mxu0 0.0
    %544 = vmatpush1.msra.mxu0 0.0
    %545 = vmatprep.subr.mxu0 0.0
    %546 = vmatpush1.msra.mxu0 0.0
    %547 = vmatprep.subr.mxu0 0.0
    %548 = vmatpush1.msra.mxu0 0.0
    %549 = vmatprep.subr.mxu0 0.0
    %550 = vmatpush1.msra.mxu0 0.0
    %551 = vmatprep.subr.mxu0 0.0
    %552 = vmatpush1.msra.mxu0 0.0
    %553 = vmatprep.subr.mxu0 0.0
    %554 = vmatpush1.msra.mxu0 0.0
    %555 = vmatprep.subr.mxu0 0.0
    %556 = vmatpush1.msra.mxu0 0.0
    %557 = vmatprep.subr.mxu0 0.0
    %558 = vmatpush1.msra.mxu0 0.0
    %559 = vmatprep.mubr.f32.mxu0 0.0
    %560 = vmatmul.mubr.f32.gmra.mrb[0].mxu0 %v106
    %v561 = vpop.f32.mrb[0].mxu0
    %v562 = vadd.f32 0.0, %v561
    %v563 = vpop.f32.mrb[0].mxu0
    %564 = vmatprep.mubr.f32.mxu0 0.0
    %565 = vmatmul.mubr.f32.gmra.mrb[0].mxu0 %v109
    %v566 = vpop.f32.mrb[0].mxu0
    %v567 = vadd.f32 0.0, %v566
    %v568 = vpop.f32.mrb[0].mxu0
    %569 = vdwg.mxu0
    %v571 = vsel %vm111, %v489, 0
    %573 = vmatprep.subr.mxu0 0.0
    %574 = vmatpush1.msra.mxu0 %v571
    %575 = vmatprep.subr.mxu0 0.0
    %576 = vmatpush1.msra.mxu0 0.0
    %577 = vmatprep.subr.mxu0 0.0
    %578 = vmatpush1.msra.mxu0 0.0
    %579 = vmatprep.subr.mxu0 0.0
    %580 = vmatpush1.msra.mxu0 0.0
    %581 = vmatprep.subr.mxu0 0.0
    %582 = vmatpush1.msra.mxu0 0.0
    %583 = vmatprep.subr.mxu0 0.0
    %584 = vmatpush1.msra.mxu0 0.0
    %585 = vmatprep.subr.mxu0 0.0
    %586 = vmatpush1.msra.mxu0 0.0
    %587 = vmatprep.subr.mxu0 0.0
    %588 = vmatpush1.msra.mxu0 0.0
    %589 = vmatprep.subr.mxu0 0.0
    %590 = vmatpush1.msra.mxu0 0.0
    %591 = vmatprep.subr.mxu0 0.0
    %592 = vmatpush1.msra.mxu0 0.0
    %593 = vmatprep.subr.mxu0 0.0
    %594 = vmatpush1.msra.mxu0 0.0
    %595 = vmatprep.subr.mxu0 0.0
    %596 = vmatpush1.msra.mxu0 0.0
    %597 = vmatprep.subr.mxu0 0.0
    %598 = vmatpush1.msra.mxu0 0.0
    %599 = vmatprep.subr.mxu0 0.0
    %600 = vmatpush1.msra.mxu0 0.0
    %601 = vmatprep.subr.mxu0 0.0
    %602 = vmatpush1.msra.mxu0 0.0
    %603 = vmatprep.subr.mxu0 0.0
    %604 = vmatpush1.msra.mxu0 0.0
    %605 = vmatprep.subr.mxu0 0.0
    %606 = vmatpush1.msra.mxu0 0.0
    %607 = vmatprep.subr.mxu0 0.0
    %608 = vmatpush1.msra.mxu0 0.0
    %609 = vmatprep.subr.mxu0 0.0
    %610 = vmatpush1.msra.mxu0 0.0
    %611 = vmatprep.subr.mxu0 0.0
    %612 = vmatpush1.msra.mxu0 0.0
    %613 = vmatprep.subr.mxu0 0.0
    %614 = vmatpush1.msra.mxu0 0.0
    %615 = vmatprep.subr.mxu0 0.0
    %616 = vmatpush1.msra.mxu0 0.0
    %617 = vmatprep.subr.mxu0 0.0
    %618 = vmatpush1.msra.mxu0 0.0
    %619 = vmatprep.subr.mxu0 0.0
    %620 = vmatpush1.msra.mxu0 0.0
    %621 = vmatprep.subr.mxu0 0.0
    %622 = vmatpush1.msra.mxu0 0.0
    %623 = vmatprep.subr.mxu0 0.0
    %624 = vmatpush1.msra.mxu0 0.0
    %625 = vmatprep.subr.mxu0 0.0
    %626 = vmatpush1.msra.mxu0 0.0
    %627 = vmatprep.subr.mxu0 0.0
    %628 = vmatpush1.msra.mxu0 0.0
    %629 = vmatprep.subr.mxu0 0.0
    %630 = vmatpush1.msra.mxu0 0.0
    %631 = vmatprep.subr.mxu0 0.0
    %632 = vmatpush1.msra.mxu0 0.0
    %633 = vmatprep.subr.mxu0 0.0
    %634 = vmatpush1.msra.mxu0 0.0
    %635 = vmatprep.subr.mxu0 0.0
    %636 = vmatpush1.msra.mxu0 0.0
    %637 = vmatprep.mubr.f32.mxu0 0.0
    %638 = vmatmul.mubr.f32.gmra.mrb[0].mxu0 %v191
    %v639 = vpop.f32.mrb[0].mxu0
    %v640 = vadd.f32 %v562, %v639
    %v641 = vpop.f32.mrb[0].mxu0
    %642 = vmatprep.mubr.f32.mxu0 0.0
    %643 = vmatmul.mubr.f32.gmra.mrb[0].mxu0 %v194
    %v644 = vpop.f32.mrb[0].mxu0
    %v645 = vadd.f32 %v567, %v644
    %v646 = vpop.f32.mrb[0].mxu0
    %647 = vdwg.mxu0
    %s648 = scalar_lea.vmem %s5, 2
    %v649 = vld [vmem:[%s648] sm:$0x1]
    %v651 = vlaneseq
    %v652 = vshrl.u32 %v651, 7
    %v653 = vsub.s32 0, %v652
    %v654 = vrot.slane %v649, %v653
    %v656 = vadd.f32 %v640, %v654
    %v657 = vadd.f32 %v645, %v654
    %s658 = scalar_lea.vmem [#allocation2], 32
    %659 = vst.msk [vmem:[%s658] sm:$0x3] %vm283, %v656
    %s660 = scalar_lea.vmem [#allocation2], 34
    %661 = vst.msk [vmem:[%s660 - $0x2] sm:$0xc] %vm286, %v656
    %s662 = scalar_lea.vmem [#allocation2], 36
    %663 = vst.msk [vmem:[%s662 - $0x4] sm:$0x30] %vm289, %v656
    %s664 = scalar_lea.vmem [#allocation2], 38
    %665 = vst.msk [vmem:[%s664 - $0x6] sm:$0xc0] %vm292, %v656
    %s666 = scalar_lea.vmem [#allocation2], 40
    %667 = vst.msk [vmem:[%s666] sm:$0x3] %vm283, %v657
    %s668 = scalar_lea.vmem [#allocation2], 42
    %669 = vst.msk [vmem:[%s668 - $0x2] sm:$0xc] %vm286, %v657
    %s670 = scalar_lea.vmem [#allocation2], 44
    %671 = vst.msk [vmem:[%s670 - $0x4] sm:$0x30] %vm289, %v657
    %s672 = scalar_lea.vmem [#allocation2], 46
    %673 = vst.msk [vmem:[%s672 - $0x6] sm:$0xc0] %vm292, %v657
    %s674 = scalar_lea.vmem %s2, 12
    %v675 = vld [vmem:[%s674] sm:$0xf]
    %s676 = scalar_lea.vmem %s3, 12
    %v677 = vld [vmem:[%s676] sm:$0xf]
    %v679 = vsel %vm111, %v677, 0
    %681 = vmatprep.subr.mxu0 0.0
    %682 = vmatpush1.msra.mxu0 %v679
    %683 = vmatprep.subr.mxu0 0.0
    %684 = vmatpush1.msra.mxu0 0.0
    %685 = vmatprep.subr.mxu0 0.0
    %686 = vmatpush1.msra.mxu0 0.0
    %687 = vmatprep.subr.mxu0 0.0
    %688 = vmatpush1.msra.mxu0 0.0
    %689 = vmatprep.subr.mxu0 0.0
    %690 = vmatpush1.msra.mxu0 0.0
    %691 = vmatprep.subr.mxu0 0.0
    %692 = vmatpush1.msra.mxu0 0.0
    %693 = vmatprep.subr.mxu0 0.0
    %694 = vmatpush1.msra.mxu0 0.0
    %695 = vmatprep.subr.mxu0 0.0
    %696 = vmatpush1.msra.mxu0 0.0
    %697 = vmatprep.subr.mxu0 0.0
    %698 = vmatpush1.msra.mxu0 0.0
    %699 = vmatprep.subr.mxu0 0.0
    %700 = vmatpush1.msra.mxu0 0.0
    %701 = vmatprep.subr.mxu0 0.0
    %702 = vmatpush1.msra.mxu0 0.0
    %703 = vmatprep.subr.mxu0 0.0
    %704 = vmatpush1.msra.mxu0 0.0
    %705 = vmatprep.subr.mxu0 0.0
    %706 = vmatpush1.msra.mxu0 0.0
    %707 = vmatprep.subr.mxu0 0.0
    %708 = vmatpush1.msra.mxu0 0.0
    %709 = vmatprep.subr.mxu0 0.0
    %710 = vmatpush1.msra.mxu0 0.0
    %711 = vmatprep.subr.mxu0 0.0
    %712 = vmatpush1.msra.mxu0 0.0
    %713 = vmatprep.subr.mxu0 0.0
    %714 = vmatpush1.msra.mxu0 0.0
    %715 = vmatprep.subr.mxu0 0.0
    %716 = vmatpush1.msra.mxu0 0.0
    %717 = vmatprep.subr.mxu0 0.0
    %718 = vmatpush1.msra.mxu0 0.0
    %719 = vmatprep.subr.mxu0 0.0
    %720 = vmatpush1.msra.mxu0 0.0
    %721 = vmatprep.subr.mxu0 0.0
    %722 = vmatpush1.msra.mxu0 0.0
    %723 = vmatprep.subr.mxu0 0.0
    %724 = vmatpush1.msra.mxu0 0.0
    %725 = vmatprep.subr.mxu0 0.0
    %726 = vmatpush1.msra.mxu0 0.0
    %727 = vmatprep.subr.mxu0 0.0
    %728 = vmatpush1.msra.mxu0 0.0
    %729 = vmatprep.subr.mxu0 0.0
    %730 = vmatpush1.msra.mxu0 0.0
    %731 = vmatprep.subr.mxu0 0.0
    %732 = vmatpush1.msra.mxu0 0.0
    %733 = vmatprep.subr.mxu0 0.0
    %734 = vmatpush1.msra.mxu0 0.0
    %735 = vmatprep.subr.mxu0 0.0
    %736 = vmatpush1.msra.mxu0 0.0
    %737 = vmatprep.subr.mxu0 0.0
    %738 = vmatpush1.msra.mxu0 0.0
    %739 = vmatprep.subr.mxu0 0.0
    %740 = vmatpush1.msra.mxu0 0.0
    %741 = vmatprep.subr.mxu0 0.0
    %742 = vmatpush1.msra.mxu0 0.0
    %743 = vmatprep.subr.mxu0 0.0
    %744 = vmatpush1.msra.mxu0 0.0
    %745 = vmatprep.mubr.f32.mxu0 0.0
    %746 = vmatmul.mubr.f32.gmra.mrb[0].mxu0 %v106
    %v747 = vpop.f32.mrb[0].mxu0
    %v748 = vadd.f32 0.0, %v747
    %v749 = vpop.f32.mrb[0].mxu0
    %750 = vmatprep.mubr.f32.mxu0 0.0
    %751 = vmatmul.mubr.f32.gmra.mrb[0].mxu0 %v109
    %v752 = vpop.f32.mrb[0].mxu0
    %v753 = vadd.f32 0.0, %v752
    %v754 = vpop.f32.mrb[0].mxu0
    %755 = vdwg.mxu0
    %v757 = vsel %vm111, %v675, 0
    %759 = vmatprep.subr.mxu0 0.0
    %760 = vmatpush1.msra.mxu0 %v757
    %761 = vmatprep.subr.mxu0 0.0
    %762 = vmatpush1.msra.mxu0 0.0
    %763 = vmatprep.subr.mxu0 0.0
    %764 = vmatpush1.msra.mxu0 0.0
    %765 = vmatprep.subr.mxu0 0.0
    %766 = vmatpush1.msra.mxu0 0.0
    %767 = vmatprep.subr.mxu0 0.0
    %768 = vmatpush1.msra.mxu0 0.0
    %769 = vmatprep.subr.mxu0 0.0
    %770 = vmatpush1.msra.mxu0 0.0
    %771 = vmatprep.subr.mxu0 0.0
    %772 = vmatpush1.msra.mxu0 0.0
    %773 = vmatprep.subr.mxu0 0.0
    %774 = vmatpush1.msra.mxu0 0.0
    %775 = vmatprep.subr.mxu0 0.0
    %776 = vmatpush1.msra.mxu0 0.0
    %777 = vmatprep.subr.mxu0 0.0
    %778 = vmatpush1.msra.mxu0 0.0
    %779 = vmatprep.subr.mxu0 0.0
    %780 = vmatpush1.msra.mxu0 0.0
    %781 = vmatprep.subr.mxu0 0.0
    %782 = vmatpush1.msra.mxu0 0.0
    %783 = vmatprep.subr.mxu0 0.0
    %784 = vmatpush1.msra.mxu0 0.0
    %785 = vmatprep.subr.mxu0 0.0
    %786 = vmatpush1.msra.mxu0 0.0
    %787 = vmatprep.subr.mxu0 0.0
    %788 = vmatpush1.msra.mxu0 0.0
    %789 = vmatprep.subr.mxu0 0.0
    %790 = vmatpush1.msra.mxu0 0.0
    %791 = vmatprep.subr.mxu0 0.0
    %792 = vmatpush1.msra.mxu0 0.0
    %793 = vmatprep.subr.mxu0 0.0
    %794 = vmatpush1.msra.mxu0 0.0
    %795 = vmatprep.subr.mxu0 0.0
    %796 = vmatpush1.msra.mxu0 0.0
    %797 = vmatprep.subr.mxu0 0.0
    %798 = vmatpush1.msra.mxu0 0.0
    %799 = vmatprep.subr.mxu0 0.0
    %800 = vmatpush1.msra.mxu0 0.0
    %801 = vmatprep.subr.mxu0 0.0
    %802 = vmatpush1.msra.mxu0 0.0
    %803 = vmatprep.subr.mxu0 0.0
    %804 = vmatpush1.msra.mxu0 0.0
    %805 = vmatprep.subr.mxu0 0.0
    %806 = vmatpush1.msra.mxu0 0.0
    %807 = vmatprep.subr.mxu0 0.0
    %808 = vmatpush1.msra.mxu0 0.0
    %809 = vmatprep.subr.mxu0 0.0
    %810 = vmatpush1.msra.mxu0 0.0
    %811 = vmatprep.subr.mxu0 0.0
    %812 = vmatpush1.msra.mxu0 0.0
    %813 = vmatprep.subr.mxu0 0.0
    %814 = vmatpush1.msra.mxu0 0.0
    %815 = vmatprep.subr.mxu0 0.0
    %816 = vmatpush1.msra.mxu0 0.0
    %817 = vmatprep.subr.mxu0 0.0
    %818 = vmatpush1.msra.mxu0 0.0
    %819 = vmatprep.subr.mxu0 0.0
    %820 = vmatpush1.msra.mxu0 0.0
    %821 = vmatprep.subr.mxu0 0.0
    %822 = vmatpush1.msra.mxu0 0.0
    %823 = vmatprep.mubr.f32.mxu0 0.0
    %824 = vmatmul.mubr.f32.gmra.mrb[0].mxu0 %v191
    %v825 = vpop.f32.mrb[0].mxu0
    %v826 = vadd.f32 %v748, %v825
    %v827 = vpop.f32.mrb[0].mxu0
    %828 = vmatprep.mubr.f32.mxu0 0.0
    %829 = vmatmul.mubr.f32.gmra.mrb[0].mxu0 %v194
    %v830 = vpop.f32.mrb[0].mxu0
    %v831 = vadd.f32 %v753, %v830
    %v832 = vpop.f32.mrb[0].mxu0
    %833 = vdwg.mxu0
    %s834 = scalar_lea.vmem %s5, 3
    %v835 = vld [vmem:[%s834] sm:$0x1]
    %v837 = vlaneseq
    %v838 = vshrl.u32 %v837, 7
    %v839 = vsub.s32 0, %v838
    %v840 = vrot.slane %v835, %v839
    %v842 = vadd.f32 %v826, %v840
    %v843 = vadd.f32 %v831, %v840
    %s844 = scalar_lea.vmem [#allocation2], 48
    %845 = vst.msk [vmem:[%s844] sm:$0x3] %vm283, %v842
    %s846 = scalar_lea.vmem [#allocation2], 50
    %847 = vst.msk [vmem:[%s846 - $0x2] sm:$0xc] %vm286, %v842
    %s848 = scalar_lea.vmem [#allocation2], 52
    %849 = vst.msk [vmem:[%s848 - $0x4] sm:$0x30] %vm289, %v842
    %s850 = scalar_lea.vmem [#allocation2], 54
    %851 = vst.msk [vmem:[%s850 - $0x6] sm:$0xc0] %vm292, %v842
    %s852 = scalar_lea.vmem [#allocation2], 56
    %853 = vst.msk [vmem:[%s852] sm:$0x3] %vm283, %v843
    %s854 = scalar_lea.vmem [#allocation2], 58
    %855 = vst.msk [vmem:[%s854 - $0x2] sm:$0xc] %vm286, %v843
    %s856 = scalar_lea.vmem [#allocation2], 60
    %857 = vst.msk [vmem:[%s856 - $0x4] sm:$0x30] %vm289, %v843
    %s858 = scalar_lea.vmem [#allocation2], 62
    %859 = vst.msk [vmem:[%s858 - $0x6] sm:$0xc0] %vm292, %v843
    %v860 = vld [vmem:[#allocation7] sm:$0xff]
    %v861 = vld [vmem:[#allocation7 + $0x8] sm:$0xff]
    %v862 = vld [vmem:[#allocation7 + $0x10] sm:$0xff]
    %v863 = vld [vmem:[#allocation7 + $0x18] sm:$0xff]
    %v864 = vld [vmem:[#allocation7 + $0x20] sm:$0xff]
    %v865 = vld [vmem:[#allocation7 + $0x28] sm:$0xff]
    %v866 = vld [vmem:[#allocation7 + $0x30] sm:$0xff]
    %v867 = vld [vmem:[#allocation7 + $0x38] sm:$0xff]
    %s868 = scalar_lea.vmem [#allocation7], 64
    %v869 = vld [vmem:[%s868] sm:$0xff]
    %v870 = vld [vmem:[%s868 + $0x8] sm:$0xff]
    %v871 = vld [vmem:[%s868 + $0x10] sm:$0xff]
    %v872 = vld [vmem:[%s868 + $0x18] sm:$0xff]
    %v873 = vld [vmem:[%s868 + $0x20] sm:$0xff]
    %v874 = vld [vmem:[%s868 + $0x28] sm:$0xff]
    %v875 = vld [vmem:[%s868 + $0x30] sm:$0xff]
    %v876 = vld [vmem:[%s868 + $0x38] sm:$0xff]
    %s877 = scalar_lea.vmem [#allocation7], 128
    %v878 = vld [vmem:[%s877] sm:$0xff]
    %v879 = vld [vmem:[%s877 + $0x8] sm:$0xff]
    %v880 = vld [vmem:[%s877 + $0x10] sm:$0xff]
    %v881 = vld [vmem:[%s877 + $0x18] sm:$0xff]
    %v882 = vld [vmem:[%s877 + $0x20] sm:$0xff]
    %v883 = vld [vmem:[%s877 + $0x28] sm:$0xff]
    %v884 = vld [vmem:[%s877 + $0x30] sm:$0xff]
    %v885 = vld [vmem:[%s877 + $0x38] sm:$0xff]
    %s886 = scalar_lea.vmem [#allocation7], 192
    %v887 = vld [vmem:[%s886] sm:$0xff]
    %v888 = vld [vmem:[%s886 + $0x8] sm:$0xff]
    %v889 = vld [vmem:[%s886 + $0x10] sm:$0xff]
    %v890 = vld [vmem:[%s886 + $0x18] sm:$0xff]
    %v891 = vld [vmem:[%s886 + $0x20] sm:$0xff]
    %v892 = vld [vmem:[%s886 + $0x28] sm:$0xff]
    %v893 = vld [vmem:[%s886 + $0x30] sm:$0xff]
    %v894 = vld [vmem:[%s886 + $0x38] sm:$0xff]
    %v895 = vld [vmem:[#allocation2] sm:$0x3]
    %vm896 = vcmask 523264
    %v898 = vsel %vm896, 0.0, 0
    %900 = vmatprep.subr.mxu0 0.0
    %901 = vmatpush1.msra.mxu0 %v860
    %902 = vmatprep.subr.mxu0 0.0
    %903 = vmatpush1.msra.mxu0 %v861
    %904 = vmatprep.subr.mxu0 0.0
    %905 = vmatpush1.msra.mxu0 %v862
    %906 = vmatprep.subr.mxu0 0.0
    %907 = vmatpush1.msra.mxu0 %v863
    %908 = vmatprep.subr.mxu0 0.0
    %909 = vmatpush1.msra.mxu0 %v864
    %910 = vmatprep.subr.mxu0 0.0
    %911 = vmatpush1.msra.mxu0 %v865
    %912 = vmatprep.subr.mxu0 0.0
    %913 = vmatpush1.msra.mxu0 %v866
    %914 = vmatprep.subr.mxu0 0.0
    %915 = vmatpush1.msra.mxu0 %v867
    %916 = vmatprep.subr.mxu0 0.0
    %917 = vmatpush1.msra.mxu0 0.0
    %918 = vmatprep.subr.mxu0 0.0
    %919 = vmatpush1.msra.mxu0 0.0
    %920 = vmatprep.subr.mxu0 0.0
    %921 = vmatpush1.msra.mxu0 0.0
    %922 = vmatprep.subr.mxu0 0.0
    %923 = vmatpush1.msra.mxu0 0.0
    %924 = vmatprep.subr.mxu0 0.0
    %925 = vmatpush1.msra.mxu0 0.0
    %926 = vmatprep.subr.mxu0 0.0
    %927 = vmatpush1.msra.mxu0 0.0
    %928 = vmatprep.subr.mxu0 0.0
    %929 = vmatpush1.msra.mxu0 0.0
    %930 = vmatprep.subr.mxu0 0.0
    %931 = vmatpush1.msra.mxu0 0.0
    %932 = vmatprep.subr.mxu0 0.0
    %933 = vmatpush1.msra.mxu0 0.0
    %934 = vmatprep.subr.mxu0 0.0
    %935 = vmatpush1.msra.mxu0 0.0
    %936 = vmatprep.subr.mxu0 0.0
    %937 = vmatpush1.msra.mxu0 0.0
    %938 = vmatprep.subr.mxu0 0.0
    %939 = vmatpush1.msra.mxu0 0.0
    %940 = vmatprep.subr.mxu0 0.0
    %941 = vmatpush1.msra.mxu0 0.0
    %942 = vmatprep.subr.mxu0 0.0
    %943 = vmatpush1.msra.mxu0 0.0
    %944 = vmatprep.subr.mxu0 0.0
    %945 = vmatpush1.msra.mxu0 0.0
    %946 = vmatprep.subr.mxu0 0.0
    %947 = vmatpush1.msra.mxu0 0.0
    %948 = vmatprep.subr.mxu0 0.0
    %949 = vmatpush1.msra.mxu0 0.0
    %950 = vmatprep.subr.mxu0 0.0
    %951 = vmatpush1.msra.mxu0 0.0
    %952 = vmatprep.subr.mxu0 0.0
    %953 = vmatpush1.msra.mxu0 0.0
    %954 = vmatprep.subr.mxu0 0.0
    %955 = vmatpush1.msra.mxu0 0.0
    %956 = vmatprep.subr.mxu0 0.0
    %957 = vmatpush1.msra.mxu0 0.0
    %958 = vmatprep.subr.mxu0 0.0
    %959 = vmatpush1.msra.mxu0 0.0
    %960 = vmatprep.subr.mxu0 0.0
    %961 = vmatpush1.msra.mxu0 0.0
    %962 = vmatprep.subr.mxu0 0.0
    %963 = vmatpush1.msra.mxu0 0.0
    %964 = vmatprep.mubr.f32.mxu0 0.0
    %965 = vmatmul.mubr.f32.gmra.mrb[0].mxu0 %v898
    %v966 = vpop.f32.mrb[0].mxu0
    %v967 = vadd.f32 %v895, %v966
    %v968 = vpop.f32.mrb[0].mxu0
    %969 = vdwg.mxu0
    %v970 = vxor.u32 %v967, 2147483648
    %v971 = vmul.f32 %v970, 1.442695
    %v972 = vpow.pop %v971
    %v973 = vadd.f32 %v972, 1.0
    %v974 = vrcp.pop %v973
    %v975 = vmul.f32 1.0, %v974
    %v976 = vld [vmem:[%s472] sm:$0x3]
    %977 = vmatprep.subr.mxu0 0.0
    %978 = vmatpush1.msra.mxu0 %v869
    %979 = vmatprep.subr.mxu0 0.0
    %980 = vmatpush1.msra.mxu0 %v870
    %981 = vmatprep.subr.mxu0 0.0
    %982 = vmatpush1.msra.mxu0 %v871
    %983 = vmatprep.subr.mxu0 0.0
    %984 = vmatpush1.msra.mxu0 %v872
    %985 = vmatprep.subr.mxu0 0.0
    %986 = vmatpush1.msra.mxu0 %v873
    %987 = vmatprep.subr.mxu0 0.0
    %988 = vmatpush1.msra.mxu0 %v874
    %989 = vmatprep.subr.mxu0 0.0
    %990 = vmatpush1.msra.mxu0 %v875
    %991 = vmatprep.subr.mxu0 0.0
    %992 = vmatpush1.msra.mxu0 %v876
    %993 = vmatprep.subr.mxu0 0.0
    %994 = vmatpush1.msra.mxu0 0.0
    %995 = vmatprep.subr.mxu0 0.0
    %996 = vmatpush1.msra.mxu0 0.0
    %997 = vmatprep.subr.mxu0 0.0
    %998 = vmatpush1.msra.mxu0 0.0
    %999 = vmatprep.subr.mxu0 0.0
    %1000 = vmatpush1.msra.mxu0 0.0
    %1001 = vmatprep.subr.mxu0 0.0
    %1002 = vmatpush1.msra.mxu0 0.0
    %1003 = vmatprep.subr.mxu0 0.0
    %1004 = vmatpush1.msra.mxu0 0.0
    %1005 = vmatprep.subr.mxu0 0.0
    %1006 = vmatpush1.msra.mxu0 0.0
    %1007 = vmatprep.subr.mxu0 0.0
    %1008 = vmatpush1.msra.mxu0 0.0
    %1009 = vmatprep.subr.mxu0 0.0
    %1010 = vmatpush1.msra.mxu0 0.0
    %1011 = vmatprep.subr.mxu0 0.0
    %1012 = vmatpush1.msra.mxu0 0.0
    %1013 = vmatprep.subr.mxu0 0.0
    %1014 = vmatpush1.msra.mxu0 0.0
    %1015 = vmatprep.subr.mxu0 0.0
    %1016 = vmatpush1.msra.mxu0 0.0
    %1017 = vmatprep.subr.mxu0 0.0
    %1018 = vmatpush1.msra.mxu0 0.0
    %1019 = vmatprep.subr.mxu0 0.0
    %1020 = vmatpush1.msra.mxu0 0.0
    %1021 = vmatprep.subr.mxu0 0.0
    %1022 = vmatpush1.msra.mxu0 0.0
    %1023 = vmatprep.subr.mxu0 0.0
    %1024 = vmatpush1.msra.mxu0 0.0
    %1025 = vmatprep.subr.mxu0 0.0
    %1026 = vmatpush1.msra.mxu0 0.0
    %1027 = vmatprep.subr.mxu0 0.0
    %1028 = vmatpush1.msra.mxu0 0.0
    %1029 = vmatprep.subr.mxu0 0.0
    %1030 = vmatpush1.msra.mxu0 0.0
    %1031 = vmatprep.subr.mxu0 0.0
    %1032 = vmatpush1.msra.mxu0 0.0
    %1033 = vmatprep.subr.mxu0 0.0
    %1034 = vmatpush1.msra.mxu0 0.0
    %1035 = vmatprep.subr.mxu0 0.0
    %1036 = vmatpush1.msra.mxu0 0.0
    %1037 = vmatprep.subr.mxu0 0.0
    %1038 = vmatpush1.msra.mxu0 0.0
    %1039 = vmatprep.subr.mxu0 0.0
    %1040 = vmatpush1.msra.mxu0 0.0
    %1041 = vmatprep.mubr.f32.mxu0 0.0
    %1042 = vmatmul.mubr.f32.gmra.mrb[0].mxu0 %v898
    %v1043 = vpop.f32.mrb[0].mxu0
    %v1044 = vadd.f32 %v976, %v1043
    %v1045 = vpop.f32.mrb[0].mxu0
    %1046 = vdwg.mxu0
    %v1047 = vxor.u32 %v1044, 2147483648
    %v1048 = vmul.f32 %v1047, 1.442695
    %v1049 = vpow.pop %v1048
    %v1050 = vadd.f32 %v1049, 1.0
    %v1051 = vrcp.pop %v1050
    %v1052 = vmul.f32 1.0, %v1051
    %v1053 = vld [vmem:[%s658] sm:$0x3]
    %1054 = vmatprep.subr.mxu0 0.0
    %1055 = vmatpush1.msra.mxu0 %v878
    %1056 = vmatprep.subr.mxu0 0.0
    %1057 = vmatpush1.msra.mxu0 %v879
    %1058 = vmatprep.subr.mxu0 0.0
    %1059 = vmatpush1.msra.mxu0 %v880
    %1060 = vmatprep.subr.mxu0 0.0
    %1061 = vmatpush1.msra.mxu0 %v881
    %1062 = vmatprep.subr.mxu0 0.0
    %1063 = vmatpush1.msra.mxu0 %v882
    %1064 = vmatprep.subr.mxu0 0.0
    %1065 = vmatpush1.msra.mxu0 %v883
    %1066 = vmatprep.subr.mxu0 0.0
    %1067 = vmatpush1.msra.mxu0 %v884
    %1068 = vmatprep.subr.mxu0 0.0
    %1069 = vmatpush1.msra.mxu0 %v885
    %1070 = vmatprep.subr.mxu0 0.0
    %1071 = vmatpush1.msra.mxu0 0.0
    %1072 = vmatprep.subr.mxu0 0.0
    %1073 = vmatpush1.msra.mxu0 0.0
    %1074 = vmatprep.subr.mxu0 0.0
    %1075 = vmatpush1.msra.mxu0 0.0
    %1076 = vmatprep.subr.mxu0 0.0
    %1077 = vmatpush1.msra.mxu0 0.0
    %1078 = vmatprep.subr.mxu0 0.0
    %1079 = vmatpush1.msra.mxu0 0.0
    %1080 = vmatprep.subr.mxu0 0.0
    %1081 = vmatpush1.msra.mxu0 0.0
    %1082 = vmatprep.subr.mxu0 0.0
    %1083 = vmatpush1.msra.mxu0 0.0
    %1084 = vmatprep.subr.mxu0 0.0
    %1085 = vmatpush1.msra.mxu0 0.0
    %1086 = vmatprep.subr.mxu0 0.0
    %1087 = vmatpush1.msra.mxu0 0.0
    %1088 = vmatprep.subr.mxu0 0.0
    %1089 = vmatpush1.msra.mxu0 0.0
    %1090 = vmatprep.subr.mxu0 0.0
    %1091 = vmatpush1.msra.mxu0 0.0
    %1092 = vmatprep.subr.mxu0 0.0
    %1093 = vmatpush1.msra.mxu0 0.0
    %1094 = vmatprep.subr.mxu0 0.0
    %1095 = vmatpush1.msra.mxu0 0.0
    %1096 = vmatprep.subr.mxu0 0.0
    %1097 = vmatpush1.msra.mxu0 0.0
    %1098 = vmatprep.subr.mxu0 0.0
    %1099 = vmatpush1.msra.mxu0 0.0
    %1100 = vmatprep.subr.mxu0 0.0
    %1101 = vmatpush1.msra.mxu0 0.0
    %1102 = vmatprep.subr.mxu0 0.0
    %1103 = vmatpush1.msra.mxu0 0.0
    %1104 = vmatprep.subr.mxu0 0.0
    %1105 = vmatpush1.msra.mxu0 0.0
    %1106 = vmatprep.subr.mxu0 0.0
    %1107 = vmatpush1.msra.mxu0 0.0
    %1108 = vmatprep.subr.mxu0 0.0
    %1109 = vmatpush1.msra.mxu0 0.0
    %1110 = vmatprep.subr.mxu0 0.0
    %1111 = vmatpush1.msra.mxu0 0.0
    %1112 = vmatprep.subr.mxu0 0.0
    %1113 = vmatpush1.msra.mxu0 0.0
    %1114 = vmatprep.subr.mxu0 0.0
    %1115 = vmatpush1.msra.mxu0 0.0
    %1116 = vmatprep.subr.mxu0 0.0
    %1117 = vmatpush1.msra.mxu0 0.0
    %1118 = vmatprep.mubr.f32.mxu0 0.0
    %1119 = vmatmul.mubr.f32.gmra.mrb[0].mxu0 %v898
    %v1120 = vpop.f32.mrb[0].mxu0
    %v1121 = vadd.f32 %v1053, %v1120
    %v1122 = vpop.f32.mrb[0].mxu0
    %1123 = vdwg.mxu0
    %v1124 = vtanh.pop %v1121
    %v1125 = vld [vmem:[%s844] sm:$0x3]
    %1126 = vmatprep.subr.mxu0 0.0
    %1127 = vmatpush1.msra.mxu0 %v887
    %1128 = vmatprep.subr.mxu0 0.0
    %1129 = vmatpush1.msra.mxu0 %v888
    %1130 = vmatprep.subr.mxu0 0.0
    %1131 = vmatpush1.msra.mxu0 %v889
    %1132 = vmatprep.subr.mxu0 0.0
    %1133 = vmatpush1.msra.mxu0 %v890
    %1134 = vmatprep.subr.mxu0 0.0
    %1135 = vmatpush1.msra.mxu0 %v891
    %1136 = vmatprep.subr.mxu0 0.0
    %1137 = vmatpush1.msra.mxu0 %v892
    %1138 = vmatprep.subr.mxu0 0.0
    %1139 = vmatpush1.msra.mxu0 %v893
    %1140 = vmatprep.subr.mxu0 0.0
    %1141 = vmatpush1.msra.mxu0 %v894
    %1142 = vmatprep.subr.mxu0 0.0
    %1143 = vmatpush1.msra.mxu0 0.0
    %1144 = vmatprep.subr.mxu0 0.0
    %1145 = vmatpush1.msra.mxu0 0.0
    %1146 = vmatprep.subr.mxu0 0.0
    %1147 = vmatpush1.msra.mxu0 0.0
    %1148 = vmatprep.subr.mxu0 0.0
    %1149 = vmatpush1.msra.mxu0 0.0
    %1150 = vmatprep.subr.mxu0 0.0
    %1151 = vmatpush1.msra.mxu0 0.0
    %1152 = vmatprep.subr.mxu0 0.0
    %1153 = vmatpush1.msra.mxu0 0.0
    %1154 = vmatprep.subr.mxu0 0.0
    %1155 = vmatpush1.msra.mxu0 0.0
    %1156 = vmatprep.subr.mxu0 0.0
    %1157 = vmatpush1.msra.mxu0 0.0
    %1158 = vmatprep.subr.mxu0 0.0
    %1159 = vmatpush1.msra.mxu0 0.0
    %1160 = vmatprep.subr.mxu0 0.0
    %1161 = vmatpush1.msra.mxu0 0.0
    %1162 = vmatprep.subr.mxu0 0.0
    %1163 = vmatpush1.msra.mxu0 0.0
    %1164 = vmatprep.subr.mxu0 0.0
    %1165 = vmatpush1.msra.mxu0 0.0
    %1166 = vmatprep.subr.mxu0 0.0
    %1167 = vmatpush1.msra.mxu0 0.0
    %1168 = vmatprep.subr.mxu0 0.0
    %1169 = vmatpush1.msra.mxu0 0.0
    %1170 = vmatprep.subr.mxu0 0.0
    %1171 = vmatpush1.msra.mxu0 0.0
    %1172 = vmatprep.subr.mxu0 0.0
    %1173 = vmatpush1.msra.mxu0 0.0
    %1174 = vmatprep.subr.mxu0 0.0
    %1175 = vmatpush1.msra.mxu0 0.0
    %1176 = vmatprep.subr.mxu0 0.0
    %1177 = vmatpush1.msra.mxu0 0.0
    %1178 = vmatprep.subr.mxu0 0.0
    %1179 = vmatpush1.msra.mxu0 0.0
    %1180 = vmatprep.subr.mxu0 0.0
    %1181 = vmatpush1.msra.mxu0 0.0
    %1182 = vmatprep.subr.mxu0 0.0
    %1183 = vmatpush1.msra.mxu0 0.0
    %1184 = vmatprep.subr.mxu0 0.0
    %1185 = vmatpush1.msra.mxu0 0.0
    %1186 = vmatprep.subr.mxu0 0.0
    %1187 = vmatpush1.msra.mxu0 0.0
    %1188 = vmatprep.subr.mxu0 0.0
    %1189 = vmatpush1.msra.mxu0 0.0
    %1190 = vmatprep.mubr.f32.mxu0 0.0
    %1191 = vmatmul.mubr.f32.gmra.mrb[0].mxu0 %v898
    %v1192 = vpop.f32.mrb[0].mxu0
    %v1193 = vadd.f32 %v1125, %v1192
    %v1194 = vpop.f32.mrb[0].mxu0
    %1195 = vdwg.mxu0
    %v1196 = vxor.u32 %v1193, 2147483648
    %v1197 = vmul.f32 %v1196, 1.442695
    %v1198 = vpow.pop %v1197
    %v1199 = vadd.f32 %v1198, 1.0
    %v1200 = vrcp.pop %v1199
    %v1201 = vmul.f32 1.0, %v1200
    %v1202 = vmul.f32 %v1052, 0.0
    %v1203 = vmul.f32 %v975, %v1124
    %v1204 = vadd.f32 %v1202, %v1203
    %v1205 = vtanh.pop %v1204
    %v1206 = vmul.f32 %v1201, %v1205
    %vm1207 = vcmask 254976
    %1208 = vst.msk [vmem:[#allocation3] sm:$0x3] %vm1207, %v1206
    %s1209 = scalar_lea.vmem [#allocation3], 14
    %vm1210 = vcmask 517376
    %1211 = vst.msk [vmem:[%s1209] sm:$0x3] %vm1210, %v1206
    %v1212 = vld [vmem:[%s285] sm:$0x3]
    %v1214 = vsel %vm896, %v1206, 0
    %1216 = vmatprep.subr.mxu0 0.0
    %1217 = vmatpush1.msra.mxu0 %v860
    %1218 = vmatprep.subr.mxu0 0.0
    %1219 = vmatpush1.msra.mxu0 %v861
    %1220 = vmatprep.subr.mxu0 0.0
    %1221 = vmatpush1.msra.mxu0 %v862
    %1222 = vmatprep.subr.mxu0 0.0
    %1223 = vmatpush1.msra.mxu0 %v863
    %1224 = vmatprep.subr.mxu0 0.0
    %1225 = vmatpush1.msra.mxu0 %v864
    %1226 = vmatprep.subr.mxu0 0.0
    %1227 = vmatpush1.msra.mxu0 %v865
    %1228 = vmatprep.subr.mxu0 0.0
    %1229 = vmatpush1.msra.mxu0 %v866
    %1230 = vmatprep.subr.mxu0 0.0
    %1231 = vmatpush1.msra.mxu0 %v867
    %1232 = vmatprep.subr.mxu0 0.0
    %1233 = vmatpush1.msra.mxu0 0.0
    %1234 = vmatprep.subr.mxu0 0.0
    %1235 = vmatpush1.msra.mxu0 0.0
    %1236 = vmatprep.subr.mxu0 0.0
    %1237 = vmatpush1.msra.mxu0 0.0
    %1238 = vmatprep.subr.mxu0 0.0
    %1239 = vmatpush1.msra.mxu0 0.0
    %1240 = vmatprep.subr.mxu0 0.0
    %1241 = vmatpush1.msra.mxu0 0.0
    %1242 = vmatprep.subr.mxu0 0.0
    %1243 = vmatpush1.msra.mxu0 0.0
    %1244 = vmatprep.subr.mxu0 0.0
    %1245 = vmatpush1.msra.mxu0 0.0
    %1246 = vmatprep.subr.mxu0 0.0
    %1247 = vmatpush1.msra.mxu0 0.0
    %1248 = vmatprep.subr.mxu0 0.0
    %1249 = vmatpush1.msra.mxu0 0.0
    %1250 = vmatprep.subr.mxu0 0.0
    %1251 = vmatpush1.msra.mxu0 0.0
    %1252 = vmatprep.subr.mxu0 0.0
    %1253 = vmatpush1.msra.mxu0 0.0
    %1254 = vmatprep.subr.mxu0 0.0
    %1255 = vmatpush1.msra.mxu0 0.0
    %1256 = vmatprep.subr.mxu0 0.0
    %1257 = vmatpush1.msra.mxu0 0.0
    %1258 = vmatprep.subr.mxu0 0.0
    %1259 = vmatpush1.msra.mxu0 0.0
    %1260 = vmatprep.subr.mxu0 0.0
    %1261 = vmatpush1.msra.mxu0 0.0
    %1262 = vmatprep.subr.mxu0 0.0
    %1263 = vmatpush1.msra.mxu0 0.0
    %1264 = vmatprep.subr.mxu0 0.0
    %1265 = vmatpush1.msra.mxu0 0.0
    %1266 = vmatprep.subr.mxu0 0.0
    %1267 = vmatpush1.msra.mxu0 0.0
    %1268 = vmatprep.subr.mxu0 0.0
    %1269 = vmatpush1.msra.mxu0 0.0
    %1270 = vmatprep.subr.mxu0 0.0
    %1271 = vmatpush1.msra.mxu0 0.0
    %1272 = vmatprep.subr.mxu0 0.0
    %1273 = vmatpush1.msra.mxu0 0.0
    %1274 = vmatprep.subr.mxu0 0.0
    %1275 = vmatpush1.msra.mxu0 0.0
    %1276 = vmatprep.subr.mxu0 0.0
    %1277 = vmatpush1.msra.mxu0 0.0
    %1278 = vmatprep.subr.mxu0 0.0
    %1279 = vmatpush1.msra.mxu0 0.0
    %1280 = vmatprep.mubr.f32.mxu0 0.0
    %1281 = vmatmul.mubr.f32.gmra.mrb[0].mxu0 %v1214
    %v1282 = vpop.f32.mrb[0].mxu0
    %v1283 = vadd.f32 %v1212, %v1282
    %v1284 = vpop.f32.mrb[0].mxu0
    %1285 = vdwg.mxu0
    %v1286 = vxor.u32 %v1283, 2147483648
    %v1287 = vmul.f32 %v1286, 1.442695
    %v1288 = vpow.pop %v1287
    %v1289 = vadd.f32 %v1288, 1.0
    %v1290 = vrcp.pop %v1289
    %v1291 = vmul.f32 1.0, %v1290
    %v1292 = vld [vmem:[%s474] sm:$0x3]
    %1293 = vmatprep.subr.mxu0 0.0
    %1294 = vmatpush1.msra.mxu0 %v869
    %1295 = vmatprep.subr.mxu0 0.0
    %1296 = vmatpush1.msra.mxu0 %v870
    %1297 = vmatprep.subr.mxu0 0.0
    %1298 = vmatpush1.msra.mxu0 %v871
    %1299 = vmatprep.subr.mxu0 0.0
    %1300 = vmatpush1.msra.mxu0 %v872
    %1301 = vmatprep.subr.mxu0 0.0
    %1302 = vmatpush1.msra.mxu0 %v873
    %1303 = vmatprep.subr.mxu0 0.0
    %1304 = vmatpush1.msra.mxu0 %v874
    %1305 = vmatprep.subr.mxu0 0.0
    %1306 = vmatpush1.msra.mxu0 %v875
    %1307 = vmatprep.subr.mxu0 0.0
    %1308 = vmatpush1.msra.mxu0 %v876
    %1309 = vmatprep.subr.mxu0 0.0
    %1310 = vmatpush1.msra.mxu0 0.0
    %1311 = vmatprep.subr.mxu0 0.0
    %1312 = vmatpush1.msra.mxu0 0.0
    %1313 = vmatprep.subr.mxu0 0.0
    %1314 = vmatpush1.msra.mxu0 0.0
    %1315 = vmatprep.subr.mxu0 0.0
    %1316 = vmatpush1.msra.mxu0 0.0
    %1317 = vmatprep.subr.mxu0 0.0
    %1318 = vmatpush1.msra.mxu0 0.0
    %1319 = vmatprep.subr.mxu0 0.0
    %1320 = vmatpush1.msra.mxu0 0.0
    %1321 = vmatprep.subr.mxu0 0.0
    %1322 = vmatpush1.msra.mxu0 0.0
    %1323 = vmatprep.subr.mxu0 0.0
    %1324 = vmatpush1.msra.mxu0 0.0
    %1325 = vmatprep.subr.mxu0 0.0
    %1326 = vmatpush1.msra.mxu0 0.0
    %1327 = vmatprep.subr.mxu0 0.0
    %1328 = vmatpush1.msra.mxu0 0.0
    %1329 = vmatprep.subr.mxu0 0.0
    %1330 = vmatpush1.msra.mxu0 0.0
    %1331 = vmatprep.subr.mxu0 0.0
    %1332 = vmatpush1.msra.mxu0 0.0
    %1333 = vmatprep.subr.mxu0 0.0
    %1334 = vmatpush1.msra.mxu0 0.0
    %1335 = vmatprep.subr.mxu0 0.0
    %1336 = vmatpush1.msra.mxu0 0.0
    %1337 = vmatprep.subr.mxu0 0.0
    %1338 = vmatpush1.msra.mxu0 0.0
    %1339 = vmatprep.subr.mxu0 0.0
    %1340 = vmatpush1.msra.mxu0 0.0
    %1341 = vmatprep.subr.mxu0 0.0
    %1342 = vmatpush1.msra.mxu0 0.0
    %1343 = vmatprep.subr.mxu0 0.0
    %1344 = vmatpush1.msra.mxu0 0.0
    %1345 = vmatprep.subr.mxu0 0.0
    %1346 = vmatpush1.msra.mxu0 0.0
    %1347 = vmatprep.subr.mxu0 0.0
    %1348 = vmatpush1.msra.mxu0 0.0
    %1349 = vmatprep.subr.mxu0 0.0
    %1350 = vmatpush1.msra.mxu0 0.0
    %1351 = vmatprep.subr.mxu0 0.0
    %1352 = vmatpush1.msra.mxu0 0.0
    %1353 = vmatprep.subr.mxu0 0.0
    %1354 = vmatpush1.msra.mxu0 0.0
    %1355 = vmatprep.subr.mxu0 0.0
    %1356 = vmatpush1.msra.mxu0 0.0
    %1357 = vmatprep.mubr.f32.mxu0 0.0
    %1358 = vmatmul.mubr.f32.gmra.mrb[0].mxu0 %v1214
    %v1359 = vpop.f32.mrb[0].mxu0
    %v1360 = vadd.f32 %v1292, %v1359
    %v1361 = vpop.f32.mrb[0].mxu0
    %1362 = vdwg.mxu0
    %v1363 = vxor.u32 %v1360, 2147483648
    %v1364 = vmul.f32 %v1363, 1.442695
    %v1365 = vpow.pop %v1364
    %v1366 = vadd.f32 %v1365, 1.0
    %v1367 = vrcp.pop %v1366
    %v1368 = vmul.f32 1.0, %v1367
    %v1369 = vld [vmem:[%s660] sm:$0x3]
    %1370 = vmatprep.subr.mxu0 0.0
    %1371 = vmatpush1.msra.mxu0 %v878
    %1372 = vmatprep.subr.mxu0 0.0
    %1373 = vmatpush1.msra.mxu0 %v879
    %1374 = vmatprep.subr.mxu0 0.0
    %1375 = vmatpush1.msra.mxu0 %v880
    %1376 = vmatprep.subr.mxu0 0.0
    %1377 = vmatpush1.msra.mxu0 %v881
    %1378 = vmatprep.subr.mxu0 0.0
    %1379 = vmatpush1.msra.mxu0 %v882
    %1380 = vmatprep.subr.mxu0 0.0
    %1381 = vmatpush1.msra.mxu0 %v883
    %1382 = vmatprep.subr.mxu0 0.0
    %1383 = vmatpush1.msra.mxu0 %v884
    %1384 = vmatprep.subr.mxu0 0.0
    %1385 = vmatpush1.msra.mxu0 %v885
    %1386 = vmatprep.subr.mxu0 0.0
    %1387 = vmatpush1.msra.mxu0 0.0
    %1388 = vmatprep.subr.mxu0 0.0
    %1389 = vmatpush1.msra.mxu0 0.0
    %1390 = vmatprep.subr.mxu0 0.0
    %1391 = vmatpush1.msra.mxu0 0.0
    %1392 = vmatprep.subr.mxu0 0.0
    %1393 = vmatpush1.msra.mxu0 0.0
    %1394 = vmatprep.subr.mxu0 0.0
    %1395 = vmatpush1.msra.mxu0 0.0
    %1396 = vmatprep.subr.mxu0 0.0
    %1397 = vmatpush1.msra.mxu0 0.0
    %1398 = vmatprep.subr.mxu0 0.0
    %1399 = vmatpush1.msra.mxu0 0.0
    %1400 = vmatprep.subr.mxu0 0.0
    %1401 = vmatpush1.msra.mxu0 0.0
    %1402 = vmatprep.subr.mxu0 0.0
    %1403 = vmatpush1.msra.mxu0 0.0
    %1404 = vmatprep.subr.mxu0 0.0
    %1405 = vmatpush1.msra.mxu0 0.0
    %1406 = vmatprep.subr.mxu0 0.0
    %1407 = vmatpush1.msra.mxu0 0.0
    %1408 = vmatprep.subr.mxu0 0.0
    %1409 = vmatpush1.msra.mxu0 0.0
    %1410 = vmatprep.subr.mxu0 0.0
    %1411 = vmatpush1.msra.mxu0 0.0
    %1412 = vmatprep.subr.mxu0 0.0
    %1413 = vmatpush1.msra.mxu0 0.0
    %1414 = vmatprep.subr.mxu0 0.0
    %1415 = vmatpush1.msra.mxu0 0.0
    %1416 = vmatprep.subr.mxu0 0.0
    %1417 = vmatpush1.msra.mxu0 0.0
    %1418 = vmatprep.subr.mxu0 0.0
    %1419 = vmatpush1.msra.mxu0 0.0
    %1420 = vmatprep.subr.mxu0 0.0
    %1421 = vmatpush1.msra.mxu0 0.0
    %1422 = vmatprep.subr.mxu0 0.0
    %1423 = vmatpush1.msra.mxu0 0.0
    %1424 = vmatprep.subr.mxu0 0.0
    %1425 = vmatpush1.msra.mxu0 0.0
    %1426 = vmatprep.subr.mxu0 0.0
    %1427 = vmatpush1.msra.mxu0 0.0
    %1428 = vmatprep.subr.mxu0 0.0
    %1429 = vmatpush1.msra.mxu0 0.0
    %1430 = vmatprep.subr.mxu0 0.0
    %1431 = vmatpush1.msra.mxu0 0.0
    %1432 = vmatprep.subr.mxu0 0.0
    %1433 = vmatpush1.msra.mxu0 0.0
    %1434 = vmatprep.mubr.f32.mxu0 0.0
    %1435 = vmatmul.mubr.f32.gmra.mrb[0].mxu0 %v1214
    %v1436 = vpop.f32.mrb[0].mxu0
    %v1437 = vadd.f32 %v1369, %v1436
    %v1438 = vpop.f32.mrb[0].mxu0
    %1439 = vdwg.mxu0
    %v1440 = vtanh.pop %v1437
    %v1441 = vld [vmem:[%s846] sm:$0x3]
    %1442 = vmatprep.subr.mxu0 0.0
    %1443 = vmatpush1.msra.mxu0 %v887
    %1444 = vmatprep.subr.mxu0 0.0
    %1445 = vmatpush1.msra.mxu0 %v888
    %1446 = vmatprep.subr.mxu0 0.0
    %1447 = vmatpush1.msra.mxu0 %v889
    %1448 = vmatprep.subr.mxu0 0.0
    %1449 = vmatpush1.msra.mxu0 %v890
    %1450 = vmatprep.subr.mxu0 0.0
    %1451 = vmatpush1.msra.mxu0 %v891
    %1452 = vmatprep.subr.mxu0 0.0
    %1453 = vmatpush1.msra.mxu0 %v892
    %1454 = vmatprep.subr.mxu0 0.0
    %1455 = vmatpush1.msra.mxu0 %v893
    %1456 = vmatprep.subr.mxu0 0.0
    %1457 = vmatpush1.msra.mxu0 %v894
    %1458 = vmatprep.subr.mxu0 0.0
    %1459 = vmatpush1.msra.mxu0 0.0
    %1460 = vmatprep.subr.mxu0 0.0
    %1461 = vmatpush1.msra.mxu0 0.0
    %1462 = vmatprep.subr.mxu0 0.0
    %1463 = vmatpush1.msra.mxu0 0.0
    %1464 = vmatprep.subr.mxu0 0.0
    %1465 = vmatpush1.msra.mxu0 0.0
    %1466 = vmatprep.subr.mxu0 0.0
    %1467 = vmatpush1.msra.mxu0 0.0
    %1468 = vmatprep.subr.mxu0 0.0
    %1469 = vmatpush1.msra.mxu0 0.0
    %1470 = vmatprep.subr.mxu0 0.0
    %1471 = vmatpush1.msra.mxu0 0.0
    %1472 = vmatprep.subr.mxu0 0.0
    %1473 = vmatpush1.msra.mxu0 0.0
    %1474 = vmatprep.subr.mxu0 0.0
    %1475 = vmatpush1.msra.mxu0 0.0
    %1476 = vmatprep.subr.mxu0 0.0
    %1477 = vmatpush1.msra.mxu0 0.0
    %1478 = vmatprep.subr.mxu0 0.0
    %1479 = vmatpush1.msra.mxu0 0.0
    %1480 = vmatprep.subr.mxu0 0.0
    %1481 = vmatpush1.msra.mxu0 0.0
    %1482 = vmatprep.subr.mxu0 0.0
    %1483 = vmatpush1.msra.mxu0 0.0
    %1484 = vmatprep.subr.mxu0 0.0
    %1485 = vmatpush1.msra.mxu0 0.0
    %1486 = vmatprep.subr.mxu0 0.0
    %1487 = vmatpush1.msra.mxu0 0.0
    %1488 = vmatprep.subr.mxu0 0.0
    %1489 = vmatpush1.msra.mxu0 0.0
    %1490 = vmatprep.subr.mxu0 0.0
    %1491 = vmatpush1.msra.mxu0 0.0
    %1492 = vmatprep.subr.mxu0 0.0
    %1493 = vmatpush1.msra.mxu0 0.0
    %1494 = vmatprep.subr.mxu0 0.0
    %1495 = vmatpush1.msra.mxu0 0.0
    %1496 = vmatprep.subr.mxu0 0.0
    %1497 = vmatpush1.msra.mxu0 0.0
    %1498 = vmatprep.subr.mxu0 0.0
    %1499 = vmatpush1.msra.mxu0 0.0
    %1500 = vmatprep.subr.mxu0 0.0
    %1501 = vmatpush1.msra.mxu0 0.0
    %1502 = vmatprep.subr.mxu0 0.0
    %1503 = vmatpush1.msra.mxu0 0.0
    %1504 = vmatprep.subr.mxu0 0.0
    %1505 = vmatpush1.msra.mxu0 0.0
    %1506 = vmatprep.mubr.f32.mxu0 0.0
    %1507 = vmatmul.mubr.f32.gmra.mrb[0].mxu0 %v1214
    %v1508 = vpop.f32.mrb[0].mxu0
    %v1509 = vadd.f32 %v1441, %v1508
    %v1510 = vpop.f32.mrb[0].mxu0
    %1511 = vdwg.mxu0
    %v1512 = vxor.u32 %v1509, 2147483648
    %v1513 = vmul.f32 %v1512, 1.442695
    %v1514 = vpow.pop %v1513
    %v1515 = vadd.f32 %v1514, 1.0
    %v1516 = vrcp.pop %v1515
    %v1517 = vmul.f32 1.0, %v1516
    %v1518 = vmul.f32 %v1368, %v1204
    %v1519 = vmul.f32 %v1291, %v1440
    %v1520 = vadd.f32 %v1518, %v1519
    %v1521 = vtanh.pop %v1520
    %v1522 = vmul.f32 %v1517, %v1521
    %s1523 = scalar_lea.vmem [#allocation3], 2
    %1524 = vst.msk [vmem:[%s1523] sm:$0x3] %vm1207, %v1522
    %s1525 = scalar_lea.vmem [#allocation3], 12
    %1526 = vst.msk [vmem:[%s1525] sm:$0x3] %vm1210, %v1522
    %v1527 = vld [vmem:[%s288] sm:$0x3]
    %v1529 = vsel %vm896, %v1522, 0
    %1531 = vmatprep.subr.mxu0 0.0
    %1532 = vmatpush1.msra.mxu0 %v860
    %1533 = vmatprep.subr.mxu0 0.0
    %1534 = vmatpush1.msra.mxu0 %v861
    %1535 = vmatprep.subr.mxu0 0.0
    %1536 = vmatpush1.msra.mxu0 %v862
    %1537 = vmatprep.subr.mxu0 0.0
    %1538 = vmatpush1.msra.mxu0 %v863
    %1539 = vmatprep.subr.mxu0 0.0
    %1540 = vmatpush1.msra.mxu0 %v864
    %1541 = vmatprep.subr.mxu0 0.0
    %1542 = vmatpush1.msra.mxu0 %v865
    %1543 = vmatprep.subr.mxu0 0.0
    %1544 = vmatpush1.msra.mxu0 %v866
    %1545 = vmatprep.subr.mxu0 0.0
    %1546 = vmatpush1.msra.mxu0 %v867
    %1547 = vmatprep.subr.mxu0 0.0
    %1548 = vmatpush1.msra.mxu0 0.0
    %1549 = vmatprep.subr.mxu0 0.0
    %1550 = vmatpush1.msra.mxu0 0.0
    %1551 = vmatprep.subr.mxu0 0.0
    %1552 = vmatpush1.msra.mxu0 0.0
    %1553 = vmatprep.subr.mxu0 0.0
    %1554 = vmatpush1.msra.mxu0 0.0
    %1555 = vmatprep.subr.mxu0 0.0
    %1556 = vmatpush1.msra.mxu0 0.0
    %1557 = vmatprep.subr.mxu0 0.0
    %1558 = vmatpush1.msra.mxu0 0.0
    %1559 = vmatprep.subr.mxu0 0.0
    %1560 = vmatpush1.msra.mxu0 0.0
    %1561 = vmatprep.subr.mxu0 0.0
    %1562 = vmatpush1.msra.mxu0 0.0
    %1563 = vmatprep.subr.mxu0 0.0
    %1564 = vmatpush1.msra.mxu0 0.0
    %1565 = vmatprep.subr.mxu0 0.0
    %1566 = vmatpush1.msra.mxu0 0.0
    %1567 = vmatprep.subr.mxu0 0.0
    %1568 = vmatpush1.msra.mxu0 0.0
    %1569 = vmatprep.subr.mxu0 0.0
    %1570 = vmatpush1.msra.mxu0 0.0
    %1571 = vmatprep.subr.mxu0 0.0
    %1572 = vmatpush1.msra.mxu0 0.0
    %1573 = vmatprep.subr.mxu0 0.0
    %1574 = vmatpush1.msra.mxu0 0.0
    %1575 = vmatprep.subr.mxu0 0.0
    %1576 = vmatpush1.msra.mxu0 0.0
    %1577 = vmatprep.subr.mxu0 0.0
    %1578 = vmatpush1.msra.mxu0 0.0
    %1579 = vmatprep.subr.mxu0 0.0
    %1580 = vmatpush1.msra.mxu0 0.0
    %1581 = vmatprep.subr.mxu0 0.0
    %1582 = vmatpush1.msra.mxu0 0.0
    %1583 = vmatprep.subr.mxu0 0.0
    %1584 = vmatpush1.msra.mxu0 0.0
    %1585 = vmatprep.subr.mxu0 0.0
    %1586 = vmatpush1.msra.mxu0 0.0
    %1587 = vmatprep.subr.mxu0 0.0
    %1588 = vmatpush1.msra.mxu0 0.0
    %1589 = vmatprep.subr.mxu0 0.0
    %1590 = vmatpush1.msra.mxu0 0.0
    %1591 = vmatprep.subr.mxu0 0.0
    %1592 = vmatpush1.msra.mxu0 0.0
    %1593 = vmatprep.subr.mxu0 0.0
    %1594 = vmatpush1.msra.mxu0 0.0
    %1595 = vmatprep.mubr.f32.mxu0 0.0
    %1596 = vmatmul.mubr.f32.gmra.mrb[0].mxu0 %v1529
    %v1597 = vpop.f32.mrb[0].mxu0
    %v1598 = vadd.f32 %v1527, %v1597
    %v1599 = vpop.f32.mrb[0].mxu0
    %1600 = vdwg.mxu0
    %v1601 = vxor.u32 %v1598, 2147483648
    %v1602 = vmul.f32 %v1601, 1.442695
    %v1603 = vpow.pop %v1602
    %v1604 = vadd.f32 %v1603, 1.0
    %v1605 = vrcp.pop %v1604
    %v1606 = vmul.f32 1.0, %v1605
    %v1607 = vld [vmem:[%s476] sm:$0x3]
    %1608 = vmatprep.subr.mxu0 0.0
    %1609 = vmatpush1.msra.mxu0 %v869
    %1610 = vmatprep.subr.mxu0 0.0
    %1611 = vmatpush1.msra.mxu0 %v870
    %1612 = vmatprep.subr.mxu0 0.0
    %1613 = vmatpush1.msra.mxu0 %v871
    %1614 = vmatprep.subr.mxu0 0.0
    %1615 = vmatpush1.msra.mxu0 %v872
    %1616 = vmatprep.subr.mxu0 0.0
    %1617 = vmatpush1.msra.mxu0 %v873
    %1618 = vmatprep.subr.mxu0 0.0
    %1619 = vmatpush1.msra.mxu0 %v874
    %1620 = vmatprep.subr.mxu0 0.0
    %1621 = vmatpush1.msra.mxu0 %v875
    %1622 = vmatprep.subr.mxu0 0.0
    %1623 = vmatpush1.msra.mxu0 %v876
    %1624 = vmatprep.subr.mxu0 0.0
    %1625 = vmatpush1.msra.mxu0 0.0
    %1626 = vmatprep.subr.mxu0 0.0
    %1627 = vmatpush1.msra.mxu0 0.0
    %1628 = vmatprep.subr.mxu0 0.0
    %1629 = vmatpush1.msra.mxu0 0.0
    %1630 = vmatprep.subr.mxu0 0.0
    %1631 = vmatpush1.msra.mxu0 0.0
    %1632 = vmatprep.subr.mxu0 0.0
    %1633 = vmatpush1.msra.mxu0 0.0
    %1634 = vmatprep.subr.mxu0 0.0
    %1635 = vmatpush1.msra.mxu0 0.0
    %1636 = vmatprep.subr.mxu0 0.0
    %1637 = vmatpush1.msra.mxu0 0.0
    %1638 = vmatprep.subr.mxu0 0.0
    %1639 = vmatpush1.msra.mxu0 0.0
    %1640 = vmatprep.subr.mxu0 0.0
    %1641 = vmatpush1.msra.mxu0 0.0
    %1642 = vmatprep.subr.mxu0 0.0
    %1643 = vmatpush1.msra.mxu0 0.0
    %1644 = vmatprep.subr.mxu0 0.0
    %1645 = vmatpush1.msra.mxu0 0.0
    %1646 = vmatprep.subr.mxu0 0.0
    %1647 = vmatpush1.msra.mxu0 0.0
    %1648 = vmatprep.subr.mxu0 0.0
    %1649 = vmatpush1.msra.mxu0 0.0
    %1650 = vmatprep.subr.mxu0 0.0
    %1651 = vmatpush1.msra.mxu0 0.0
    %1652 = vmatprep.subr.mxu0 0.0
    %1653 = vmatpush1.msra.mxu0 0.0
    %1654 = vmatprep.subr.mxu0 0.0
    %1655 = vmatpush1.msra.mxu0 0.0
    %1656 = vmatprep.subr.mxu0 0.0
    %1657 = vmatpush1.msra.mxu0 0.0
    %1658 = vmatprep.subr.mxu0 0.0
    %1659 = vmatpush1.msra.mxu0 0.0
    %1660 = vmatprep.subr.mxu0 0.0
    %1661 = vmatpush1.msra.mxu0 0.0
    %1662 = vmatprep.subr.mxu0 0.0
    %1663 = vmatpush1.msra.mxu0 0.0
    %1664 = vmatprep.subr.mxu0 0.0
    %1665 = vmatpush1.msra.mxu0 0.0
    %1666 = vmatprep.subr.mxu0 0.0
    %1667 = vmatpush1.msra.mxu0 0.0
    %1668 = vmatprep.subr.mxu0 0.0
    %1669 = vmatpush1.msra.mxu0 0.0
    %1670 = vmatprep.subr.mxu0 0.0
    %1671 = vmatpush1.msra.mxu0 0.0
    %1672 = vmatprep.mubr.f32.mxu0 0.0
    %1673 = vmatmul.mubr.f32.gmra.mrb[0].mxu0 %v1529
    %v1674 = vpop.f32.mrb[0].mxu0
    %v1675 = vadd.f32 %v1607, %v1674
    %v1676 = vpop.f32.mrb[0].mxu0
    %1677 = vdwg.mxu0
    %v1678 = vxor.u32 %v1675, 2147483648
    %v1679 = vmul.f32 %v1678, 1.442695
    %v1680 = vpow.pop %v1679
    %v1681 = vadd.f32 %v1680, 1.0
    %v1682 = vrcp.pop %v1681
    %v1683 = vmul.f32 1.0, %v1682
    %v1684 = vld [vmem:[%s662] sm:$0x3]
    %1685 = vmatprep.subr.mxu0 0.0
    %1686 = vmatpush1.msra.mxu0 %v878
    %1687 = vmatprep.subr.mxu0 0.0
    %1688 = vmatpush1.msra.mxu0 %v879
    %1689 = vmatprep.subr.mxu0 0.0
    %1690 = vmatpush1.msra.mxu0 %v880
    %1691 = vmatprep.subr.mxu0 0.0
    %1692 = vmatpush1.msra.mxu0 %v881
    %1693 = vmatprep.subr.mxu0 0.0
    %1694 = vmatpush1.msra.mxu0 %v882
    %1695 = vmatprep.subr.mxu0 0.0
    %1696 = vmatpush1.msra.mxu0 %v883
    %1697 = vmatprep.subr.mxu0 0.0
    %1698 = vmatpush1.msra.mxu0 %v884
    %1699 = vmatprep.subr.mxu0 0.0
    %1700 = vmatpush1.msra.mxu0 %v885
    %1701 = vmatprep.subr.mxu0 0.0
    %1702 = vmatpush1.msra.mxu0 0.0
    %1703 = vmatprep.subr.mxu0 0.0
    %1704 = vmatpush1.msra.mxu0 0.0
    %1705 = vmatprep.subr.mxu0 0.0
    %1706 = vmatpush1.msra.mxu0 0.0
    %1707 = vmatprep.subr.mxu0 0.0
    %1708 = vmatpush1.msra.mxu0 0.0
    %1709 = vmatprep.subr.mxu0 0.0
    %1710 = vmatpush1.msra.mxu0 0.0
    %1711 = vmatprep.subr.mxu0 0.0
    %1712 = vmatpush1.msra.mxu0 0.0
    %1713 = vmatprep.subr.mxu0 0.0
    %1714 = vmatpush1.msra.mxu0 0.0
    %1715 = vmatprep.subr.mxu0 0.0
    %1716 = vmatpush1.msra.mxu0 0.0
    %1717 = vmatprep.subr.mxu0 0.0
    %1718 = vmatpush1.msra.mxu0 0.0
    %1719 = vmatprep.subr.mxu0 0.0
    %1720 = vmatpush1.msra.mxu0 0.0
    %1721 = vmatprep.subr.mxu0 0.0
    %1722 = vmatpush1.msra.mxu0 0.0
    %1723 = vmatprep.subr.mxu0 0.0
    %1724 = vmatpush1.msra.mxu0 0.0
    %1725 = vmatprep.subr.mxu0 0.0
    %1726 = vmatpush1.msra.mxu0 0.0
    %1727 = vmatprep.subr.mxu0 0.0
    %1728 = vmatpush1.msra.mxu0 0.0
    %1729 = vmatprep.subr.mxu0 0.0
    %1730 = vmatpush1.msra.mxu0 0.0
    %1731 = vmatprep.subr.mxu0 0.0
    %1732 = vmatpush1.msra.mxu0 0.0
    %1733 = vmatprep.subr.mxu0 0.0
    %1734 = vmatpush1.msra.mxu0 0.0
    %1735 = vmatprep.subr.mxu0 0.0
    %1736 = vmatpush1.msra.mxu0 0.0
    %1737 = vmatprep.subr.mxu0 0.0
    %1738 = vmatpush1.msra.mxu0 0.0
    %1739 = vmatprep.subr.mxu0 0.0
    %1740 = vmatpush1.msra.mxu0 0.0
    %1741 = vmatprep.subr.mxu0 0.0
    %1742 = vmatpush1.msra.mxu0 0.0
    %1743 = vmatprep.subr.mxu0 0.0
    %1744 = vmatpush1.msra.mxu0 0.0
    %1745 = vmatprep.subr.mxu0 0.0
    %1746 = vmatpush1.msra.mxu0 0.0
    %1747 = vmatprep.subr.mxu0 0.0
    %1748 = vmatpush1.msra.mxu0 0.0
    %1749 = vmatprep.mubr.f32.mxu0 0.0
    %1750 = vmatmul.mubr.f32.gmra.mrb[0].mxu0 %v1529
    %v1751 = vpop.f32.mrb[0].mxu0
    %v1752 = vadd.f32 %v1684, %v1751
    %v1753 = vpop.f32.mrb[0].mxu0
    %1754 = vdwg.mxu0
    %v1755 = vtanh.pop %v1752
    %v1756 = vld [vmem:[%s848] sm:$0x3]
    %1757 = vmatprep.subr.mxu0 0.0
    %1758 = vmatpush1.msra.mxu0 %v887
    %1759 = vmatprep.subr.mxu0 0.0
    %1760 = vmatpush1.msra.mxu0 %v888
    %1761 = vmatprep.subr.mxu0 0.0
    %1762 = vmatpush1.msra.mxu0 %v889
    %1763 = vmatprep.subr.mxu0 0.0
    %1764 = vmatpush1.msra.mxu0 %v890
    %1765 = vmatprep.subr.mxu0 0.0
    %1766 = vmatpush1.msra.mxu0 %v891
    %1767 = vmatprep.subr.mxu0 0.0
    %1768 = vmatpush1.msra.mxu0 %v892
    %1769 = vmatprep.subr.mxu0 0.0
    %1770 = vmatpush1.msra.mxu0 %v893
    %1771 = vmatprep.subr.mxu0 0.0
    %1772 = vmatpush1.msra.mxu0 %v894
    %1773 = vmatprep.subr.mxu0 0.0
    %1774 = vmatpush1.msra.mxu0 0.0
    %1775 = vmatprep.subr.mxu0 0.0
    %1776 = vmatpush1.msra.mxu0 0.0
    %1777 = vmatprep.subr.mxu0 0.0
    %1778 = vmatpush1.msra.mxu0 0.0
    %1779 = vmatprep.subr.mxu0 0.0
    %1780 = vmatpush1.msra.mxu0 0.0
    %1781 = vmatprep.subr.mxu0 0.0
    %1782 = vmatpush1.msra.mxu0 0.0
    %1783 = vmatprep.subr.mxu0 0.0
    %1784 = vmatpush1.msra.mxu0 0.0
    %1785 = vmatprep.subr.mxu0 0.0
    %1786 = vmatpush1.msra.mxu0 0.0
    %1787 = vmatprep.subr.mxu0 0.0
    %1788 = vmatpush1.msra.mxu0 0.0
    %1789 = vmatprep.subr.mxu0 0.0
    %1790 = vmatpush1.msra.mxu0 0.0
    %1791 = vmatprep.subr.mxu0 0.0
    %1792 = vmatpush1.msra.mxu0 0.0
    %1793 = vmatprep.subr.mxu0 0.0
    %1794 = vmatpush1.msra.mxu0 0.0
    %1795 = vmatprep.subr.mxu0 0.0
    %1796 = vmatpush1.msra.mxu0 0.0
    %1797 = vmatprep.subr.mxu0 0.0
    %1798 = vmatpush1.msra.mxu0 0.0
    %1799 = vmatprep.subr.mxu0 0.0
    %1800 = vmatpush1.msra.mxu0 0.0
    %1801 = vmatprep.subr.mxu0 0.0
    %1802 = vmatpush1.msra.mxu0 0.0
    %1803 = vmatprep.subr.mxu0 0.0
    %1804 = vmatpush1.msra.mxu0 0.0
    %1805 = vmatprep.subr.mxu0 0.0
    %1806 = vmatpush1.msra.mxu0 0.0
    %1807 = vmatprep.subr.mxu0 0.0
    %1808 = vmatpush1.msra.mxu0 0.0
    %1809 = vmatprep.subr.mxu0 0.0
    %1810 = vmatpush1.msra.mxu0 0.0
    %1811 = vmatprep.subr.mxu0 0.0
    %1812 = vmatpush1.msra.mxu0 0.0
    %1813 = vmatprep.subr.mxu0 0.0
    %1814 = vmatpush1.msra.mxu0 0.0
    %1815 = vmatprep.subr.mxu0 0.0
    %1816 = vmatpush1.msra.mxu0 0.0
    %1817 = vmatprep.subr.mxu0 0.0
    %1818 = vmatpush1.msra.mxu0 0.0
    %1819 = vmatprep.subr.mxu0 0.0
    %1820 = vmatpush1.msra.mxu0 0.0
    %1821 = vmatprep.mubr.f32.mxu0 0.0
    %1822 = vmatmul.mubr.f32.gmra.mrb[0].mxu0 %v1529
    %v1823 = vpop.f32.mrb[0].mxu0
    %v1824 = vadd.f32 %v1756, %v1823
    %v1825 = vpop.f32.mrb[0].mxu0
    %1826 = vdwg.mxu0
    %v1827 = vxor.u32 %v1824, 2147483648
    %v1828 = vmul.f32 %v1827, 1.442695
    %v1829 = vpow.pop %v1828
    %v1830 = vadd.f32 %v1829, 1.0
    %v1831 = vrcp.pop %v1830
    %v1832 = vmul.f32 1.0, %v1831
    %v1833 = vmul.f32 %v1683, %v1520
    %v1834 = vmul.f32 %v1606, %v1755
    %v1835 = vadd.f32 %v1833, %v1834
    %v1836 = vtanh.pop %v1835
    %v1837 = vmul.f32 %v1832, %v1836
    %s1838 = scalar_lea.vmem [#allocation3], 4
    %1839 = vst.msk [vmem:[%s1838] sm:$0x3] %vm1207, %v1837
    %s1840 = scalar_lea.vmem [#allocation3], 10
    %1841 = vst.msk [vmem:[%s1840] sm:$0x3] %vm1210, %v1837
    %v1842 = vld [vmem:[%s291] sm:$0x3]
    %v1844 = vsel %vm896, %v1837, 0
    %1846 = vmatprep.subr.mxu0 0.0
    %1847 = vmatpush1.msra.mxu0 %v860
    %1848 = vmatprep.subr.mxu0 0.0
    %1849 = vmatpush1.msra.mxu0 %v861
    %1850 = vmatprep.subr.mxu0 0.0
    %1851 = vmatpush1.msra.mxu0 %v862
    %1852 = vmatprep.subr.mxu0 0.0
    %1853 = vmatpush1.msra.mxu0 %v863
    %1854 = vmatprep.subr.mxu0 0.0
    %1855 = vmatpush1.msra.mxu0 %v864
    %1856 = vmatprep.subr.mxu0 0.0
    %1857 = vmatpush1.msra.mxu0 %v865
    %1858 = vmatprep.subr.mxu0 0.0
    %1859 = vmatpush1.msra.mxu0 %v866
    %1860 = vmatprep.subr.mxu0 0.0
    %1861 = vmatpush1.msra.mxu0 %v867
    %1862 = vmatprep.subr.mxu0 0.0
    %1863 = vmatpush1.msra.mxu0 0.0
    %1864 = vmatprep.subr.mxu0 0.0
    %1865 = vmatpush1.msra.mxu0 0.0
    %1866 = vmatprep.subr.mxu0 0.0
    %1867 = vmatpush1.msra.mxu0 0.0
    %1868 = vmatprep.subr.mxu0 0.0
    %1869 = vmatpush1.msra.mxu0 0.0
    %1870 = vmatprep.subr.mxu0 0.0
    %1871 = vmatpush1.msra.mxu0 0.0
    %1872 = vmatprep.subr.mxu0 0.0
    %1873 = vmatpush1.msra.mxu0 0.0
    %1874 = vmatprep.subr.mxu0 0.0
    %1875 = vmatpush1.msra.mxu0 0.0
    %1876 = vmatprep.subr.mxu0 0.0
    %1877 = vmatpush1.msra.mxu0 0.0
    %1878 = vmatprep.subr.mxu0 0.0
    %1879 = vmatpush1.msra.mxu0 0.0
    %1880 = vmatprep.subr.mxu0 0.0
    %1881 = vmatpush1.msra.mxu0 0.0
    %1882 = vmatprep.subr.mxu0 0.0
    %1883 = vmatpush1.msra.mxu0 0.0
    %1884 = vmatprep.subr.mxu0 0.0
    %1885 = vmatpush1.msra.mxu0 0.0
    %1886 = vmatprep.subr.mxu0 0.0
    %1887 = vmatpush1.msra.mxu0 0.0
    %1888 = vmatprep.subr.mxu0 0.0
    %1889 = vmatpush1.msra.mxu0 0.0
    %1890 = vmatprep.subr.mxu0 0.0
    %1891 = vmatpush1.msra.mxu0 0.0
    %1892 = vmatprep.subr.mxu0 0.0
    %1893 = vmatpush1.msra.mxu0 0.0
    %1894 = vmatprep.subr.mxu0 0.0
    %1895 = vmatpush1.msra.mxu0 0.0
    %1896 = vmatprep.subr.mxu0 0.0
    %1897 = vmatpush1.msra.mxu0 0.0
    %1898 = vmatprep.subr.mxu0 0.0
    %1899 = vmatpush1.msra.mxu0 0.0
    %1900 = vmatprep.subr.mxu0 0.0
    %1901 = vmatpush1.msra.mxu0 0.0
    %1902 = vmatprep.subr.mxu0 0.0
    %1903 = vmatpush1.msra.mxu0 0.0
    %1904 = vmatprep.subr.mxu0 0.0
    %1905 = vmatpush1.msra.mxu0 0.0
    %1906 = vmatprep.subr.mxu0 0.0
    %1907 = vmatpush1.msra.mxu0 0.0
    %1908 = vmatprep.subr.mxu0 0.0
    %1909 = vmatpush1.msra.mxu0 0.0
    %1910 = vmatprep.mubr.f32.mxu0 0.0
    %1911 = vmatmul.mubr.f32.gmra.mrb[0].mxu0 %v1844
    %v1912 = vpop.f32.mrb[0].mxu0
    %v1913 = vadd.f32 %v1842, %v1912
    %v1914 = vpop.f32.mrb[0].mxu0
    %1915 = vdwg.mxu0
    %v1916 = vxor.u32 %v1913, 2147483648
    %v1917 = vmul.f32 %v1916, 1.442695
    %v1918 = vpow.pop %v1917
    %v1919 = vadd.f32 %v1918, 1.0
    %v1920 = vrcp.pop %v1919
    %v1921 = vmul.f32 1.0, %v1920
    %v1922 = vld [vmem:[%s478] sm:$0x3]
    %1923 = vmatprep.subr.mxu0 0.0
    %1924 = vmatpush1.msra.mxu0 %v869
    %1925 = vmatprep.subr.mxu0 0.0
    %1926 = vmatpush1.msra.mxu0 %v870
    %1927 = vmatprep.subr.mxu0 0.0
    %1928 = vmatpush1.msra.mxu0 %v871
    %1929 = vmatprep.subr.mxu0 0.0
    %1930 = vmatpush1.msra.mxu0 %v872
    %1931 = vmatprep.subr.mxu0 0.0
    %1932 = vmatpush1.msra.mxu0 %v873
    %1933 = vmatprep.subr.mxu0 0.0
    %1934 = vmatpush1.msra.mxu0 %v874
    %1935 = vmatprep.subr.mxu0 0.0
    %1936 = vmatpush1.msra.mxu0 %v875
    %1937 = vmatprep.subr.mxu0 0.0
    %1938 = vmatpush1.msra.mxu0 %v876
    %1939 = vmatprep.subr.mxu0 0.0
    %1940 = vmatpush1.msra.mxu0 0.0
    %1941 = vmatprep.subr.mxu0 0.0
    %1942 = vmatpush1.msra.mxu0 0.0
    %1943 = vmatprep.subr.mxu0 0.0
    %1944 = vmatpush1.msra.mxu0 0.0
    %1945 = vmatprep.subr.mxu0 0.0
    %1946 = vmatpush1.msra.mxu0 0.0
    %1947 = vmatprep.subr.mxu0 0.0
    %1948 = vmatpush1.msra.mxu0 0.0
    %1949 = vmatprep.subr.mxu0 0.0
    %1950 = vmatpush1.msra.mxu0 0.0
    %1951 = vmatprep.subr.mxu0 0.0
    %1952 = vmatpush1.msra.mxu0 0.0
    %1953 = vmatprep.subr.mxu0 0.0
    %1954 = vmatpush1.msra.mxu0 0.0
    %1955 = vmatprep.subr.mxu0 0.0
    %1956 = vmatpush1.msra.mxu0 0.0
    %1957 = vmatprep.subr.mxu0 0.0
    %1958 = vmatpush1.msra.mxu0 0.0
    %1959 = vmatprep.subr.mxu0 0.0
    %1960 = vmatpush1.msra.mxu0 0.0
    %1961 = vmatprep.subr.mxu0 0.0
    %1962 = vmatpush1.msra.mxu0 0.0
    %1963 = vmatprep.subr.mxu0 0.0
    %1964 = vmatpush1.msra.mxu0 0.0
    %1965 = vmatprep.subr.mxu0 0.0
    %1966 = vmatpush1.msra.mxu0 0.0
    %1967 = vmatprep.subr.mxu0 0.0
    %1968 = vmatpush1.msra.mxu0 0.0
    %1969 = vmatprep.subr.mxu0 0.0
    %1970 = vmatpush1.msra.mxu0 0.0
    %1971 = vmatprep.subr.mxu0 0.0
    %1972 = vmatpush1.msra.mxu0 0.0
    %1973 = vmatprep.subr.mxu0 0.0
    %1974 = vmatpush1.msra.mxu0 0.0
    %1975 = vmatprep.subr.mxu0 0.0
    %1976 = vmatpush1.msra.mxu0 0.0
    %1977 = vmatprep.subr.mxu0 0.0
    %1978 = vmatpush1.msra.mxu0 0.0
    %1979 = vmatprep.subr.mxu0 0.0
    %1980 = vmatpush1.msra.mxu0 0.0
    %1981 = vmatprep.subr.mxu0 0.0
    %1982 = vmatpush1.msra.mxu0 0.0
    %1983 = vmatprep.subr.mxu0 0.0
    %1984 = vmatpush1.msra.mxu0 0.0
    %1985 = vmatprep.subr.mxu0 0.0
    %1986 = vmatpush1.msra.mxu0 0.0
    %1987 = vmatprep.mubr.f32.mxu0 0.0
    %1988 = vmatmul.mubr.f32.gmra.mrb[0].mxu0 %v1844
    %v1989 = vpop.f32.mrb[0].mxu0
    %v1990 = vadd.f32 %v1922, %v1989
    %v1991 = vpop.f32.mrb[0].mxu0
    %1992 = vdwg.mxu0
    %v1993 = vxor.u32 %v1990, 2147483648
    %v1994 = vmul.f32 %v1993, 1.442695
    %v1995 = vpow.pop %v1994
    %v1996 = vadd.f32 %v1995, 1.0
    %v1997 = vrcp.pop %v1996
    %v1998 = vmul.f32 1.0, %v1997
    %v1999 = vld [vmem:[%s664] sm:$0x3]
    %2000 = vmatprep.subr.mxu0 0.0
    %2001 = vmatpush1.msra.mxu0 %v878
    %2002 = vmatprep.subr.mxu0 0.0
    %2003 = vmatpush1.msra.mxu0 %v879
    %2004 = vmatprep.subr.mxu0 0.0
    %2005 = vmatpush1.msra.mxu0 %v880
    %2006 = vmatprep.subr.mxu0 0.0
    %2007 = vmatpush1.msra.mxu0 %v881
    %2008 = vmatprep.subr.mxu0 0.0
    %2009 = vmatpush1.msra.mxu0 %v882
    %2010 = vmatprep.subr.mxu0 0.0
    %2011 = vmatpush1.msra.mxu0 %v883
    %2012 = vmatprep.subr.mxu0 0.0
    %2013 = vmatpush1.msra.mxu0 %v884
    %2014 = vmatprep.subr.mxu0 0.0
    %2015 = vmatpush1.msra.mxu0 %v885
    %2016 = vmatprep.subr.mxu0 0.0
    %2017 = vmatpush1.msra.mxu0 0.0
    %2018 = vmatprep.subr.mxu0 0.0
    %2019 = vmatpush1.msra.mxu0 0.0
    %2020 = vmatprep.subr.mxu0 0.0
    %2021 = vmatpush1.msra.mxu0 0.0
    %2022 = vmatprep.subr.mxu0 0.0
    %2023 = vmatpush1.msra.mxu0 0.0
    %2024 = vmatprep.subr.mxu0 0.0
    %2025 = vmatpush1.msra.mxu0 0.0
    %2026 = vmatprep.subr.mxu0 0.0
    %2027 = vmatpush1.msra.mxu0 0.0
    %2028 = vmatprep.subr.mxu0 0.0
    %2029 = vmatpush1.msra.mxu0 0.0
    %2030 = vmatprep.subr.mxu0 0.0
    %2031 = vmatpush1.msra.mxu0 0.0
    %2032 = vmatprep.subr.mxu0 0.0
    %2033 = vmatpush1.msra.mxu0 0.0
    %2034 = vmatprep.subr.mxu0 0.0
    %2035 = vmatpush1.msra.mxu0 0.0
    %2036 = vmatprep.subr.mxu0 0.0
    %2037 = vmatpush1.msra.mxu0 0.0
    %2038 = vmatprep.subr.mxu0 0.0
    %2039 = vmatpush1.msra.mxu0 0.0
    %2040 = vmatprep.subr.mxu0 0.0
    %2041 = vmatpush1.msra.mxu0 0.0
    %2042 = vmatprep.subr.mxu0 0.0
    %2043 = vmatpush1.msra.mxu0 0.0
    %2044 = vmatprep.subr.mxu0 0.0
    %2045 = vmatpush1.msra.mxu0 0.0
    %2046 = vmatprep.subr.mxu0 0.0
    %2047 = vmatpush1.msra.mxu0 0.0
    %2048 = vmatprep.subr.mxu0 0.0
    %2049 = vmatpush1.msra.mxu0 0.0
    %2050 = vmatprep.subr.mxu0 0.0
    %2051 = vmatpush1.msra.mxu0 0.0
    %2052 = vmatprep.subr.mxu0 0.0
    %2053 = vmatpush1.msra.mxu0 0.0
    %2054 = vmatprep.subr.mxu0 0.0
    %2055 = vmatpush1.msra.mxu0 0.0
    %2056 = vmatprep.subr.mxu0 0.0
    %2057 = vmatpush1.msra.mxu0 0.0
    %2058 = vmatprep.subr.mxu0 0.0
    %2059 = vmatpush1.msra.mxu0 0.0
    %2060 = vmatprep.subr.mxu0 0.0
    %2061 = vmatpush1.msra.mxu0 0.0
    %2062 = vmatprep.subr.mxu0 0.0
    %2063 = vmatpush1.msra.mxu0 0.0
    %2064 = vmatprep.mubr.f32.mxu0 0.0
    %2065 = vmatmul.mubr.f32.gmra.mrb[0].mxu0 %v1844
    %v2066 = vpop.f32.mrb[0].mxu0
    %v2067 = vadd.f32 %v1999, %v2066
    %v2068 = vpop.f32.mrb[0].mxu0
    %2069 = vdwg.mxu0
    %v2070 = vtanh.pop %v2067
    %v2071 = vld [vmem:[%s850] sm:$0x3]
    %2072 = vmatprep.subr.mxu0 0.0
    %2073 = vmatpush1.msra.mxu0 %v887
    %2074 = vmatprep.subr.mxu0 0.0
    %2075 = vmatpush1.msra.mxu0 %v888
    %2076 = vmatprep.subr.mxu0 0.0
    %2077 = vmatpush1.msra.mxu0 %v889
    %2078 = vmatprep.subr.mxu0 0.0
    %2079 = vmatpush1.msra.mxu0 %v890
    %2080 = vmatprep.subr.mxu0 0.0
    %2081 = vmatpush1.msra.mxu0 %v891
    %2082 = vmatprep.subr.mxu0 0.0
    %2083 = vmatpush1.msra.mxu0 %v892
    %2084 = vmatprep.subr.mxu0 0.0
    %2085 = vmatpush1.msra.mxu0 %v893
    %2086 = vmatprep.subr.mxu0 0.0
    %2087 = vmatpush1.msra.mxu0 %v894
    %2088 = vmatprep.subr.mxu0 0.0
    %2089 = vmatpush1.msra.mxu0 0.0
    %2090 = vmatprep.subr.mxu0 0.0
    %2091 = vmatpush1.msra.mxu0 0.0
    %2092 = vmatprep.subr.mxu0 0.0
    %2093 = vmatpush1.msra.mxu0 0.0
    %2094 = vmatprep.subr.mxu0 0.0
    %2095 = vmatpush1.msra.mxu0 0.0
    %2096 = vmatprep.subr.mxu0 0.0
    %2097 = vmatpush1.msra.mxu0 0.0
    %2098 = vmatprep.subr.mxu0 0.0
    %2099 = vmatpush1.msra.mxu0 0.0
    %2100 = vmatprep.subr.mxu0 0.0
    %2101 = vmatpush1.msra.mxu0 0.0
    %2102 = vmatprep.subr.mxu0 0.0
    %2103 = vmatpush1.msra.mxu0 0.0
    %2104 = vmatprep.subr.mxu0 0.0
    %2105 = vmatpush1.msra.mxu0 0.0
    %2106 = vmatprep.subr.mxu0 0.0
    %2107 = vmatpush1.msra.mxu0 0.0
    %2108 = vmatprep.subr.mxu0 0.0
    %2109 = vmatpush1.msra.mxu0 0.0
    %2110 = vmatprep.subr.mxu0 0.0
    %2111 = vmatpush1.msra.mxu0 0.0
    %2112 = vmatprep.subr.mxu0 0.0
    %2113 = vmatpush1.msra.mxu0 0.0
    %2114 = vmatprep.subr.mxu0 0.0
    %2115 = vmatpush1.msra.mxu0 0.0
    %2116 = vmatprep.subr.mxu0 0.0
    %2117 = vmatpush1.msra.mxu0 0.0
    %2118 = vmatprep.subr.mxu0 0.0
    %2119 = vmatpush1.msra.mxu0 0.0
    %2120 = vmatprep.subr.mxu0 0.0
    %2121 = vmatpush1.msra.mxu0 0.0
    %2122 = vmatprep.subr.mxu0 0.0
    %2123 = vmatpush1.msra.mxu0 0.0
    %2124 = vmatprep.subr.mxu0 0.0
    %2125 = vmatpush1.msra.mxu0 0.0
    %2126 = vmatprep.subr.mxu0 0.0
    %2127 = vmatpush1.msra.mxu0 0.0
    %2128 = vmatprep.subr.mxu0 0.0
    %2129 = vmatpush1.msra.mxu0 0.0
    %2130 = vmatprep.subr.mxu0 0.0
    %2131 = vmatpush1.msra.mxu0 0.0
    %2132 = vmatprep.subr.mxu0 0.0
    %2133 = vmatpush1.msra.mxu0 0.0
    %2134 = vmatprep.subr.mxu0 0.0
    %2135 = vmatpush1.msra.mxu0 0.0
    %2136 = vmatprep.mubr.f32.mxu0 0.0
    %2137 = vmatmul.mubr.f32.gmra.mrb[0].mxu0 %v1844
    %v2138 = vpop.f32.mrb[0].mxu0
    %v2139 = vadd.f32 %v2071, %v2138
    %v2140 = vpop.f32.mrb[0].mxu0
    %2141 = vdwg.mxu0
    %v2142 = vxor.u32 %v2139, 2147483648
    %v2143 = vmul.f32 %v2142, 1.442695
    %v2144 = vpow.pop %v2143
    %v2145 = vadd.f32 %v2144, 1.0
    %v2146 = vrcp.pop %v2145
    %v2147 = vmul.f32 1.0, %v2146
    %v2148 = vmul.f32 %v1998, %v1835
    %v2149 = vmul.f32 %v1921, %v2070
    %v2150 = vadd.f32 %v2148, %v2149
    %v2151 = vtanh.pop %v2150
    %v2152 = vmul.f32 %v2147, %v2151
    %s2153 = scalar_lea.vmem [#allocation3], 6
    %2154 = vst.msk [vmem:[%s2153] sm:$0x3] %vm1207, %v2152
    %s2155 = scalar_lea.vmem [#allocation3], 8
    %2156 = vst.msk [vmem:[%s2155] sm:$0x3] %vm1210, %v2152
    %v2157 = vld [vmem:[%s294] sm:$0x3]
    %v2159 = vsel %vm896, %v2152, 0
    %2161 = vmatprep.subr.mxu0 0.0
    %2162 = vmatpush1.msra.mxu0 %v860
    %2163 = vmatprep.subr.mxu0 0.0
    %2164 = vmatpush1.msra.mxu0 %v861
    %2165 = vmatprep.subr.mxu0 0.0
    %2166 = vmatpush1.msra.mxu0 %v862
    %2167 = vmatprep.subr.mxu0 0.0
    %2168 = vmatpush1.msra.mxu0 %v863
    %2169 = vmatprep.subr.mxu0 0.0
    %2170 = vmatpush1.msra.mxu0 %v864
    %2171 = vmatprep.subr.mxu0 0.0
    %2172 = vmatpush1.msra.mxu0 %v865
    %2173 = vmatprep.subr.mxu0 0.0
    %2174 = vmatpush1.msra.mxu0 %v866
    %2175 = vmatprep.subr.mxu0 0.0
    %2176 = vmatpush1.msra.mxu0 %v867
    %2177 = vmatprep.subr.mxu0 0.0
    %2178 = vmatpush1.msra.mxu0 0.0
    %2179 = vmatprep.subr.mxu0 0.0
    %2180 = vmatpush1.msra.mxu0 0.0
    %2181 = vmatprep.subr.mxu0 0.0
    %2182 = vmatpush1.msra.mxu0 0.0
    %2183 = vmatprep.subr.mxu0 0.0
    %2184 = vmatpush1.msra.mxu0 0.0
    %2185 = vmatprep.subr.mxu0 0.0
    %2186 = vmatpush1.msra.mxu0 0.0
    %2187 = vmatprep.subr.mxu0 0.0
    %2188 = vmatpush1.msra.mxu0 0.0
    %2189 = vmatprep.subr.mxu0 0.0
    %2190 = vmatpush1.msra.mxu0 0.0
    %2191 = vmatprep.subr.mxu0 0.0
    %2192 = vmatpush1.msra.mxu0 0.0
    %2193 = vmatprep.subr.mxu0 0.0
    %2194 = vmatpush1.msra.mxu0 0.0
    %2195 = vmatprep.subr.mxu0 0.0
    %2196 = vmatpush1.msra.mxu0 0.0
    %2197 = vmatprep.subr.mxu0 0.0
    %2198 = vmatpush1.msra.mxu0 0.0
    %2199 = vmatprep.subr.mxu0 0.0
    %2200 = vmatpush1.msra.mxu0 0.0
    %2201 = vmatprep.subr.mxu0 0.0
    %2202 = vmatpush1.msra.mxu0 0.0
    %2203 = vmatprep.subr.mxu0 0.0
    %2204 = vmatpush1.msra.mxu0 0.0
    %2205 = vmatprep.subr.mxu0 0.0
    %2206 = vmatpush1.msra.mxu0 0.0
    %2207 = vmatprep.subr.mxu0 0.0
    %2208 = vmatpush1.msra.mxu0 0.0
    %2209 = vmatprep.subr.mxu0 0.0
    %2210 = vmatpush1.msra.mxu0 0.0
    %2211 = vmatprep.subr.mxu0 0.0
    %2212 = vmatpush1.msra.mxu0 0.0
    %2213 = vmatprep.subr.mxu0 0.0
    %2214 = vmatpush1.msra.mxu0 0.0
    %2215 = vmatprep.subr.mxu0 0.0
    %2216 = vmatpush1.msra.mxu0 0.0
    %2217 = vmatprep.subr.mxu0 0.0
    %2218 = vmatpush1.msra.mxu0 0.0
    %2219 = vmatprep.subr.mxu0 0.0
    %2220 = vmatpush1.msra.mxu0 0.0
    %2221 = vmatprep.subr.mxu0 0.0
    %2222 = vmatpush1.msra.mxu0 0.0
    %2223 = vmatprep.subr.mxu0 0.0
    %2224 = vmatpush1.msra.mxu0 0.0
    %2225 = vmatprep.mubr.f32.mxu0 0.0
    %2226 = vmatmul.mubr.f32.gmra.mrb[0].mxu0 %v2159
    %v2227 = vpop.f32.mrb[0].mxu0
    %v2228 = vadd.f32 %v2157, %v2227
    %v2229 = vpop.f32.mrb[0].mxu0
    %2230 = vdwg.mxu0
    %v2231 = vxor.u32 %v2228, 2147483648
    %v2232 = vmul.f32 %v2231, 1.442695
    %v2233 = vpow.pop %v2232
    %v2234 = vadd.f32 %v2233, 1.0
    %v2235 = vrcp.pop %v2234
    %v2236 = vmul.f32 1.0, %v2235
    %v2237 = vld [vmem:[%s480] sm:$0x3]
    %2238 = vmatprep.subr.mxu0 0.0
    %2239 = vmatpush1.msra.mxu0 %v869
    %2240 = vmatprep.subr.mxu0 0.0
    %2241 = vmatpush1.msra.mxu0 %v870
    %2242 = vmatprep.subr.mxu0 0.0
    %2243 = vmatpush1.msra.mxu0 %v871
    %2244 = vmatprep.subr.mxu0 0.0
    %2245 = vmatpush1.msra.mxu0 %v872
    %2246 = vmatprep.subr.mxu0 0.0
    %2247 = vmatpush1.msra.mxu0 %v873
    %2248 = vmatprep.subr.mxu0 0.0
    %2249 = vmatpush1.msra.mxu0 %v874
    %2250 = vmatprep.subr.mxu0 0.0
    %2251 = vmatpush1.msra.mxu0 %v875
    %2252 = vmatprep.subr.mxu0 0.0
    %2253 = vmatpush1.msra.mxu0 %v876
    %2254 = vmatprep.subr.mxu0 0.0
    %2255 = vmatpush1.msra.mxu0 0.0
    %2256 = vmatprep.subr.mxu0 0.0
    %2257 = vmatpush1.msra.mxu0 0.0
    %2258 = vmatprep.subr.mxu0 0.0
    %2259 = vmatpush1.msra.mxu0 0.0
    %2260 = vmatprep.subr.mxu0 0.0
    %2261 = vmatpush1.msra.mxu0 0.0
    %2262 = vmatprep.subr.mxu0 0.0
    %2263 = vmatpush1.msra.mxu0 0.0
    %2264 = vmatprep.subr.mxu0 0.0
    %2265 = vmatpush1.msra.mxu0 0.0
    %2266 = vmatprep.subr.mxu0 0.0
    %2267 = vmatpush1.msra.mxu0 0.0
    %2268 = vmatprep.subr.mxu0 0.0
    %2269 = vmatpush1.msra.mxu0 0.0
    %2270 = vmatprep.subr.mxu0 0.0
    %2271 = vmatpush1.msra.mxu0 0.0
    %2272 = vmatprep.subr.mxu0 0.0
    %2273 = vmatpush1.msra.mxu0 0.0
    %2274 = vmatprep.subr.mxu0 0.0
    %2275 = vmatpush1.msra.mxu0 0.0
    %2276 = vmatprep.subr.mxu0 0.0
    %2277 = vmatpush1.msra.mxu0 0.0
    %2278 = vmatprep.subr.mxu0 0.0
    %2279 = vmatpush1.msra.mxu0 0.0
    %2280 = vmatprep.subr.mxu0 0.0
    %2281 = vmatpush1.msra.mxu0 0.0
    %2282 = vmatprep.subr.mxu0 0.0
    %2283 = vmatpush1.msra.mxu0 0.0
    %2284 = vmatprep.subr.mxu0 0.0
    %2285 = vmatpush1.msra.mxu0 0.0
    %2286 = vmatprep.subr.mxu0 0.0
    %2287 = vmatpush1.msra.mxu0 0.0
    %2288 = vmatprep.subr.mxu0 0.0
    %2289 = vmatpush1.msra.mxu0 0.0
    %2290 = vmatprep.subr.mxu0 0.0
    %2291 = vmatpush1.msra.mxu0 0.0
    %2292 = vmatprep.subr.mxu0 0.0
    %2293 = vmatpush1.msra.mxu0 0.0
    %2294 = vmatprep.subr.mxu0 0.0
    %2295 = vmatpush1.msra.mxu0 0.0
    %2296 = vmatprep.subr.mxu0 0.0
    %2297 = vmatpush1.msra.mxu0 0.0
    %2298 = vmatprep.subr.mxu0 0.0
    %2299 = vmatpush1.msra.mxu0 0.0
    %2300 = vmatprep.subr.mxu0 0.0
    %2301 = vmatpush1.msra.mxu0 0.0
    %2302 = vmatprep.mubr.f32.mxu0 0.0
    %2303 = vmatmul.mubr.f32.gmra.mrb[0].mxu0 %v2159
    %v2304 = vpop.f32.mrb[0].mxu0
    %v2305 = vadd.f32 %v2237, %v2304
    %v2306 = vpop.f32.mrb[0].mxu0
    %2307 = vdwg.mxu0
    %v2308 = vxor.u32 %v2305, 2147483648
    %v2309 = vmul.f32 %v2308, 1.442695
    %v2310 = vpow.pop %v2309
    %v2311 = vadd.f32 %v2310, 1.0
    %v2312 = vrcp.pop %v2311
    %v2313 = vmul.f32 1.0, %v2312
    %v2314 = vld [vmem:[%s666] sm:$0x3]
    %2315 = vmatprep.subr.mxu0 0.0
    %2316 = vmatpush1.msra.mxu0 %v878
    %2317 = vmatprep.subr.mxu0 0.0
    %2318 = vmatpush1.msra.mxu0 %v879
    %2319 = vmatprep.subr.mxu0 0.0
    %2320 = vmatpush1.msra.mxu0 %v880
    %2321 = vmatprep.subr.mxu0 0.0
    %2322 = vmatpush1.msra.mxu0 %v881
    %2323 = vmatprep.subr.mxu0 0.0
    %2324 = vmatpush1.msra.mxu0 %v882
    %2325 = vmatprep.subr.mxu0 0.0
    %2326 = vmatpush1.msra.mxu0 %v883
    %2327 = vmatprep.subr.mxu0 0.0
    %2328 = vmatpush1.msra.mxu0 %v884
    %2329 = vmatprep.subr.mxu0 0.0
    %2330 = vmatpush1.msra.mxu0 %v885
    %2331 = vmatprep.subr.mxu0 0.0
    %2332 = vmatpush1.msra.mxu0 0.0
    %2333 = vmatprep.subr.mxu0 0.0
    %2334 = vmatpush1.msra.mxu0 0.0
    %2335 = vmatprep.subr.mxu0 0.0
    %2336 = vmatpush1.msra.mxu0 0.0
    %2337 = vmatprep.subr.mxu0 0.0
    %2338 = vmatpush1.msra.mxu0 0.0
    %2339 = vmatprep.subr.mxu0 0.0
    %2340 = vmatpush1.msra.mxu0 0.0
    %2341 = vmatprep.subr.mxu0 0.0
    %2342 = vmatpush1.msra.mxu0 0.0
    %2343 = vmatprep.subr.mxu0 0.0
    %2344 = vmatpush1.msra.mxu0 0.0
    %2345 = vmatprep.subr.mxu0 0.0
    %2346 = vmatpush1.msra.mxu0 0.0
    %2347 = vmatprep.subr.mxu0 0.0
    %2348 = vmatpush1.msra.mxu0 0.0
    %2349 = vmatprep.subr.mxu0 0.0
    %2350 = vmatpush1.msra.mxu0 0.0
    %2351 = vmatprep.subr.mxu0 0.0
    %2352 = vmatpush1.msra.mxu0 0.0
    %2353 = vmatprep.subr.mxu0 0.0
    %2354 = vmatpush1.msra.mxu0 0.0
    %2355 = vmatprep.subr.mxu0 0.0
    %2356 = vmatpush1.msra.mxu0 0.0
    %2357 = vmatprep.subr.mxu0 0.0
    %2358 = vmatpush1.msra.mxu0 0.0
    %2359 = vmatprep.subr.mxu0 0.0
    %2360 = vmatpush1.msra.mxu0 0.0
    %2361 = vmatprep.subr.mxu0 0.0
    %2362 = vmatpush1.msra.mxu0 0.0
    %2363 = vmatprep.subr.mxu0 0.0
    %2364 = vmatpush1.msra.mxu0 0.0
    %2365 = vmatprep.subr.mxu0 0.0
    %2366 = vmatpush1.msra.mxu0 0.0
    %2367 = vmatprep.subr.mxu0 0.0
    %2368 = vmatpush1.msra.mxu0 0.0
    %2369 = vmatprep.subr.mxu0 0.0
    %2370 = vmatpush1.msra.mxu0 0.0
    %2371 = vmatprep.subr.mxu0 0.0
    %2372 = vmatpush1.msra.mxu0 0.0
    %2373 = vmatprep.subr.mxu0 0.0
    %2374 = vmatpush1.msra.mxu0 0.0
    %2375 = vmatprep.subr.mxu0 0.0
    %2376 = vmatpush1.msra.mxu0 0.0
    %2377 = vmatprep.subr.mxu0 0.0
    %2378 = vmatpush1.msra.mxu0 0.0
    %2379 = vmatprep.mubr.f32.mxu0 0.0
    %2380 = vmatmul.mubr.f32.gmra.mrb[0].mxu0 %v2159
    %v2381 = vpop.f32.mrb[0].mxu0
    %v2382 = vadd.f32 %v2314, %v2381
    %v2383 = vpop.f32.mrb[0].mxu0
    %2384 = vdwg.mxu0
    %v2385 = vtanh.pop %v2382
    %v2386 = vld [vmem:[%s852] sm:$0x3]
    %2387 = vmatprep.subr.mxu0 0.0
    %2388 = vmatpush1.msra.mxu0 %v887
    %2389 = vmatprep.subr.mxu0 0.0
    %2390 = vmatpush1.msra.mxu0 %v888
    %2391 = vmatprep.subr.mxu0 0.0
    %2392 = vmatpush1.msra.mxu0 %v889
    %2393 = vmatprep.subr.mxu0 0.0
    %2394 = vmatpush1.msra.mxu0 %v890
    %2395 = vmatprep.subr.mxu0 0.0
    %2396 = vmatpush1.msra.mxu0 %v891
    %2397 = vmatprep.subr.mxu0 0.0
    %2398 = vmatpush1.msra.mxu0 %v892
    %2399 = vmatprep.subr.mxu0 0.0
    %2400 = vmatpush1.msra.mxu0 %v893
    %2401 = vmatprep.subr.mxu0 0.0
    %2402 = vmatpush1.msra.mxu0 %v894
    %2403 = vmatprep.subr.mxu0 0.0
    %2404 = vmatpush1.msra.mxu0 0.0
    %2405 = vmatprep.subr.mxu0 0.0
    %2406 = vmatpush1.msra.mxu0 0.0
    %2407 = vmatprep.subr.mxu0 0.0
    %2408 = vmatpush1.msra.mxu0 0.0
    %2409 = vmatprep.subr.mxu0 0.0
    %2410 = vmatpush1.msra.mxu0 0.0
    %2411 = vmatprep.subr.mxu0 0.0
    %2412 = vmatpush1.msra.mxu0 0.0
    %2413 = vmatprep.subr.mxu0 0.0
    %2414 = vmatpush1.msra.mxu0 0.0
    %2415 = vmatprep.subr.mxu0 0.0
    %2416 = vmatpush1.msra.mxu0 0.0
    %2417 = vmatprep.subr.mxu0 0.0
    %2418 = vmatpush1.msra.mxu0 0.0
    %2419 = vmatprep.subr.mxu0 0.0
    %2420 = vmatpush1.msra.mxu0 0.0
    %2421 = vmatprep.subr.mxu0 0.0
    %2422 = vmatpush1.msra.mxu0 0.0
    %2423 = vmatprep.subr.mxu0 0.0
    %2424 = vmatpush1.msra.mxu0 0.0
    %2425 = vmatprep.subr.mxu0 0.0
    %2426 = vmatpush1.msra.mxu0 0.0
    %2427 = vmatprep.subr.mxu0 0.0
    %2428 = vmatpush1.msra.mxu0 0.0
    %2429 = vmatprep.subr.mxu0 0.0
    %2430 = vmatpush1.msra.mxu0 0.0
    %2431 = vmatprep.subr.mxu0 0.0
    %2432 = vmatpush1.msra.mxu0 0.0
    %2433 = vmatprep.subr.mxu0 0.0
    %2434 = vmatpush1.msra.mxu0 0.0
    %2435 = vmatprep.subr.mxu0 0.0
    %2436 = vmatpush1.msra.mxu0 0.0
    %2437 = vmatprep.subr.mxu0 0.0
    %2438 = vmatpush1.msra.mxu0 0.0
    %2439 = vmatprep.subr.mxu0 0.0
    %2440 = vmatpush1.msra.mxu0 0.0
    %2441 = vmatprep.subr.mxu0 0.0
    %2442 = vmatpush1.msra.mxu0 0.0
    %2443 = vmatprep.subr.mxu0 0.0
    %2444 = vmatpush1.msra.mxu0 0.0
    %2445 = vmatprep.subr.mxu0 0.0
    %2446 = vmatpush1.msra.mxu0 0.0
    %2447 = vmatprep.subr.mxu0 0.0
    %2448 = vmatpush1.msra.mxu0 0.0
    %2449 = vmatprep.subr.mxu0 0.0
    %2450 = vmatpush1.msra.mxu0 0.0
    %2451 = vmatprep.mubr.f32.mxu0 0.0
    %2452 = vmatmul.mubr.f32.gmra.mrb[0].mxu0 %v2159
    %v2453 = vpop.f32.mrb[0].mxu0
    %v2454 = vadd.f32 %v2386, %v2453
    %v2455 = vpop.f32.mrb[0].mxu0
    %2456 = vdwg.mxu0
    %v2457 = vxor.u32 %v2454, 2147483648
    %v2458 = vmul.f32 %v2457, 1.442695
    %v2459 = vpow.pop %v2458
    %v2460 = vadd.f32 %v2459, 1.0
    %v2461 = vrcp.pop %v2460
    %v2462 = vmul.f32 1.0, %v2461
    %v2463 = vmul.f32 %v2313, %v2150
    %v2464 = vmul.f32 %v2236, %v2385
    %v2465 = vadd.f32 %v2463, %v2464
    %v2466 = vtanh.pop %v2465
    %v2467 = vmul.f32 %v2462, %v2466
    %2468 = vst.msk [vmem:[%s2155] sm:$0x3] %vm1207, %v2467
    %2469 = vst.msk [vmem:[%s2153] sm:$0x3] %vm1210, %v2467
    %v2470 = vld [vmem:[%s296] sm:$0x3]
    %v2472 = vsel %vm896, %v2467, 0
    %2474 = vmatprep.subr.mxu0 0.0
    %2475 = vmatpush1.msra.mxu0 %v860
    %2476 = vmatprep.subr.mxu0 0.0
    %2477 = vmatpush1.msra.mxu0 %v861
    %2478 = vmatprep.subr.mxu0 0.0
    %2479 = vmatpush1.msra.mxu0 %v862
    %2480 = vmatprep.subr.mxu0 0.0
    %2481 = vmatpush1.msra.mxu0 %v863
    %2482 = vmatprep.subr.mxu0 0.0
    %2483 = vmatpush1.msra.mxu0 %v864
    %2484 = vmatprep.subr.mxu0 0.0
    %2485 = vmatpush1.msra.mxu0 %v865
    %2486 = vmatprep.subr.mxu0 0.0
    %2487 = vmatpush1.msra.mxu0 %v866
    %2488 = vmatprep.subr.mxu0 0.0
    %2489 = vmatpush1.msra.mxu0 %v867
    %2490 = vmatprep.subr.mxu0 0.0
    %2491 = vmatpush1.msra.mxu0 0.0
    %2492 = vmatprep.subr.mxu0 0.0
    %2493 = vmatpush1.msra.mxu0 0.0
    %2494 = vmatprep.subr.mxu0 0.0
    %2495 = vmatpush1.msra.mxu0 0.0
    %2496 = vmatprep.subr.mxu0 0.0
    %2497 = vmatpush1.msra.mxu0 0.0
    %2498 = vmatprep.subr.mxu0 0.0
    %2499 = vmatpush1.msra.mxu0 0.0
    %2500 = vmatprep.subr.mxu0 0.0
    %2501 = vmatpush1.msra.mxu0 0.0
    %2502 = vmatprep.subr.mxu0 0.0
    %2503 = vmatpush1.msra.mxu0 0.0
    %2504 = vmatprep.subr.mxu0 0.0
    %2505 = vmatpush1.msra.mxu0 0.0
    %2506 = vmatprep.subr.mxu0 0.0
    %2507 = vmatpush1.msra.mxu0 0.0
    %2508 = vmatprep.subr.mxu0 0.0
    %2509 = vmatpush1.msra.mxu0 0.0
    %2510 = vmatprep.subr.mxu0 0.0
    %2511 = vmatpush1.msra.mxu0 0.0
    %2512 = vmatprep.subr.mxu0 0.0
    %2513 = vmatpush1.msra.mxu0 0.0
    %2514 = vmatprep.subr.mxu0 0.0
    %2515 = vmatpush1.msra.mxu0 0.0
    %2516 = vmatprep.subr.mxu0 0.0
    %2517 = vmatpush1.msra.mxu0 0.0
    %2518 = vmatprep.subr.mxu0 0.0
    %2519 = vmatpush1.msra.mxu0 0.0
    %2520 = vmatprep.subr.mxu0 0.0
    %2521 = vmatpush1.msra.mxu0 0.0
    %2522 = vmatprep.subr.mxu0 0.0
    %2523 = vmatpush1.msra.mxu0 0.0
    %2524 = vmatprep.subr.mxu0 0.0
    %2525 = vmatpush1.msra.mxu0 0.0
    %2526 = vmatprep.subr.mxu0 0.0
    %2527 = vmatpush1.msra.mxu0 0.0
    %2528 = vmatprep.subr.mxu0 0.0
    %2529 = vmatpush1.msra.mxu0 0.0
    %2530 = vmatprep.subr.mxu0 0.0
    %2531 = vmatpush1.msra.mxu0 0.0
    %2532 = vmatprep.subr.mxu0 0.0
    %2533 = vmatpush1.msra.mxu0 0.0
    %2534 = vmatprep.subr.mxu0 0.0
    %2535 = vmatpush1.msra.mxu0 0.0
    %2536 = vmatprep.subr.mxu0 0.0
    %2537 = vmatpush1.msra.mxu0 0.0
    %2538 = vmatprep.mubr.f32.mxu0 0.0
    %2539 = vmatmul.mubr.f32.gmra.mrb[0].mxu0 %v2472
    %v2540 = vpop.f32.mrb[0].mxu0
    %v2541 = vadd.f32 %v2470, %v2540
    %v2542 = vpop.f32.mrb[0].mxu0
    %2543 = vdwg.mxu0
    %v2544 = vxor.u32 %v2541, 2147483648
    %v2545 = vmul.f32 %v2544, 1.442695
    %v2546 = vpow.pop %v2545
    %v2547 = vadd.f32 %v2546, 1.0
    %v2548 = vrcp.pop %v2547
    %v2549 = vmul.f32 1.0, %v2548
    %v2550 = vld [vmem:[%s482] sm:$0x3]
    %2551 = vmatprep.subr.mxu0 0.0
    %2552 = vmatpush1.msra.mxu0 %v869
    %2553 = vmatprep.subr.mxu0 0.0
    %2554 = vmatpush1.msra.mxu0 %v870
    %2555 = vmatprep.subr.mxu0 0.0
    %2556 = vmatpush1.msra.mxu0 %v871
    %2557 = vmatprep.subr.mxu0 0.0
    %2558 = vmatpush1.msra.mxu0 %v872
    %2559 = vmatprep.subr.mxu0 0.0
    %2560 = vmatpush1.msra.mxu0 %v873
    %2561 = vmatprep.subr.mxu0 0.0
    %2562 = vmatpush1.msra.mxu0 %v874
    %2563 = vmatprep.subr.mxu0 0.0
    %2564 = vmatpush1.msra.mxu0 %v875
    %2565 = vmatprep.subr.mxu0 0.0
    %2566 = vmatpush1.msra.mxu0 %v876
    %2567 = vmatprep.subr.mxu0 0.0
    %2568 = vmatpush1.msra.mxu0 0.0
    %2569 = vmatprep.subr.mxu0 0.0
    %2570 = vmatpush1.msra.mxu0 0.0
    %2571 = vmatprep.subr.mxu0 0.0
    %2572 = vmatpush1.msra.mxu0 0.0
    %2573 = vmatprep.subr.mxu0 0.0
    %2574 = vmatpush1.msra.mxu0 0.0
    %2575 = vmatprep.subr.mxu0 0.0
    %2576 = vmatpush1.msra.mxu0 0.0
    %2577 = vmatprep.subr.mxu0 0.0
    %2578 = vmatpush1.msra.mxu0 0.0
    %2579 = vmatprep.subr.mxu0 0.0
    %2580 = vmatpush1.msra.mxu0 0.0
    %2581 = vmatprep.subr.mxu0 0.0
    %2582 = vmatpush1.msra.mxu0 0.0
    %2583 = vmatprep.subr.mxu0 0.0
    %2584 = vmatpush1.msra.mxu0 0.0
    %2585 = vmatprep.subr.mxu0 0.0
    %2586 = vmatpush1.msra.mxu0 0.0
    %2587 = vmatprep.subr.mxu0 0.0
    %2588 = vmatpush1.msra.mxu0 0.0
    %2589 = vmatprep.subr.mxu0 0.0
    %2590 = vmatpush1.msra.mxu0 0.0
    %2591 = vmatprep.subr.mxu0 0.0
    %2592 = vmatpush1.msra.mxu0 0.0
    %2593 = vmatprep.subr.mxu0 0.0
    %2594 = vmatpush1.msra.mxu0 0.0
    %2595 = vmatprep.subr.mxu0 0.0
    %2596 = vmatpush1.msra.mxu0 0.0
    %2597 = vmatprep.subr.mxu0 0.0
    %2598 = vmatpush1.msra.mxu0 0.0
    %2599 = vmatprep.subr.mxu0 0.0
    %2600 = vmatpush1.msra.mxu0 0.0
    %2601 = vmatprep.subr.mxu0 0.0
    %2602 = vmatpush1.msra.mxu0 0.0
    %2603 = vmatprep.subr.mxu0 0.0
    %2604 = vmatpush1.msra.mxu0 0.0
    %2605 = vmatprep.subr.mxu0 0.0
    %2606 = vmatpush1.msra.mxu0 0.0
    %2607 = vmatprep.subr.mxu0 0.0
    %2608 = vmatpush1.msra.mxu0 0.0
    %2609 = vmatprep.subr.mxu0 0.0
    %2610 = vmatpush1.msra.mxu0 0.0
    %2611 = vmatprep.subr.mxu0 0.0
    %2612 = vmatpush1.msra.mxu0 0.0
    %2613 = vmatprep.subr.mxu0 0.0
    %2614 = vmatpush1.msra.mxu0 0.0
    %2615 = vmatprep.mubr.f32.mxu0 0.0
    %2616 = vmatmul.mubr.f32.gmra.mrb[0].mxu0 %v2472
    %v2617 = vpop.f32.mrb[0].mxu0
    %v2618 = vadd.f32 %v2550, %v2617
    %v2619 = vpop.f32.mrb[0].mxu0
    %2620 = vdwg.mxu0
    %v2621 = vxor.u32 %v2618, 2147483648
    %v2622 = vmul.f32 %v2621, 1.442695
    %v2623 = vpow.pop %v2622
    %v2624 = vadd.f32 %v2623, 1.0
    %v2625 = vrcp.pop %v2624
    %v2626 = vmul.f32 1.0, %v2625
    %v2627 = vld [vmem:[%s668] sm:$0x3]
    %2628 = vmatprep.subr.mxu0 0.0
    %2629 = vmatpush1.msra.mxu0 %v878
    %2630 = vmatprep.subr.mxu0 0.0
    %2631 = vmatpush1.msra.mxu0 %v879
    %2632 = vmatprep.subr.mxu0 0.0
    %2633 = vmatpush1.msra.mxu0 %v880
    %2634 = vmatprep.subr.mxu0 0.0
    %2635 = vmatpush1.msra.mxu0 %v881
    %2636 = vmatprep.subr.mxu0 0.0
    %2637 = vmatpush1.msra.mxu0 %v882
    %2638 = vmatprep.subr.mxu0 0.0
    %2639 = vmatpush1.msra.mxu0 %v883
    %2640 = vmatprep.subr.mxu0 0.0
    %2641 = vmatpush1.msra.mxu0 %v884
    %2642 = vmatprep.subr.mxu0 0.0
    %2643 = vmatpush1.msra.mxu0 %v885
    %2644 = vmatprep.subr.mxu0 0.0
    %2645 = vmatpush1.msra.mxu0 0.0
    %2646 = vmatprep.subr.mxu0 0.0
    %2647 = vmatpush1.msra.mxu0 0.0
    %2648 = vmatprep.subr.mxu0 0.0
    %2649 = vmatpush1.msra.mxu0 0.0
    %2650 = vmatprep.subr.mxu0 0.0
    %2651 = vmatpush1.msra.mxu0 0.0
    %2652 = vmatprep.subr.mxu0 0.0
    %2653 = vmatpush1.msra.mxu0 0.0
    %2654 = vmatprep.subr.mxu0 0.0
    %2655 = vmatpush1.msra.mxu0 0.0
    %2656 = vmatprep.subr.mxu0 0.0
    %2657 = vmatpush1.msra.mxu0 0.0
    %2658 = vmatprep.subr.mxu0 0.0
    %2659 = vmatpush1.msra.mxu0 0.0
    %2660 = vmatprep.subr.mxu0 0.0
    %2661 = vmatpush1.msra.mxu0 0.0
    %2662 = vmatprep.subr.mxu0 0.0
    %2663 = vmatpush1.msra.mxu0 0.0
    %2664 = vmatprep.subr.mxu0 0.0
    %2665 = vmatpush1.msra.mxu0 0.0
    %2666 = vmatprep.subr.mxu0 0.0
    %2667 = vmatpush1.msra.mxu0 0.0
    %2668 = vmatprep.subr.mxu0 0.0
    %2669 = vmatpush1.msra.mxu0 0.0
    %2670 = vmatprep.subr.mxu0 0.0
    %2671 = vmatpush1.msra.mxu0 0.0
    %2672 = vmatprep.subr.mxu0 0.0
    %2673 = vmatpush1.msra.mxu0 0.0
    %2674 = vmatprep.subr.mxu0 0.0
    %2675 = vmatpush1.msra.mxu0 0.0
    %2676 = vmatprep.subr.mxu0 0.0
    %2677 = vmatpush1.msra.mxu0 0.0
    %2678 = vmatprep.subr.mxu0 0.0
    %2679 = vmatpush1.msra.mxu0 0.0
    %2680 = vmatprep.subr.mxu0 0.0
    %2681 = vmatpush1.msra.mxu0 0.0
    %2682 = vmatprep.subr.mxu0 0.0
    %2683 = vmatpush1.msra.mxu0 0.0
    %2684 = vmatprep.subr.mxu0 0.0
    %2685 = vmatpush1.msra.mxu0 0.0
    %2686 = vmatprep.subr.mxu0 0.0
    %2687 = vmatpush1.msra.mxu0 0.0
    %2688 = vmatprep.subr.mxu0 0.0
    %2689 = vmatpush1.msra.mxu0 0.0
    %2690 = vmatprep.subr.mxu0 0.0
    %2691 = vmatpush1.msra.mxu0 0.0
    %2692 = vmatprep.mubr.f32.mxu0 0.0
    %2693 = vmatmul.mubr.f32.gmra.mrb[0].mxu0 %v2472
    %v2694 = vpop.f32.mrb[0].mxu0
    %v2695 = vadd.f32 %v2627, %v2694
    %v2696 = vpop.f32.mrb[0].mxu0
    %2697 = vdwg.mxu0
    %v2698 = vtanh.pop %v2695
    %v2699 = vld [vmem:[%s854] sm:$0x3]
    %2700 = vmatprep.subr.mxu0 0.0
    %2701 = vmatpush1.msra.mxu0 %v887
    %2702 = vmatprep.subr.mxu0 0.0
    %2703 = vmatpush1.msra.mxu0 %v888
    %2704 = vmatprep.subr.mxu0 0.0
    %2705 = vmatpush1.msra.mxu0 %v889
    %2706 = vmatprep.subr.mxu0 0.0
    %2707 = vmatpush1.msra.mxu0 %v890
    %2708 = vmatprep.subr.mxu0 0.0
    %2709 = vmatpush1.msra.mxu0 %v891
    %2710 = vmatprep.subr.mxu0 0.0
    %2711 = vmatpush1.msra.mxu0 %v892
    %2712 = vmatprep.subr.mxu0 0.0
    %2713 = vmatpush1.msra.mxu0 %v893
    %2714 = vmatprep.subr.mxu0 0.0
    %2715 = vmatpush1.msra.mxu0 %v894
    %2716 = vmatprep.subr.mxu0 0.0
    %2717 = vmatpush1.msra.mxu0 0.0
    %2718 = vmatprep.subr.mxu0 0.0
    %2719 = vmatpush1.msra.mxu0 0.0
    %2720 = vmatprep.subr.mxu0 0.0
    %2721 = vmatpush1.msra.mxu0 0.0
    %2722 = vmatprep.subr.mxu0 0.0
    %2723 = vmatpush1.msra.mxu0 0.0
    %2724 = vmatprep.subr.mxu0 0.0
    %2725 = vmatpush1.msra.mxu0 0.0
    %2726 = vmatprep.subr.mxu0 0.0
    %2727 = vmatpush1.msra.mxu0 0.0
    %2728 = vmatprep.subr.mxu0 0.0
    %2729 = vmatpush1.msra.mxu0 0.0
    %2730 = vmatprep.subr.mxu0 0.0
    %2731 = vmatpush1.msra.mxu0 0.0
    %2732 = vmatprep.subr.mxu0 0.0
    %2733 = vmatpush1.msra.mxu0 0.0
    %2734 = vmatprep.subr.mxu0 0.0
    %2735 = vmatpush1.msra.mxu0 0.0
    %2736 = vmatprep.subr.mxu0 0.0
    %2737 = vmatpush1.msra.mxu0 0.0
    %2738 = vmatprep.subr.mxu0 0.0
    %2739 = vmatpush1.msra.mxu0 0.0
    %2740 = vmatprep.subr.mxu0 0.0
    %2741 = vmatpush1.msra.mxu0 0.0
    %2742 = vmatprep.subr.mxu0 0.0
    %2743 = vmatpush1.msra.mxu0 0.0
    %2744 = vmatprep.subr.mxu0 0.0
    %2745 = vmatpush1.msra.mxu0 0.0
    %2746 = vmatprep.subr.mxu0 0.0
    %2747 = vmatpush1.msra.mxu0 0.0
    %2748 = vmatprep.subr.mxu0 0.0
    %2749 = vmatpush1.msra.mxu0 0.0
    %2750 = vmatprep.subr.mxu0 0.0
    %2751 = vmatpush1.msra.mxu0 0.0
    %2752 = vmatprep.subr.mxu0 0.0
    %2753 = vmatpush1.msra.mxu0 0.0
    %2754 = vmatprep.subr.mxu0 0.0
    %2755 = vmatpush1.msra.mxu0 0.0
    %2756 = vmatprep.subr.mxu0 0.0
    %2757 = vmatpush1.msra.mxu0 0.0
    %2758 = vmatprep.subr.mxu0 0.0
    %2759 = vmatpush1.msra.mxu0 0.0
    %2760 = vmatprep.subr.mxu0 0.0
    %2761 = vmatpush1.msra.mxu0 0.0
    %2762 = vmatprep.subr.mxu0 0.0
    %2763 = vmatpush1.msra.mxu0 0.0
    %2764 = vmatprep.mubr.f32.mxu0 0.0
    %2765 = vmatmul.mubr.f32.gmra.mrb[0].mxu0 %v2472
    %v2766 = vpop.f32.mrb[0].mxu0
    %v2767 = vadd.f32 %v2699, %v2766
    %v2768 = vpop.f32.mrb[0].mxu0
    %2769 = vdwg.mxu0
    %v2770 = vxor.u32 %v2767, 2147483648
    %v2771 = vmul.f32 %v2770, 1.442695
    %v2772 = vpow.pop %v2771
    %v2773 = vadd.f32 %v2772, 1.0
    %v2774 = vrcp.pop %v2773
    %v2775 = vmul.f32 1.0, %v2774
    %v2776 = vmul.f32 %v2626, %v2465
    %v2777 = vmul.f32 %v2549, %v2698
    %v2778 = vadd.f32 %v2776, %v2777
    %v2779 = vtanh.pop %v2778
    %v2780 = vmul.f32 %v2775, %v2779
    %2781 = vst.msk [vmem:[%s1840] sm:$0x3] %vm1207, %v2780
    %2782 = vst.msk [vmem:[%s1838] sm:$0x3] %vm1210, %v2780
    %v2783 = vld [vmem:[%s298] sm:$0x3]
    %v2785 = vsel %vm896, %v2780, 0
    %2787 = vmatprep.subr.mxu0 0.0
    %2788 = vmatpush1.msra.mxu0 %v860
    %2789 = vmatprep.subr.mxu0 0.0
    %2790 = vmatpush1.msra.mxu0 %v861
    %2791 = vmatprep.subr.mxu0 0.0
    %2792 = vmatpush1.msra.mxu0 %v862
    %2793 = vmatprep.subr.mxu0 0.0
    %2794 = vmatpush1.msra.mxu0 %v863
    %2795 = vmatprep.subr.mxu0 0.0
    %2796 = vmatpush1.msra.mxu0 %v864
    %2797 = vmatprep.subr.mxu0 0.0
    %2798 = vmatpush1.msra.mxu0 %v865
    %2799 = vmatprep.subr.mxu0 0.0
    %2800 = vmatpush1.msra.mxu0 %v866
    %2801 = vmatprep.subr.mxu0 0.0
    %2802 = vmatpush1.msra.mxu0 %v867
    %2803 = vmatprep.subr.mxu0 0.0
    %2804 = vmatpush1.msra.mxu0 0.0
    %2805 = vmatprep.subr.mxu0 0.0
    %2806 = vmatpush1.msra.mxu0 0.0
    %2807 = vmatprep.subr.mxu0 0.0
    %2808 = vmatpush1.msra.mxu0 0.0
    %2809 = vmatprep.subr.mxu0 0.0
    %2810 = vmatpush1.msra.mxu0 0.0
    %2811 = vmatprep.subr.mxu0 0.0
    %2812 = vmatpush1.msra.mxu0 0.0
    %2813 = vmatprep.subr.mxu0 0.0
    %2814 = vmatpush1.msra.mxu0 0.0
    %2815 = vmatprep.subr.mxu0 0.0
    %2816 = vmatpush1.msra.mxu0 0.0
    %2817 = vmatprep.subr.mxu0 0.0
    %2818 = vmatpush1.msra.mxu0 0.0
    %2819 = vmatprep.subr.mxu0 0.0
    %2820 = vmatpush1.msra.mxu0 0.0
    %2821 = vmatprep.subr.mxu0 0.0
    %2822 = vmatpush1.msra.mxu0 0.0
    %2823 = vmatprep.subr.mxu0 0.0
    %2824 = vmatpush1.msra.mxu0 0.0
    %2825 = vmatprep.subr.mxu0 0.0
    %2826 = vmatpush1.msra.mxu0 0.0
    %2827 = vmatprep.subr.mxu0 0.0
    %2828 = vmatpush1.msra.mxu0 0.0
    %2829 = vmatprep.subr.mxu0 0.0
    %2830 = vmatpush1.msra.mxu0 0.0
    %2831 = vmatprep.subr.mxu0 0.0
    %2832 = vmatpush1.msra.mxu0 0.0
    %2833 = vmatprep.subr.mxu0 0.0
    %2834 = vmatpush1.msra.mxu0 0.0
    %2835 = vmatprep.subr.mxu0 0.0
    %2836 = vmatpush1.msra.mxu0 0.0
    %2837 = vmatprep.subr.mxu0 0.0
    %2838 = vmatpush1.msra.mxu0 0.0
    %2839 = vmatprep.subr.mxu0 0.0
    %2840 = vmatpush1.msra.mxu0 0.0
    %2841 = vmatprep.subr.mxu0 0.0
    %2842 = vmatpush1.msra.mxu0 0.0
    %2843 = vmatprep.subr.mxu0 0.0
    %2844 = vmatpush1.msra.mxu0 0.0
    %2845 = vmatprep.subr.mxu0 0.0
    %2846 = vmatpush1.msra.mxu0 0.0
    %2847 = vmatprep.subr.mxu0 0.0
    %2848 = vmatpush1.msra.mxu0 0.0
    %2849 = vmatprep.subr.mxu0 0.0
    %2850 = vmatpush1.msra.mxu0 0.0
    %2851 = vmatprep.mubr.f32.mxu0 0.0
    %2852 = vmatmul.mubr.f32.gmra.mrb[0].mxu0 %v2785
    %v2853 = vpop.f32.mrb[0].mxu0
    %v2854 = vadd.f32 %v2783, %v2853
    %v2855 = vpop.f32.mrb[0].mxu0
    %2856 = vdwg.mxu0
    %v2857 = vxor.u32 %v2854, 2147483648
    %v2858 = vmul.f32 %v2857, 1.442695
    %v2859 = vpow.pop %v2858
    %v2860 = vadd.f32 %v2859, 1.0
    %v2861 = vrcp.pop %v2860
    %v2862 = vmul.f32 1.0, %v2861
    %v2863 = vld [vmem:[%s484] sm:$0x3]
    %2864 = vmatprep.subr.mxu0 0.0
    %2865 = vmatpush1.msra.mxu0 %v869
    %2866 = vmatprep.subr.mxu0 0.0
    %2867 = vmatpush1.msra.mxu0 %v870
    %2868 = vmatprep.subr.mxu0 0.0
    %2869 = vmatpush1.msra.mxu0 %v871
    %2870 = vmatprep.subr.mxu0 0.0
    %2871 = vmatpush1.msra.mxu0 %v872
    %2872 = vmatprep.subr.mxu0 0.0
    %2873 = vmatpush1.msra.mxu0 %v873
    %2874 = vmatprep.subr.mxu0 0.0
    %2875 = vmatpush1.msra.mxu0 %v874
    %2876 = vmatprep.subr.mxu0 0.0
    %2877 = vmatpush1.msra.mxu0 %v875
    %2878 = vmatprep.subr.mxu0 0.0
    %2879 = vmatpush1.msra.mxu0 %v876
    %2880 = vmatprep.subr.mxu0 0.0
    %2881 = vmatpush1.msra.mxu0 0.0
    %2882 = vmatprep.subr.mxu0 0.0
    %2883 = vmatpush1.msra.mxu0 0.0
    %2884 = vmatprep.subr.mxu0 0.0
    %2885 = vmatpush1.msra.mxu0 0.0
    %2886 = vmatprep.subr.mxu0 0.0
    %2887 = vmatpush1.msra.mxu0 0.0
    %2888 = vmatprep.subr.mxu0 0.0
    %2889 = vmatpush1.msra.mxu0 0.0
    %2890 = vmatprep.subr.mxu0 0.0
    %2891 = vmatpush1.msra.mxu0 0.0
    %2892 = vmatprep.subr.mxu0 0.0
    %2893 = vmatpush1.msra.mxu0 0.0
    %2894 = vmatprep.subr.mxu0 0.0
    %2895 = vmatpush1.msra.mxu0 0.0
    %2896 = vmatprep.subr.mxu0 0.0
    %2897 = vmatpush1.msra.mxu0 0.0
    %2898 = vmatprep.subr.mxu0 0.0
    %2899 = vmatpush1.msra.mxu0 0.0
    %2900 = vmatprep.subr.mxu0 0.0
    %2901 = vmatpush1.msra.mxu0 0.0
    %2902 = vmatprep.subr.mxu0 0.0
    %2903 = vmatpush1.msra.mxu0 0.0
    %2904 = vmatprep.subr.mxu0 0.0
    %2905 = vmatpush1.msra.mxu0 0.0
    %2906 = vmatprep.subr.mxu0 0.0
    %2907 = vmatpush1.msra.mxu0 0.0
    %2908 = vmatprep.subr.mxu0 0.0
    %2909 = vmatpush1.msra.mxu0 0.0
    %2910 = vmatprep.subr.mxu0 0.0
    %2911 = vmatpush1.msra.mxu0 0.0
    %2912 = vmatprep.subr.mxu0 0.0
    %2913 = vmatpush1.msra.mxu0 0.0
    %2914 = vmatprep.subr.mxu0 0.0
    %2915 = vmatpush1.msra.mxu0 0.0
    %2916 = vmatprep.subr.mxu0 0.0
    %2917 = vmatpush1.msra.mxu0 0.0
    %2918 = vmatprep.subr.mxu0 0.0
    %2919 = vmatpush1.msra.mxu0 0.0
    %2920 = vmatprep.subr.mxu0 0.0
    %2921 = vmatpush1.msra.mxu0 0.0
    %2922 = vmatprep.subr.mxu0 0.0
    %2923 = vmatpush1.msra.mxu0 0.0
    %2924 = vmatprep.subr.mxu0 0.0
    %2925 = vmatpush1.msra.mxu0 0.0
    %2926 = vmatprep.subr.mxu0 0.0
    %2927 = vmatpush1.msra.mxu0 0.0
    %2928 = vmatprep.mubr.f32.mxu0 0.0
    %2929 = vmatmul.mubr.f32.gmra.mrb[0].mxu0 %v2785
    %v2930 = vpop.f32.mrb[0].mxu0
    %v2931 = vadd.f32 %v2863, %v2930
    %v2932 = vpop.f32.mrb[0].mxu0
    %2933 = vdwg.mxu0
    %v2934 = vxor.u32 %v2931, 2147483648
    %v2935 = vmul.f32 %v2934, 1.442695
    %v2936 = vpow.pop %v2935
    %v2937 = vadd.f32 %v2936, 1.0
    %v2938 = vrcp.pop %v2937
    %v2939 = vmul.f32 1.0, %v2938
    %v2940 = vld [vmem:[%s670] sm:$0x3]
    %2941 = vmatprep.subr.mxu0 0.0
    %2942 = vmatpush1.msra.mxu0 %v878
    %2943 = vmatprep.subr.mxu0 0.0
    %2944 = vmatpush1.msra.mxu0 %v879
    %2945 = vmatprep.subr.mxu0 0.0
    %2946 = vmatpush1.msra.mxu0 %v880
    %2947 = vmatprep.subr.mxu0 0.0
    %2948 = vmatpush1.msra.mxu0 %v881
    %2949 = vmatprep.subr.mxu0 0.0
    %2950 = vmatpush1.msra.mxu0 %v882
    %2951 = vmatprep.subr.mxu0 0.0
    %2952 = vmatpush1.msra.mxu0 %v883
    %2953 = vmatprep.subr.mxu0 0.0
    %2954 = vmatpush1.msra.mxu0 %v884
    %2955 = vmatprep.subr.mxu0 0.0
    %2956 = vmatpush1.msra.mxu0 %v885
    %2957 = vmatprep.subr.mxu0 0.0
    %2958 = vmatpush1.msra.mxu0 0.0
    %2959 = vmatprep.subr.mxu0 0.0
    %2960 = vmatpush1.msra.mxu0 0.0
    %2961 = vmatprep.subr.mxu0 0.0
    %2962 = vmatpush1.msra.mxu0 0.0
    %2963 = vmatprep.subr.mxu0 0.0
    %2964 = vmatpush1.msra.mxu0 0.0
    %2965 = vmatprep.subr.mxu0 0.0
    %2966 = vmatpush1.msra.mxu0 0.0
    %2967 = vmatprep.subr.mxu0 0.0
    %2968 = vmatpush1.msra.mxu0 0.0
    %2969 = vmatprep.subr.mxu0 0.0
    %2970 = vmatpush1.msra.mxu0 0.0
    %2971 = vmatprep.subr.mxu0 0.0
    %2972 = vmatpush1.msra.mxu0 0.0
    %2973 = vmatprep.subr.mxu0 0.0
    %2974 = vmatpush1.msra.mxu0 0.0
    %2975 = vmatprep.subr.mxu0 0.0
    %2976 = vmatpush1.msra.mxu0 0.0
    %2977 = vmatprep.subr.mxu0 0.0
    %2978 = vmatpush1.msra.mxu0 0.0
    %2979 = vmatprep.subr.mxu0 0.0
    %2980 = vmatpush1.msra.mxu0 0.0
    %2981 = vmatprep.subr.mxu0 0.0
    %2982 = vmatpush1.msra.mxu0 0.0
    %2983 = vmatprep.subr.mxu0 0.0
    %2984 = vmatpush1.msra.mxu0 0.0
    %2985 = vmatprep.subr.mxu0 0.0
    %2986 = vmatpush1.msra.mxu0 0.0
    %2987 = vmatprep.subr.mxu0 0.0
    %2988 = vmatpush1.msra.mxu0 0.0
    %2989 = vmatprep.subr.mxu0 0.0
    %2990 = vmatpush1.msra.mxu0 0.0
    %2991 = vmatprep.subr.mxu0 0.0
    %2992 = vmatpush1.msra.mxu0 0.0
    %2993 = vmatprep.subr.mxu0 0.0
    %2994 = vmatpush1.msra.mxu0 0.0
    %2995 = vmatprep.subr.mxu0 0.0
    %2996 = vmatpush1.msra.mxu0 0.0
    %2997 = vmatprep.subr.mxu0 0.0
    %2998 = vmatpush1.msra.mxu0 0.0
    %2999 = vmatprep.subr.mxu0 0.0
    %3000 = vmatpush1.msra.mxu0 0.0
    %3001 = vmatprep.subr.mxu0 0.0
    %3002 = vmatpush1.msra.mxu0 0.0
    %3003 = vmatprep.subr.mxu0 0.0
    %3004 = vmatpush1.msra.mxu0 0.0
    %3005 = vmatprep.mubr.f32.mxu0 0.0
    %3006 = vmatmul.mubr.f32.gmra.mrb[0].mxu0 %v2785
    %v3007 = vpop.f32.mrb[0].mxu0
    %v3008 = vadd.f32 %v2940, %v3007
    %v3009 = vpop.f32.mrb[0].mxu0
    %3010 = vdwg.mxu0
    %v3011 = vtanh.pop %v3008
    %v3012 = vld [vmem:[%s856] sm:$0x3]
    %3013 = vmatprep.subr.mxu0 0.0
    %3014 = vmatpush1.msra.mxu0 %v887
    %3015 = vmatprep.subr.mxu0 0.0
    %3016 = vmatpush1.msra.mxu0 %v888
    %3017 = vmatprep.subr.mxu0 0.0
    %3018 = vmatpush1.msra.mxu0 %v889
    %3019 = vmatprep.subr.mxu0 0.0
    %3020 = vmatpush1.msra.mxu0 %v890
    %3021 = vmatprep.subr.mxu0 0.0
    %3022 = vmatpush1.msra.mxu0 %v891
    %3023 = vmatprep.subr.mxu0 0.0
    %3024 = vmatpush1.msra.mxu0 %v892
    %3025 = vmatprep.subr.mxu0 0.0
    %3026 = vmatpush1.msra.mxu0 %v893
    %3027 = vmatprep.subr.mxu0 0.0
    %3028 = vmatpush1.msra.mxu0 %v894
    %3029 = vmatprep.subr.mxu0 0.0
    %3030 = vmatpush1.msra.mxu0 0.0
    %3031 = vmatprep.subr.mxu0 0.0
    %3032 = vmatpush1.msra.mxu0 0.0
    %3033 = vmatprep.subr.mxu0 0.0
    %3034 = vmatpush1.msra.mxu0 0.0
    %3035 = vmatprep.subr.mxu0 0.0
    %3036 = vmatpush1.msra.mxu0 0.0
    %3037 = vmatprep.subr.mxu0 0.0
    %3038 = vmatpush1.msra.mxu0 0.0
    %3039 = vmatprep.subr.mxu0 0.0
    %3040 = vmatpush1.msra.mxu0 0.0
    %3041 = vmatprep.subr.mxu0 0.0
    %3042 = vmatpush1.msra.mxu0 0.0
    %3043 = vmatprep.subr.mxu0 0.0
    %3044 = vmatpush1.msra.mxu0 0.0
    %3045 = vmatprep.subr.mxu0 0.0
    %3046 = vmatpush1.msra.mxu0 0.0
    %3047 = vmatprep.subr.mxu0 0.0
    %3048 = vmatpush1.msra.mxu0 0.0
    %3049 = vmatprep.subr.mxu0 0.0
    %3050 = vmatpush1.msra.mxu0 0.0
    %3051 = vmatprep.subr.mxu0 0.0
    %3052 = vmatpush1.msra.mxu0 0.0
    %3053 = vmatprep.subr.mxu0 0.0
    %3054 = vmatpush1.msra.mxu0 0.0
    %3055 = vmatprep.subr.mxu0 0.0
    %3056 = vmatpush1.msra.mxu0 0.0
    %3057 = vmatprep.subr.mxu0 0.0
    %3058 = vmatpush1.msra.mxu0 0.0
    %3059 = vmatprep.subr.mxu0 0.0
    %3060 = vmatpush1.msra.mxu0 0.0
    %3061 = vmatprep.subr.mxu0 0.0
    %3062 = vmatpush1.msra.mxu0 0.0
    %3063 = vmatprep.subr.mxu0 0.0
    %3064 = vmatpush1.msra.mxu0 0.0
    %3065 = vmatprep.subr.mxu0 0.0
    %3066 = vmatpush1.msra.mxu0 0.0
    %3067 = vmatprep.subr.mxu0 0.0
    %3068 = vmatpush1.msra.mxu0 0.0
    %3069 = vmatprep.subr.mxu0 0.0
    %3070 = vmatpush1.msra.mxu0 0.0
    %3071 = vmatprep.subr.mxu0 0.0
    %3072 = vmatpush1.msra.mxu0 0.0
    %3073 = vmatprep.subr.mxu0 0.0
    %3074 = vmatpush1.msra.mxu0 0.0
    %3075 = vmatprep.subr.mxu0 0.0
    %3076 = vmatpush1.msra.mxu0 0.0
    %3077 = vmatprep.mubr.f32.mxu0 0.0
    %3078 = vmatmul.mubr.f32.gmra.mrb[0].mxu0 %v2785
    %v3079 = vpop.f32.mrb[0].mxu0
    %v3080 = vadd.f32 %v3012, %v3079
    %v3081 = vpop.f32.mrb[0].mxu0
    %3082 = vdwg.mxu0
    %v3083 = vxor.u32 %v3080, 2147483648
    %v3084 = vmul.f32 %v3083, 1.442695
    %v3085 = vpow.pop %v3084
    %v3086 = vadd.f32 %v3085, 1.0
    %v3087 = vrcp.pop %v3086
    %v3088 = vmul.f32 1.0, %v3087
    %v3089 = vmul.f32 %v2939, %v2778
    %v3090 = vmul.f32 %v2862, %v3011
    %v3091 = vadd.f32 %v3089, %v3090
    %v3092 = vtanh.pop %v3091
    %v3093 = vmul.f32 %v3088, %v3092
    %3094 = vst.msk [vmem:[%s1525] sm:$0x3] %vm1207, %v3093
    %3095 = vst.msk [vmem:[%s1523] sm:$0x3] %vm1210, %v3093
    %v3096 = vld [vmem:[%s300] sm:$0x3]
    %v3098 = vsel %vm896, %v3093, 0
    %3100 = vmatprep.subr.mxu0 0.0
    %3101 = vmatpush1.msra.mxu0 %v860
    %3102 = vmatprep.subr.mxu0 0.0
    %3103 = vmatpush1.msra.mxu0 %v861
    %3104 = vmatprep.subr.mxu0 0.0
    %3105 = vmatpush1.msra.mxu0 %v862
    %3106 = vmatprep.subr.mxu0 0.0
    %3107 = vmatpush1.msra.mxu0 %v863
    %3108 = vmatprep.subr.mxu0 0.0
    %3109 = vmatpush1.msra.mxu0 %v864
    %3110 = vmatprep.subr.mxu0 0.0
    %3111 = vmatpush1.msra.mxu0 %v865
    %3112 = vmatprep.subr.mxu0 0.0
    %3113 = vmatpush1.msra.mxu0 %v866
    %3114 = vmatprep.subr.mxu0 0.0
    %3115 = vmatpush1.msra.mxu0 %v867
    %3116 = vmatprep.subr.mxu0 0.0
    %3117 = vmatpush1.msra.mxu0 0.0
    %3118 = vmatprep.subr.mxu0 0.0
    %3119 = vmatpush1.msra.mxu0 0.0
    %3120 = vmatprep.subr.mxu0 0.0
    %3121 = vmatpush1.msra.mxu0 0.0
    %3122 = vmatprep.subr.mxu0 0.0
    %3123 = vmatpush1.msra.mxu0 0.0
    %3124 = vmatprep.subr.mxu0 0.0
    %3125 = vmatpush1.msra.mxu0 0.0
    %3126 = vmatprep.subr.mxu0 0.0
    %3127 = vmatpush1.msra.mxu0 0.0
    %3128 = vmatprep.subr.mxu0 0.0
    %3129 = vmatpush1.msra.mxu0 0.0
    %3130 = vmatprep.subr.mxu0 0.0
    %3131 = vmatpush1.msra.mxu0 0.0
    %3132 = vmatprep.subr.mxu0 0.0
    %3133 = vmatpush1.msra.mxu0 0.0
    %3134 = vmatprep.subr.mxu0 0.0
    %3135 = vmatpush1.msra.mxu0 0.0
    %3136 = vmatprep.subr.mxu0 0.0
    %3137 = vmatpush1.msra.mxu0 0.0
    %3138 = vmatprep.subr.mxu0 0.0
    %3139 = vmatpush1.msra.mxu0 0.0
    %3140 = vmatprep.subr.mxu0 0.0
    %3141 = vmatpush1.msra.mxu0 0.0
    %3142 = vmatprep.subr.mxu0 0.0
    %3143 = vmatpush1.msra.mxu0 0.0
    %3144 = vmatprep.subr.mxu0 0.0
    %3145 = vmatpush1.msra.mxu0 0.0
    %3146 = vmatprep.subr.mxu0 0.0
    %3147 = vmatpush1.msra.mxu0 0.0
    %3148 = vmatprep.subr.mxu0 0.0
    %3149 = vmatpush1.msra.mxu0 0.0
    %3150 = vmatprep.subr.mxu0 0.0
    %3151 = vmatpush1.msra.mxu0 0.0
    %3152 = vmatprep.subr.mxu0 0.0
    %3153 = vmatpush1.msra.mxu0 0.0
    %3154 = vmatprep.subr.mxu0 0.0
    %3155 = vmatpush1.msra.mxu0 0.0
    %3156 = vmatprep.subr.mxu0 0.0
    %3157 = vmatpush1.msra.mxu0 0.0
    %3158 = vmatprep.subr.mxu0 0.0
    %3159 = vmatpush1.msra.mxu0 0.0
    %3160 = vmatprep.subr.mxu0 0.0
    %3161 = vmatpush1.msra.mxu0 0.0
    %3162 = vmatprep.subr.mxu0 0.0
    %3163 = vmatpush1.msra.mxu0 0.0
    %3164 = vmatprep.mubr.f32.mxu0 0.0
    %3165 = vmatmul.mubr.f32.gmra.mrb[0].mxu0 %v3098
    %v3166 = vpop.f32.mrb[0].mxu0
    %v3167 = vadd.f32 %v3096, %v3166
    %v3168 = vpop.f32.mrb[0].mxu0
    %3169 = vdwg.mxu0
    %v3170 = vxor.u32 %v3167, 2147483648
    %v3171 = vmul.f32 %v3170, 1.442695
    %v3172 = vpow.pop %v3171
    %v3173 = vadd.f32 %v3172, 1.0
    %v3174 = vrcp.pop %v3173
    %v3175 = vmul.f32 1.0, %v3174
    %v3176 = vld [vmem:[%s486] sm:$0x3]
    %3177 = vmatprep.subr.mxu0 0.0
    %3178 = vmatpush1.msra.mxu0 %v869
    %3179 = vmatprep.subr.mxu0 0.0
    %3180 = vmatpush1.msra.mxu0 %v870
    %3181 = vmatprep.subr.mxu0 0.0
    %3182 = vmatpush1.msra.mxu0 %v871
    %3183 = vmatprep.subr.mxu0 0.0
    %3184 = vmatpush1.msra.mxu0 %v872
    %3185 = vmatprep.subr.mxu0 0.0
    %3186 = vmatpush1.msra.mxu0 %v873
    %3187 = vmatprep.subr.mxu0 0.0
    %3188 = vmatpush1.msra.mxu0 %v874
    %3189 = vmatprep.subr.mxu0 0.0
    %3190 = vmatpush1.msra.mxu0 %v875
    %3191 = vmatprep.subr.mxu0 0.0
    %3192 = vmatpush1.msra.mxu0 %v876
    %3193 = vmatprep.subr.mxu0 0.0
    %3194 = vmatpush1.msra.mxu0 0.0
    %3195 = vmatprep.subr.mxu0 0.0
    %3196 = vmatpush1.msra.mxu0 0.0
    %3197 = vmatprep.subr.mxu0 0.0
    %3198 = vmatpush1.msra.mxu0 0.0
    %3199 = vmatprep.subr.mxu0 0.0
    %3200 = vmatpush1.msra.mxu0 0.0
    %3201 = vmatprep.subr.mxu0 0.0
    %3202 = vmatpush1.msra.mxu0 0.0
    %3203 = vmatprep.subr.mxu0 0.0
    %3204 = vmatpush1.msra.mxu0 0.0
    %3205 = vmatprep.subr.mxu0 0.0
    %3206 = vmatpush1.msra.mxu0 0.0
    %3207 = vmatprep.subr.mxu0 0.0
    %3208 = vmatpush1.msra.mxu0 0.0
    %3209 = vmatprep.subr.mxu0 0.0
    %3210 = vmatpush1.msra.mxu0 0.0
    %3211 = vmatprep.subr.mxu0 0.0
    %3212 = vmatpush1.msra.mxu0 0.0
    %3213 = vmatprep.subr.mxu0 0.0
    %3214 = vmatpush1.msra.mxu0 0.0
    %3215 = vmatprep.subr.mxu0 0.0
    %3216 = vmatpush1.msra.mxu0 0.0
    %3217 = vmatprep.subr.mxu0 0.0
    %3218 = vmatpush1.msra.mxu0 0.0
    %3219 = vmatprep.subr.mxu0 0.0
    %3220 = vmatpush1.msra.mxu0 0.0
    %3221 = vmatprep.subr.mxu0 0.0
    %3222 = vmatpush1.msra.mxu0 0.0
    %3223 = vmatprep.subr.mxu0 0.0
    %3224 = vmatpush1.msra.mxu0 0.0
    %3225 = vmatprep.subr.mxu0 0.0
    %3226 = vmatpush1.msra.mxu0 0.0
    %3227 = vmatprep.subr.mxu0 0.0
    %3228 = vmatpush1.msra.mxu0 0.0
    %3229 = vmatprep.subr.mxu0 0.0
    %3230 = vmatpush1.msra.mxu0 0.0
    %3231 = vmatprep.subr.mxu0 0.0
    %3232 = vmatpush1.msra.mxu0 0.0
    %3233 = vmatprep.subr.mxu0 0.0
    %3234 = vmatpush1.msra.mxu0 0.0
    %3235 = vmatprep.subr.mxu0 0.0
    %3236 = vmatpush1.msra.mxu0 0.0
    %3237 = vmatprep.subr.mxu0 0.0
    %3238 = vmatpush1.msra.mxu0 0.0
    %3239 = vmatprep.subr.mxu0 0.0
    %3240 = vmatpush1.msra.mxu0 0.0
    %3241 = vmatprep.mubr.f32.mxu0 0.0
    %3242 = vmatmul.mubr.f32.gmra.mrb[0].mxu0 %v3098
    %v3243 = vpop.f32.mrb[0].mxu0
    %v3244 = vadd.f32 %v3176, %v3243
    %v3245 = vpop.f32.mrb[0].mxu0
    %3246 = vdwg.mxu0
    %v3247 = vxor.u32 %v3244, 2147483648
    %v3248 = vmul.f32 %v3247, 1.442695
    %v3249 = vpow.pop %v3248
    %v3250 = vadd.f32 %v3249, 1.0
    %v3251 = vrcp.pop %v3250
    %v3252 = vmul.f32 1.0, %v3251
    %v3253 = vld [vmem:[%s672] sm:$0x3]
    %3254 = vmatprep.subr.mxu0 0.0
    %3255 = vmatpush1.msra.mxu0 %v878
    %3256 = vmatprep.subr.mxu0 0.0
    %3257 = vmatpush1.msra.mxu0 %v879
    %3258 = vmatprep.subr.mxu0 0.0
    %3259 = vmatpush1.msra.mxu0 %v880
    %3260 = vmatprep.subr.mxu0 0.0
    %3261 = vmatpush1.msra.mxu0 %v881
    %3262 = vmatprep.subr.mxu0 0.0
    %3263 = vmatpush1.msra.mxu0 %v882
    %3264 = vmatprep.subr.mxu0 0.0
    %3265 = vmatpush1.msra.mxu0 %v883
    %3266 = vmatprep.subr.mxu0 0.0
    %3267 = vmatpush1.msra.mxu0 %v884
    %3268 = vmatprep.subr.mxu0 0.0
    %3269 = vmatpush1.msra.mxu0 %v885
    %3270 = vmatprep.subr.mxu0 0.0
    %3271 = vmatpush1.msra.mxu0 0.0
    %3272 = vmatprep.subr.mxu0 0.0
    %3273 = vmatpush1.msra.mxu0 0.0
    %3274 = vmatprep.subr.mxu0 0.0
    %3275 = vmatpush1.msra.mxu0 0.0
    %3276 = vmatprep.subr.mxu0 0.0
    %3277 = vmatpush1.msra.mxu0 0.0
    %3278 = vmatprep.subr.mxu0 0.0
    %3279 = vmatpush1.msra.mxu0 0.0
    %3280 = vmatprep.subr.mxu0 0.0
    %3281 = vmatpush1.msra.mxu0 0.0
    %3282 = vmatprep.subr.mxu0 0.0
    %3283 = vmatpush1.msra.mxu0 0.0
    %3284 = vmatprep.subr.mxu0 0.0
    %3285 = vmatpush1.msra.mxu0 0.0
    %3286 = vmatprep.subr.mxu0 0.0
    %3287 = vmatpush1.msra.mxu0 0.0
    %3288 = vmatprep.subr.mxu0 0.0
    %3289 = vmatpush1.msra.mxu0 0.0
    %3290 = vmatprep.subr.mxu0 0.0
    %3291 = vmatpush1.msra.mxu0 0.0
    %3292 = vmatprep.subr.mxu0 0.0
    %3293 = vmatpush1.msra.mxu0 0.0
    %3294 = vmatprep.subr.mxu0 0.0
    %3295 = vmatpush1.msra.mxu0 0.0
    %3296 = vmatprep.subr.mxu0 0.0
    %3297 = vmatpush1.msra.mxu0 0.0
    %3298 = vmatprep.subr.mxu0 0.0
    %3299 = vmatpush1.msra.mxu0 0.0
    %3300 = vmatprep.subr.mxu0 0.0
    %3301 = vmatpush1.msra.mxu0 0.0
    %3302 = vmatprep.subr.mxu0 0.0
    %3303 = vmatpush1.msra.mxu0 0.0
    %3304 = vmatprep.subr.mxu0 0.0
    %3305 = vmatpush1.msra.mxu0 0.0
    %3306 = vmatprep.subr.mxu0 0.0
    %3307 = vmatpush1.msra.mxu0 0.0
    %3308 = vmatprep.subr.mxu0 0.0
    %3309 = vmatpush1.msra.mxu0 0.0
    %3310 = vmatprep.subr.mxu0 0.0
    %3311 = vmatpush1.msra.mxu0 0.0
    %3312 = vmatprep.subr.mxu0 0.0
    %3313 = vmatpush1.msra.mxu0 0.0
    %3314 = vmatprep.subr.mxu0 0.0
    %3315 = vmatpush1.msra.mxu0 0.0
    %3316 = vmatprep.subr.mxu0 0.0
    %3317 = vmatpush1.msra.mxu0 0.0
    %3318 = vmatprep.mubr.f32.mxu0 0.0
    %3319 = vmatmul.mubr.f32.gmra.mrb[0].mxu0 %v3098
    %v3320 = vpop.f32.mrb[0].mxu0
    %v3321 = vadd.f32 %v3253, %v3320
    %v3322 = vpop.f32.mrb[0].mxu0
    %3323 = vdwg.mxu0
    %v3324 = vtanh.pop %v3321
    %v3325 = vld [vmem:[%s858] sm:$0x3]
    %3326 = vmatprep.subr.mxu0 0.0
    %3327 = vmatpush1.msra.mxu0 %v887
    %3328 = vmatprep.subr.mxu0 0.0
    %3329 = vmatpush1.msra.mxu0 %v888
    %3330 = vmatprep.subr.mxu0 0.0
    %3331 = vmatpush1.msra.mxu0 %v889
    %3332 = vmatprep.subr.mxu0 0.0
    %3333 = vmatpush1.msra.mxu0 %v890
    %3334 = vmatprep.subr.mxu0 0.0
    %3335 = vmatpush1.msra.mxu0 %v891
    %3336 = vmatprep.subr.mxu0 0.0
    %3337 = vmatpush1.msra.mxu0 %v892
    %3338 = vmatprep.subr.mxu0 0.0
    %3339 = vmatpush1.msra.mxu0 %v893
    %3340 = vmatprep.subr.mxu0 0.0
    %3341 = vmatpush1.msra.mxu0 %v894
    %3342 = vmatprep.subr.mxu0 0.0
    %3343 = vmatpush1.msra.mxu0 0.0
    %3344 = vmatprep.subr.mxu0 0.0
    %3345 = vmatpush1.msra.mxu0 0.0
    %3346 = vmatprep.subr.mxu0 0.0
    %3347 = vmatpush1.msra.mxu0 0.0
    %3348 = vmatprep.subr.mxu0 0.0
    %3349 = vmatpush1.msra.mxu0 0.0
    %3350 = vmatprep.subr.mxu0 0.0
    %3351 = vmatpush1.msra.mxu0 0.0
    %3352 = vmatprep.subr.mxu0 0.0
    %3353 = vmatpush1.msra.mxu0 0.0
    %3354 = vmatprep.subr.mxu0 0.0
    %3355 = vmatpush1.msra.mxu0 0.0
    %3356 = vmatprep.subr.mxu0 0.0
    %3357 = vmatpush1.msra.mxu0 0.0
    %3358 = vmatprep.subr.mxu0 0.0
    %3359 = vmatpush1.msra.mxu0 0.0
    %3360 = vmatprep.subr.mxu0 0.0
    %3361 = vmatpush1.msra.mxu0 0.0
    %3362 = vmatprep.subr.mxu0 0.0
    %3363 = vmatpush1.msra.mxu0 0.0
    %3364 = vmatprep.subr.mxu0 0.0
    %3365 = vmatpush1.msra.mxu0 0.0
    %3366 = vmatprep.subr.mxu0 0.0
    %3367 = vmatpush1.msra.mxu0 0.0
    %3368 = vmatprep.subr.mxu0 0.0
    %3369 = vmatpush1.msra.mxu0 0.0
    %3370 = vmatprep.subr.mxu0 0.0
    %3371 = vmatpush1.msra.mxu0 0.0
    %3372 = vmatprep.subr.mxu0 0.0
    %3373 = vmatpush1.msra.mxu0 0.0
    %3374 = vmatprep.subr.mxu0 0.0
    %3375 = vmatpush1.msra.mxu0 0.0
    %3376 = vmatprep.subr.mxu0 0.0
    %3377 = vmatpush1.msra.mxu0 0.0
    %3378 = vmatprep.subr.mxu0 0.0
    %3379 = vmatpush1.msra.mxu0 0.0
    %3380 = vmatprep.subr.mxu0 0.0
    %3381 = vmatpush1.msra.mxu0 0.0
    %3382 = vmatprep.subr.mxu0 0.0
    %3383 = vmatpush1.msra.mxu0 0.0
    %3384 = vmatprep.subr.mxu0 0.0
    %3385 = vmatpush1.msra.mxu0 0.0
    %3386 = vmatprep.subr.mxu0 0.0
    %3387 = vmatpush1.msra.mxu0 0.0
    %3388 = vmatprep.subr.mxu0 0.0
    %3389 = vmatpush1.msra.mxu0 0.0
    %3390 = vmatprep.mubr.f32.mxu0 0.0
    %3391 = vmatmul.mubr.f32.gmra.mrb[0].mxu0 %v3098
    %v3392 = vpop.f32.mrb[0].mxu0
    %v3393 = vadd.f32 %v3325, %v3392
    %v3394 = vpop.f32.mrb[0].mxu0
    %3395 = vdwg.mxu0
    %v3396 = vxor.u32 %v3393, 2147483648
    %v3397 = vmul.f32 %v3396, 1.442695
    %v3398 = vpow.pop %v3397
    %v3399 = vadd.f32 %v3398, 1.0
    %v3400 = vrcp.pop %v3399
    %v3401 = vmul.f32 1.0, %v3400
    %v3402 = vmul.f32 %v3252, %v3091
    %v3403 = vmul.f32 %v3175, %v3324
    %v3404 = vadd.f32 %v3402, %v3403
    %v3405 = vtanh.pop %v3404
    %v3406 = vmul.f32 %v3401, %v3405
    %3407 = vst.msk [vmem:[%s1209] sm:$0x3] %vm1207, %v3406
    %3408 = vst.msk [vmem:[#allocation3] sm:$0x3] %vm1210, %v3406
    %v3409 = vld [vmem:[#allocation3] sm:$0x3]
    %3410 = vst.msk [vmem:[#allocation4] sm:$0x3] %vm283, %v3409
    %3411 = vst.msk [vmem:[#allocation5 + $0xe] sm:$0x3] %vm283, %v3409
    %v3412 = vld [vmem:[%s1523] sm:$0x3]
    %3413 = vst.msk [vmem:[#allocation4 + $0x2] sm:$0x3] %vm283, %v3412
    %3414 = vst.msk [vmem:[#allocation5 + $0xc] sm:$0x3] %vm283, %v3412
    %v3415 = vld [vmem:[%s1838] sm:$0x3]
    %3416 = vst.msk [vmem:[#allocation4 + $0x4] sm:$0x3] %vm283, %v3415
    %3417 = vst.msk [vmem:[#allocation5 + $0xa] sm:$0x3] %vm283, %v3415
    %v3418 = vld [vmem:[%s2153] sm:$0x3]
    %3419 = vst.msk [vmem:[#allocation4 + $0x6] sm:$0x3] %vm283, %v3418
    %3420 = vst.msk [vmem:[#allocation5 + $0x8] sm:$0x3] %vm283, %v3418
    %v3421 = vld [vmem:[%s2155] sm:$0x3]
    %3422 = vst.msk [vmem:[#allocation4 + $0x8] sm:$0x3] %vm283, %v3421
    %3423 = vst.msk [vmem:[#allocation5 + $0x6] sm:$0x3] %vm283, %v3421
    %v3424 = vld [vmem:[%s1840] sm:$0x3]
    %3425 = vst.msk [vmem:[#allocation4 + $0xa] sm:$0x3] %vm283, %v3424
    %3426 = vst.msk [vmem:[#allocation5 + $0x4] sm:$0x3] %vm283, %v3424
    %v3427 = vld [vmem:[%s1525] sm:$0x3]
    %3428 = vst.msk [vmem:[#allocation4 + $0xc] sm:$0x3] %vm283, %v3427
    %3429 = vst.msk [vmem:[#allocation5 + $0x2] sm:$0x3] %vm283, %v3427
    %v3430 = vld [vmem:[%s1209] sm:$0x3]
    %3431 = vst.msk [vmem:[#allocation4 + $0xe] sm:$0x3] %vm283, %v3430
    %3432 = vst.msk [vmem:[#allocation5] sm:$0x3] %vm283, %v3430
    %v3433 = vld [vmem:[#allocation4] sm:$0xff]
    %v3434 = vld [vmem:[#allocation4 + $0x8] sm:$0xff]
    %v3435 = vld [vmem:[#allocation5] sm:$0xff]
    %v3436 = vld [vmem:[#allocation5 + $0x8] sm:$0xff]
    %v3437 = vld [vmem:[#allocation9] sm:$0xff]
    %v3438 = vld [vmem:[#allocation9 + $0x8] sm:$0xff]
    %v3439 = vld [vmem:[#allocation9 + $0x10] sm:$0xff]
    %v3440 = vld [vmem:[#allocation9 + $0x18] sm:$0xff]
    %v3441 = vld [vmem:[#allocation9 + $0x20] sm:$0xff]
    %v3442 = vld [vmem:[#allocation9 + $0x28] sm:$0xff]
    %v3443 = vld [vmem:[#allocation9 + $0x30] sm:$0xff]
    %v3444 = vld [vmem:[#allocation9 + $0x38] sm:$0xff]
    %v3445 = vld [vmem:[#allocation11] sm:$0xff]
    %v3446 = vld [vmem:[#allocation11 + $0x8] sm:$0xff]
    %v3447 = vld [vmem:[#allocation11 + $0x10] sm:$0xff]
    %v3448 = vld [vmem:[#allocation11 + $0x18] sm:$0xff]
    %v3449 = vld [vmem:[#allocation11 + $0x20] sm:$0xff]
    %v3450 = vld [vmem:[#allocation11 + $0x28] sm:$0xff]
    %v3451 = vld [vmem:[#allocation11 + $0x30] sm:$0xff]
    %v3452 = vld [vmem:[#allocation11 + $0x38] sm:$0xff]
    %v3454 = vsel %vm896, %v3435, 0
    %v3457 = vsel %vm896, %v3436, 0
    %3459 = vmatprep.subr.mxu0 0.0
    %3460 = vmatpush1.msra.mxu0 %v3445
    %3461 = vmatprep.subr.mxu0 0.0
    %3462 = vmatpush1.msra.mxu0 %v3446
    %3463 = vmatprep.subr.mxu0 0.0
    %3464 = vmatpush1.msra.mxu0 %v3447
    %3465 = vmatprep.subr.mxu0 0.0
    %3466 = vmatpush1.msra.mxu0 %v3448
    %3467 = vmatprep.subr.mxu0 0.0
    %3468 = vmatpush1.msra.mxu0 %v3449
    %3469 = vmatprep.subr.mxu0 0.0
    %3470 = vmatpush1.msra.mxu0 %v3450
    %3471 = vmatprep.subr.mxu0 0.0
    %3472 = vmatpush1.msra.mxu0 %v3451
    %3473 = vmatprep.subr.mxu0 0.0
    %3474 = vmatpush1.msra.mxu0 %v3452
    %3475 = vmatprep.subr.mxu0 0.0
    %3476 = vmatpush1.msra.mxu0 0.0
    %3477 = vmatprep.subr.mxu0 0.0
    %3478 = vmatpush1.msra.mxu0 0.0
    %3479 = vmatprep.subr.mxu0 0.0
    %3480 = vmatpush1.msra.mxu0 0.0
    %3481 = vmatprep.subr.mxu0 0.0
    %3482 = vmatpush1.msra.mxu0 0.0
    %3483 = vmatprep.subr.mxu0 0.0
    %3484 = vmatpush1.msra.mxu0 0.0
    %3485 = vmatprep.subr.mxu0 0.0
    %3486 = vmatpush1.msra.mxu0 0.0
    %3487 = vmatprep.subr.mxu0 0.0
    %3488 = vmatpush1.msra.mxu0 0.0
    %3489 = vmatprep.subr.mxu0 0.0
    %3490 = vmatpush1.msra.mxu0 0.0
    %3491 = vmatprep.subr.mxu0 0.0
    %3492 = vmatpush1.msra.mxu0 0.0
    %3493 = vmatprep.subr.mxu0 0.0
    %3494 = vmatpush1.msra.mxu0 0.0
    %3495 = vmatprep.subr.mxu0 0.0
    %3496 = vmatpush1.msra.mxu0 0.0
    %3497 = vmatprep.subr.mxu0 0.0
    %3498 = vmatpush1.msra.mxu0 0.0
    %3499 = vmatprep.subr.mxu0 0.0
    %3500 = vmatpush1.msra.mxu0 0.0
    %3501 = vmatprep.subr.mxu0 0.0
    %3502 = vmatpush1.msra.mxu0 0.0
    %3503 = vmatprep.subr.mxu0 0.0
    %3504 = vmatpush1.msra.mxu0 0.0
    %3505 = vmatprep.subr.mxu0 0.0
    %3506 = vmatpush1.msra.mxu0 0.0
    %3507 = vmatprep.subr.mxu0 0.0
    %3508 = vmatpush1.msra.mxu0 0.0
    %3509 = vmatprep.subr.mxu0 0.0
    %3510 = vmatpush1.msra.mxu0 0.0
    %3511 = vmatprep.subr.mxu0 0.0
    %3512 = vmatpush1.msra.mxu0 0.0
    %3513 = vmatprep.subr.mxu0 0.0
    %3514 = vmatpush1.msra.mxu0 0.0
    %3515 = vmatprep.subr.mxu0 0.0
    %3516 = vmatpush1.msra.mxu0 0.0
    %3517 = vmatprep.subr.mxu0 0.0
    %3518 = vmatpush1.msra.mxu0 0.0
    %3519 = vmatprep.subr.mxu0 0.0
    %3520 = vmatpush1.msra.mxu0 0.0
    %3521 = vmatprep.subr.mxu0 0.0
    %3522 = vmatpush1.msra.mxu0 0.0
    %3523 = vmatprep.mubr.f32.mxu0 0.0
    %3524 = vmatmul.mubr.f32.gmra.mrb[0].mxu0 %v3454
    %v3525 = vpop.f32.mrb[0].mxu0
    %v3526 = vadd.f32 0.0, %v3525
    %v3527 = vpop.f32.mrb[0].mxu0
    %3528 = vmatprep.mubr.f32.mxu0 0.0
    %3529 = vmatmul.mubr.f32.gmra.mrb[0].mxu0 %v3457
    %v3530 = vpop.f32.mrb[0].mxu0
    %v3531 = vadd.f32 0.0, %v3530
    %v3532 = vpop.f32.mrb[0].mxu0
    %3533 = vdwg.mxu0
    %v3535 = vsel %vm896, %v3433, 0
    %v3538 = vsel %vm896, %v3434, 0
    %3540 = vmatprep.subr.mxu0 0.0
    %3541 = vmatpush1.msra.mxu0 %v3437
    %3542 = vmatprep.subr.mxu0 0.0
    %3543 = vmatpush1.msra.mxu0 %v3438
    %3544 = vmatprep.subr.mxu0 0.0
    %3545 = vmatpush1.msra.mxu0 %v3439
    %3546 = vmatprep.subr.mxu0 0.0
    %3547 = vmatpush1.msra.mxu0 %v3440
    %3548 = vmatprep.subr.mxu0 0.0
    %3549 = vmatpush1.msra.mxu0 %v3441
    %3550 = vmatprep.subr.mxu0 0.0
    %3551 = vmatpush1.msra.mxu0 %v3442
    %3552 = vmatprep.subr.mxu0 0.0
    %3553 = vmatpush1.msra.mxu0 %v3443
    %3554 = vmatprep.subr.mxu0 0.0
    %3555 = vmatpush1.msra.mxu0 %v3444
    %3556 = vmatprep.subr.mxu0 0.0
    %3557 = vmatpush1.msra.mxu0 0.0
    %3558 = vmatprep.subr.mxu0 0.0
    %3559 = vmatpush1.msra.mxu0 0.0
    %3560 = vmatprep.subr.mxu0 0.0
    %3561 = vmatpush1.msra.mxu0 0.0
    %3562 = vmatprep.subr.mxu0 0.0
    %3563 = vmatpush1.msra.mxu0 0.0
    %3564 = vmatprep.subr.mxu0 0.0
    %3565 = vmatpush1.msra.mxu0 0.0
    %3566 = vmatprep.subr.mxu0 0.0
    %3567 = vmatpush1.msra.mxu0 0.0
    %3568 = vmatprep.subr.mxu0 0.0
    %3569 = vmatpush1.msra.mxu0 0.0
    %3570 = vmatprep.subr.mxu0 0.0
    %3571 = vmatpush1.msra.mxu0 0.0
    %3572 = vmatprep.subr.mxu0 0.0
    %3573 = vmatpush1.msra.mxu0 0.0
    %3574 = vmatprep.subr.mxu0 0.0
    %3575 = vmatpush1.msra.mxu0 0.0
    %3576 = vmatprep.subr.mxu0 0.0
    %3577 = vmatpush1.msra.mxu0 0.0
    %3578 = vmatprep.subr.mxu0 0.0
    %3579 = vmatpush1.msra.mxu0 0.0
    %3580 = vmatprep.subr.mxu0 0.0
    %3581 = vmatpush1.msra.mxu0 0.0
    %3582 = vmatprep.subr.mxu0 0.0
    %3583 = vmatpush1.msra.mxu0 0.0
    %3584 = vmatprep.subr.mxu0 0.0
    %3585 = vmatpush1.msra.mxu0 0.0
    %3586 = vmatprep.subr.mxu0 0.0
    %3587 = vmatpush1.msra.mxu0 0.0
    %3588 = vmatprep.subr.mxu0 0.0
    %3589 = vmatpush1.msra.mxu0 0.0
    %3590 = vmatprep.subr.mxu0 0.0
    %3591 = vmatpush1.msra.mxu0 0.0
    %3592 = vmatprep.subr.mxu0 0.0
    %3593 = vmatpush1.msra.mxu0 0.0
    %3594 = vmatprep.subr.mxu0 0.0
    %3595 = vmatpush1.msra.mxu0 0.0
    %3596 = vmatprep.subr.mxu0 0.0
    %3597 = vmatpush1.msra.mxu0 0.0
    %3598 = vmatprep.subr.mxu0 0.0
    %3599 = vmatpush1.msra.mxu0 0.0
    %3600 = vmatprep.subr.mxu0 0.0
    %3601 = vmatpush1.msra.mxu0 0.0
    %3602 = vmatprep.subr.mxu0 0.0
    %3603 = vmatpush1.msra.mxu0 0.0
    %3604 = vmatprep.mubr.f32.mxu0 0.0
    %3605 = vmatmul.mubr.f32.gmra.mrb[0].mxu0 %v3535
    %v3606 = vpop.f32.mrb[0].mxu0
    %v3607 = vadd.f32 %v3526, %v3606
    %v3608 = vpop.f32.mrb[0].mxu0
    %3609 = vmatprep.mubr.f32.mxu0 0.0
    %3610 = vmatmul.mubr.f32.gmra.mrb[0].mxu0 %v3538
    %v3611 = vpop.f32.mrb[0].mxu0
    %v3612 = vadd.f32 %v3531, %v3611
    %v3613 = vpop.f32.mrb[0].mxu0
    %3614 = vdwg.mxu0
    %v3615 = vld [vmem:[%s9] sm:$0x1]
    %v3617 = vlaneseq
    %v3618 = vshrl.u32 %v3617, 7
    %v3619 = vsub.s32 0, %v3618
    %v3620 = vrot.slane %v3615, %v3619
    %v3622 = vadd.f32 %v3607, %v3620
    %v3623 = vadd.f32 %v3612, %v3620
    %3624 = vst.msk [vmem:[#allocation2] sm:$0x3] %vm283, %v3622
    %3625 = vst.msk [vmem:[%s285 - $0x2] sm:$0xc] %vm286, %v3622
    %3626 = vst.msk [vmem:[%s288 - $0x4] sm:$0x30] %vm289, %v3622
    %3627 = vst.msk [vmem:[%s291 - $0x6] sm:$0xc0] %vm292, %v3622
    %3628 = vst.msk [vmem:[%s294] sm:$0x3] %vm283, %v3623
    %3629 = vst.msk [vmem:[%s296 - $0x2] sm:$0xc] %vm286, %v3623
    %3630 = vst.msk [vmem:[%s298 - $0x4] sm:$0x30] %vm289, %v3623
    %3631 = vst.msk [vmem:[%s300 - $0x6] sm:$0xc0] %vm292, %v3623
    %s3632 = scalar_lea.vmem [#allocation9], 64
    %v3633 = vld [vmem:[%s3632] sm:$0xff]
    %v3634 = vld [vmem:[%s3632 + $0x8] sm:$0xff]
    %v3635 = vld [vmem:[%s3632 + $0x10] sm:$0xff]
    %v3636 = vld [vmem:[%s3632 + $0x18] sm:$0xff]
    %v3637 = vld [vmem:[%s3632 + $0x20] sm:$0xff]
    %v3638 = vld [vmem:[%s3632 + $0x28] sm:$0xff]
    %v3639 = vld [vmem:[%s3632 + $0x30] sm:$0xff]
    %v3640 = vld [vmem:[%s3632 + $0x38] sm:$0xff]
    %s3641 = scalar_lea.vmem [#allocation11], 64
    %v3642 = vld [vmem:[%s3641] sm:$0xff]
    %v3643 = vld [vmem:[%s3641 + $0x8] sm:$0xff]
    %v3644 = vld [vmem:[%s3641 + $0x10] sm:$0xff]
    %v3645 = vld [vmem:[%s3641 + $0x18] sm:$0xff]
    %v3646 = vld [vmem:[%s3641 + $0x20] sm:$0xff]
    %v3647 = vld [vmem:[%s3641 + $0x28] sm:$0xff]
    %v3648 = vld [vmem:[%s3641 + $0x30] sm:$0xff]
    %v3649 = vld [vmem:[%s3641 + $0x38] sm:$0xff]
    %3650 = vmatprep.subr.mxu0 0.0
    %3651 = vmatpush1.msra.mxu0 %v3642
    %3652 = vmatprep.subr.mxu0 0.0
    %3653 = vmatpush1.msra.mxu0 %v3643
    %3654 = vmatprep.subr.mxu0 0.0
    %3655 = vmatpush1.msra.mxu0 %v3644
    %3656 = vmatprep.subr.mxu0 0.0
    %3657 = vmatpush1.msra.mxu0 %v3645
    %3658 = vmatprep.subr.mxu0 0.0
    %3659 = vmatpush1.msra.mxu0 %v3646
    %3660 = vmatprep.subr.mxu0 0.0
    %3661 = vmatpush1.msra.mxu0 %v3647
    %3662 = vmatprep.subr.mxu0 0.0
    %3663 = vmatpush1.msra.mxu0 %v3648
    %3664 = vmatprep.subr.mxu0 0.0
    %3665 = vmatpush1.msra.mxu0 %v3649
    %3666 = vmatprep.subr.mxu0 0.0
    %3667 = vmatpush1.msra.mxu0 0.0
    %3668 = vmatprep.subr.mxu0 0.0
    %3669 = vmatpush1.msra.mxu0 0.0
    %3670 = vmatprep.subr.mxu0 0.0
    %3671 = vmatpush1.msra.mxu0 0.0
    %3672 = vmatprep.subr.mxu0 0.0
    %3673 = vmatpush1.msra.mxu0 0.0
    %3674 = vmatprep.subr.mxu0 0.0
    %3675 = vmatpush1.msra.mxu0 0.0
    %3676 = vmatprep.subr.mxu0 0.0
    %3677 = vmatpush1.msra.mxu0 0.0
    %3678 = vmatprep.subr.mxu0 0.0
    %3679 = vmatpush1.msra.mxu0 0.0
    %3680 = vmatprep.subr.mxu0 0.0
    %3681 = vmatpush1.msra.mxu0 0.0
    %3682 = vmatprep.subr.mxu0 0.0
    %3683 = vmatpush1.msra.mxu0 0.0
    %3684 = vmatprep.subr.mxu0 0.0
    %3685 = vmatpush1.msra.mxu0 0.0
    %3686 = vmatprep.subr.mxu0 0.0
    %3687 = vmatpush1.msra.mxu0 0.0
    %3688 = vmatprep.subr.mxu0 0.0
    %3689 = vmatpush1.msra.mxu0 0.0
    %3690 = vmatprep.subr.mxu0 0.0
    %3691 = vmatpush1.msra.mxu0 0.0
    %3692 = vmatprep.subr.mxu0 0.0
    %3693 = vmatpush1.msra.mxu0 0.0
    %3694 = vmatprep.subr.mxu0 0.0
    %3695 = vmatpush1.msra.mxu0 0.0
    %3696 = vmatprep.subr.mxu0 0.0
    %3697 = vmatpush1.msra.mxu0 0.0
    %3698 = vmatprep.subr.mxu0 0.0
    %3699 = vmatpush1.msra.mxu0 0.0
    %3700 = vmatprep.subr.mxu0 0.0
    %3701 = vmatpush1.msra.mxu0 0.0
    %3702 = vmatprep.subr.mxu0 0.0
    %3703 = vmatpush1.msra.mxu0 0.0
    %3704 = vmatprep.subr.mxu0 0.0
    %3705 = vmatpush1.msra.mxu0 0.0
    %3706 = vmatprep.subr.mxu0 0.0
    %3707 = vmatpush1.msra.mxu0 0.0
    %3708 = vmatprep.subr.mxu0 0.0
    %3709 = vmatpush1.msra.mxu0 0.0
    %3710 = vmatprep.subr.mxu0 0.0
    %3711 = vmatpush1.msra.mxu0 0.0
    %3712 = vmatprep.subr.mxu0 0.0
    %3713 = vmatpush1.msra.mxu0 0.0
    %3714 = vmatprep.mubr.f32.mxu0 0.0
    %3715 = vmatmul.mubr.f32.gmra.mrb[0].mxu0 %v3454
    %v3716 = vpop.f32.mrb[0].mxu0
    %v3717 = vadd.f32 0.0, %v3716
    %v3718 = vpop.f32.mrb[0].mxu0
    %3719 = vmatprep.mubr.f32.mxu0 0.0
    %3720 = vmatmul.mubr.f32.gmra.mrb[0].mxu0 %v3457
    %v3721 = vpop.f32.mrb[0].mxu0
    %v3722 = vadd.f32 0.0, %v3721
    %v3723 = vpop.f32.mrb[0].mxu0
    %3724 = vdwg.mxu0
    %3725 = vmatprep.subr.mxu0 0.0
    %3726 = vmatpush1.msra.mxu0 %v3633
    %3727 = vmatprep.subr.mxu0 0.0
    %3728 = vmatpush1.msra.mxu0 %v3634
    %3729 = vmatprep.subr.mxu0 0.0
    %3730 = vmatpush1.msra.mxu0 %v3635
    %3731 = vmatprep.subr.mxu0 0.0
    %3732 = vmatpush1.msra.mxu0 %v3636
    %3733 = vmatprep.subr.mxu0 0.0
    %3734 = vmatpush1.msra.mxu0 %v3637
    %3735 = vmatprep.subr.mxu0 0.0
    %3736 = vmatpush1.msra.mxu0 %v3638
    %3737 = vmatprep.subr.mxu0 0.0
    %3738 = vmatpush1.msra.mxu0 %v3639
    %3739 = vmatprep.subr.mxu0 0.0
    %3740 = vmatpush1.msra.mxu0 %v3640
    %3741 = vmatprep.subr.mxu0 0.0
    %3742 = vmatpush1.msra.mxu0 0.0
    %3743 = vmatprep.subr.mxu0 0.0
    %3744 = vmatpush1.msra.mxu0 0.0
    %3745 = vmatprep.subr.mxu0 0.0
    %3746 = vmatpush1.msra.mxu0 0.0
    %3747 = vmatprep.subr.mxu0 0.0
    %3748 = vmatpush1.msra.mxu0 0.0
    %3749 = vmatprep.subr.mxu0 0.0
    %3750 = vmatpush1.msra.mxu0 0.0
    %3751 = vmatprep.subr.mxu0 0.0
    %3752 = vmatpush1.msra.mxu0 0.0
    %3753 = vmatprep.subr.mxu0 0.0
    %3754 = vmatpush1.msra.mxu0 0.0
    %3755 = vmatprep.subr.mxu0 0.0
    %3756 = vmatpush1.msra.mxu0 0.0
    %3757 = vmatprep.subr.mxu0 0.0
    %3758 = vmatpush1.msra.mxu0 0.0
    %3759 = vmatprep.subr.mxu0 0.0
    %3760 = vmatpush1.msra.mxu0 0.0
    %3761 = vmatprep.subr.mxu0 0.0
    %3762 = vmatpush1.msra.mxu0 0.0
    %3763 = vmatprep.subr.mxu0 0.0
    %3764 = vmatpush1.msra.mxu0 0.0
    %3765 = vmatprep.subr.mxu0 0.0
    %3766 = vmatpush1.msra.mxu0 0.0
    %3767 = vmatprep.subr.mxu0 0.0
    %3768 = vmatpush1.msra.mxu0 0.0
    %3769 = vmatprep.subr.mxu0 0.0
    %3770 = vmatpush1.msra.mxu0 0.0
    %3771 = vmatprep.subr.mxu0 0.0
    %3772 = vmatpush1.msra.mxu0 0.0
    %3773 = vmatprep.subr.mxu0 0.0
    %3774 = vmatpush1.msra.mxu0 0.0
    %3775 = vmatprep.subr.mxu0 0.0
    %3776 = vmatpush1.msra.mxu0 0.0
    %3777 = vmatprep.subr.mxu0 0.0
    %3778 = vmatpush1.msra.mxu0 0.0
    %3779 = vmatprep.subr.mxu0 0.0
    %3780 = vmatpush1.msra.mxu0 0.0
    %3781 = vmatprep.subr.mxu0 0.0
    %3782 = vmatpush1.msra.mxu0 0.0
    %3783 = vmatprep.subr.mxu0 0.0
    %3784 = vmatpush1.msra.mxu0 0.0
    %3785 = vmatprep.subr.mxu0 0.0
    %3786 = vmatpush1.msra.mxu0 0.0
    %3787 = vmatprep.subr.mxu0 0.0
    %3788 = vmatpush1.msra.mxu0 0.0
    %3789 = vmatprep.mubr.f32.mxu0 0.0
    %3790 = vmatmul.mubr.f32.gmra.mrb[0].mxu0 %v3535
    %v3791 = vpop.f32.mrb[0].mxu0
    %v3792 = vadd.f32 %v3717, %v3791
    %v3793 = vpop.f32.mrb[0].mxu0
    %3794 = vmatprep.mubr.f32.mxu0 0.0
    %3795 = vmatmul.mubr.f32.gmra.mrb[0].mxu0 %v3538
    %v3796 = vpop.f32.mrb[0].mxu0
    %v3797 = vadd.f32 %v3722, %v3796
    %v3798 = vpop.f32.mrb[0].mxu0
    %3799 = vdwg.mxu0
    %s3800 = scalar_lea.vmem %s9, 1
    %v3801 = vld [vmem:[%s3800] sm:$0x1]
    %v3803 = vlaneseq
    %v3804 = vshrl.u32 %v3803, 7
    %v3805 = vsub.s32 0, %v3804
    %v3806 = vrot.slane %v3801, %v3805
    %v3808 = vadd.f32 %v3792, %v3806
    %v3809 = vadd.f32 %v3797, %v3806
    %3810 = vst.msk [vmem:[%s472] sm:$0x3] %vm283, %v3808
    %3811 = vst.msk [vmem:[%s474 - $0x2] sm:$0xc] %vm286, %v3808
    %3812 = vst.msk [vmem:[%s476 - $0x4] sm:$0x30] %vm289, %v3808
    %3813 = vst.msk [vmem:[%s478 - $0x6] sm:$0xc0] %vm292, %v3808
    %3814 = vst.msk [vmem:[%s480] sm:$0x3] %vm283, %v3809
    %3815 = vst.msk [vmem:[%s482 - $0x2] sm:$0xc] %vm286, %v3809
    %3816 = vst.msk [vmem:[%s484 - $0x4] sm:$0x30] %vm289, %v3809
    %3817 = vst.msk [vmem:[%s486 - $0x6] sm:$0xc0] %vm292, %v3809
    %s3818 = scalar_lea.vmem [#allocation9], 128
    %v3819 = vld [vmem:[%s3818] sm:$0xff]
    %v3820 = vld [vmem:[%s3818 + $0x8] sm:$0xff]
    %v3821 = vld [vmem:[%s3818 + $0x10] sm:$0xff]
    %v3822 = vld [vmem:[%s3818 + $0x18] sm:$0xff]
    %v3823 = vld [vmem:[%s3818 + $0x20] sm:$0xff]
    %v3824 = vld [vmem:[%s3818 + $0x28] sm:$0xff]
    %v3825 = vld [vmem:[%s3818 + $0x30] sm:$0xff]
    %v3826 = vld [vmem:[%s3818 + $0x38] sm:$0xff]
    %s3827 = scalar_lea.vmem [#allocation11], 128
    %v3828 = vld [vmem:[%s3827] sm:$0xff]
    %v3829 = vld [vmem:[%s3827 + $0x8] sm:$0xff]
    %v3830 = vld [vmem:[%s3827 + $0x10] sm:$0xff]
    %v3831 = vld [vmem:[%s3827 + $0x18] sm:$0xff]
    %v3832 = vld [vmem:[%s3827 + $0x20] sm:$0xff]
    %v3833 = vld [vmem:[%s3827 + $0x28] sm:$0xff]
    %v3834 = vld [vmem:[%s3827 + $0x30] sm:$0xff]
    %v3835 = vld [vmem:[%s3827 + $0x38] sm:$0xff]
    %3836 = vmatprep.subr.mxu0 0.0
    %3837 = vmatpush1.msra.mxu0 %v3828
    %3838 = vmatprep.subr.mxu0 0.0
    %3839 = vmatpush1.msra.mxu0 %v3829
    %3840 = vmatprep.subr.mxu0 0.0
    %3841 = vmatpush1.msra.mxu0 %v3830
    %3842 = vmatprep.subr.mxu0 0.0
    %3843 = vmatpush1.msra.mxu0 %v3831
    %3844 = vmatprep.subr.mxu0 0.0
    %3845 = vmatpush1.msra.mxu0 %v3832
    %3846 = vmatprep.subr.mxu0 0.0
    %3847 = vmatpush1.msra.mxu0 %v3833
    %3848 = vmatprep.subr.mxu0 0.0
    %3849 = vmatpush1.msra.mxu0 %v3834
    %3850 = vmatprep.subr.mxu0 0.0
    %3851 = vmatpush1.msra.mxu0 %v3835
    %3852 = vmatprep.subr.mxu0 0.0
    %3853 = vmatpush1.msra.mxu0 0.0
    %3854 = vmatprep.subr.mxu0 0.0
    %3855 = vmatpush1.msra.mxu0 0.0
    %3856 = vmatprep.subr.mxu0 0.0
    %3857 = vmatpush1.msra.mxu0 0.0
    %3858 = vmatprep.subr.mxu0 0.0
    %3859 = vmatpush1.msra.mxu0 0.0
    %3860 = vmatprep.subr.mxu0 0.0
    %3861 = vmatpush1.msra.mxu0 0.0
    %3862 = vmatprep.subr.mxu0 0.0
    %3863 = vmatpush1.msra.mxu0 0.0
    %3864 = vmatprep.subr.mxu0 0.0
    %3865 = vmatpush1.msra.mxu0 0.0
    %3866 = vmatprep.subr.mxu0 0.0
    %3867 = vmatpush1.msra.mxu0 0.0
    %3868 = vmatprep.subr.mxu0 0.0
    %3869 = vmatpush1.msra.mxu0 0.0
    %3870 = vmatprep.subr.mxu0 0.0
    %3871 = vmatpush1.msra.mxu0 0.0
    %3872 = vmatprep.subr.mxu0 0.0
    %3873 = vmatpush1.msra.mxu0 0.0
    %3874 = vmatprep.subr.mxu0 0.0
    %3875 = vmatpush1.msra.mxu0 0.0
    %3876 = vmatprep.subr.mxu0 0.0
    %3877 = vmatpush1.msra.mxu0 0.0
    %3878 = vmatprep.subr.mxu0 0.0
    %3879 = vmatpush1.msra.mxu0 0.0
    %3880 = vmatprep.subr.mxu0 0.0
    %3881 = vmatpush1.msra.mxu0 0.0
    %3882 = vmatprep.subr.mxu0 0.0
    %3883 = vmatpush1.msra.mxu0 0.0
    %3884 = vmatprep.subr.mxu0 0.0
    %3885 = vmatpush1.msra.mxu0 0.0
    %3886 = vmatprep.subr.mxu0 0.0
    %3887 = vmatpush1.msra.mxu0 0.0
    %3888 = vmatprep.subr.mxu0 0.0
    %3889 = vmatpush1.msra.mxu0 0.0
    %3890 = vmatprep.subr.mxu0 0.0
    %3891 = vmatpush1.msra.mxu0 0.0
    %3892 = vmatprep.subr.mxu0 0.0
    %3893 = vmatpush1.msra.mxu0 0.0
    %3894 = vmatprep.subr.mxu0 0.0
    %3895 = vmatpush1.msra.mxu0 0.0
    %3896 = vmatprep.subr.mxu0 0.0
    %3897 = vmatpush1.msra.mxu0 0.0
    %3898 = vmatprep.subr.mxu0 0.0
    %3899 = vmatpush1.msra.mxu0 0.0
    %3900 = vmatprep.mubr.f32.mxu0 0.0
    %3901 = vmatmul.mubr.f32.gmra.mrb[0].mxu0 %v3454
    %v3902 = vpop.f32.mrb[0].mxu0
    %v3903 = vadd.f32 0.0, %v3902
    %v3904 = vpop.f32.mrb[0].mxu0
    %3905 = vmatprep.mubr.f32.mxu0 0.0
    %3906 = vmatmul.mubr.f32.gmra.mrb[0].mxu0 %v3457
    %v3907 = vpop.f32.mrb[0].mxu0
    %v3908 = vadd.f32 0.0, %v3907
    %v3909 = vpop.f32.mrb[0].mxu0
    %3910 = vdwg.mxu0
    %3911 = vmatprep.subr.mxu0 0.0
    %3912 = vmatpush1.msra.mxu0 %v3819
    %3913 = vmatprep.subr.mxu0 0.0
    %3914 = vmatpush1.msra.mxu0 %v3820
    %3915 = vmatprep.subr.mxu0 0.0
    %3916 = vmatpush1.msra.mxu0 %v3821
    %3917 = vmatprep.subr.mxu0 0.0
    %3918 = vmatpush1.msra.mxu0 %v3822
    %3919 = vmatprep.subr.mxu0 0.0
    %3920 = vmatpush1.msra.mxu0 %v3823
    %3921 = vmatprep.subr.mxu0 0.0
    %3922 = vmatpush1.msra.mxu0 %v3824
    %3923 = vmatprep.subr.mxu0 0.0
    %3924 = vmatpush1.msra.mxu0 %v3825
    %3925 = vmatprep.subr.mxu0 0.0
    %3926 = vmatpush1.msra.mxu0 %v3826
    %3927 = vmatprep.subr.mxu0 0.0
    %3928 = vmatpush1.msra.mxu0 0.0
    %3929 = vmatprep.subr.mxu0 0.0
    %3930 = vmatpush1.msra.mxu0 0.0
    %3931 = vmatprep.subr.mxu0 0.0
    %3932 = vmatpush1.msra.mxu0 0.0
    %3933 = vmatprep.subr.mxu0 0.0
    %3934 = vmatpush1.msra.mxu0 0.0
    %3935 = vmatprep.subr.mxu0 0.0
    %3936 = vmatpush1.msra.mxu0 0.0
    %3937 = vmatprep.subr.mxu0 0.0
    %3938 = vmatpush1.msra.mxu0 0.0
    %3939 = vmatprep.subr.mxu0 0.0
    %3940 = vmatpush1.msra.mxu0 0.0
    %3941 = vmatprep.subr.mxu0 0.0
    %3942 = vmatpush1.msra.mxu0 0.0
    %3943 = vmatprep.subr.mxu0 0.0
    %3944 = vmatpush1.msra.mxu0 0.0
    %3945 = vmatprep.subr.mxu0 0.0
    %3946 = vmatpush1.msra.mxu0 0.0
    %3947 = vmatprep.subr.mxu0 0.0
    %3948 = vmatpush1.msra.mxu0 0.0
    %3949 = vmatprep.subr.mxu0 0.0
    %3950 = vmatpush1.msra.mxu0 0.0
    %3951 = vmatprep.subr.mxu0 0.0
    %3952 = vmatpush1.msra.mxu0 0.0
    %3953 = vmatprep.subr.mxu0 0.0
    %3954 = vmatpush1.msra.mxu0 0.0
    %3955 = vmatprep.subr.mxu0 0.0
    %3956 = vmatpush1.msra.mxu0 0.0
    %3957 = vmatprep.subr.mxu0 0.0
    %3958 = vmatpush1.msra.mxu0 0.0
    %3959 = vmatprep.subr.mxu0 0.0
    %3960 = vmatpush1.msra.mxu0 0.0
    %3961 = vmatprep.subr.mxu0 0.0
    %3962 = vmatpush1.msra.mxu0 0.0
    %3963 = vmatprep.subr.mxu0 0.0
    %3964 = vmatpush1.msra.mxu0 0.0
    %3965 = vmatprep.subr.mxu0 0.0
    %3966 = vmatpush1.msra.mxu0 0.0
    %3967 = vmatprep.subr.mxu0 0.0
    %3968 = vmatpush1.msra.mxu0 0.0
    %3969 = vmatprep.subr.mxu0 0.0
    %3970 = vmatpush1.msra.mxu0 0.0
    %3971 = vmatprep.subr.mxu0 0.0
    %3972 = vmatpush1.msra.mxu0 0.0
    %3973 = vmatprep.subr.mxu0 0.0
    %3974 = vmatpush1.msra.mxu0 0.0
    %3975 = vmatprep.mubr.f32.mxu0 0.0
    %3976 = vmatmul.mubr.f32.gmra.mrb[0].mxu0 %v3535
    %v3977 = vpop.f32.mrb[0].mxu0
    %v3978 = vadd.f32 %v3903, %v3977
    %v3979 = vpop.f32.mrb[0].mxu0
    %3980 = vmatprep.mubr.f32.mxu0 0.0
    %3981 = vmatmul.mubr.f32.gmra.mrb[0].mxu0 %v3538
    %v3982 = vpop.f32.mrb[0].mxu0
    %v3983 = vadd.f32 %v3908, %v3982
    %v3984 = vpop.f32.mrb[0].mxu0
    %3985 = vdwg.mxu0
    %s3986 = scalar_lea.vmem %s9, 2
    %v3987 = vld [vmem:[%s3986] sm:$0x1]
    %v3989 = vlaneseq
    %v3990 = vshrl.u32 %v3989, 7
    %v3991 = vsub.s32 0, %v3990
    %v3992 = vrot.slane %v3987, %v3991
    %v3994 = vadd.f32 %v3978, %v3992
    %v3995 = vadd.f32 %v3983, %v3992
    %3996 = vst.msk [vmem:[%s658] sm:$0x3] %vm283, %v3994
    %3997 = vst.msk [vmem:[%s660 - $0x2] sm:$0xc] %vm286, %v3994
    %3998 = vst.msk [vmem:[%s662 - $0x4] sm:$0x30] %vm289, %v3994
    %3999 = vst.msk [vmem:[%s664 - $0x6] sm:$0xc0] %vm292, %v3994
    %4000 = vst.msk [vmem:[%s666] sm:$0x3] %vm283, %v3995
    %4001 = vst.msk [vmem:[%s668 - $0x2] sm:$0xc] %vm286, %v3995
    %4002 = vst.msk [vmem:[%s670 - $0x4] sm:$0x30] %vm289, %v3995
    %4003 = vst.msk [vmem:[%s672 - $0x6] sm:$0xc0] %vm292, %v3995
    %s4004 = scalar_lea.vmem [#allocation9], 192
    %v4005 = vld [vmem:[%s4004] sm:$0xff]
    %v4006 = vld [vmem:[%s4004 + $0x8] sm:$0xff]
    %v4007 = vld [vmem:[%s4004 + $0x10] sm:$0xff]
    %v4008 = vld [vmem:[%s4004 + $0x18] sm:$0xff]
    %v4009 = vld [vmem:[%s4004 + $0x20] sm:$0xff]
    %v4010 = vld [vmem:[%s4004 + $0x28] sm:$0xff]
    %v4011 = vld [vmem:[%s4004 + $0x30] sm:$0xff]
    %v4012 = vld [vmem:[%s4004 + $0x38] sm:$0xff]
    %s4013 = scalar_lea.vmem [#allocation11], 192
    %v4014 = vld [vmem:[%s4013] sm:$0xff]
    %v4015 = vld [vmem:[%s4013 + $0x8] sm:$0xff]
    %v4016 = vld [vmem:[%s4013 + $0x10] sm:$0xff]
    %v4017 = vld [vmem:[%s4013 + $0x18] sm:$0xff]
    %v4018 = vld [vmem:[%s4013 + $0x20] sm:$0xff]
    %v4019 = vld [vmem:[%s4013 + $0x28] sm:$0xff]
    %v4020 = vld [vmem:[%s4013 + $0x30] sm:$0xff]
    %v4021 = vld [vmem:[%s4013 + $0x38] sm:$0xff]
    %4022 = vmatprep.subr.mxu0 0.0
    %4023 = vmatpush1.msra.mxu0 %v4014
    %4024 = vmatprep.subr.mxu0 0.0
    %4025 = vmatpush1.msra.mxu0 %v4015
    %4026 = vmatprep.subr.mxu0 0.0
    %4027 = vmatpush1.msra.mxu0 %v4016
    %4028 = vmatprep.subr.mxu0 0.0
    %4029 = vmatpush1.msra.mxu0 %v4017
    %4030 = vmatprep.subr.mxu0 0.0
    %4031 = vmatpush1.msra.mxu0 %v4018
    %4032 = vmatprep.subr.mxu0 0.0
    %4033 = vmatpush1.msra.mxu0 %v4019
    %4034 = vmatprep.subr.mxu0 0.0
    %4035 = vmatpush1.msra.mxu0 %v4020
    %4036 = vmatprep.subr.mxu0 0.0
    %4037 = vmatpush1.msra.mxu0 %v4021
    %4038 = vmatprep.subr.mxu0 0.0
    %4039 = vmatpush1.msra.mxu0 0.0
    %4040 = vmatprep.subr.mxu0 0.0
    %4041 = vmatpush1.msra.mxu0 0.0
    %4042 = vmatprep.subr.mxu0 0.0
    %4043 = vmatpush1.msra.mxu0 0.0
    %4044 = vmatprep.subr.mxu0 0.0
    %4045 = vmatpush1.msra.mxu0 0.0
    %4046 = vmatprep.subr.mxu0 0.0
    %4047 = vmatpush1.msra.mxu0 0.0
    %4048 = vmatprep.subr.mxu0 0.0
    %4049 = vmatpush1.msra.mxu0 0.0
    %4050 = vmatprep.subr.mxu0 0.0
    %4051 = vmatpush1.msra.mxu0 0.0
    %4052 = vmatprep.subr.mxu0 0.0
    %4053 = vmatpush1.msra.mxu0 0.0
    %4054 = vmatprep.subr.mxu0 0.0
    %4055 = vmatpush1.msra.mxu0 0.0
    %4056 = vmatprep.subr.mxu0 0.0
    %4057 = vmatpush1.msra.mxu0 0.0
    %4058 = vmatprep.subr.mxu0 0.0
    %4059 = vmatpush1.msra.mxu0 0.0
    %4060 = vmatprep.subr.mxu0 0.0
    %4061 = vmatpush1.msra.mxu0 0.0
    %4062 = vmatprep.subr.mxu0 0.0
    %4063 = vmatpush1.msra.mxu0 0.0
    %4064 = vmatprep.subr.mxu0 0.0
    %4065 = vmatpush1.msra.mxu0 0.0
    %4066 = vmatprep.subr.mxu0 0.0
    %4067 = vmatpush1.msra.mxu0 0.0
    %4068 = vmatprep.subr.mxu0 0.0
    %4069 = vmatpush1.msra.mxu0 0.0
    %4070 = vmatprep.subr.mxu0 0.0
    %4071 = vmatpush1.msra.mxu0 0.0
    %4072 = vmatprep.subr.mxu0 0.0
    %4073 = vmatpush1.msra.mxu0 0.0
    %4074 = vmatprep.subr.mxu0 0.0
    %4075 = vmatpush1.msra.mxu0 0.0
    %4076 = vmatprep.subr.mxu0 0.0
    %4077 = vmatpush1.msra.mxu0 0.0
    %4078 = vmatprep.subr.mxu0 0.0
    %4079 = vmatpush1.msra.mxu0 0.0
    %4080 = vmatprep.subr.mxu0 0.0
    %4081 = vmatpush1.msra.mxu0 0.0
    %4082 = vmatprep.subr.mxu0 0.0
    %4083 = vmatpush1.msra.mxu0 0.0
    %4084 = vmatprep.subr.mxu0 0.0
    %4085 = vmatpush1.msra.mxu0 0.0
    %4086 = vmatprep.mubr.f32.mxu0 0.0
    %4087 = vmatmul.mubr.f32.gmra.mrb[0].mxu0 %v3454
    %v4088 = vpop.f32.mrb[0].mxu0
    %v4089 = vadd.f32 0.0, %v4088
    %v4090 = vpop.f32.mrb[0].mxu0
    %4091 = vmatprep.mubr.f32.mxu0 0.0
    %4092 = vmatmul.mubr.f32.gmra.mrb[0].mxu0 %v3457
    %v4093 = vpop.f32.mrb[0].mxu0
    %v4094 = vadd.f32 0.0, %v4093
    %v4095 = vpop.f32.mrb[0].mxu0
    %4096 = vdwg.mxu0
    %4097 = vmatprep.subr.mxu0 0.0
    %4098 = vmatpush1.msra.mxu0 %v4005
    %4099 = vmatprep.subr.mxu0 0.0
    %4100 = vmatpush1.msra.mxu0 %v4006
    %4101 = vmatprep.subr.mxu0 0.0
    %4102 = vmatpush1.msra.mxu0 %v4007
    %4103 = vmatprep.subr.mxu0 0.0
    %4104 = vmatpush1.msra.mxu0 %v4008
    %4105 = vmatprep.subr.mxu0 0.0
    %4106 = vmatpush1.msra.mxu0 %v4009
    %4107 = vmatprep.subr.mxu0 0.0
    %4108 = vmatpush1.msra.mxu0 %v4010
    %4109 = vmatprep.subr.mxu0 0.0
    %4110 = vmatpush1.msra.mxu0 %v4011
    %4111 = vmatprep.subr.mxu0 0.0
    %4112 = vmatpush1.msra.mxu0 %v4012
    %4113 = vmatprep.subr.mxu0 0.0
    %4114 = vmatpush1.msra.mxu0 0.0
    %4115 = vmatprep.subr.mxu0 0.0
    %4116 = vmatpush1.msra.mxu0 0.0
    %4117 = vmatprep.subr.mxu0 0.0
    %4118 = vmatpush1.msra.mxu0 0.0
    %4119 = vmatprep.subr.mxu0 0.0
    %4120 = vmatpush1.msra.mxu0 0.0
    %4121 = vmatprep.subr.mxu0 0.0
    %4122 = vmatpush1.msra.mxu0 0.0
    %4123 = vmatprep.subr.mxu0 0.0
    %4124 = vmatpush1.msra.mxu0 0.0
    %4125 = vmatprep.subr.mxu0 0.0
    %4126 = vmatpush1.msra.mxu0 0.0
    %4127 = vmatprep.subr.mxu0 0.0
    %4128 = vmatpush1.msra.mxu0 0.0
    %4129 = vmatprep.subr.mxu0 0.0
    %4130 = vmatpush1.msra.mxu0 0.0
    %4131 = vmatprep.subr.mxu0 0.0
    %4132 = vmatpush1.msra.mxu0 0.0
    %4133 = vmatprep.subr.mxu0 0.0
    %4134 = vmatpush1.msra.mxu0 0.0
    %4135 = vmatprep.subr.mxu0 0.0
    %4136 = vmatpush1.msra.mxu0 0.0
    %4137 = vmatprep.subr.mxu0 0.0
    %4138 = vmatpush1.msra.mxu0 0.0
    %4139 = vmatprep.subr.mxu0 0.0
    %4140 = vmatpush1.msra.mxu0 0.0
    %4141 = vmatprep.subr.mxu0 0.0
    %4142 = vmatpush1.msra.mxu0 0.0
    %4143 = vmatprep.subr.mxu0 0.0
    %4144 = vmatpush1.msra.mxu0 0.0
    %4145 = vmatprep.subr.mxu0 0.0
    %4146 = vmatpush1.msra.mxu0 0.0
    %4147 = vmatprep.subr.mxu0 0.0
    %4148 = vmatpush1.msra.mxu0 0.0
    %4149 = vmatprep.subr.mxu0 0.0
    %4150 = vmatpush1.msra.mxu0 0.0
    %4151 = vmatprep.subr.mxu0 0.0
    %4152 = vmatpush1.msra.mxu0 0.0
    %4153 = vmatprep.subr.mxu0 0.0
    %4154 = vmatpush1.msra.mxu0 0.0
    %4155 = vmatprep.subr.mxu0 0.0
    %4156 = vmatpush1.msra.mxu0 0.0
    %4157 = vmatprep.subr.mxu0 0.0
    %4158 = vmatpush1.msra.mxu0 0.0
    %4159 = vmatprep.subr.mxu0 0.0
    %4160 = vmatpush1.msra.mxu0 0.0
    %4161 = vmatprep.mubr.f32.mxu0 0.0
    %4162 = vmatmul.mubr.f32.gmra.mrb[0].mxu0 %v3535
    %v4163 = vpop.f32.mrb[0].mxu0
    %v4164 = vadd.f32 %v4089, %v4163
    %v4165 = vpop.f32.mrb[0].mxu0
    %4166 = vmatprep.mubr.f32.mxu0 0.0
    %4167 = vmatmul.mubr.f32.gmra.mrb[0].mxu0 %v3538
    %v4168 = vpop.f32.mrb[0].mxu0
    %v4169 = vadd.f32 %v4094, %v4168
    %v4170 = vpop.f32.mrb[0].mxu0
    %4171 = vdwg.mxu0
    %s4172 = scalar_lea.vmem %s9, 3
    %v4173 = vld [vmem:[%s4172] sm:$0x1]
    %v4175 = vlaneseq
    %v4176 = vshrl.u32 %v4175, 7
    %v4177 = vsub.s32 0, %v4176
    %v4178 = vrot.slane %v4173, %v4177
    %v4180 = vadd.f32 %v4164, %v4178
    %v4181 = vadd.f32 %v4169, %v4178
    %4182 = vst.msk [vmem:[%s844] sm:$0x3] %vm283, %v4180
    %4183 = vst.msk [vmem:[%s846 - $0x2] sm:$0xc] %vm286, %v4180
    %4184 = vst.msk [vmem:[%s848 - $0x4] sm:$0x30] %vm289, %v4180
    %4185 = vst.msk [vmem:[%s850 - $0x6] sm:$0xc0] %vm292, %v4180
    %4186 = vst.msk [vmem:[%s852] sm:$0x3] %vm283, %v4181
    %4187 = vst.msk [vmem:[%s854 - $0x2] sm:$0xc] %vm286, %v4181
    %4188 = vst.msk [vmem:[%s856 - $0x4] sm:$0x30] %vm289, %v4181
    %4189 = vst.msk [vmem:[%s858 - $0x6] sm:$0xc0] %vm292, %v4181
    %v4190 = vld [vmem:[#allocation12] sm:$0xff]
    %v4191 = vld [vmem:[#allocation12 + $0x8] sm:$0xff]
    %v4192 = vld [vmem:[#allocation12 + $0x10] sm:$0xff]
    %v4193 = vld [vmem:[#allocation12 + $0x18] sm:$0xff]
    %v4194 = vld [vmem:[#allocation12 + $0x20] sm:$0xff]
    %v4195 = vld [vmem:[#allocation12 + $0x28] sm:$0xff]
    %v4196 = vld [vmem:[#allocation12 + $0x30] sm:$0xff]
    %v4197 = vld [vmem:[#allocation12 + $0x38] sm:$0xff]
    %s4198 = scalar_lea.vmem [#allocation12], 64
    %v4199 = vld [vmem:[%s4198] sm:$0xff]
    %v4200 = vld [vmem:[%s4198 + $0x8] sm:$0xff]
    %v4201 = vld [vmem:[%s4198 + $0x10] sm:$0xff]
    %v4202 = vld [vmem:[%s4198 + $0x18] sm:$0xff]
    %v4203 = vld [vmem:[%s4198 + $0x20] sm:$0xff]
    %v4204 = vld [vmem:[%s4198 + $0x28] sm:$0xff]
    %v4205 = vld [vmem:[%s4198 + $0x30] sm:$0xff]
    %v4206 = vld [vmem:[%s4198 + $0x38] sm:$0xff]
    %s4207 = scalar_lea.vmem [#allocation12], 128
    %v4208 = vld [vmem:[%s4207] sm:$0xff]
    %v4209 = vld [vmem:[%s4207 + $0x8] sm:$0xff]
    %v4210 = vld [vmem:[%s4207 + $0x10] sm:$0xff]
    %v4211 = vld [vmem:[%s4207 + $0x18] sm:$0xff]
    %v4212 = vld [vmem:[%s4207 + $0x20] sm:$0xff]
    %v4213 = vld [vmem:[%s4207 + $0x28] sm:$0xff]
    %v4214 = vld [vmem:[%s4207 + $0x30] sm:$0xff]
    %v4215 = vld [vmem:[%s4207 + $0x38] sm:$0xff]
    %s4216 = scalar_lea.vmem [#allocation12], 192
    %v4217 = vld [vmem:[%s4216] sm:$0xff]
    %v4218 = vld [vmem:[%s4216 + $0x8] sm:$0xff]
    %v4219 = vld [vmem:[%s4216 + $0x10] sm:$0xff]
    %v4220 = vld [vmem:[%s4216 + $0x18] sm:$0xff]
    %v4221 = vld [vmem:[%s4216 + $0x20] sm:$0xff]
    %v4222 = vld [vmem:[%s4216 + $0x28] sm:$0xff]
    %v4223 = vld [vmem:[%s4216 + $0x30] sm:$0xff]
    %v4224 = vld [vmem:[%s4216 + $0x38] sm:$0xff]
    %v4225 = vld [vmem:[#allocation2] sm:$0x3]
    %4226 = vmatprep.subr.mxu0 0.0
    %4227 = vmatpush1.msra.mxu0 %v4190
    %4228 = vmatprep.subr.mxu0 0.0
    %4229 = vmatpush1.msra.mxu0 %v4191
    %4230 = vmatprep.subr.mxu0 0.0
    %4231 = vmatpush1.msra.mxu0 %v4192
    %4232 = vmatprep.subr.mxu0 0.0
    %4233 = vmatpush1.msra.mxu0 %v4193
    %4234 = vmatprep.subr.mxu0 0.0
    %4235 = vmatpush1.msra.mxu0 %v4194
    %4236 = vmatprep.subr.mxu0 0.0
    %4237 = vmatpush1.msra.mxu0 %v4195
    %4238 = vmatprep.subr.mxu0 0.0
    %4239 = vmatpush1.msra.mxu0 %v4196
    %4240 = vmatprep.subr.mxu0 0.0
    %4241 = vmatpush1.msra.mxu0 %v4197
    %4242 = vmatprep.subr.mxu0 0.0
    %4243 = vmatpush1.msra.mxu0 0.0
    %4244 = vmatprep.subr.mxu0 0.0
    %4245 = vmatpush1.msra.mxu0 0.0
    %4246 = vmatprep.subr.mxu0 0.0
    %4247 = vmatpush1.msra.mxu0 0.0
    %4248 = vmatprep.subr.mxu0 0.0
    %4249 = vmatpush1.msra.mxu0 0.0
    %4250 = vmatprep.subr.mxu0 0.0
    %4251 = vmatpush1.msra.mxu0 0.0
    %4252 = vmatprep.subr.mxu0 0.0
    %4253 = vmatpush1.msra.mxu0 0.0
    %4254 = vmatprep.subr.mxu0 0.0
    %4255 = vmatpush1.msra.mxu0 0.0
    %4256 = vmatprep.subr.mxu0 0.0
    %4257 = vmatpush1.msra.mxu0 0.0
    %4258 = vmatprep.subr.mxu0 0.0
    %4259 = vmatpush1.msra.mxu0 0.0
    %4260 = vmatprep.subr.mxu0 0.0
    %4261 = vmatpush1.msra.mxu0 0.0
    %4262 = vmatprep.subr.mxu0 0.0
    %4263 = vmatpush1.msra.mxu0 0.0
    %4264 = vmatprep.subr.mxu0 0.0
    %4265 = vmatpush1.msra.mxu0 0.0
    %4266 = vmatprep.subr.mxu0 0.0
    %4267 = vmatpush1.msra.mxu0 0.0
    %4268 = vmatprep.subr.mxu0 0.0
    %4269 = vmatpush1.msra.mxu0 0.0
    %4270 = vmatprep.subr.mxu0 0.0
    %4271 = vmatpush1.msra.mxu0 0.0
    %4272 = vmatprep.subr.mxu0 0.0
    %4273 = vmatpush1.msra.mxu0 0.0
    %4274 = vmatprep.subr.mxu0 0.0
    %4275 = vmatpush1.msra.mxu0 0.0
    %4276 = vmatprep.subr.mxu0 0.0
    %4277 = vmatpush1.msra.mxu0 0.0
    %4278 = vmatprep.subr.mxu0 0.0
    %4279 = vmatpush1.msra.mxu0 0.0
    %4280 = vmatprep.subr.mxu0 0.0
    %4281 = vmatpush1.msra.mxu0 0.0
    %4282 = vmatprep.subr.mxu0 0.0
    %4283 = vmatpush1.msra.mxu0 0.0
    %4284 = vmatprep.subr.mxu0 0.0
    %4285 = vmatpush1.msra.mxu0 0.0
    %4286 = vmatprep.subr.mxu0 0.0
    %4287 = vmatpush1.msra.mxu0 0.0
    %4288 = vmatprep.subr.mxu0 0.0
    %4289 = vmatpush1.msra.mxu0 0.0
    %4290 = vmatprep.mubr.f32.mxu0 0.0
    %4291 = vmatmul.mubr.f32.gmra.mrb[0].mxu0 %v898
    %v4292 = vpop.f32.mrb[0].mxu0
    %v4293 = vadd.f32 %v4225, %v4292
    %v4294 = vpop.f32.mrb[0].mxu0
    %4295 = vdwg.mxu0
    %v4296 = vxor.u32 %v4293, 2147483648
    %v4297 = vmul.f32 %v4296, 1.442695
    %v4298 = vpow.pop %v4297
    %v4299 = vadd.f32 %v4298, 1.0
    %v4300 = vrcp.pop %v4299
    %v4301 = vmul.f32 1.0, %v4300
    %v4302 = vld [vmem:[%s472] sm:$0x3]
    %4303 = vmatprep.subr.mxu0 0.0
    %4304 = vmatpush1.msra.mxu0 %v4199
    %4305 = vmatprep.subr.mxu0 0.0
    %4306 = vmatpush1.msra.mxu0 %v4200
    %4307 = vmatprep.subr.mxu0 0.0
    %4308 = vmatpush1.msra.mxu0 %v4201
    %4309 = vmatprep.subr.mxu0 0.0
    %4310 = vmatpush1.msra.mxu0 %v4202
    %4311 = vmatprep.subr.mxu0 0.0
    %4312 = vmatpush1.msra.mxu0 %v4203
    %4313 = vmatprep.subr.mxu0 0.0
    %4314 = vmatpush1.msra.mxu0 %v4204
    %4315 = vmatprep.subr.mxu0 0.0
    %4316 = vmatpush1.msra.mxu0 %v4205
    %4317 = vmatprep.subr.mxu0 0.0
    %4318 = vmatpush1.msra.mxu0 %v4206
    %4319 = vmatprep.subr.mxu0 0.0
    %4320 = vmatpush1.msra.mxu0 0.0
    %4321 = vmatprep.subr.mxu0 0.0
    %4322 = vmatpush1.msra.mxu0 0.0
    %4323 = vmatprep.subr.mxu0 0.0
    %4324 = vmatpush1.msra.mxu0 0.0
    %4325 = vmatprep.subr.mxu0 0.0
    %4326 = vmatpush1.msra.mxu0 0.0
    %4327 = vmatprep.subr.mxu0 0.0
    %4328 = vmatpush1.msra.mxu0 0.0
    %4329 = vmatprep.subr.mxu0 0.0
    %4330 = vmatpush1.msra.mxu0 0.0
    %4331 = vmatprep.subr.mxu0 0.0
    %4332 = vmatpush1.msra.mxu0 0.0
    %4333 = vmatprep.subr.mxu0 0.0
    %4334 = vmatpush1.msra.mxu0 0.0
    %4335 = vmatprep.subr.mxu0 0.0
    %4336 = vmatpush1.msra.mxu0 0.0
    %4337 = vmatprep.subr.mxu0 0.0
    %4338 = vmatpush1.msra.mxu0 0.0
    %4339 = vmatprep.subr.mxu0 0.0
    %4340 = vmatpush1.msra.mxu0 0.0
    %4341 = vmatprep.subr.mxu0 0.0
    %4342 = vmatpush1.msra.mxu0 0.0
    %4343 = vmatprep.subr.mxu0 0.0
    %4344 = vmatpush1.msra.mxu0 0.0
    %4345 = vmatprep.subr.mxu0 0.0
    %4346 = vmatpush1.msra.mxu0 0.0
    %4347 = vmatprep.subr.mxu0 0.0
    %4348 = vmatpush1.msra.mxu0 0.0
    %4349 = vmatprep.subr.mxu0 0.0
    %4350 = vmatpush1.msra.mxu0 0.0
    %4351 = vmatprep.subr.mxu0 0.0
    %4352 = vmatpush1.msra.mxu0 0.0
    %4353 = vmatprep.subr.mxu0 0.0
    %4354 = vmatpush1.msra.mxu0 0.0
    %4355 = vmatprep.subr.mxu0 0.0
    %4356 = vmatpush1.msra.mxu0 0.0
    %4357 = vmatprep.subr.mxu0 0.0
    %4358 = vmatpush1.msra.mxu0 0.0
    %4359 = vmatprep.subr.mxu0 0.0
    %4360 = vmatpush1.msra.mxu0 0.0
    %4361 = vmatprep.subr.mxu0 0.0
    %4362 = vmatpush1.msra.mxu0 0.0
    %4363 = vmatprep.subr.mxu0 0.0
    %4364 = vmatpush1.msra.mxu0 0.0
    %4365 = vmatprep.subr.mxu0 0.0
    %4366 = vmatpush1.msra.mxu0 0.0
    %4367 = vmatprep.mubr.f32.mxu0 0.0
    %4368 = vmatmul.mubr.f32.gmra.mrb[0].mxu0 %v898
    %v4369 = vpop.f32.mrb[0].mxu0
    %v4370 = vadd.f32 %v4302, %v4369
    %v4371 = vpop.f32.mrb[0].mxu0
    %4372 = vdwg.mxu0
    %v4373 = vxor.u32 %v4370, 2147483648
    %v4374 = vmul.f32 %v4373, 1.442695
    %v4375 = vpow.pop %v4374
    %v4376 = vadd.f32 %v4375, 1.0
    %v4377 = vrcp.pop %v4376
    %v4378 = vmul.f32 1.0, %v4377
    %v4379 = vld [vmem:[%s658] sm:$0x3]
    %4380 = vmatprep.subr.mxu0 0.0
    %4381 = vmatpush1.msra.mxu0 %v4208
    %4382 = vmatprep.subr.mxu0 0.0
    %4383 = vmatpush1.msra.mxu0 %v4209
    %4384 = vmatprep.subr.mxu0 0.0
    %4385 = vmatpush1.msra.mxu0 %v4210
    %4386 = vmatprep.subr.mxu0 0.0
    %4387 = vmatpush1.msra.mxu0 %v4211
    %4388 = vmatprep.subr.mxu0 0.0
    %4389 = vmatpush1.msra.mxu0 %v4212
    %4390 = vmatprep.subr.mxu0 0.0
    %4391 = vmatpush1.msra.mxu0 %v4213
    %4392 = vmatprep.subr.mxu0 0.0
    %4393 = vmatpush1.msra.mxu0 %v4214
    %4394 = vmatprep.subr.mxu0 0.0
    %4395 = vmatpush1.msra.mxu0 %v4215
    %4396 = vmatprep.subr.mxu0 0.0
    %4397 = vmatpush1.msra.mxu0 0.0
    %4398 = vmatprep.subr.mxu0 0.0
    %4399 = vmatpush1.msra.mxu0 0.0
    %4400 = vmatprep.subr.mxu0 0.0
    %4401 = vmatpush1.msra.mxu0 0.0
    %4402 = vmatprep.subr.mxu0 0.0
    %4403 = vmatpush1.msra.mxu0 0.0
    %4404 = vmatprep.subr.mxu0 0.0
    %4405 = vmatpush1.msra.mxu0 0.0
    %4406 = vmatprep.subr.mxu0 0.0
    %4407 = vmatpush1.msra.mxu0 0.0
    %4408 = vmatprep.subr.mxu0 0.0
    %4409 = vmatpush1.msra.mxu0 0.0
    %4410 = vmatprep.subr.mxu0 0.0
    %4411 = vmatpush1.msra.mxu0 0.0
    %4412 = vmatprep.subr.mxu0 0.0
    %4413 = vmatpush1.msra.mxu0 0.0
    %4414 = vmatprep.subr.mxu0 0.0
    %4415 = vmatpush1.msra.mxu0 0.0
    %4416 = vmatprep.subr.mxu0 0.0
    %4417 = vmatpush1.msra.mxu0 0.0
    %4418 = vmatprep.subr.mxu0 0.0
    %4419 = vmatpush1.msra.mxu0 0.0
    %4420 = vmatprep.subr.mxu0 0.0
    %4421 = vmatpush1.msra.mxu0 0.0
    %4422 = vmatprep.subr.mxu0 0.0
    %4423 = vmatpush1.msra.mxu0 0.0
    %4424 = vmatprep.subr.mxu0 0.0
    %4425 = vmatpush1.msra.mxu0 0.0
    %4426 = vmatprep.subr.mxu0 0.0
    %4427 = vmatpush1.msra.mxu0 0.0
    %4428 = vmatprep.subr.mxu0 0.0
    %4429 = vmatpush1.msra.mxu0 0.0
    %4430 = vmatprep.subr.mxu0 0.0
    %4431 = vmatpush1.msra.mxu0 0.0
    %4432 = vmatprep.subr.mxu0 0.0
    %4433 = vmatpush1.msra.mxu0 0.0
    %4434 = vmatprep.subr.mxu0 0.0
    %4435 = vmatpush1.msra.mxu0 0.0
    %4436 = vmatprep.subr.mxu0 0.0
    %4437 = vmatpush1.msra.mxu0 0.0
    %4438 = vmatprep.subr.mxu0 0.0
    %4439 = vmatpush1.msra.mxu0 0.0
    %4440 = vmatprep.subr.mxu0 0.0
    %4441 = vmatpush1.msra.mxu0 0.0
    %4442 = vmatprep.subr.mxu0 0.0
    %4443 = vmatpush1.msra.mxu0 0.0
    %4444 = vmatprep.mubr.f32.mxu0 0.0
    %4445 = vmatmul.mubr.f32.gmra.mrb[0].mxu0 %v898
    %v4446 = vpop.f32.mrb[0].mxu0
    %v4447 = vadd.f32 %v4379, %v4446
    %v4448 = vpop.f32.mrb[0].mxu0
    %4449 = vdwg.mxu0
    %v4450 = vtanh.pop %v4447
    %v4451 = vld [vmem:[%s844] sm:$0x3]
    %4452 = vmatprep.subr.mxu0 0.0
    %4453 = vmatpush1.msra.mxu0 %v4217
    %4454 = vmatprep.subr.mxu0 0.0
    %4455 = vmatpush1.msra.mxu0 %v4218
    %4456 = vmatprep.subr.mxu0 0.0
    %4457 = vmatpush1.msra.mxu0 %v4219
    %4458 = vmatprep.subr.mxu0 0.0
    %4459 = vmatpush1.msra.mxu0 %v4220
    %4460 = vmatprep.subr.mxu0 0.0
    %4461 = vmatpush1.msra.mxu0 %v4221
    %4462 = vmatprep.subr.mxu0 0.0
    %4463 = vmatpush1.msra.mxu0 %v4222
    %4464 = vmatprep.subr.mxu0 0.0
    %4465 = vmatpush1.msra.mxu0 %v4223
    %4466 = vmatprep.subr.mxu0 0.0
    %4467 = vmatpush1.msra.mxu0 %v4224
    %4468 = vmatprep.subr.mxu0 0.0
    %4469 = vmatpush1.msra.mxu0 0.0
    %4470 = vmatprep.subr.mxu0 0.0
    %4471 = vmatpush1.msra.mxu0 0.0
    %4472 = vmatprep.subr.mxu0 0.0
    %4473 = vmatpush1.msra.mxu0 0.0
    %4474 = vmatprep.subr.mxu0 0.0
    %4475 = vmatpush1.msra.mxu0 0.0
    %4476 = vmatprep.subr.mxu0 0.0
    %4477 = vmatpush1.msra.mxu0 0.0
    %4478 = vmatprep.subr.mxu0 0.0
    %4479 = vmatpush1.msra.mxu0 0.0
    %4480 = vmatprep.subr.mxu0 0.0
    %4481 = vmatpush1.msra.mxu0 0.0
    %4482 = vmatprep.subr.mxu0 0.0
    %4483 = vmatpush1.msra.mxu0 0.0
    %4484 = vmatprep.subr.mxu0 0.0
    %4485 = vmatpush1.msra.mxu0 0.0
    %4486 = vmatprep.subr.mxu0 0.0
    %4487 = vmatpush1.msra.mxu0 0.0
    %4488 = vmatprep.subr.mxu0 0.0
    %4489 = vmatpush1.msra.mxu0 0.0
    %4490 = vmatprep.subr.mxu0 0.0
    %4491 = vmatpush1.msra.mxu0 0.0
    %4492 = vmatprep.subr.mxu0 0.0
    %4493 = vmatpush1.msra.mxu0 0.0
    %4494 = vmatprep.subr.mxu0 0.0
    %4495 = vmatpush1.msra.mxu0 0.0
    %4496 = vmatprep.subr.mxu0 0.0
    %4497 = vmatpush1.msra.mxu0 0.0
    %4498 = vmatprep.subr.mxu0 0.0
    %4499 = vmatpush1.msra.mxu0 0.0
    %4500 = vmatprep.subr.mxu0 0.0
    %4501 = vmatpush1.msra.mxu0 0.0
    %4502 = vmatprep.subr.mxu0 0.0
    %4503 = vmatpush1.msra.mxu0 0.0
    %4504 = vmatprep.subr.mxu0 0.0
    %4505 = vmatpush1.msra.mxu0 0.0
    %4506 = vmatprep.subr.mxu0 0.0
    %4507 = vmatpush1.msra.mxu0 0.0
    %4508 = vmatprep.subr.mxu0 0.0
    %4509 = vmatpush1.msra.mxu0 0.0
    %4510 = vmatprep.subr.mxu0 0.0
    %4511 = vmatpush1.msra.mxu0 0.0
    %4512 = vmatprep.subr.mxu0 0.0
    %4513 = vmatpush1.msra.mxu0 0.0
    %4514 = vmatprep.subr.mxu0 0.0
    %4515 = vmatpush1.msra.mxu0 0.0
    %4516 = vmatprep.mubr.f32.mxu0 0.0
    %4517 = vmatmul.mubr.f32.gmra.mrb[0].mxu0 %v898
    %v4518 = vpop.f32.mrb[0].mxu0
    %v4519 = vadd.f32 %v4451, %v4518
    %v4520 = vpop.f32.mrb[0].mxu0
    %4521 = vdwg.mxu0
    %v4522 = vxor.u32 %v4519, 2147483648
    %v4523 = vmul.f32 %v4522, 1.442695
    %v4524 = vpow.pop %v4523
    %v4525 = vadd.f32 %v4524, 1.0
    %v4526 = vrcp.pop %v4525
    %v4527 = vmul.f32 1.0, %v4526
    %v4528 = vmul.f32 %v4378, 0.0
    %v4529 = vmul.f32 %v4301, %v4450
    %v4530 = vadd.f32 %v4528, %v4529
    %v4531 = vtanh.pop %v4530
    %v4532 = vmul.f32 %v4527, %v4531
    %4533 = vst.msk [vmem:[#allocation3] sm:$0x3] %vm1207, %v4532
    %4534 = vst.msk [vmem:[%s1209] sm:$0x3] %vm1210, %v4532
    %v4535 = vld [vmem:[%s285] sm:$0x3]
    %v4537 = vsel %vm896, %v4532, 0
    %4539 = vmatprep.subr.mxu0 0.0
    %4540 = vmatpush1.msra.mxu0 %v4190
    %4541 = vmatprep.subr.mxu0 0.0
    %4542 = vmatpush1.msra.mxu0 %v4191
    %4543 = vmatprep.subr.mxu0 0.0
    %4544 = vmatpush1.msra.mxu0 %v4192
    %4545 = vmatprep.subr.mxu0 0.0
    %4546 = vmatpush1.msra.mxu0 %v4193
    %4547 = vmatprep.subr.mxu0 0.0
    %4548 = vmatpush1.msra.mxu0 %v4194
    %4549 = vmatprep.subr.mxu0 0.0
    %4550 = vmatpush1.msra.mxu0 %v4195
    %4551 = vmatprep.subr.mxu0 0.0
    %4552 = vmatpush1.msra.mxu0 %v4196
    %4553 = vmatprep.subr.mxu0 0.0
    %4554 = vmatpush1.msra.mxu0 %v4197
    %4555 = vmatprep.subr.mxu0 0.0
    %4556 = vmatpush1.msra.mxu0 0.0
    %4557 = vmatprep.subr.mxu0 0.0
    %4558 = vmatpush1.msra.mxu0 0.0
    %4559 = vmatprep.subr.mxu0 0.0
    %4560 = vmatpush1.msra.mxu0 0.0
    %4561 = vmatprep.subr.mxu0 0.0
    %4562 = vmatpush1.msra.mxu0 0.0
    %4563 = vmatprep.subr.mxu0 0.0
    %4564 = vmatpush1.msra.mxu0 0.0
    %4565 = vmatprep.subr.mxu0 0.0
    %4566 = vmatpush1.msra.mxu0 0.0
    %4567 = vmatprep.subr.mxu0 0.0
    %4568 = vmatpush1.msra.mxu0 0.0
    %4569 = vmatprep.subr.mxu0 0.0
    %4570 = vmatpush1.msra.mxu0 0.0
    %4571 = vmatprep.subr.mxu0 0.0
    %4572 = vmatpush1.msra.mxu0 0.0
    %4573 = vmatprep.subr.mxu0 0.0
    %4574 = vmatpush1.msra.mxu0 0.0
    %4575 = vmatprep.subr.mxu0 0.0
    %4576 = vmatpush1.msra.mxu0 0.0
    %4577 = vmatprep.subr.mxu0 0.0
    %4578 = vmatpush1.msra.mxu0 0.0
    %4579 = vmatprep.subr.mxu0 0.0
    %4580 = vmatpush1.msra.mxu0 0.0
    %4581 = vmatprep.subr.mxu0 0.0
    %4582 = vmatpush1.msra.mxu0 0.0
    %4583 = vmatprep.subr.mxu0 0.0
    %4584 = vmatpush1.msra.mxu0 0.0
    %4585 = vmatprep.subr.mxu0 0.0
    %4586 = vmatpush1.msra.mxu0 0.0
    %4587 = vmatprep.subr.mxu0 0.0
    %4588 = vmatpush1.msra.mxu0 0.0
    %4589 = vmatprep.subr.mxu0 0.0
    %4590 = vmatpush1.msra.mxu0 0.0
    %4591 = vmatprep.subr.mxu0 0.0
    %4592 = vmatpush1.msra.mxu0 0.0
    %4593 = vmatprep.subr.mxu0 0.0
    %4594 = vmatpush1.msra.mxu0 0.0
    %4595 = vmatprep.subr.mxu0 0.0
    %4596 = vmatpush1.msra.mxu0 0.0
    %4597 = vmatprep.subr.mxu0 0.0
    %4598 = vmatpush1.msra.mxu0 0.0
    %4599 = vmatprep.subr.mxu0 0.0
    %4600 = vmatpush1.msra.mxu0 0.0
    %4601 = vmatprep.subr.mxu0 0.0
    %4602 = vmatpush1.msra.mxu0 0.0
    %4603 = vmatprep.mubr.f32.mxu0 0.0
    %4604 = vmatmul.mubr.f32.gmra.mrb[0].mxu0 %v4537
    %v4605 = vpop.f32.mrb[0].mxu0
    %v4606 = vadd.f32 %v4535, %v4605
    %v4607 = vpop.f32.mrb[0].mxu0
    %4608 = vdwg.mxu0
    %v4609 = vxor.u32 %v4606, 2147483648
    %v4610 = vmul.f32 %v4609, 1.442695
    %v4611 = vpow.pop %v4610
    %v4612 = vadd.f32 %v4611, 1.0
    %v4613 = vrcp.pop %v4612
    %v4614 = vmul.f32 1.0, %v4613
    %v4615 = vld [vmem:[%s474] sm:$0x3]
    %4616 = vmatprep.subr.mxu0 0.0
    %4617 = vmatpush1.msra.mxu0 %v4199
    %4618 = vmatprep.subr.mxu0 0.0
    %4619 = vmatpush1.msra.mxu0 %v4200
    %4620 = vmatprep.subr.mxu0 0.0
    %4621 = vmatpush1.msra.mxu0 %v4201
    %4622 = vmatprep.subr.mxu0 0.0
    %4623 = vmatpush1.msra.mxu0 %v4202
    %4624 = vmatprep.subr.mxu0 0.0
    %4625 = vmatpush1.msra.mxu0 %v4203
    %4626 = vmatprep.subr.mxu0 0.0
    %4627 = vmatpush1.msra.mxu0 %v4204
    %4628 = vmatprep.subr.mxu0 0.0
    %4629 = vmatpush1.msra.mxu0 %v4205
    %4630 = vmatprep.subr.mxu0 0.0
    %4631 = vmatpush1.msra.mxu0 %v4206
    %4632 = vmatprep.subr.mxu0 0.0
    %4633 = vmatpush1.msra.mxu0 0.0
    %4634 = vmatprep.subr.mxu0 0.0
    %4635 = vmatpush1.msra.mxu0 0.0
    %4636 = vmatprep.subr.mxu0 0.0
    %4637 = vmatpush1.msra.mxu0 0.0
    %4638 = vmatprep.subr.mxu0 0.0
    %4639 = vmatpush1.msra.mxu0 0.0
    %4640 = vmatprep.subr.mxu0 0.0
    %4641 = vmatpush1.msra.mxu0 0.0
    %4642 = vmatprep.subr.mxu0 0.0
    %4643 = vmatpush1.msra.mxu0 0.0
    %4644 = vmatprep.subr.mxu0 0.0
    %4645 = vmatpush1.msra.mxu0 0.0
    %4646 = vmatprep.subr.mxu0 0.0
    %4647 = vmatpush1.msra.mxu0 0.0
    %4648 = vmatprep.subr.mxu0 0.0
    %4649 = vmatpush1.msra.mxu0 0.0
    %4650 = vmatprep.subr.mxu0 0.0
    %4651 = vmatpush1.msra.mxu0 0.0
    %4652 = vmatprep.subr.mxu0 0.0
    %4653 = vmatpush1.msra.mxu0 0.0
    %4654 = vmatprep.subr.mxu0 0.0
    %4655 = vmatpush1.msra.mxu0 0.0
    %4656 = vmatprep.subr.mxu0 0.0
    %4657 = vmatpush1.msra.mxu0 0.0
    %4658 = vmatprep.subr.mxu0 0.0
    %4659 = vmatpush1.msra.mxu0 0.0
    %4660 = vmatprep.subr.mxu0 0.0
    %4661 = vmatpush1.msra.mxu0 0.0
    %4662 = vmatprep.subr.mxu0 0.0
    %4663 = vmatpush1.msra.mxu0 0.0
    %4664 = vmatprep.subr.mxu0 0.0
    %4665 = vmatpush1.msra.mxu0 0.0
    %4666 = vmatprep.subr.mxu0 0.0
    %4667 = vmatpush1.msra.mxu0 0.0
    %4668 = vmatprep.subr.mxu0 0.0
    %4669 = vmatpush1.msra.mxu0 0.0
    %4670 = vmatprep.subr.mxu0 0.0
    %4671 = vmatpush1.msra.mxu0 0.0
    %4672 = vmatprep.subr.mxu0 0.0
    %4673 = vmatpush1.msra.mxu0 0.0
    %4674 = vmatprep.subr.mxu0 0.0
    %4675 = vmatpush1.msra.mxu0 0.0
    %4676 = vmatprep.subr.mxu0 0.0
    %4677 = vmatpush1.msra.mxu0 0.0
    %4678 = vmatprep.subr.mxu0 0.0
    %4679 = vmatpush1.msra.mxu0 0.0
    %4680 = vmatprep.mubr.f32.mxu0 0.0
    %4681 = vmatmul.mubr.f32.gmra.mrb[0].mxu0 %v4537
    %v4682 = vpop.f32.mrb[0].mxu0
    %v4683 = vadd.f32 %v4615, %v4682
    %v4684 = vpop.f32.mrb[0].mxu0
    %4685 = vdwg.mxu0
    %v4686 = vxor.u32 %v4683, 2147483648
    %v4687 = vmul.f32 %v4686, 1.442695
    %v4688 = vpow.pop %v4687
    %v4689 = vadd.f32 %v4688, 1.0
    %v4690 = vrcp.pop %v4689
    %v4691 = vmul.f32 1.0, %v4690
    %v4692 = vld [vmem:[%s660] sm:$0x3]
    %4693 = vmatprep.subr.mxu0 0.0
    %4694 = vmatpush1.msra.mxu0 %v4208
    %4695 = vmatprep.subr.mxu0 0.0
    %4696 = vmatpush1.msra.mxu0 %v4209
    %4697 = vmatprep.subr.mxu0 0.0
    %4698 = vmatpush1.msra.mxu0 %v4210
    %4699 = vmatprep.subr.mxu0 0.0
    %4700 = vmatpush1.msra.mxu0 %v4211
    %4701 = vmatprep.subr.mxu0 0.0
    %4702 = vmatpush1.msra.mxu0 %v4212
    %4703 = vmatprep.subr.mxu0 0.0
    %4704 = vmatpush1.msra.mxu0 %v4213
    %4705 = vmatprep.subr.mxu0 0.0
    %4706 = vmatpush1.msra.mxu0 %v4214
    %4707 = vmatprep.subr.mxu0 0.0
    %4708 = vmatpush1.msra.mxu0 %v4215
    %4709 = vmatprep.subr.mxu0 0.0
    %4710 = vmatpush1.msra.mxu0 0.0
    %4711 = vmatprep.subr.mxu0 0.0
    %4712 = vmatpush1.msra.mxu0 0.0
    %4713 = vmatprep.subr.mxu0 0.0
    %4714 = vmatpush1.msra.mxu0 0.0
    %4715 = vmatprep.subr.mxu0 0.0
    %4716 = vmatpush1.msra.mxu0 0.0
    %4717 = vmatprep.subr.mxu0 0.0
    %4718 = vmatpush1.msra.mxu0 0.0
    %4719 = vmatprep.subr.mxu0 0.0
    %4720 = vmatpush1.msra.mxu0 0.0
    %4721 = vmatprep.subr.mxu0 0.0
    %4722 = vmatpush1.msra.mxu0 0.0
    %4723 = vmatprep.subr.mxu0 0.0
    %4724 = vmatpush1.msra.mxu0 0.0
    %4725 = vmatprep.subr.mxu0 0.0
    %4726 = vmatpush1.msra.mxu0 0.0
    %4727 = vmatprep.subr.mxu0 0.0
    %4728 = vmatpush1.msra.mxu0 0.0
    %4729 = vmatprep.subr.mxu0 0.0
    %4730 = vmatpush1.msra.mxu0 0.0
    %4731 = vmatprep.subr.mxu0 0.0
    %4732 = vmatpush1.msra.mxu0 0.0
    %4733 = vmatprep.subr.mxu0 0.0
    %4734 = vmatpush1.msra.mxu0 0.0
    %4735 = vmatprep.subr.mxu0 0.0
    %4736 = vmatpush1.msra.mxu0 0.0
    %4737 = vmatprep.subr.mxu0 0.0
    %4738 = vmatpush1.msra.mxu0 0.0
    %4739 = vmatprep.subr.mxu0 0.0
    %4740 = vmatpush1.msra.mxu0 0.0
    %4741 = vmatprep.subr.mxu0 0.0
    %4742 = vmatpush1.msra.mxu0 0.0
    %4743 = vmatprep.subr.mxu0 0.0
    %4744 = vmatpush1.msra.mxu0 0.0
    %4745 = vmatprep.subr.mxu0 0.0
    %4746 = vmatpush1.msra.mxu0 0.0
    %4747 = vmatprep.subr.mxu0 0.0
    %4748 = vmatpush1.msra.mxu0 0.0
    %4749 = vmatprep.subr.mxu0 0.0
    %4750 = vmatpush1.msra.mxu0 0.0
    %4751 = vmatprep.subr.mxu0 0.0
    %4752 = vmatpush1.msra.mxu0 0.0
    %4753 = vmatprep.subr.mxu0 0.0
    %4754 = vmatpush1.msra.mxu0 0.0
    %4755 = vmatprep.subr.mxu0 0.0
    %4756 = vmatpush1.msra.mxu0 0.0
    %4757 = vmatprep.mubr.f32.mxu0 0.0
    %4758 = vmatmul.mubr.f32.gmra.mrb[0].mxu0 %v4537
    %v4759 = vpop.f32.mrb[0].mxu0
    %v4760 = vadd.f32 %v4692, %v4759
    %v4761 = vpop.f32.mrb[0].mxu0
    %4762 = vdwg.mxu0
    %v4763 = vtanh.pop %v4760
    %v4764 = vld [vmem:[%s846] sm:$0x3]
    %4765 = vmatprep.subr.mxu0 0.0
    %4766 = vmatpush1.msra.mxu0 %v4217
    %4767 = vmatprep.subr.mxu0 0.0
    %4768 = vmatpush1.msra.mxu0 %v4218
    %4769 = vmatprep.subr.mxu0 0.0
    %4770 = vmatpush1.msra.mxu0 %v4219
    %4771 = vmatprep.subr.mxu0 0.0
    %4772 = vmatpush1.msra.mxu0 %v4220
    %4773 = vmatprep.subr.mxu0 0.0
    %4774 = vmatpush1.msra.mxu0 %v4221
    %4775 = vmatprep.subr.mxu0 0.0
    %4776 = vmatpush1.msra.mxu0 %v4222
    %4777 = vmatprep.subr.mxu0 0.0
    %4778 = vmatpush1.msra.mxu0 %v4223
    %4779 = vmatprep.subr.mxu0 0.0
    %4780 = vmatpush1.msra.mxu0 %v4224
    %4781 = vmatprep.subr.mxu0 0.0
    %4782 = vmatpush1.msra.mxu0 0.0
    %4783 = vmatprep.subr.mxu0 0.0
    %4784 = vmatpush1.msra.mxu0 0.0
    %4785 = vmatprep.subr.mxu0 0.0
    %4786 = vmatpush1.msra.mxu0 0.0
    %4787 = vmatprep.subr.mxu0 0.0
    %4788 = vmatpush1.msra.mxu0 0.0
    %4789 = vmatprep.subr.mxu0 0.0
    %4790 = vmatpush1.msra.mxu0 0.0
    %4791 = vmatprep.subr.mxu0 0.0
    %4792 = vmatpush1.msra.mxu0 0.0
    %4793 = vmatprep.subr.mxu0 0.0
    %4794 = vmatpush1.msra.mxu0 0.0
    %4795 = vmatprep.subr.mxu0 0.0
    %4796 = vmatpush1.msra.mxu0 0.0
    %4797 = vmatprep.subr.mxu0 0.0
    %4798 = vmatpush1.msra.mxu0 0.0
    %4799 = vmatprep.subr.mxu0 0.0
    %4800 = vmatpush1.msra.mxu0 0.0
    %4801 = vmatprep.subr.mxu0 0.0
    %4802 = vmatpush1.msra.mxu0 0.0
    %4803 = vmatprep.subr.mxu0 0.0
    %4804 = vmatpush1.msra.mxu0 0.0
    %4805 = vmatprep.subr.mxu0 0.0
    %4806 = vmatpush1.msra.mxu0 0.0
    %4807 = vmatprep.subr.mxu0 0.0
    %4808 = vmatpush1.msra.mxu0 0.0
    %4809 = vmatprep.subr.mxu0 0.0
    %4810 = vmatpush1.msra.mxu0 0.0
    %4811 = vmatprep.subr.mxu0 0.0
    %4812 = vmatpush1.msra.mxu0 0.0
    %4813 = vmatprep.subr.mxu0 0.0
    %4814 = vmatpush1.msra.mxu0 0.0
    %4815 = vmatprep.subr.mxu0 0.0
    %4816 = vmatpush1.msra.mxu0 0.0
    %4817 = vmatprep.subr.mxu0 0.0
    %4818 = vmatpush1.msra.mxu0 0.0
    %4819 = vmatprep.subr.mxu0 0.0
    %4820 = vmatpush1.msra.mxu0 0.0
    %4821 = vmatprep.subr.mxu0 0.0
    %4822 = vmatpush1.msra.mxu0 0.0
    %4823 = vmatprep.subr.mxu0 0.0
    %4824 = vmatpush1.msra.mxu0 0.0
    %4825 = vmatprep.subr.mxu0 0.0
    %4826 = vmatpush1.msra.mxu0 0.0
    %4827 = vmatprep.subr.mxu0 0.0
    %4828 = vmatpush1.msra.mxu0 0.0
    %4829 = vmatprep.mubr.f32.mxu0 0.0
    %4830 = vmatmul.mubr.f32.gmra.mrb[0].mxu0 %v4537
    %v4831 = vpop.f32.mrb[0].mxu0
    %v4832 = vadd.f32 %v4764, %v4831
    %v4833 = vpop.f32.mrb[0].mxu0
    %4834 = vdwg.mxu0
    %v4835 = vxor.u32 %v4832, 2147483648
    %v4836 = vmul.f32 %v4835, 1.442695
    %v4837 = vpow.pop %v4836
    %v4838 = vadd.f32 %v4837, 1.0
    %v4839 = vrcp.pop %v4838
    %v4840 = vmul.f32 1.0, %v4839
    %v4841 = vmul.f32 %v4691, %v4530
    %v4842 = vmul.f32 %v4614, %v4763
    %v4843 = vadd.f32 %v4841, %v4842
    %v4844 = vtanh.pop %v4843
    %v4845 = vmul.f32 %v4840, %v4844
    %4846 = vst.msk [vmem:[%s1523] sm:$0x3] %vm1207, %v4845
    %4847 = vst.msk [vmem:[%s1525] sm:$0x3] %vm1210, %v4845
    %v4848 = vld [vmem:[%s288] sm:$0x3]
    %v4850 = vsel %vm896, %v4845, 0
    %4852 = vmatprep.subr.mxu0 0.0
    %4853 = vmatpush1.msra.mxu0 %v4190
    %4854 = vmatprep.subr.mxu0 0.0
    %4855 = vmatpush1.msra.mxu0 %v4191
    %4856 = vmatprep.subr.mxu0 0.0
    %4857 = vmatpush1.msra.mxu0 %v4192
    %4858 = vmatprep.subr.mxu0 0.0
    %4859 = vmatpush1.msra.mxu0 %v4193
    %4860 = vmatprep.subr.mxu0 0.0
    %4861 = vmatpush1.msra.mxu0 %v4194
    %4862 = vmatprep.subr.mxu0 0.0
    %4863 = vmatpush1.msra.mxu0 %v4195
    %4864 = vmatprep.subr.mxu0 0.0
    %4865 = vmatpush1.msra.mxu0 %v4196
    %4866 = vmatprep.subr.mxu0 0.0
    %4867 = vmatpush1.msra.mxu0 %v4197
    %4868 = vmatprep.subr.mxu0 0.0
    %4869 = vmatpush1.msra.mxu0 0.0
    %4870 = vmatprep.subr.mxu0 0.0
    %4871 = vmatpush1.msra.mxu0 0.0
    %4872 = vmatprep.subr.mxu0 0.0
    %4873 = vmatpush1.msra.mxu0 0.0
    %4874 = vmatprep.subr.mxu0 0.0
    %4875 = vmatpush1.msra.mxu0 0.0
    %4876 = vmatprep.subr.mxu0 0.0
    %4877 = vmatpush1.msra.mxu0 0.0
    %4878 = vmatprep.subr.mxu0 0.0
    %4879 = vmatpush1.msra.mxu0 0.0
    %4880 = vmatprep.subr.mxu0 0.0
    %4881 = vmatpush1.msra.mxu0 0.0
    %4882 = vmatprep.subr.mxu0 0.0
    %4883 = vmatpush1.msra.mxu0 0.0
    %4884 = vmatprep.subr.mxu0 0.0
    %4885 = vmatpush1.msra.mxu0 0.0
    %4886 = vmatprep.subr.mxu0 0.0
    %4887 = vmatpush1.msra.mxu0 0.0
    %4888 = vmatprep.subr.mxu0 0.0
    %4889 = vmatpush1.msra.mxu0 0.0
    %4890 = vmatprep.subr.mxu0 0.0
    %4891 = vmatpush1.msra.mxu0 0.0
    %4892 = vmatprep.subr.mxu0 0.0
    %4893 = vmatpush1.msra.mxu0 0.0
    %4894 = vmatprep.subr.mxu0 0.0
    %4895 = vmatpush1.msra.mxu0 0.0
    %4896 = vmatprep.subr.mxu0 0.0
    %4897 = vmatpush1.msra.mxu0 0.0
    %4898 = vmatprep.subr.mxu0 0.0
    %4899 = vmatpush1.msra.mxu0 0.0
    %4900 = vmatprep.subr.mxu0 0.0
    %4901 = vmatpush1.msra.mxu0 0.0
    %4902 = vmatprep.subr.mxu0 0.0
    %4903 = vmatpush1.msra.mxu0 0.0
    %4904 = vmatprep.subr.mxu0 0.0
    %4905 = vmatpush1.msra.mxu0 0.0
    %4906 = vmatprep.subr.mxu0 0.0
    %4907 = vmatpush1.msra.mxu0 0.0
    %4908 = vmatprep.subr.mxu0 0.0
    %4909 = vmatpush1.msra.mxu0 0.0
    %4910 = vmatprep.subr.mxu0 0.0
    %4911 = vmatpush1.msra.mxu0 0.0
    %4912 = vmatprep.subr.mxu0 0.0
    %4913 = vmatpush1.msra.mxu0 0.0
    %4914 = vmatprep.subr.mxu0 0.0
    %4915 = vmatpush1.msra.mxu0 0.0
    %4916 = vmatprep.mubr.f32.mxu0 0.0
    %4917 = vmatmul.mubr.f32.gmra.mrb[0].mxu0 %v4850
    %v4918 = vpop.f32.mrb[0].mxu0
    %v4919 = vadd.f32 %v4848, %v4918
    %v4920 = vpop.f32.mrb[0].mxu0
    %4921 = vdwg.mxu0
    %v4922 = vxor.u32 %v4919, 2147483648
    %v4923 = vmul.f32 %v4922, 1.442695
    %v4924 = vpow.pop %v4923
    %v4925 = vadd.f32 %v4924, 1.0
    %v4926 = vrcp.pop %v4925
    %v4927 = vmul.f32 1.0, %v4926
    %v4928 = vld [vmem:[%s476] sm:$0x3]
    %4929 = vmatprep.subr.mxu0 0.0
    %4930 = vmatpush1.msra.mxu0 %v4199
    %4931 = vmatprep.subr.mxu0 0.0
    %4932 = vmatpush1.msra.mxu0 %v4200
    %4933 = vmatprep.subr.mxu0 0.0
    %4934 = vmatpush1.msra.mxu0 %v4201
    %4935 = vmatprep.subr.mxu0 0.0
    %4936 = vmatpush1.msra.mxu0 %v4202
    %4937 = vmatprep.subr.mxu0 0.0
    %4938 = vmatpush1.msra.mxu0 %v4203
    %4939 = vmatprep.subr.mxu0 0.0
    %4940 = vmatpush1.msra.mxu0 %v4204
    %4941 = vmatprep.subr.mxu0 0.0
    %4942 = vmatpush1.msra.mxu0 %v4205
    %4943 = vmatprep.subr.mxu0 0.0
    %4944 = vmatpush1.msra.mxu0 %v4206
    %4945 = vmatprep.subr.mxu0 0.0
    %4946 = vmatpush1.msra.mxu0 0.0
    %4947 = vmatprep.subr.mxu0 0.0
    %4948 = vmatpush1.msra.mxu0 0.0
    %4949 = vmatprep.subr.mxu0 0.0
    %4950 = vmatpush1.msra.mxu0 0.0
    %4951 = vmatprep.subr.mxu0 0.0
    %4952 = vmatpush1.msra.mxu0 0.0
    %4953 = vmatprep.subr.mxu0 0.0
    %4954 = vmatpush1.msra.mxu0 0.0
    %4955 = vmatprep.subr.mxu0 0.0
    %4956 = vmatpush1.msra.mxu0 0.0
    %4957 = vmatprep.subr.mxu0 0.0
    %4958 = vmatpush1.msra.mxu0 0.0
    %4959 = vmatprep.subr.mxu0 0.0
    %4960 = vmatpush1.msra.mxu0 0.0
    %4961 = vmatprep.subr.mxu0 0.0
    %4962 = vmatpush1.msra.mxu0 0.0
    %4963 = vmatprep.subr.mxu0 0.0
    %4964 = vmatpush1.msra.mxu0 0.0
    %4965 = vmatprep.subr.mxu0 0.0
    %4966 = vmatpush1.msra.mxu0 0.0
    %4967 = vmatprep.subr.mxu0 0.0
    %4968 = vmatpush1.msra.mxu0 0.0
    %4969 = vmatprep.subr.mxu0 0.0
    %4970 = vmatpush1.msra.mxu0 0.0
    %4971 = vmatprep.subr.mxu0 0.0
    %4972 = vmatpush1.msra.mxu0 0.0
    %4973 = vmatprep.subr.mxu0 0.0
    %4974 = vmatpush1.msra.mxu0 0.0
    %4975 = vmatprep.subr.mxu0 0.0
    %4976 = vmatpush1.msra.mxu0 0.0
    %4977 = vmatprep.subr.mxu0 0.0
    %4978 = vmatpush1.msra.mxu0 0.0
    %4979 = vmatprep.subr.mxu0 0.0
    %4980 = vmatpush1.msra.mxu0 0.0
    %4981 = vmatprep.subr.mxu0 0.0
    %4982 = vmatpush1.msra.mxu0 0.0
    %4983 = vmatprep.subr.mxu0 0.0
    %4984 = vmatpush1.msra.mxu0 0.0
    %4985 = vmatprep.subr.mxu0 0.0
    %4986 = vmatpush1.msra.mxu0 0.0
    %4987 = vmatprep.subr.mxu0 0.0
    %4988 = vmatpush1.msra.mxu0 0.0
    %4989 = vmatprep.subr.mxu0 0.0
    %4990 = vmatpush1.msra.mxu0 0.0
    %4991 = vmatprep.subr.mxu0 0.0
    %4992 = vmatpush1.msra.mxu0 0.0
    %4993 = vmatprep.mubr.f32.mxu0 0.0
    %4994 = vmatmul.mubr.f32.gmra.mrb[0].mxu0 %v4850
    %v4995 = vpop.f32.mrb[0].mxu0
    %v4996 = vadd.f32 %v4928, %v4995
    %v4997 = vpop.f32.mrb[0].mxu0
    %4998 = vdwg.mxu0
    %v4999 = vxor.u32 %v4996, 2147483648
    %v5000 = vmul.f32 %v4999, 1.442695
    %v5001 = vpow.pop %v5000
    %v5002 = vadd.f32 %v5001, 1.0
    %v5003 = vrcp.pop %v5002
    %v5004 = vmul.f32 1.0, %v5003
    %v5005 = vld [vmem:[%s662] sm:$0x3]
    %5006 = vmatprep.subr.mxu0 0.0
    %5007 = vmatpush1.msra.mxu0 %v4208
    %5008 = vmatprep.subr.mxu0 0.0
    %5009 = vmatpush1.msra.mxu0 %v4209
    %5010 = vmatprep.subr.mxu0 0.0
    %5011 = vmatpush1.msra.mxu0 %v4210
    %5012 = vmatprep.subr.mxu0 0.0
    %5013 = vmatpush1.msra.mxu0 %v4211
    %5014 = vmatprep.subr.mxu0 0.0
    %5015 = vmatpush1.msra.mxu0 %v4212
    %5016 = vmatprep.subr.mxu0 0.0
    %5017 = vmatpush1.msra.mxu0 %v4213
    %5018 = vmatprep.subr.mxu0 0.0
    %5019 = vmatpush1.msra.mxu0 %v4214
    %5020 = vmatprep.subr.mxu0 0.0
    %5021 = vmatpush1.msra.mxu0 %v4215
    %5022 = vmatprep.subr.mxu0 0.0
    %5023 = vmatpush1.msra.mxu0 0.0
    %5024 = vmatprep.subr.mxu0 0.0
    %5025 = vmatpush1.msra.mxu0 0.0
    %5026 = vmatprep.subr.mxu0 0.0
    %5027 = vmatpush1.msra.mxu0 0.0
    %5028 = vmatprep.subr.mxu0 0.0
    %5029 = vmatpush1.msra.mxu0 0.0
    %5030 = vmatprep.subr.mxu0 0.0
    %5031 = vmatpush1.msra.mxu0 0.0
    %5032 = vmatprep.subr.mxu0 0.0
    %5033 = vmatpush1.msra.mxu0 0.0
    %5034 = vmatprep.subr.mxu0 0.0
    %5035 = vmatpush1.msra.mxu0 0.0
    %5036 = vmatprep.subr.mxu0 0.0
    %5037 = vmatpush1.msra.mxu0 0.0
    %5038 = vmatprep.subr.mxu0 0.0
    %5039 = vmatpush1.msra.mxu0 0.0
    %5040 = vmatprep.subr.mxu0 0.0
    %5041 = vmatpush1.msra.mxu0 0.0
    %5042 = vmatprep.subr.mxu0 0.0
    %5043 = vmatpush1.msra.mxu0 0.0
    %5044 = vmatprep.subr.mxu0 0.0
    %5045 = vmatpush1.msra.mxu0 0.0
    %5046 = vmatprep.subr.mxu0 0.0
    %5047 = vmatpush1.msra.mxu0 0.0
    %5048 = vmatprep.subr.mxu0 0.0
    %5049 = vmatpush1.msra.mxu0 0.0
    %5050 = vmatprep.subr.mxu0 0.0
    %5051 = vmatpush1.msra.mxu0 0.0
    %5052 = vmatprep.subr.mxu0 0.0
    %5053 = vmatpush1.msra.mxu0 0.0
    %5054 = vmatprep.subr.mxu0 0.0
    %5055 = vmatpush1.msra.mxu0 0.0
    %5056 = vmatprep.subr.mxu0 0.0
    %5057 = vmatpush1.msra.mxu0 0.0
    %5058 = vmatprep.subr.mxu0 0.0
    %5059 = vmatpush1.msra.mxu0 0.0
    %5060 = vmatprep.subr.mxu0 0.0
    %5061 = vmatpush1.msra.mxu0 0.0
    %5062 = vmatprep.subr.mxu0 0.0
    %5063 = vmatpush1.msra.mxu0 0.0
    %5064 = vmatprep.subr.mxu0 0.0
    %5065 = vmatpush1.msra.mxu0 0.0
    %5066 = vmatprep.subr.mxu0 0.0
    %5067 = vmatpush1.msra.mxu0 0.0
    %5068 = vmatprep.subr.mxu0 0.0
    %5069 = vmatpush1.msra.mxu0 0.0
    %5070 = vmatprep.mubr.f32.mxu0 0.0
    %5071 = vmatmul.mubr.f32.gmra.mrb[0].mxu0 %v4850
    %v5072 = vpop.f32.mrb[0].mxu0
    %v5073 = vadd.f32 %v5005, %v5072
    %v5074 = vpop.f32.mrb[0].mxu0
    %5075 = vdwg.mxu0
    %v5076 = vtanh.pop %v5073
    %v5077 = vld [vmem:[%s848] sm:$0x3]
    %5078 = vmatprep.subr.mxu0 0.0
    %5079 = vmatpush1.msra.mxu0 %v4217
    %5080 = vmatprep.subr.mxu0 0.0
    %5081 = vmatpush1.msra.mxu0 %v4218
    %5082 = vmatprep.subr.mxu0 0.0
    %5083 = vmatpush1.msra.mxu0 %v4219
    %5084 = vmatprep.subr.mxu0 0.0
    %5085 = vmatpush1.msra.mxu0 %v4220
    %5086 = vmatprep.subr.mxu0 0.0
    %5087 = vmatpush1.msra.mxu0 %v4221
    %5088 = vmatprep.subr.mxu0 0.0
    %5089 = vmatpush1.msra.mxu0 %v4222
    %5090 = vmatprep.subr.mxu0 0.0
    %5091 = vmatpush1.msra.mxu0 %v4223
    %5092 = vmatprep.subr.mxu0 0.0
    %5093 = vmatpush1.msra.mxu0 %v4224
    %5094 = vmatprep.subr.mxu0 0.0
    %5095 = vmatpush1.msra.mxu0 0.0
    %5096 = vmatprep.subr.mxu0 0.0
    %5097 = vmatpush1.msra.mxu0 0.0
    %5098 = vmatprep.subr.mxu0 0.0
    %5099 = vmatpush1.msra.mxu0 0.0
    %5100 = vmatprep.subr.mxu0 0.0
    %5101 = vmatpush1.msra.mxu0 0.0
    %5102 = vmatprep.subr.mxu0 0.0
    %5103 = vmatpush1.msra.mxu0 0.0
    %5104 = vmatprep.subr.mxu0 0.0
    %5105 = vmatpush1.msra.mxu0 0.0
    %5106 = vmatprep.subr.mxu0 0.0
    %5107 = vmatpush1.msra.mxu0 0.0
    %5108 = vmatprep.subr.mxu0 0.0
    %5109 = vmatpush1.msra.mxu0 0.0
    %5110 = vmatprep.subr.mxu0 0.0
    %5111 = vmatpush1.msra.mxu0 0.0
    %5112 = vmatprep.subr.mxu0 0.0
    %5113 = vmatpush1.msra.mxu0 0.0
    %5114 = vmatprep.subr.mxu0 0.0
    %5115 = vmatpush1.msra.mxu0 0.0
    %5116 = vmatprep.subr.mxu0 0.0
    %5117 = vmatpush1.msra.mxu0 0.0
    %5118 = vmatprep.subr.mxu0 0.0
    %5119 = vmatpush1.msra.mxu0 0.0
    %5120 = vmatprep.subr.mxu0 0.0
    %5121 = vmatpush1.msra.mxu0 0.0
    %5122 = vmatprep.subr.mxu0 0.0
    %5123 = vmatpush1.msra.mxu0 0.0
    %5124 = vmatprep.subr.mxu0 0.0
    %5125 = vmatpush1.msra.mxu0 0.0
    %5126 = vmatprep.subr.mxu0 0.0
    %5127 = vmatpush1.msra.mxu0 0.0
    %5128 = vmatprep.subr.mxu0 0.0
    %5129 = vmatpush1.msra.mxu0 0.0
    %5130 = vmatprep.subr.mxu0 0.0
    %5131 = vmatpush1.msra.mxu0 0.0
    %5132 = vmatprep.subr.mxu0 0.0
    %5133 = vmatpush1.msra.mxu0 0.0
    %5134 = vmatprep.subr.mxu0 0.0
    %5135 = vmatpush1.msra.mxu0 0.0
    %5136 = vmatprep.subr.mxu0 0.0
    %5137 = vmatpush1.msra.mxu0 0.0
    %5138 = vmatprep.subr.mxu0 0.0
    %5139 = vmatpush1.msra.mxu0 0.0
    %5140 = vmatprep.subr.mxu0 0.0
    %5141 = vmatpush1.msra.mxu0 0.0
    %5142 = vmatprep.mubr.f32.mxu0 0.0
    %5143 = vmatmul.mubr.f32.gmra.mrb[0].mxu0 %v4850
    %v5144 = vpop.f32.mrb[0].mxu0
    %v5145 = vadd.f32 %v5077, %v5144
    %v5146 = vpop.f32.mrb[0].mxu0
    %5147 = vdwg.mxu0
    %v5148 = vxor.u32 %v5145, 2147483648
    %v5149 = vmul.f32 %v5148, 1.442695
    %v5150 = vpow.pop %v5149
    %v5151 = vadd.f32 %v5150, 1.0
    %v5152 = vrcp.pop %v5151
    %v5153 = vmul.f32 1.0, %v5152
    %v5154 = vmul.f32 %v5004, %v4843
    %v5155 = vmul.f32 %v4927, %v5076
    %v5156 = vadd.f32 %v5154, %v5155
    %v5157 = vtanh.pop %v5156
    %v5158 = vmul.f32 %v5153, %v5157
    %5159 = vst.msk [vmem:[%s1838] sm:$0x3] %vm1207, %v5158
    %5160 = vst.msk [vmem:[%s1840] sm:$0x3] %vm1210, %v5158
    %v5161 = vld [vmem:[%s291] sm:$0x3]
    %v5163 = vsel %vm896, %v5158, 0
    %5165 = vmatprep.subr.mxu0 0.0
    %5166 = vmatpush1.msra.mxu0 %v4190
    %5167 = vmatprep.subr.mxu0 0.0
    %5168 = vmatpush1.msra.mxu0 %v4191
    %5169 = vmatprep.subr.mxu0 0.0
    %5170 = vmatpush1.msra.mxu0 %v4192
    %5171 = vmatprep.subr.mxu0 0.0
    %5172 = vmatpush1.msra.mxu0 %v4193
    %5173 = vmatprep.subr.mxu0 0.0
    %5174 = vmatpush1.msra.mxu0 %v4194
    %5175 = vmatprep.subr.mxu0 0.0
    %5176 = vmatpush1.msra.mxu0 %v4195
    %5177 = vmatprep.subr.mxu0 0.0
    %5178 = vmatpush1.msra.mxu0 %v4196
    %5179 = vmatprep.subr.mxu0 0.0
    %5180 = vmatpush1.msra.mxu0 %v4197
    %5181 = vmatprep.subr.mxu0 0.0
    %5182 = vmatpush1.msra.mxu0 0.0
    %5183 = vmatprep.subr.mxu0 0.0
    %5184 = vmatpush1.msra.mxu0 0.0
    %5185 = vmatprep.subr.mxu0 0.0
    %5186 = vmatpush1.msra.mxu0 0.0
    %5187 = vmatprep.subr.mxu0 0.0
    %5188 = vmatpush1.msra.mxu0 0.0
    %5189 = vmatprep.subr.mxu0 0.0
    %5190 = vmatpush1.msra.mxu0 0.0
    %5191 = vmatprep.subr.mxu0 0.0
    %5192 = vmatpush1.msra.mxu0 0.0
    %5193 = vmatprep.subr.mxu0 0.0
    %5194 = vmatpush1.msra.mxu0 0.0
    %5195 = vmatprep.subr.mxu0 0.0
    %5196 = vmatpush1.msra.mxu0 0.0
    %5197 = vmatprep.subr.mxu0 0.0
    %5198 = vmatpush1.msra.mxu0 0.0
    %5199 = vmatprep.subr.mxu0 0.0
    %5200 = vmatpush1.msra.mxu0 0.0
    %5201 = vmatprep.subr.mxu0 0.0
    %5202 = vmatpush1.msra.mxu0 0.0
    %5203 = vmatprep.subr.mxu0 0.0
    %5204 = vmatpush1.msra.mxu0 0.0
    %5205 = vmatprep.subr.mxu0 0.0
    %5206 = vmatpush1.msra.mxu0 0.0
    %5207 = vmatprep.subr.mxu0 0.0
    %5208 = vmatpush1.msra.mxu0 0.0
    %5209 = vmatprep.subr.mxu0 0.0
    %5210 = vmatpush1.msra.mxu0 0.0
    %5211 = vmatprep.subr.mxu0 0.0
    %5212 = vmatpush1.msra.mxu0 0.0
    %5213 = vmatprep.subr.mxu0 0.0
    %5214 = vmatpush1.msra.mxu0 0.0
    %5215 = vmatprep.subr.mxu0 0.0
    %5216 = vmatpush1.msra.mxu0 0.0
    %5217 = vmatprep.subr.mxu0 0.0
    %5218 = vmatpush1.msra.mxu0 0.0
    %5219 = vmatprep.subr.mxu0 0.0
    %5220 = vmatpush1.msra.mxu0 0.0
    %5221 = vmatprep.subr.mxu0 0.0
    %5222 = vmatpush1.msra.mxu0 0.0
    %5223 = vmatprep.subr.mxu0 0.0
    %5224 = vmatpush1.msra.mxu0 0.0
    %5225 = vmatprep.subr.mxu0 0.0
    %5226 = vmatpush1.msra.mxu0 0.0
    %5227 = vmatprep.subr.mxu0 0.0
    %5228 = vmatpush1.msra.mxu0 0.0
    %5229 = vmatprep.mubr.f32.mxu0 0.0
    %5230 = vmatmul.mubr.f32.gmra.mrb[0].mxu0 %v5163
    %v5231 = vpop.f32.mrb[0].mxu0
    %v5232 = vadd.f32 %v5161, %v5231
    %v5233 = vpop.f32.mrb[0].mxu0
    %5234 = vdwg.mxu0
    %v5235 = vxor.u32 %v5232, 2147483648
    %v5236 = vmul.f32 %v5235, 1.442695
    %v5237 = vpow.pop %v5236
    %v5238 = vadd.f32 %v5237, 1.0
    %v5239 = vrcp.pop %v5238
    %v5240 = vmul.f32 1.0, %v5239
    %v5241 = vld [vmem:[%s478] sm:$0x3]
    %5242 = vmatprep.subr.mxu0 0.0
    %5243 = vmatpush1.msra.mxu0 %v4199
    %5244 = vmatprep.subr.mxu0 0.0
    %5245 = vmatpush1.msra.mxu0 %v4200
    %5246 = vmatprep.subr.mxu0 0.0
    %5247 = vmatpush1.msra.mxu0 %v4201
    %5248 = vmatprep.subr.mxu0 0.0
    %5249 = vmatpush1.msra.mxu0 %v4202
    %5250 = vmatprep.subr.mxu0 0.0
    %5251 = vmatpush1.msra.mxu0 %v4203
    %5252 = vmatprep.subr.mxu0 0.0
    %5253 = vmatpush1.msra.mxu0 %v4204
    %5254 = vmatprep.subr.mxu0 0.0
    %5255 = vmatpush1.msra.mxu0 %v4205
    %5256 = vmatprep.subr.mxu0 0.0
    %5257 = vmatpush1.msra.mxu0 %v4206
    %5258 = vmatprep.subr.mxu0 0.0
    %5259 = vmatpush1.msra.mxu0 0.0
    %5260 = vmatprep.subr.mxu0 0.0
    %5261 = vmatpush1.msra.mxu0 0.0
    %5262 = vmatprep.subr.mxu0 0.0
    %5263 = vmatpush1.msra.mxu0 0.0
    %5264 = vmatprep.subr.mxu0 0.0
    %5265 = vmatpush1.msra.mxu0 0.0
    %5266 = vmatprep.subr.mxu0 0.0
    %5267 = vmatpush1.msra.mxu0 0.0
    %5268 = vmatprep.subr.mxu0 0.0
    %5269 = vmatpush1.msra.mxu0 0.0
    %5270 = vmatprep.subr.mxu0 0.0
    %5271 = vmatpush1.msra.mxu0 0.0
    %5272 = vmatprep.subr.mxu0 0.0
    %5273 = vmatpush1.msra.mxu0 0.0
    %5274 = vmatprep.subr.mxu0 0.0
    %5275 = vmatpush1.msra.mxu0 0.0
    %5276 = vmatprep.subr.mxu0 0.0
    %5277 = vmatpush1.msra.mxu0 0.0
    %5278 = vmatprep.subr.mxu0 0.0
    %5279 = vmatpush1.msra.mxu0 0.0
    %5280 = vmatprep.subr.mxu0 0.0
    %5281 = vmatpush1.msra.mxu0 0.0
    %5282 = vmatprep.subr.mxu0 0.0
    %5283 = vmatpush1.msra.mxu0 0.0
    %5284 = vmatprep.subr.mxu0 0.0
    %5285 = vmatpush1.msra.mxu0 0.0
    %5286 = vmatprep.subr.mxu0 0.0
    %5287 = vmatpush1.msra.mxu0 0.0
    %5288 = vmatprep.subr.mxu0 0.0
    %5289 = vmatpush1.msra.mxu0 0.0
    %5290 = vmatprep.subr.mxu0 0.0
    %5291 = vmatpush1.msra.mxu0 0.0
    %5292 = vmatprep.subr.mxu0 0.0
    %5293 = vmatpush1.msra.mxu0 0.0
    %5294 = vmatprep.subr.mxu0 0.0
    %5295 = vmatpush1.msra.mxu0 0.0
    %5296 = vmatprep.subr.mxu0 0.0
    %5297 = vmatpush1.msra.mxu0 0.0
    %5298 = vmatprep.subr.mxu0 0.0
    %5299 = vmatpush1.msra.mxu0 0.0
    %5300 = vmatprep.subr.mxu0 0.0
    %5301 = vmatpush1.msra.mxu0 0.0
    %5302 = vmatprep.subr.mxu0 0.0
    %5303 = vmatpush1.msra.mxu0 0.0
    %5304 = vmatprep.subr.mxu0 0.0
    %5305 = vmatpush1.msra.mxu0 0.0
    %5306 = vmatprep.mubr.f32.mxu0 0.0
    %5307 = vmatmul.mubr.f32.gmra.mrb[0].mxu0 %v5163
    %v5308 = vpop.f32.mrb[0].mxu0
    %v5309 = vadd.f32 %v5241, %v5308
    %v5310 = vpop.f32.mrb[0].mxu0
    %5311 = vdwg.mxu0
    %v5312 = vxor.u32 %v5309, 2147483648
    %v5313 = vmul.f32 %v5312, 1.442695
    %v5314 = vpow.pop %v5313
    %v5315 = vadd.f32 %v5314, 1.0
    %v5316 = vrcp.pop %v5315
    %v5317 = vmul.f32 1.0, %v5316
    %v5318 = vld [vmem:[%s664] sm:$0x3]
    %5319 = vmatprep.subr.mxu0 0.0
    %5320 = vmatpush1.msra.mxu0 %v4208
    %5321 = vmatprep.subr.mxu0 0.0
    %5322 = vmatpush1.msra.mxu0 %v4209
    %5323 = vmatprep.subr.mxu0 0.0
    %5324 = vmatpush1.msra.mxu0 %v4210
    %5325 = vmatprep.subr.mxu0 0.0
    %5326 = vmatpush1.msra.mxu0 %v4211
    %5327 = vmatprep.subr.mxu0 0.0
    %5328 = vmatpush1.msra.mxu0 %v4212
    %5329 = vmatprep.subr.mxu0 0.0
    %5330 = vmatpush1.msra.mxu0 %v4213
    %5331 = vmatprep.subr.mxu0 0.0
    %5332 = vmatpush1.msra.mxu0 %v4214
    %5333 = vmatprep.subr.mxu0 0.0
    %5334 = vmatpush1.msra.mxu0 %v4215
    %5335 = vmatprep.subr.mxu0 0.0
    %5336 = vmatpush1.msra.mxu0 0.0
    %5337 = vmatprep.subr.mxu0 0.0
    %5338 = vmatpush1.msra.mxu0 0.0
    %5339 = vmatprep.subr.mxu0 0.0
    %5340 = vmatpush1.msra.mxu0 0.0
    %5341 = vmatprep.subr.mxu0 0.0
    %5342 = vmatpush1.msra.mxu0 0.0
    %5343 = vmatprep.subr.mxu0 0.0
    %5344 = vmatpush1.msra.mxu0 0.0
    %5345 = vmatprep.subr.mxu0 0.0
    %5346 = vmatpush1.msra.mxu0 0.0
    %5347 = vmatprep.subr.mxu0 0.0
    %5348 = vmatpush1.msra.mxu0 0.0
    %5349 = vmatprep.subr.mxu0 0.0
    %5350 = vmatpush1.msra.mxu0 0.0
    %5351 = vmatprep.subr.mxu0 0.0
    %5352 = vmatpush1.msra.mxu0 0.0
    %5353 = vmatprep.subr.mxu0 0.0
    %5354 = vmatpush1.msra.mxu0 0.0
    %5355 = vmatprep.subr.mxu0 0.0
    %5356 = vmatpush1.msra.mxu0 0.0
    %5357 = vmatprep.subr.mxu0 0.0
    %5358 = vmatpush1.msra.mxu0 0.0
    %5359 = vmatprep.subr.mxu0 0.0
    %5360 = vmatpush1.msra.mxu0 0.0
    %5361 = vmatprep.subr.mxu0 0.0
    %5362 = vmatpush1.msra.mxu0 0.0
    %5363 = vmatprep.subr.mxu0 0.0
    %5364 = vmatpush1.msra.mxu0 0.0
    %5365 = vmatprep.subr.mxu0 0.0
    %5366 = vmatpush1.msra.mxu0 0.0
    %5367 = vmatprep.subr.mxu0 0.0
    %5368 = vmatpush1.msra.mxu0 0.0
    %5369 = vmatprep.subr.mxu0 0.0
    %5370 = vmatpush1.msra.mxu0 0.0
    %5371 = vmatprep.subr.mxu0 0.0
    %5372 = vmatpush1.msra.mxu0 0.0
    %5373 = vmatprep.subr.mxu0 0.0
    %5374 = vmatpush1.msra.mxu0 0.0
    %5375 = vmatprep.subr.mxu0 0.0
    %5376 = vmatpush1.msra.mxu0 0.0
    %5377 = vmatprep.subr.mxu0 0.0
    %5378 = vmatpush1.msra.mxu0 0.0
    %5379 = vmatprep.subr.mxu0 0.0
    %5380 = vmatpush1.msra.mxu0 0.0
    %5381 = vmatprep.subr.mxu0 0.0
    %5382 = vmatpush1.msra.mxu0 0.0
    %5383 = vmatprep.mubr.f32.mxu0 0.0
    %5384 = vmatmul.mubr.f32.gmra.mrb[0].mxu0 %v5163
    %v5385 = vpop.f32.mrb[0].mxu0
    %v5386 = vadd.f32 %v5318, %v5385
    %v5387 = vpop.f32.mrb[0].mxu0
    %5388 = vdwg.mxu0
    %v5389 = vtanh.pop %v5386
    %v5390 = vld [vmem:[%s850] sm:$0x3]
    %5391 = vmatprep.subr.mxu0 0.0
    %5392 = vmatpush1.msra.mxu0 %v4217
    %5393 = vmatprep.subr.mxu0 0.0
    %5394 = vmatpush1.msra.mxu0 %v4218
    %5395 = vmatprep.subr.mxu0 0.0
    %5396 = vmatpush1.msra.mxu0 %v4219
    %5397 = vmatprep.subr.mxu0 0.0
    %5398 = vmatpush1.msra.mxu0 %v4220
    %5399 = vmatprep.subr.mxu0 0.0
    %5400 = vmatpush1.msra.mxu0 %v4221
    %5401 = vmatprep.subr.mxu0 0.0
    %5402 = vmatpush1.msra.mxu0 %v4222
    %5403 = vmatprep.subr.mxu0 0.0
    %5404 = vmatpush1.msra.mxu0 %v4223
    %5405 = vmatprep.subr.mxu0 0.0
    %5406 = vmatpush1.msra.mxu0 %v4224
    %5407 = vmatprep.subr.mxu0 0.0
    %5408 = vmatpush1.msra.mxu0 0.0
    %5409 = vmatprep.subr.mxu0 0.0
    %5410 = vmatpush1.msra.mxu0 0.0
    %5411 = vmatprep.subr.mxu0 0.0
    %5412 = vmatpush1.msra.mxu0 0.0
    %5413 = vmatprep.subr.mxu0 0.0
    %5414 = vmatpush1.msra.mxu0 0.0
    %5415 = vmatprep.subr.mxu0 0.0
    %5416 = vmatpush1.msra.mxu0 0.0
    %5417 = vmatprep.subr.mxu0 0.0
    %5418 = vmatpush1.msra.mxu0 0.0
    %5419 = vmatprep.subr.mxu0 0.0
    %5420 = vmatpush1.msra.mxu0 0.0
    %5421 = vmatprep.subr.mxu0 0.0
    %5422 = vmatpush1.msra.mxu0 0.0
    %5423 = vmatprep.subr.mxu0 0.0
    %5424 = vmatpush1.msra.mxu0 0.0
    %5425 = vmatprep.subr.mxu0 0.0
    %5426 = vmatpush1.msra.mxu0 0.0
    %5427 = vmatprep.subr.mxu0 0.0
    %5428 = vmatpush1.msra.mxu0 0.0
    %5429 = vmatprep.subr.mxu0 0.0
    %5430 = vmatpush1.msra.mxu0 0.0
    %5431 = vmatprep.subr.mxu0 0.0
    %5432 = vmatpush1.msra.mxu0 0.0
    %5433 = vmatprep.subr.mxu0 0.0
    %5434 = vmatpush1.msra.mxu0 0.0
    %5435 = vmatprep.subr.mxu0 0.0
    %5436 = vmatpush1.msra.mxu0 0.0
    %5437 = vmatprep.subr.mxu0 0.0
    %5438 = vmatpush1.msra.mxu0 0.0
    %5439 = vmatprep.subr.mxu0 0.0
    %5440 = vmatpush1.msra.mxu0 0.0
    %5441 = vmatprep.subr.mxu0 0.0
    %5442 = vmatpush1.msra.mxu0 0.0
    %5443 = vmatprep.subr.mxu0 0.0
    %5444 = vmatpush1.msra.mxu0 0.0
    %5445 = vmatprep.subr.mxu0 0.0
    %5446 = vmatpush1.msra.mxu0 0.0
    %5447 = vmatprep.subr.mxu0 0.0
    %5448 = vmatpush1.msra.mxu0 0.0
    %5449 = vmatprep.subr.mxu0 0.0
    %5450 = vmatpush1.msra.mxu0 0.0
    %5451 = vmatprep.subr.mxu0 0.0
    %5452 = vmatpush1.msra.mxu0 0.0
    %5453 = vmatprep.subr.mxu0 0.0
    %5454 = vmatpush1.msra.mxu0 0.0
    %5455 = vmatprep.mubr.f32.mxu0 0.0
    %5456 = vmatmul.mubr.f32.gmra.mrb[0].mxu0 %v5163
    %v5457 = vpop.f32.mrb[0].mxu0
    %v5458 = vadd.f32 %v5390, %v5457
    %v5459 = vpop.f32.mrb[0].mxu0
    %5460 = vdwg.mxu0
    %v5461 = vxor.u32 %v5458, 2147483648
    %v5462 = vmul.f32 %v5461, 1.442695
    %v5463 = vpow.pop %v5462
    %v5464 = vadd.f32 %v5463, 1.0
    %v5465 = vrcp.pop %v5464
    %v5466 = vmul.f32 1.0, %v5465
    %v5467 = vmul.f32 %v5317, %v5156
    %v5468 = vmul.f32 %v5240, %v5389
    %v5469 = vadd.f32 %v5467, %v5468
    %v5470 = vtanh.pop %v5469
    %v5471 = vmul.f32 %v5466, %v5470
    %5472 = vst.msk [vmem:[%s2153] sm:$0x3] %vm1207, %v5471
    %5473 = vst.msk [vmem:[%s2155] sm:$0x3] %vm1210, %v5471
    %v5474 = vld [vmem:[%s294] sm:$0x3]
    %v5476 = vsel %vm896, %v5471, 0
    %5478 = vmatprep.subr.mxu0 0.0
    %5479 = vmatpush1.msra.mxu0 %v4190
    %5480 = vmatprep.subr.mxu0 0.0
    %5481 = vmatpush1.msra.mxu0 %v4191
    %5482 = vmatprep.subr.mxu0 0.0
    %5483 = vmatpush1.msra.mxu0 %v4192
    %5484 = vmatprep.subr.mxu0 0.0
    %5485 = vmatpush1.msra.mxu0 %v4193
    %5486 = vmatprep.subr.mxu0 0.0
    %5487 = vmatpush1.msra.mxu0 %v4194
    %5488 = vmatprep.subr.mxu0 0.0
    %5489 = vmatpush1.msra.mxu0 %v4195
    %5490 = vmatprep.subr.mxu0 0.0
    %5491 = vmatpush1.msra.mxu0 %v4196
    %5492 = vmatprep.subr.mxu0 0.0
    %5493 = vmatpush1.msra.mxu0 %v4197
    %5494 = vmatprep.subr.mxu0 0.0
    %5495 = vmatpush1.msra.mxu0 0.0
    %5496 = vmatprep.subr.mxu0 0.0
    %5497 = vmatpush1.msra.mxu0 0.0
    %5498 = vmatprep.subr.mxu0 0.0
    %5499 = vmatpush1.msra.mxu0 0.0
    %5500 = vmatprep.subr.mxu0 0.0
    %5501 = vmatpush1.msra.mxu0 0.0
    %5502 = vmatprep.subr.mxu0 0.0
    %5503 = vmatpush1.msra.mxu0 0.0
    %5504 = vmatprep.subr.mxu0 0.0
    %5505 = vmatpush1.msra.mxu0 0.0
    %5506 = vmatprep.subr.mxu0 0.0
    %5507 = vmatpush1.msra.mxu0 0.0
    %5508 = vmatprep.subr.mxu0 0.0
    %5509 = vmatpush1.msra.mxu0 0.0
    %5510 = vmatprep.subr.mxu0 0.0
    %5511 = vmatpush1.msra.mxu0 0.0
    %5512 = vmatprep.subr.mxu0 0.0
    %5513 = vmatpush1.msra.mxu0 0.0
    %5514 = vmatprep.subr.mxu0 0.0
    %5515 = vmatpush1.msra.mxu0 0.0
    %5516 = vmatprep.subr.mxu0 0.0
    %5517 = vmatpush1.msra.mxu0 0.0
    %5518 = vmatprep.subr.mxu0 0.0
    %5519 = vmatpush1.msra.mxu0 0.0
    %5520 = vmatprep.subr.mxu0 0.0
    %5521 = vmatpush1.msra.mxu0 0.0
    %5522 = vmatprep.subr.mxu0 0.0
    %5523 = vmatpush1.msra.mxu0 0.0
    %5524 = vmatprep.subr.mxu0 0.0
    %5525 = vmatpush1.msra.mxu0 0.0
    %5526 = vmatprep.subr.mxu0 0.0
    %5527 = vmatpush1.msra.mxu0 0.0
    %5528 = vmatprep.subr.mxu0 0.0
    %5529 = vmatpush1.msra.mxu0 0.0
    %5530 = vmatprep.subr.mxu0 0.0
    %5531 = vmatpush1.msra.mxu0 0.0
    %5532 = vmatprep.subr.mxu0 0.0
    %5533 = vmatpush1.msra.mxu0 0.0
    %5534 = vmatprep.subr.mxu0 0.0
    %5535 = vmatpush1.msra.mxu0 0.0
    %5536 = vmatprep.subr.mxu0 0.0
    %5537 = vmatpush1.msra.mxu0 0.0
    %5538 = vmatprep.subr.mxu0 0.0
    %5539 = vmatpush1.msra.mxu0 0.0
    %5540 = vmatprep.subr.mxu0 0.0
    %5541 = vmatpush1.msra.mxu0 0.0
    %5542 = vmatprep.mubr.f32.mxu0 0.0
    %5543 = vmatmul.mubr.f32.gmra.mrb[0].mxu0 %v5476
    %v5544 = vpop.f32.mrb[0].mxu0
    %v5545 = vadd.f32 %v5474, %v5544
    %v5546 = vpop.f32.mrb[0].mxu0
    %5547 = vdwg.mxu0
    %v5548 = vxor.u32 %v5545, 2147483648
    %v5549 = vmul.f32 %v5548, 1.442695
    %v5550 = vpow.pop %v5549
    %v5551 = vadd.f32 %v5550, 1.0
    %v5552 = vrcp.pop %v5551
    %v5553 = vmul.f32 1.0, %v5552
    %v5554 = vld [vmem:[%s480] sm:$0x3]
    %5555 = vmatprep.subr.mxu0 0.0
    %5556 = vmatpush1.msra.mxu0 %v4199
    %5557 = vmatprep.subr.mxu0 0.0
    %5558 = vmatpush1.msra.mxu0 %v4200
    %5559 = vmatprep.subr.mxu0 0.0
    %5560 = vmatpush1.msra.mxu0 %v4201
    %5561 = vmatprep.subr.mxu0 0.0
    %5562 = vmatpush1.msra.mxu0 %v4202
    %5563 = vmatprep.subr.mxu0 0.0
    %5564 = vmatpush1.msra.mxu0 %v4203
    %5565 = vmatprep.subr.mxu0 0.0
    %5566 = vmatpush1.msra.mxu0 %v4204
    %5567 = vmatprep.subr.mxu0 0.0
    %5568 = vmatpush1.msra.mxu0 %v4205
    %5569 = vmatprep.subr.mxu0 0.0
    %5570 = vmatpush1.msra.mxu0 %v4206
    %5571 = vmatprep.subr.mxu0 0.0
    %5572 = vmatpush1.msra.mxu0 0.0
    %5573 = vmatprep.subr.mxu0 0.0
    %5574 = vmatpush1.msra.mxu0 0.0
    %5575 = vmatprep.subr.mxu0 0.0
    %5576 = vmatpush1.msra.mxu0 0.0
    %5577 = vmatprep.subr.mxu0 0.0
    %5578 = vmatpush1.msra.mxu0 0.0
    %5579 = vmatprep.subr.mxu0 0.0
    %5580 = vmatpush1.msra.mxu0 0.0
    %5581 = vmatprep.subr.mxu0 0.0
    %5582 = vmatpush1.msra.mxu0 0.0
    %5583 = vmatprep.subr.mxu0 0.0
    %5584 = vmatpush1.msra.mxu0 0.0
    %5585 = vmatprep.subr.mxu0 0.0
    %5586 = vmatpush1.msra.mxu0 0.0
    %5587 = vmatprep.subr.mxu0 0.0
    %5588 = vmatpush1.msra.mxu0 0.0
    %5589 = vmatprep.subr.mxu0 0.0
    %5590 = vmatpush1.msra.mxu0 0.0
    %5591 = vmatprep.subr.mxu0 0.0
    %5592 = vmatpush1.msra.mxu0 0.0
    %5593 = vmatprep.subr.mxu0 0.0
    %5594 = vmatpush1.msra.mxu0 0.0
    %5595 = vmatprep.subr.mxu0 0.0
    %5596 = vmatpush1.msra.mxu0 0.0
    %5597 = vmatprep.subr.mxu0 0.0
    %5598 = vmatpush1.msra.mxu0 0.0
    %5599 = vmatprep.subr.mxu0 0.0
    %5600 = vmatpush1.msra.mxu0 0.0
    %5601 = vmatprep.subr.mxu0 0.0
    %5602 = vmatpush1.msra.mxu0 0.0
    %5603 = vmatprep.subr.mxu0 0.0
    %5604 = vmatpush1.msra.mxu0 0.0
    %5605 = vmatprep.subr.mxu0 0.0
    %5606 = vmatpush1.msra.mxu0 0.0
    %5607 = vmatprep.subr.mxu0 0.0
    %5608 = vmatpush1.msra.mxu0 0.0
    %5609 = vmatprep.subr.mxu0 0.0
    %5610 = vmatpush1.msra.mxu0 0.0
    %5611 = vmatprep.subr.mxu0 0.0
    %5612 = vmatpush1.msra.mxu0 0.0
    %5613 = vmatprep.subr.mxu0 0.0
    %5614 = vmatpush1.msra.mxu0 0.0
    %5615 = vmatprep.subr.mxu0 0.0
    %5616 = vmatpush1.msra.mxu0 0.0
    %5617 = vmatprep.subr.mxu0 0.0
    %5618 = vmatpush1.msra.mxu0 0.0
    %5619 = vmatprep.mubr.f32.mxu0 0.0
    %5620 = vmatmul.mubr.f32.gmra.mrb[0].mxu0 %v5476
    %v5621 = vpop.f32.mrb[0].mxu0
    %v5622 = vadd.f32 %v5554, %v5621
    %v5623 = vpop.f32.mrb[0].mxu0
    %5624 = vdwg.mxu0
    %v5625 = vxor.u32 %v5622, 2147483648
    %v5626 = vmul.f32 %v5625, 1.442695
    %v5627 = vpow.pop %v5626
    %v5628 = vadd.f32 %v5627, 1.0
    %v5629 = vrcp.pop %v5628
    %v5630 = vmul.f32 1.0, %v5629
    %v5631 = vld [vmem:[%s666] sm:$0x3]
    %5632 = vmatprep.subr.mxu0 0.0
    %5633 = vmatpush1.msra.mxu0 %v4208
    %5634 = vmatprep.subr.mxu0 0.0
    %5635 = vmatpush1.msra.mxu0 %v4209
    %5636 = vmatprep.subr.mxu0 0.0
    %5637 = vmatpush1.msra.mxu0 %v4210
    %5638 = vmatprep.subr.mxu0 0.0
    %5639 = vmatpush1.msra.mxu0 %v4211
    %5640 = vmatprep.subr.mxu0 0.0
    %5641 = vmatpush1.msra.mxu0 %v4212
    %5642 = vmatprep.subr.mxu0 0.0
    %5643 = vmatpush1.msra.mxu0 %v4213
    %5644 = vmatprep.subr.mxu0 0.0
    %5645 = vmatpush1.msra.mxu0 %v4214
    %5646 = vmatprep.subr.mxu0 0.0
    %5647 = vmatpush1.msra.mxu0 %v4215
    %5648 = vmatprep.subr.mxu0 0.0
    %5649 = vmatpush1.msra.mxu0 0.0
    %5650 = vmatprep.subr.mxu0 0.0
    %5651 = vmatpush1.msra.mxu0 0.0
    %5652 = vmatprep.subr.mxu0 0.0
    %5653 = vmatpush1.msra.mxu0 0.0
    %5654 = vmatprep.subr.mxu0 0.0
    %5655 = vmatpush1.msra.mxu0 0.0
    %5656 = vmatprep.subr.mxu0 0.0
    %5657 = vmatpush1.msra.mxu0 0.0
    %5658 = vmatprep.subr.mxu0 0.0
    %5659 = vmatpush1.msra.mxu0 0.0
    %5660 = vmatprep.subr.mxu0 0.0
    %5661 = vmatpush1.msra.mxu0 0.0
    %5662 = vmatprep.subr.mxu0 0.0
    %5663 = vmatpush1.msra.mxu0 0.0
    %5664 = vmatprep.subr.mxu0 0.0
    %5665 = vmatpush1.msra.mxu0 0.0
    %5666 = vmatprep.subr.mxu0 0.0
    %5667 = vmatpush1.msra.mxu0 0.0
    %5668 = vmatprep.subr.mxu0 0.0
    %5669 = vmatpush1.msra.mxu0 0.0
    %5670 = vmatprep.subr.mxu0 0.0
    %5671 = vmatpush1.msra.mxu0 0.0
    %5672 = vmatprep.subr.mxu0 0.0
    %5673 = vmatpush1.msra.mxu0 0.0
    %5674 = vmatprep.subr.mxu0 0.0
    %5675 = vmatpush1.msra.mxu0 0.0
    %5676 = vmatprep.subr.mxu0 0.0
    %5677 = vmatpush1.msra.mxu0 0.0
    %5678 = vmatprep.subr.mxu0 0.0
    %5679 = vmatpush1.msra.mxu0 0.0
    %5680 = vmatprep.subr.mxu0 0.0
    %5681 = vmatpush1.msra.mxu0 0.0
    %5682 = vmatprep.subr.mxu0 0.0
    %5683 = vmatpush1.msra.mxu0 0.0
    %5684 = vmatprep.subr.mxu0 0.0
    %5685 = vmatpush1.msra.mxu0 0.0
    %5686 = vmatprep.subr.mxu0 0.0
    %5687 = vmatpush1.msra.mxu0 0.0
    %5688 = vmatprep.subr.mxu0 0.0
    %5689 = vmatpush1.msra.mxu0 0.0
    %5690 = vmatprep.subr.mxu0 0.0
    %5691 = vmatpush1.msra.mxu0 0.0
    %5692 = vmatprep.subr.mxu0 0.0
    %5693 = vmatpush1.msra.mxu0 0.0
    %5694 = vmatprep.subr.mxu0 0.0
    %5695 = vmatpush1.msra.mxu0 0.0
    %5696 = vmatprep.mubr.f32.mxu0 0.0
    %5697 = vmatmul.mubr.f32.gmra.mrb[0].mxu0 %v5476
    %v5698 = vpop.f32.mrb[0].mxu0
    %v5699 = vadd.f32 %v5631, %v5698
    %v5700 = vpop.f32.mrb[0].mxu0
    %5701 = vdwg.mxu0
    %v5702 = vtanh.pop %v5699
    %v5703 = vld [vmem:[%s852] sm:$0x3]
    %5704 = vmatprep.subr.mxu0 0.0
    %5705 = vmatpush1.msra.mxu0 %v4217
    %5706 = vmatprep.subr.mxu0 0.0
    %5707 = vmatpush1.msra.mxu0 %v4218
    %5708 = vmatprep.subr.mxu0 0.0
    %5709 = vmatpush1.msra.mxu0 %v4219
    %5710 = vmatprep.subr.mxu0 0.0
    %5711 = vmatpush1.msra.mxu0 %v4220
    %5712 = vmatprep.subr.mxu0 0.0
    %5713 = vmatpush1.msra.mxu0 %v4221
    %5714 = vmatprep.subr.mxu0 0.0
    %5715 = vmatpush1.msra.mxu0 %v4222
    %5716 = vmatprep.subr.mxu0 0.0
    %5717 = vmatpush1.msra.mxu0 %v4223
    %5718 = vmatprep.subr.mxu0 0.0
    %5719 = vmatpush1.msra.mxu0 %v4224
    %5720 = vmatprep.subr.mxu0 0.0
    %5721 = vmatpush1.msra.mxu0 0.0
    %5722 = vmatprep.subr.mxu0 0.0
    %5723 = vmatpush1.msra.mxu0 0.0
    %5724 = vmatprep.subr.mxu0 0.0
    %5725 = vmatpush1.msra.mxu0 0.0
    %5726 = vmatprep.subr.mxu0 0.0
    %5727 = vmatpush1.msra.mxu0 0.0
    %5728 = vmatprep.subr.mxu0 0.0
    %5729 = vmatpush1.msra.mxu0 0.0
    %5730 = vmatprep.subr.mxu0 0.0
    %5731 = vmatpush1.msra.mxu0 0.0
    %5732 = vmatprep.subr.mxu0 0.0
    %5733 = vmatpush1.msra.mxu0 0.0
    %5734 = vmatprep.subr.mxu0 0.0
    %5735 = vmatpush1.msra.mxu0 0.0
    %5736 = vmatprep.subr.mxu0 0.0
    %5737 = vmatpush1.msra.mxu0 0.0
    %5738 = vmatprep.subr.mxu0 0.0
    %5739 = vmatpush1.msra.mxu0 0.0
    %5740 = vmatprep.subr.mxu0 0.0
    %5741 = vmatpush1.msra.mxu0 0.0
    %5742 = vmatprep.subr.mxu0 0.0
    %5743 = vmatpush1.msra.mxu0 0.0
    %5744 = vmatprep.subr.mxu0 0.0
    %5745 = vmatpush1.msra.mxu0 0.0
    %5746 = vmatprep.subr.mxu0 0.0
    %5747 = vmatpush1.msra.mxu0 0.0
    %5748 = vmatprep.subr.mxu0 0.0
    %5749 = vmatpush1.msra.mxu0 0.0
    %5750 = vmatprep.subr.mxu0 0.0
    %5751 = vmatpush1.msra.mxu0 0.0
    %5752 = vmatprep.subr.mxu0 0.0
    %5753 = vmatpush1.msra.mxu0 0.0
    %5754 = vmatprep.subr.mxu0 0.0
    %5755 = vmatpush1.msra.mxu0 0.0
    %5756 = vmatprep.subr.mxu0 0.0
    %5757 = vmatpush1.msra.mxu0 0.0
    %5758 = vmatprep.subr.mxu0 0.0
    %5759 = vmatpush1.msra.mxu0 0.0
    %5760 = vmatprep.subr.mxu0 0.0
    %5761 = vmatpush1.msra.mxu0 0.0
    %5762 = vmatprep.subr.mxu0 0.0
    %5763 = vmatpush1.msra.mxu0 0.0
    %5764 = vmatprep.subr.mxu0 0.0
    %5765 = vmatpush1.msra.mxu0 0.0
    %5766 = vmatprep.subr.mxu0 0.0
    %5767 = vmatpush1.msra.mxu0 0.0
    %5768 = vmatprep.mubr.f32.mxu0 0.0
    %5769 = vmatmul.mubr.f32.gmra.mrb[0].mxu0 %v5476
    %v5770 = vpop.f32.mrb[0].mxu0
    %v5771 = vadd.f32 %v5703, %v5770
    %v5772 = vpop.f32.mrb[0].mxu0
    %5773 = vdwg.mxu0
    %v5774 = vxor.u32 %v5771, 2147483648
    %v5775 = vmul.f32 %v5774, 1.442695
    %v5776 = vpow.pop %v5775
    %v5777 = vadd.f32 %v5776, 1.0
    %v5778 = vrcp.pop %v5777
    %v5779 = vmul.f32 1.0, %v5778
    %v5780 = vmul.f32 %v5630, %v5469
    %v5781 = vmul.f32 %v5553, %v5702
    %v5782 = vadd.f32 %v5780, %v5781
    %v5783 = vtanh.pop %v5782
    %v5784 = vmul.f32 %v5779, %v5783
    %5785 = vst.msk [vmem:[%s2155] sm:$0x3] %vm1207, %v5784
    %5786 = vst.msk [vmem:[%s2153] sm:$0x3] %vm1210, %v5784
    %v5787 = vld [vmem:[%s296] sm:$0x3]
    %v5789 = vsel %vm896, %v5784, 0
    %5791 = vmatprep.subr.mxu0 0.0
    %5792 = vmatpush1.msra.mxu0 %v4190
    %5793 = vmatprep.subr.mxu0 0.0
    %5794 = vmatpush1.msra.mxu0 %v4191
    %5795 = vmatprep.subr.mxu0 0.0
    %5796 = vmatpush1.msra.mxu0 %v4192
    %5797 = vmatprep.subr.mxu0 0.0
    %5798 = vmatpush1.msra.mxu0 %v4193
    %5799 = vmatprep.subr.mxu0 0.0
    %5800 = vmatpush1.msra.mxu0 %v4194
    %5801 = vmatprep.subr.mxu0 0.0
    %5802 = vmatpush1.msra.mxu0 %v4195
    %5803 = vmatprep.subr.mxu0 0.0
    %5804 = vmatpush1.msra.mxu0 %v4196
    %5805 = vmatprep.subr.mxu0 0.0
    %5806 = vmatpush1.msra.mxu0 %v4197
    %5807 = vmatprep.subr.mxu0 0.0
    %5808 = vmatpush1.msra.mxu0 0.0
    %5809 = vmatprep.subr.mxu0 0.0
    %5810 = vmatpush1.msra.mxu0 0.0
    %5811 = vmatprep.subr.mxu0 0.0
    %5812 = vmatpush1.msra.mxu0 0.0
    %5813 = vmatprep.subr.mxu0 0.0
    %5814 = vmatpush1.msra.mxu0 0.0
    %5815 = vmatprep.subr.mxu0 0.0
    %5816 = vmatpush1.msra.mxu0 0.0
    %5817 = vmatprep.subr.mxu0 0.0
    %5818 = vmatpush1.msra.mxu0 0.0
    %5819 = vmatprep.subr.mxu0 0.0
    %5820 = vmatpush1.msra.mxu0 0.0
    %5821 = vmatprep.subr.mxu0 0.0
    %5822 = vmatpush1.msra.mxu0 0.0
    %5823 = vmatprep.subr.mxu0 0.0
    %5824 = vmatpush1.msra.mxu0 0.0
    %5825 = vmatprep.subr.mxu0 0.0
    %5826 = vmatpush1.msra.mxu0 0.0
    %5827 = vmatprep.subr.mxu0 0.0
    %5828 = vmatpush1.msra.mxu0 0.0
    %5829 = vmatprep.subr.mxu0 0.0
    %5830 = vmatpush1.msra.mxu0 0.0
    %5831 = vmatprep.subr.mxu0 0.0
    %5832 = vmatpush1.msra.mxu0 0.0
    %5833 = vmatprep.subr.mxu0 0.0
    %5834 = vmatpush1.msra.mxu0 0.0
    %5835 = vmatprep.subr.mxu0 0.0
    %5836 = vmatpush1.msra.mxu0 0.0
    %5837 = vmatprep.subr.mxu0 0.0
    %5838 = vmatpush1.msra.mxu0 0.0
    %5839 = vmatprep.subr.mxu0 0.0
    %5840 = vmatpush1.msra.mxu0 0.0
    %5841 = vmatprep.subr.mxu0 0.0
    %5842 = vmatpush1.msra.mxu0 0.0
    %5843 = vmatprep.subr.mxu0 0.0
    %5844 = vmatpush1.msra.mxu0 0.0
    %5845 = vmatprep.subr.mxu0 0.0
    %5846 = vmatpush1.msra.mxu0 0.0
    %5847 = vmatprep.subr.mxu0 0.0
    %5848 = vmatpush1.msra.mxu0 0.0
    %5849 = vmatprep.subr.mxu0 0.0
    %5850 = vmatpush1.msra.mxu0 0.0
    %5851 = vmatprep.subr.mxu0 0.0
    %5852 = vmatpush1.msra.mxu0 0.0
    %5853 = vmatprep.subr.mxu0 0.0
    %5854 = vmatpush1.msra.mxu0 0.0
    %5855 = vmatprep.mubr.f32.mxu0 0.0
    %5856 = vmatmul.mubr.f32.gmra.mrb[0].mxu0 %v5789
    %v5857 = vpop.f32.mrb[0].mxu0
    %v5858 = vadd.f32 %v5787, %v5857
    %v5859 = vpop.f32.mrb[0].mxu0
    %5860 = vdwg.mxu0
    %v5861 = vxor.u32 %v5858, 2147483648
    %v5862 = vmul.f32 %v5861, 1.442695
    %v5863 = vpow.pop %v5862
    %v5864 = vadd.f32 %v5863, 1.0
    %v5865 = vrcp.pop %v5864
    %v5866 = vmul.f32 1.0, %v5865
    %v5867 = vld [vmem:[%s482] sm:$0x3]
    %5868 = vmatprep.subr.mxu0 0.0
    %5869 = vmatpush1.msra.mxu0 %v4199
    %5870 = vmatprep.subr.mxu0 0.0
    %5871 = vmatpush1.msra.mxu0 %v4200
    %5872 = vmatprep.subr.mxu0 0.0
    %5873 = vmatpush1.msra.mxu0 %v4201
    %5874 = vmatprep.subr.mxu0 0.0
    %5875 = vmatpush1.msra.mxu0 %v4202
    %5876 = vmatprep.subr.mxu0 0.0
    %5877 = vmatpush1.msra.mxu0 %v4203
    %5878 = vmatprep.subr.mxu0 0.0
    %5879 = vmatpush1.msra.mxu0 %v4204
    %5880 = vmatprep.subr.mxu0 0.0
    %5881 = vmatpush1.msra.mxu0 %v4205
    %5882 = vmatprep.subr.mxu0 0.0
    %5883 = vmatpush1.msra.mxu0 %v4206
    %5884 = vmatprep.subr.mxu0 0.0
    %5885 = vmatpush1.msra.mxu0 0.0
    %5886 = vmatprep.subr.mxu0 0.0
    %5887 = vmatpush1.msra.mxu0 0.0
    %5888 = vmatprep.subr.mxu0 0.0
    %5889 = vmatpush1.msra.mxu0 0.0
    %5890 = vmatprep.subr.mxu0 0.0
    %5891 = vmatpush1.msra.mxu0 0.0
    %5892 = vmatprep.subr.mxu0 0.0
    %5893 = vmatpush1.msra.mxu0 0.0
    %5894 = vmatprep.subr.mxu0 0.0
    %5895 = vmatpush1.msra.mxu0 0.0
    %5896 = vmatprep.subr.mxu0 0.0
    %5897 = vmatpush1.msra.mxu0 0.0
    %5898 = vmatprep.subr.mxu0 0.0
    %5899 = vmatpush1.msra.mxu0 0.0
    %5900 = vmatprep.subr.mxu0 0.0
    %5901 = vmatpush1.msra.mxu0 0.0
    %5902 = vmatprep.subr.mxu0 0.0
    %5903 = vmatpush1.msra.mxu0 0.0
    %5904 = vmatprep.subr.mxu0 0.0
    %5905 = vmatpush1.msra.mxu0 0.0
    %5906 = vmatprep.subr.mxu0 0.0
    %5907 = vmatpush1.msra.mxu0 0.0
    %5908 = vmatprep.subr.mxu0 0.0
    %5909 = vmatpush1.msra.mxu0 0.0
    %5910 = vmatprep.subr.mxu0 0.0
    %5911 = vmatpush1.msra.mxu0 0.0
    %5912 = vmatprep.subr.mxu0 0.0
    %5913 = vmatpush1.msra.mxu0 0.0
    %5914 = vmatprep.subr.mxu0 0.0
    %5915 = vmatpush1.msra.mxu0 0.0
    %5916 = vmatprep.subr.mxu0 0.0
    %5917 = vmatpush1.msra.mxu0 0.0
    %5918 = vmatprep.subr.mxu0 0.0
    %5919 = vmatpush1.msra.mxu0 0.0
    %5920 = vmatprep.subr.mxu0 0.0
    %5921 = vmatpush1.msra.mxu0 0.0
    %5922 = vmatprep.subr.mxu0 0.0
    %5923 = vmatpush1.msra.mxu0 0.0
    %5924 = vmatprep.subr.mxu0 0.0
    %5925 = vmatpush1.msra.mxu0 0.0
    %5926 = vmatprep.subr.mxu0 0.0
    %5927 = vmatpush1.msra.mxu0 0.0
    %5928 = vmatprep.subr.mxu0 0.0
    %5929 = vmatpush1.msra.mxu0 0.0
    %5930 = vmatprep.subr.mxu0 0.0
    %5931 = vmatpush1.msra.mxu0 0.0
    %5932 = vmatprep.mubr.f32.mxu0 0.0
    %5933 = vmatmul.mubr.f32.gmra.mrb[0].mxu0 %v5789
    %v5934 = vpop.f32.mrb[0].mxu0
    %v5935 = vadd.f32 %v5867, %v5934
    %v5936 = vpop.f32.mrb[0].mxu0
    %5937 = vdwg.mxu0
    %v5938 = vxor.u32 %v5935, 2147483648
    %v5939 = vmul.f32 %v5938, 1.442695
    %v5940 = vpow.pop %v5939
    %v5941 = vadd.f32 %v5940, 1.0
    %v5942 = vrcp.pop %v5941
    %v5943 = vmul.f32 1.0, %v5942
    %v5944 = vld [vmem:[%s668] sm:$0x3]
    %5945 = vmatprep.subr.mxu0 0.0
    %5946 = vmatpush1.msra.mxu0 %v4208
    %5947 = vmatprep.subr.mxu0 0.0
    %5948 = vmatpush1.msra.mxu0 %v4209
    %5949 = vmatprep.subr.mxu0 0.0
    %5950 = vmatpush1.msra.mxu0 %v4210
    %5951 = vmatprep.subr.mxu0 0.0
    %5952 = vmatpush1.msra.mxu0 %v4211
    %5953 = vmatprep.subr.mxu0 0.0
    %5954 = vmatpush1.msra.mxu0 %v4212
    %5955 = vmatprep.subr.mxu0 0.0
    %5956 = vmatpush1.msra.mxu0 %v4213
    %5957 = vmatprep.subr.mxu0 0.0
    %5958 = vmatpush1.msra.mxu0 %v4214
    %5959 = vmatprep.subr.mxu0 0.0
    %5960 = vmatpush1.msra.mxu0 %v4215
    %5961 = vmatprep.subr.mxu0 0.0
    %5962 = vmatpush1.msra.mxu0 0.0
    %5963 = vmatprep.subr.mxu0 0.0
    %5964 = vmatpush1.msra.mxu0 0.0
    %5965 = vmatprep.subr.mxu0 0.0
    %5966 = vmatpush1.msra.mxu0 0.0
    %5967 = vmatprep.subr.mxu0 0.0
    %5968 = vmatpush1.msra.mxu0 0.0
    %5969 = vmatprep.subr.mxu0 0.0
    %5970 = vmatpush1.msra.mxu0 0.0
    %5971 = vmatprep.subr.mxu0 0.0
    %5972 = vmatpush1.msra.mxu0 0.0
    %5973 = vmatprep.subr.mxu0 0.0
    %5974 = vmatpush1.msra.mxu0 0.0
    %5975 = vmatprep.subr.mxu0 0.0
    %5976 = vmatpush1.msra.mxu0 0.0
    %5977 = vmatprep.subr.mxu0 0.0
    %5978 = vmatpush1.msra.mxu0 0.0
    %5979 = vmatprep.subr.mxu0 0.0
    %5980 = vmatpush1.msra.mxu0 0.0
    %5981 = vmatprep.subr.mxu0 0.0
    %5982 = vmatpush1.msra.mxu0 0.0
    %5983 = vmatprep.subr.mxu0 0.0
    %5984 = vmatpush1.msra.mxu0 0.0
    %5985 = vmatprep.subr.mxu0 0.0
    %5986 = vmatpush1.msra.mxu0 0.0
    %5987 = vmatprep.subr.mxu0 0.0
    %5988 = vmatpush1.msra.mxu0 0.0
    %5989 = vmatprep.subr.mxu0 0.0
    %5990 = vmatpush1.msra.mxu0 0.0
    %5991 = vmatprep.subr.mxu0 0.0
    %5992 = vmatpush1.msra.mxu0 0.0
    %5993 = vmatprep.subr.mxu0 0.0
    %5994 = vmatpush1.msra.mxu0 0.0
    %5995 = vmatprep.subr.mxu0 0.0
    %5996 = vmatpush1.msra.mxu0 0.0
    %5997 = vmatprep.subr.mxu0 0.0
    %5998 = vmatpush1.msra.mxu0 0.0
    %5999 = vmatprep.subr.mxu0 0.0
    %6000 = vmatpush1.msra.mxu0 0.0
    %6001 = vmatprep.subr.mxu0 0.0
    %6002 = vmatpush1.msra.mxu0 0.0
    %6003 = vmatprep.subr.mxu0 0.0
    %6004 = vmatpush1.msra.mxu0 0.0
    %6005 = vmatprep.subr.mxu0 0.0
    %6006 = vmatpush1.msra.mxu0 0.0
    %6007 = vmatprep.subr.mxu0 0.0
    %6008 = vmatpush1.msra.mxu0 0.0
    %6009 = vmatprep.mubr.f32.mxu0 0.0
    %6010 = vmatmul.mubr.f32.gmra.mrb[0].mxu0 %v5789
    %v6011 = vpop.f32.mrb[0].mxu0
    %v6012 = vadd.f32 %v5944, %v6011
    %v6013 = vpop.f32.mrb[0].mxu0
    %6014 = vdwg.mxu0
    %v6015 = vtanh.pop %v6012
    %v6016 = vld [vmem:[%s854] sm:$0x3]
    %6017 = vmatprep.subr.mxu0 0.0
    %6018 = vmatpush1.msra.mxu0 %v4217
    %6019 = vmatprep.subr.mxu0 0.0
    %6020 = vmatpush1.msra.mxu0 %v4218
    %6021 = vmatprep.subr.mxu0 0.0
    %6022 = vmatpush1.msra.mxu0 %v4219
    %6023 = vmatprep.subr.mxu0 0.0
    %6024 = vmatpush1.msra.mxu0 %v4220
    %6025 = vmatprep.subr.mxu0 0.0
    %6026 = vmatpush1.msra.mxu0 %v4221
    %6027 = vmatprep.subr.mxu0 0.0
    %6028 = vmatpush1.msra.mxu0 %v4222
    %6029 = vmatprep.subr.mxu0 0.0
    %6030 = vmatpush1.msra.mxu0 %v4223
    %6031 = vmatprep.subr.mxu0 0.0
    %6032 = vmatpush1.msra.mxu0 %v4224
    %6033 = vmatprep.subr.mxu0 0.0
    %6034 = vmatpush1.msra.mxu0 0.0
    %6035 = vmatprep.subr.mxu0 0.0
    %6036 = vmatpush1.msra.mxu0 0.0
    %6037 = vmatprep.subr.mxu0 0.0
    %6038 = vmatpush1.msra.mxu0 0.0
    %6039 = vmatprep.subr.mxu0 0.0
    %6040 = vmatpush1.msra.mxu0 0.0
    %6041 = vmatprep.subr.mxu0 0.0
    %6042 = vmatpush1.msra.mxu0 0.0
    %6043 = vmatprep.subr.mxu0 0.0
    %6044 = vmatpush1.msra.mxu0 0.0
    %6045 = vmatprep.subr.mxu0 0.0
    %6046 = vmatpush1.msra.mxu0 0.0
    %6047 = vmatprep.subr.mxu0 0.0
    %6048 = vmatpush1.msra.mxu0 0.0
    %6049 = vmatprep.subr.mxu0 0.0
    %6050 = vmatpush1.msra.mxu0 0.0
    %6051 = vmatprep.subr.mxu0 0.0
    %6052 = vmatpush1.msra.mxu0 0.0
    %6053 = vmatprep.subr.mxu0 0.0
    %6054 = vmatpush1.msra.mxu0 0.0
    %6055 = vmatprep.subr.mxu0 0.0
    %6056 = vmatpush1.msra.mxu0 0.0
    %6057 = vmatprep.subr.mxu0 0.0
    %6058 = vmatpush1.msra.mxu0 0.0
    %6059 = vmatprep.subr.mxu0 0.0
    %6060 = vmatpush1.msra.mxu0 0.0
    %6061 = vmatprep.subr.mxu0 0.0
    %6062 = vmatpush1.msra.mxu0 0.0
    %6063 = vmatprep.subr.mxu0 0.0
    %6064 = vmatpush1.msra.mxu0 0.0
    %6065 = vmatprep.subr.mxu0 0.0
    %6066 = vmatpush1.msra.mxu0 0.0
    %6067 = vmatprep.subr.mxu0 0.0
    %6068 = vmatpush1.msra.mxu0 0.0
    %6069 = vmatprep.subr.mxu0 0.0
    %6070 = vmatpush1.msra.mxu0 0.0
    %6071 = vmatprep.subr.mxu0 0.0
    %6072 = vmatpush1.msra.mxu0 0.0
    %6073 = vmatprep.subr.mxu0 0.0
    %6074 = vmatpush1.msra.mxu0 0.0
    %6075 = vmatprep.subr.mxu0 0.0
    %6076 = vmatpush1.msra.mxu0 0.0
    %6077 = vmatprep.subr.mxu0 0.0
    %6078 = vmatpush1.msra.mxu0 0.0
    %6079 = vmatprep.subr.mxu0 0.0
    %6080 = vmatpush1.msra.mxu0 0.0
    %6081 = vmatprep.mubr.f32.mxu0 0.0
    %6082 = vmatmul.mubr.f32.gmra.mrb[0].mxu0 %v5789
    %v6083 = vpop.f32.mrb[0].mxu0
    %v6084 = vadd.f32 %v6016, %v6083
    %v6085 = vpop.f32.mrb[0].mxu0
    %6086 = vdwg.mxu0
    %v6087 = vxor.u32 %v6084, 2147483648
    %v6088 = vmul.f32 %v6087, 1.442695
    %v6089 = vpow.pop %v6088
    %v6090 = vadd.f32 %v6089, 1.0
    %v6091 = vrcp.pop %v6090
    %v6092 = vmul.f32 1.0, %v6091
    %v6093 = vmul.f32 %v5943, %v5782
    %v6094 = vmul.f32 %v5866, %v6015
    %v6095 = vadd.f32 %v6093, %v6094
    %v6096 = vtanh.pop %v6095
    %v6097 = vmul.f32 %v6092, %v6096
    %6098 = vst.msk [vmem:[%s1840] sm:$0x3] %vm1207, %v6097
    %6099 = vst.msk [vmem:[%s1838] sm:$0x3] %vm1210, %v6097
    %v6100 = vld [vmem:[%s298] sm:$0x3]
    %v6102 = vsel %vm896, %v6097, 0
    %6104 = vmatprep.subr.mxu0 0.0
    %6105 = vmatpush1.msra.mxu0 %v4190
    %6106 = vmatprep.subr.mxu0 0.0
    %6107 = vmatpush1.msra.mxu0 %v4191
    %6108 = vmatprep.subr.mxu0 0.0
    %6109 = vmatpush1.msra.mxu0 %v4192
    %6110 = vmatprep.subr.mxu0 0.0
    %6111 = vmatpush1.msra.mxu0 %v4193
    %6112 = vmatprep.subr.mxu0 0.0
    %6113 = vmatpush1.msra.mxu0 %v4194
    %6114 = vmatprep.subr.mxu0 0.0
    %6115 = vmatpush1.msra.mxu0 %v4195
    %6116 = vmatprep.subr.mxu0 0.0
    %6117 = vmatpush1.msra.mxu0 %v4196
    %6118 = vmatprep.subr.mxu0 0.0
    %6119 = vmatpush1.msra.mxu0 %v4197
    %6120 = vmatprep.subr.mxu0 0.0
    %6121 = vmatpush1.msra.mxu0 0.0
    %6122 = vmatprep.subr.mxu0 0.0
    %6123 = vmatpush1.msra.mxu0 0.0
    %6124 = vmatprep.subr.mxu0 0.0
    %6125 = vmatpush1.msra.mxu0 0.0
    %6126 = vmatprep.subr.mxu0 0.0
    %6127 = vmatpush1.msra.mxu0 0.0
    %6128 = vmatprep.subr.mxu0 0.0
    %6129 = vmatpush1.msra.mxu0 0.0
    %6130 = vmatprep.subr.mxu0 0.0
    %6131 = vmatpush1.msra.mxu0 0.0
    %6132 = vmatprep.subr.mxu0 0.0
    %6133 = vmatpush1.msra.mxu0 0.0
    %6134 = vmatprep.subr.mxu0 0.0
    %6135 = vmatpush1.msra.mxu0 0.0
    %6136 = vmatprep.subr.mxu0 0.0
    %6137 = vmatpush1.msra.mxu0 0.0
    %6138 = vmatprep.subr.mxu0 0.0
    %6139 = vmatpush1.msra.mxu0 0.0
    %6140 = vmatprep.subr.mxu0 0.0
    %6141 = vmatpush1.msra.mxu0 0.0
    %6142 = vmatprep.subr.mxu0 0.0
    %6143 = vmatpush1.msra.mxu0 0.0
    %6144 = vmatprep.subr.mxu0 0.0
    %6145 = vmatpush1.msra.mxu0 0.0
    %6146 = vmatprep.subr.mxu0 0.0
    %6147 = vmatpush1.msra.mxu0 0.0
    %6148 = vmatprep.subr.mxu0 0.0
    %6149 = vmatpush1.msra.mxu0 0.0
    %6150 = vmatprep.subr.mxu0 0.0
    %6151 = vmatpush1.msra.mxu0 0.0
    %6152 = vmatprep.subr.mxu0 0.0
    %6153 = vmatpush1.msra.mxu0 0.0
    %6154 = vmatprep.subr.mxu0 0.0
    %6155 = vmatpush1.msra.mxu0 0.0
    %6156 = vmatprep.subr.mxu0 0.0
    %6157 = vmatpush1.msra.mxu0 0.0
    %6158 = vmatprep.subr.mxu0 0.0
    %6159 = vmatpush1.msra.mxu0 0.0
    %6160 = vmatprep.subr.mxu0 0.0
    %6161 = vmatpush1.msra.mxu0 0.0
    %6162 = vmatprep.subr.mxu0 0.0
    %6163 = vmatpush1.msra.mxu0 0.0
    %6164 = vmatprep.subr.mxu0 0.0
    %6165 = vmatpush1.msra.mxu0 0.0
    %6166 = vmatprep.subr.mxu0 0.0
    %6167 = vmatpush1.msra.mxu0 0.0
    %6168 = vmatprep.mubr.f32.mxu0 0.0
    %6169 = vmatmul.mubr.f32.gmra.mrb[0].mxu0 %v6102
    %v6170 = vpop.f32.mrb[0].mxu0
    %v6171 = vadd.f32 %v6100, %v6170
    %v6172 = vpop.f32.mrb[0].mxu0
    %6173 = vdwg.mxu0
    %v6174 = vxor.u32 %v6171, 2147483648
    %v6175 = vmul.f32 %v6174, 1.442695
    %v6176 = vpow.pop %v6175
    %v6177 = vadd.f32 %v6176, 1.0
    %v6178 = vrcp.pop %v6177
    %v6179 = vmul.f32 1.0, %v6178
    %v6180 = vld [vmem:[%s484] sm:$0x3]
    %6181 = vmatprep.subr.mxu0 0.0
    %6182 = vmatpush1.msra.mxu0 %v4199
    %6183 = vmatprep.subr.mxu0 0.0
    %6184 = vmatpush1.msra.mxu0 %v4200
    %6185 = vmatprep.subr.mxu0 0.0
    %6186 = vmatpush1.msra.mxu0 %v4201
    %6187 = vmatprep.subr.mxu0 0.0
    %6188 = vmatpush1.msra.mxu0 %v4202
    %6189 = vmatprep.subr.mxu0 0.0
    %6190 = vmatpush1.msra.mxu0 %v4203
    %6191 = vmatprep.subr.mxu0 0.0
    %6192 = vmatpush1.msra.mxu0 %v4204
    %6193 = vmatprep.subr.mxu0 0.0
    %6194 = vmatpush1.msra.mxu0 %v4205
    %6195 = vmatprep.subr.mxu0 0.0
    %6196 = vmatpush1.msra.mxu0 %v4206
    %6197 = vmatprep.subr.mxu0 0.0
    %6198 = vmatpush1.msra.mxu0 0.0
    %6199 = vmatprep.subr.mxu0 0.0
    %6200 = vmatpush1.msra.mxu0 0.0
    %6201 = vmatprep.subr.mxu0 0.0
    %6202 = vmatpush1.msra.mxu0 0.0
    %6203 = vmatprep.subr.mxu0 0.0
    %6204 = vmatpush1.msra.mxu0 0.0
    %6205 = vmatprep.subr.mxu0 0.0
    %6206 = vmatpush1.msra.mxu0 0.0
    %6207 = vmatprep.subr.mxu0 0.0
    %6208 = vmatpush1.msra.mxu0 0.0
    %6209 = vmatprep.subr.mxu0 0.0
    %6210 = vmatpush1.msra.mxu0 0.0
    %6211 = vmatprep.subr.mxu0 0.0
    %6212 = vmatpush1.msra.mxu0 0.0
    %6213 = vmatprep.subr.mxu0 0.0
    %6214 = vmatpush1.msra.mxu0 0.0
    %6215 = vmatprep.subr.mxu0 0.0
    %6216 = vmatpush1.msra.mxu0 0.0
    %6217 = vmatprep.subr.mxu0 0.0
    %6218 = vmatpush1.msra.mxu0 0.0
    %6219 = vmatprep.subr.mxu0 0.0
    %6220 = vmatpush1.msra.mxu0 0.0
    %6221 = vmatprep.subr.mxu0 0.0
    %6222 = vmatpush1.msra.mxu0 0.0
    %6223 = vmatprep.subr.mxu0 0.0
    %6224 = vmatpush1.msra.mxu0 0.0
    %6225 = vmatprep.subr.mxu0 0.0
    %6226 = vmatpush1.msra.mxu0 0.0
    %6227 = vmatprep.subr.mxu0 0.0
    %6228 = vmatpush1.msra.mxu0 0.0
    %6229 = vmatprep.subr.mxu0 0.0
    %6230 = vmatpush1.msra.mxu0 0.0
    %6231 = vmatprep.subr.mxu0 0.0
    %6232 = vmatpush1.msra.mxu0 0.0
    %6233 = vmatprep.subr.mxu0 0.0
    %6234 = vmatpush1.msra.mxu0 0.0
    %6235 = vmatprep.subr.mxu0 0.0
    %6236 = vmatpush1.msra.mxu0 0.0
    %6237 = vmatprep.subr.mxu0 0.0
    %6238 = vmatpush1.msra.mxu0 0.0
    %6239 = vmatprep.subr.mxu0 0.0
    %6240 = vmatpush1.msra.mxu0 0.0
    %6241 = vmatprep.subr.mxu0 0.0
    %6242 = vmatpush1.msra.mxu0 0.0
    %6243 = vmatprep.subr.mxu0 0.0
    %6244 = vmatpush1.msra.mxu0 0.0
    %6245 = vmatprep.mubr.f32.mxu0 0.0
    %6246 = vmatmul.mubr.f32.gmra.mrb[0].mxu0 %v6102
    %v6247 = vpop.f32.mrb[0].mxu0
    %v6248 = vadd.f32 %v6180, %v6247
    %v6249 = vpop.f32.mrb[0].mxu0
    %6250 = vdwg.mxu0
    %v6251 = vxor.u32 %v6248, 2147483648
    %v6252 = vmul.f32 %v6251, 1.442695
    %v6253 = vpow.pop %v6252
    %v6254 = vadd.f32 %v6253, 1.0
    %v6255 = vrcp.pop %v6254
    %v6256 = vmul.f32 1.0, %v6255
    %v6257 = vld [vmem:[%s670] sm:$0x3]
    %6258 = vmatprep.subr.mxu0 0.0
    %6259 = vmatpush1.msra.mxu0 %v4208
    %6260 = vmatprep.subr.mxu0 0.0
    %6261 = vmatpush1.msra.mxu0 %v4209
    %6262 = vmatprep.subr.mxu0 0.0
    %6263 = vmatpush1.msra.mxu0 %v4210
    %6264 = vmatprep.subr.mxu0 0.0
    %6265 = vmatpush1.msra.mxu0 %v4211
    %6266 = vmatprep.subr.mxu0 0.0
    %6267 = vmatpush1.msra.mxu0 %v4212
    %6268 = vmatprep.subr.mxu0 0.0
    %6269 = vmatpush1.msra.mxu0 %v4213
    %6270 = vmatprep.subr.mxu0 0.0
    %6271 = vmatpush1.msra.mxu0 %v4214
    %6272 = vmatprep.subr.mxu0 0.0
    %6273 = vmatpush1.msra.mxu0 %v4215
    %6274 = vmatprep.subr.mxu0 0.0
    %6275 = vmatpush1.msra.mxu0 0.0
    %6276 = vmatprep.subr.mxu0 0.0
    %6277 = vmatpush1.msra.mxu0 0.0
    %6278 = vmatprep.subr.mxu0 0.0
    %6279 = vmatpush1.msra.mxu0 0.0
    %6280 = vmatprep.subr.mxu0 0.0
    %6281 = vmatpush1.msra.mxu0 0.0
    %6282 = vmatprep.subr.mxu0 0.0
    %6283 = vmatpush1.msra.mxu0 0.0
    %6284 = vmatprep.subr.mxu0 0.0
    %6285 = vmatpush1.msra.mxu0 0.0
    %6286 = vmatprep.subr.mxu0 0.0
    %6287 = vmatpush1.msra.mxu0 0.0
    %6288 = vmatprep.subr.mxu0 0.0
    %6289 = vmatpush1.msra.mxu0 0.0
    %6290 = vmatprep.subr.mxu0 0.0
    %6291 = vmatpush1.msra.mxu0 0.0
    %6292 = vmatprep.subr.mxu0 0.0
    %6293 = vmatpush1.msra.mxu0 0.0
    %6294 = vmatprep.subr.mxu0 0.0
    %6295 = vmatpush1.msra.mxu0 0.0
    %6296 = vmatprep.subr.mxu0 0.0
    %6297 = vmatpush1.msra.mxu0 0.0
    %6298 = vmatprep.subr.mxu0 0.0
    %6299 = vmatpush1.msra.mxu0 0.0
    %6300 = vmatprep.subr.mxu0 0.0
    %6301 = vmatpush1.msra.mxu0 0.0
    %6302 = vmatprep.subr.mxu0 0.0
    %6303 = vmatpush1.msra.mxu0 0.0
    %6304 = vmatprep.subr.mxu0 0.0
    %6305 = vmatpush1.msra.mxu0 0.0
    %6306 = vmatprep.subr.mxu0 0.0
    %6307 = vmatpush1.msra.mxu0 0.0
    %6308 = vmatprep.subr.mxu0 0.0
    %6309 = vmatpush1.msra.mxu0 0.0
    %6310 = vmatprep.subr.mxu0 0.0
    %6311 = vmatpush1.msra.mxu0 0.0
    %6312 = vmatprep.subr.mxu0 0.0
    %6313 = vmatpush1.msra.mxu0 0.0
    %6314 = vmatprep.subr.mxu0 0.0
    %6315 = vmatpush1.msra.mxu0 0.0
    %6316 = vmatprep.subr.mxu0 0.0
    %6317 = vmatpush1.msra.mxu0 0.0
    %6318 = vmatprep.subr.mxu0 0.0
    %6319 = vmatpush1.msra.mxu0 0.0
    %6320 = vmatprep.subr.mxu0 0.0
    %6321 = vmatpush1.msra.mxu0 0.0
    %6322 = vmatprep.mubr.f32.mxu0 0.0
    %6323 = vmatmul.mubr.f32.gmra.mrb[0].mxu0 %v6102
    %v6324 = vpop.f32.mrb[0].mxu0
    %v6325 = vadd.f32 %v6257, %v6324
    %v6326 = vpop.f32.mrb[0].mxu0
    %6327 = vdwg.mxu0
    %v6328 = vtanh.pop %v6325
    %v6329 = vld [vmem:[%s856] sm:$0x3]
    %6330 = vmatprep.subr.mxu0 0.0
    %6331 = vmatpush1.msra.mxu0 %v4217
    %6332 = vmatprep.subr.mxu0 0.0
    %6333 = vmatpush1.msra.mxu0 %v4218
    %6334 = vmatprep.subr.mxu0 0.0
    %6335 = vmatpush1.msra.mxu0 %v4219
    %6336 = vmatprep.subr.mxu0 0.0
    %6337 = vmatpush1.msra.mxu0 %v4220
    %6338 = vmatprep.subr.mxu0 0.0
    %6339 = vmatpush1.msra.mxu0 %v4221
    %6340 = vmatprep.subr.mxu0 0.0
    %6341 = vmatpush1.msra.mxu0 %v4222
    %6342 = vmatprep.subr.mxu0 0.0
    %6343 = vmatpush1.msra.mxu0 %v4223
    %6344 = vmatprep.subr.mxu0 0.0
    %6345 = vmatpush1.msra.mxu0 %v4224
    %6346 = vmatprep.subr.mxu0 0.0
    %6347 = vmatpush1.msra.mxu0 0.0
    %6348 = vmatprep.subr.mxu0 0.0
    %6349 = vmatpush1.msra.mxu0 0.0
    %6350 = vmatprep.subr.mxu0 0.0
    %6351 = vmatpush1.msra.mxu0 0.0
    %6352 = vmatprep.subr.mxu0 0.0
    %6353 = vmatpush1.msra.mxu0 0.0
    %6354 = vmatprep.subr.mxu0 0.0
    %6355 = vmatpush1.msra.mxu0 0.0
    %6356 = vmatprep.subr.mxu0 0.0
    %6357 = vmatpush1.msra.mxu0 0.0
    %6358 = vmatprep.subr.mxu0 0.0
    %6359 = vmatpush1.msra.mxu0 0.0
    %6360 = vmatprep.subr.mxu0 0.0
    %6361 = vmatpush1.msra.mxu0 0.0
    %6362 = vmatprep.subr.mxu0 0.0
    %6363 = vmatpush1.msra.mxu0 0.0
    %6364 = vmatprep.subr.mxu0 0.0
    %6365 = vmatpush1.msra.mxu0 0.0
    %6366 = vmatprep.subr.mxu0 0.0
    %6367 = vmatpush1.msra.mxu0 0.0
    %6368 = vmatprep.subr.mxu0 0.0
    %6369 = vmatpush1.msra.mxu0 0.0
    %6370 = vmatprep.subr.mxu0 0.0
    %6371 = vmatpush1.msra.mxu0 0.0
    %6372 = vmatprep.subr.mxu0 0.0
    %6373 = vmatpush1.msra.mxu0 0.0
    %6374 = vmatprep.subr.mxu0 0.0
    %6375 = vmatpush1.msra.mxu0 0.0
    %6376 = vmatprep.subr.mxu0 0.0
    %6377 = vmatpush1.msra.mxu0 0.0
    %6378 = vmatprep.subr.mxu0 0.0
    %6379 = vmatpush1.msra.mxu0 0.0
    %6380 = vmatprep.subr.mxu0 0.0
    %6381 = vmatpush1.msra.mxu0 0.0
    %6382 = vmatprep.subr.mxu0 0.0
    %6383 = vmatpush1.msra.mxu0 0.0
    %6384 = vmatprep.subr.mxu0 0.0
    %6385 = vmatpush1.msra.mxu0 0.0
    %6386 = vmatprep.subr.mxu0 0.0
    %6387 = vmatpush1.msra.mxu0 0.0
    %6388 = vmatprep.subr.mxu0 0.0
    %6389 = vmatpush1.msra.mxu0 0.0
    %6390 = vmatprep.subr.mxu0 0.0
    %6391 = vmatpush1.msra.mxu0 0.0
    %6392 = vmatprep.subr.mxu0 0.0
    %6393 = vmatpush1.msra.mxu0 0.0
    %6394 = vmatprep.mubr.f32.mxu0 0.0
    %6395 = vmatmul.mubr.f32.gmra.mrb[0].mxu0 %v6102
    %v6396 = vpop.f32.mrb[0].mxu0
    %v6397 = vadd.f32 %v6329, %v6396
    %v6398 = vpop.f32.mrb[0].mxu0
    %6399 = vdwg.mxu0
    %v6400 = vxor.u32 %v6397, 2147483648
    %v6401 = vmul.f32 %v6400, 1.442695
    %v6402 = vpow.pop %v6401
    %v6403 = vadd.f32 %v6402, 1.0
    %v6404 = vrcp.pop %v6403
    %v6405 = vmul.f32 1.0, %v6404
    %v6406 = vmul.f32 %v6256, %v6095
    %v6407 = vmul.f32 %v6179, %v6328
    %v6408 = vadd.f32 %v6406, %v6407
    %v6409 = vtanh.pop %v6408
    %v6410 = vmul.f32 %v6405, %v6409
    %6411 = vst.msk [vmem:[%s1525] sm:$0x3] %vm1207, %v6410
    %6412 = vst.msk [vmem:[%s1523] sm:$0x3] %vm1210, %v6410
    %v6413 = vld [vmem:[%s300] sm:$0x3]
    %v6415 = vsel %vm896, %v6410, 0
    %6417 = vmatprep.subr.mxu0 0.0
    %6418 = vmatpush1.msra.mxu0 %v4190
    %6419 = vmatprep.subr.mxu0 0.0
    %6420 = vmatpush1.msra.mxu0 %v4191
    %6421 = vmatprep.subr.mxu0 0.0
    %6422 = vmatpush1.msra.mxu0 %v4192
    %6423 = vmatprep.subr.mxu0 0.0
    %6424 = vmatpush1.msra.mxu0 %v4193
    %6425 = vmatprep.subr.mxu0 0.0
    %6426 = vmatpush1.msra.mxu0 %v4194
    %6427 = vmatprep.subr.mxu0 0.0
    %6428 = vmatpush1.msra.mxu0 %v4195
    %6429 = vmatprep.subr.mxu0 0.0
    %6430 = vmatpush1.msra.mxu0 %v4196
    %6431 = vmatprep.subr.mxu0 0.0
    %6432 = vmatpush1.msra.mxu0 %v4197
    %6433 = vmatprep.subr.mxu0 0.0
    %6434 = vmatpush1.msra.mxu0 0.0
    %6435 = vmatprep.subr.mxu0 0.0
    %6436 = vmatpush1.msra.mxu0 0.0
    %6437 = vmatprep.subr.mxu0 0.0
    %6438 = vmatpush1.msra.mxu0 0.0
    %6439 = vmatprep.subr.mxu0 0.0
    %6440 = vmatpush1.msra.mxu0 0.0
    %6441 = vmatprep.subr.mxu0 0.0
    %6442 = vmatpush1.msra.mxu0 0.0
    %6443 = vmatprep.subr.mxu0 0.0
    %6444 = vmatpush1.msra.mxu0 0.0
    %6445 = vmatprep.subr.mxu0 0.0
    %6446 = vmatpush1.msra.mxu0 0.0
    %6447 = vmatprep.subr.mxu0 0.0
    %6448 = vmatpush1.msra.mxu0 0.0
    %6449 = vmatprep.subr.mxu0 0.0
    %6450 = vmatpush1.msra.mxu0 0.0
    %6451 = vmatprep.subr.mxu0 0.0
    %6452 = vmatpush1.msra.mxu0 0.0
    %6453 = vmatprep.subr.mxu0 0.0
    %6454 = vmatpush1.msra.mxu0 0.0
    %6455 = vmatprep.subr.mxu0 0.0
    %6456 = vmatpush1.msra.mxu0 0.0
    %6457 = vmatprep.subr.mxu0 0.0
    %6458 = vmatpush1.msra.mxu0 0.0
    %6459 = vmatprep.subr.mxu0 0.0
    %6460 = vmatpush1.msra.mxu0 0.0
    %6461 = vmatprep.subr.mxu0 0.0
    %6462 = vmatpush1.msra.mxu0 0.0
    %6463 = vmatprep.subr.mxu0 0.0
    %6464 = vmatpush1.msra.mxu0 0.0
    %6465 = vmatprep.subr.mxu0 0.0
    %6466 = vmatpush1.msra.mxu0 0.0
    %6467 = vmatprep.subr.mxu0 0.0
    %6468 = vmatpush1.msra.mxu0 0.0
    %6469 = vmatprep.subr.mxu0 0.0
    %6470 = vmatpush1.msra.mxu0 0.0
    %6471 = vmatprep.subr.mxu0 0.0
    %6472 = vmatpush1.msra.mxu0 0.0
    %6473 = vmatprep.subr.mxu0 0.0
    %6474 = vmatpush1.msra.mxu0 0.0
    %6475 = vmatprep.subr.mxu0 0.0
    %6476 = vmatpush1.msra.mxu0 0.0
    %6477 = vmatprep.subr.mxu0 0.0
    %6478 = vmatpush1.msra.mxu0 0.0
    %6479 = vmatprep.subr.mxu0 0.0
    %6480 = vmatpush1.msra.mxu0 0.0
    %6481 = vmatprep.mubr.f32.mxu0 0.0
    %6482 = vmatmul.mubr.f32.gmra.mrb[0].mxu0 %v6415
    %v6483 = vpop.f32.mrb[0].mxu0
    %v6484 = vadd.f32 %v6413, %v6483
    %v6485 = vpop.f32.mrb[0].mxu0
    %6486 = vdwg.mxu0
    %v6487 = vxor.u32 %v6484, 2147483648
    %v6488 = vmul.f32 %v6487, 1.442695
    %v6489 = vpow.pop %v6488
    %v6490 = vadd.f32 %v6489, 1.0
    %v6491 = vrcp.pop %v6490
    %v6492 = vmul.f32 1.0, %v6491
    %v6493 = vld [vmem:[%s486] sm:$0x3]
    %6494 = vmatprep.subr.mxu0 0.0
    %6495 = vmatpush1.msra.mxu0 %v4199
    %6496 = vmatprep.subr.mxu0 0.0
    %6497 = vmatpush1.msra.mxu0 %v4200
    %6498 = vmatprep.subr.mxu0 0.0
    %6499 = vmatpush1.msra.mxu0 %v4201
    %6500 = vmatprep.subr.mxu0 0.0
    %6501 = vmatpush1.msra.mxu0 %v4202
    %6502 = vmatprep.subr.mxu0 0.0
    %6503 = vmatpush1.msra.mxu0 %v4203
    %6504 = vmatprep.subr.mxu0 0.0
    %6505 = vmatpush1.msra.mxu0 %v4204
    %6506 = vmatprep.subr.mxu0 0.0
    %6507 = vmatpush1.msra.mxu0 %v4205
    %6508 = vmatprep.subr.mxu0 0.0
    %6509 = vmatpush1.msra.mxu0 %v4206
    %6510 = vmatprep.subr.mxu0 0.0
    %6511 = vmatpush1.msra.mxu0 0.0
    %6512 = vmatprep.subr.mxu0 0.0
    %6513 = vmatpush1.msra.mxu0 0.0
    %6514 = vmatprep.subr.mxu0 0.0
    %6515 = vmatpush1.msra.mxu0 0.0
    %6516 = vmatprep.subr.mxu0 0.0
    %6517 = vmatpush1.msra.mxu0 0.0
    %6518 = vmatprep.subr.mxu0 0.0
    %6519 = vmatpush1.msra.mxu0 0.0
    %6520 = vmatprep.subr.mxu0 0.0
    %6521 = vmatpush1.msra.mxu0 0.0
    %6522 = vmatprep.subr.mxu0 0.0
    %6523 = vmatpush1.msra.mxu0 0.0
    %6524 = vmatprep.subr.mxu0 0.0
    %6525 = vmatpush1.msra.mxu0 0.0
    %6526 = vmatprep.subr.mxu0 0.0
    %6527 = vmatpush1.msra.mxu0 0.0
    %6528 = vmatprep.subr.mxu0 0.0
    %6529 = vmatpush1.msra.mxu0 0.0
    %6530 = vmatprep.subr.mxu0 0.0
    %6531 = vmatpush1.msra.mxu0 0.0
    %6532 = vmatprep.subr.mxu0 0.0
    %6533 = vmatpush1.msra.mxu0 0.0
    %6534 = vmatprep.subr.mxu0 0.0
    %6535 = vmatpush1.msra.mxu0 0.0
    %6536 = vmatprep.subr.mxu0 0.0
    %6537 = vmatpush1.msra.mxu0 0.0
    %6538 = vmatprep.subr.mxu0 0.0
    %6539 = vmatpush1.msra.mxu0 0.0
    %6540 = vmatprep.subr.mxu0 0.0
    %6541 = vmatpush1.msra.mxu0 0.0
    %6542 = vmatprep.subr.mxu0 0.0
    %6543 = vmatpush1.msra.mxu0 0.0
    %6544 = vmatprep.subr.mxu0 0.0
    %6545 = vmatpush1.msra.mxu0 0.0
    %6546 = vmatprep.subr.mxu0 0.0
    %6547 = vmatpush1.msra.mxu0 0.0
    %6548 = vmatprep.subr.mxu0 0.0
    %6549 = vmatpush1.msra.mxu0 0.0
    %6550 = vmatprep.subr.mxu0 0.0
    %6551 = vmatpush1.msra.mxu0 0.0
    %6552 = vmatprep.subr.mxu0 0.0
    %6553 = vmatpush1.msra.mxu0 0.0
    %6554 = vmatprep.subr.mxu0 0.0
    %6555 = vmatpush1.msra.mxu0 0.0
    %6556 = vmatprep.subr.mxu0 0.0
    %6557 = vmatpush1.msra.mxu0 0.0
    %6558 = vmatprep.mubr.f32.mxu0 0.0
    %6559 = vmatmul.mubr.f32.gmra.mrb[0].mxu0 %v6415
    %v6560 = vpop.f32.mrb[0].mxu0
    %v6561 = vadd.f32 %v6493, %v6560
    %v6562 = vpop.f32.mrb[0].mxu0
    %6563 = vdwg.mxu0
    %v6564 = vxor.u32 %v6561, 2147483648
    %v6565 = vmul.f32 %v6564, 1.442695
    %v6566 = vpow.pop %v6565
    %v6567 = vadd.f32 %v6566, 1.0
    %v6568 = vrcp.pop %v6567
    %v6569 = vmul.f32 1.0, %v6568
    %v6570 = vld [vmem:[%s672] sm:$0x3]
    %6571 = vmatprep.subr.mxu0 0.0
    %6572 = vmatpush1.msra.mxu0 %v4208
    %6573 = vmatprep.subr.mxu0 0.0
    %6574 = vmatpush1.msra.mxu0 %v4209
    %6575 = vmatprep.subr.mxu0 0.0
    %6576 = vmatpush1.msra.mxu0 %v4210
    %6577 = vmatprep.subr.mxu0 0.0
    %6578 = vmatpush1.msra.mxu0 %v4211
    %6579 = vmatprep.subr.mxu0 0.0
    %6580 = vmatpush1.msra.mxu0 %v4212
    %6581 = vmatprep.subr.mxu0 0.0
    %6582 = vmatpush1.msra.mxu0 %v4213
    %6583 = vmatprep.subr.mxu0 0.0
    %6584 = vmatpush1.msra.mxu0 %v4214
    %6585 = vmatprep.subr.mxu0 0.0
    %6586 = vmatpush1.msra.mxu0 %v4215
    %6587 = vmatprep.subr.mxu0 0.0
    %6588 = vmatpush1.msra.mxu0 0.0
    %6589 = vmatprep.subr.mxu0 0.0
    %6590 = vmatpush1.msra.mxu0 0.0
    %6591 = vmatprep.subr.mxu0 0.0
    %6592 = vmatpush1.msra.mxu0 0.0
    %6593 = vmatprep.subr.mxu0 0.0
    %6594 = vmatpush1.msra.mxu0 0.0
    %6595 = vmatprep.subr.mxu0 0.0
    %6596 = vmatpush1.msra.mxu0 0.0
    %6597 = vmatprep.subr.mxu0 0.0
    %6598 = vmatpush1.msra.mxu0 0.0
    %6599 = vmatprep.subr.mxu0 0.0
    %6600 = vmatpush1.msra.mxu0 0.0
    %6601 = vmatprep.subr.mxu0 0.0
    %6602 = vmatpush1.msra.mxu0 0.0
    %6603 = vmatprep.subr.mxu0 0.0
    %6604 = vmatpush1.msra.mxu0 0.0
    %6605 = vmatprep.subr.mxu0 0.0
    %6606 = vmatpush1.msra.mxu0 0.0
    %6607 = vmatprep.subr.mxu0 0.0
    %6608 = vmatpush1.msra.mxu0 0.0
    %6609 = vmatprep.subr.mxu0 0.0
    %6610 = vmatpush1.msra.mxu0 0.0
    %6611 = vmatprep.subr.mxu0 0.0
    %6612 = vmatpush1.msra.mxu0 0.0
    %6613 = vmatprep.subr.mxu0 0.0
    %6614 = vmatpush1.msra.mxu0 0.0
    %6615 = vmatprep.subr.mxu0 0.0
    %6616 = vmatpush1.msra.mxu0 0.0
    %6617 = vmatprep.subr.mxu0 0.0
    %6618 = vmatpush1.msra.mxu0 0.0
    %6619 = vmatprep.subr.mxu0 0.0
    %6620 = vmatpush1.msra.mxu0 0.0
    %6621 = vmatprep.subr.mxu0 0.0
    %6622 = vmatpush1.msra.mxu0 0.0
    %6623 = vmatprep.subr.mxu0 0.0
    %6624 = vmatpush1.msra.mxu0 0.0
    %6625 = vmatprep.subr.mxu0 0.0
    %6626 = vmatpush1.msra.mxu0 0.0
    %6627 = vmatprep.subr.mxu0 0.0
    %6628 = vmatpush1.msra.mxu0 0.0
    %6629 = vmatprep.subr.mxu0 0.0
    %6630 = vmatpush1.msra.mxu0 0.0
    %6631 = vmatprep.subr.mxu0 0.0
    %6632 = vmatpush1.msra.mxu0 0.0
    %6633 = vmatprep.subr.mxu0 0.0
    %6634 = vmatpush1.msra.mxu0 0.0
    %6635 = vmatprep.mubr.f32.mxu0 0.0
    %6636 = vmatmul.mubr.f32.gmra.mrb[0].mxu0 %v6415
    %v6637 = vpop.f32.mrb[0].mxu0
    %v6638 = vadd.f32 %v6570, %v6637
    %v6639 = vpop.f32.mrb[0].mxu0
    %6640 = vdwg.mxu0
    %v6641 = vtanh.pop %v6638
    %v6642 = vld [vmem:[%s858] sm:$0x3]
    %6643 = vmatprep.subr.mxu0 0.0
    %6644 = vmatpush1.msra.mxu0 %v4217
    %6645 = vmatprep.subr.mxu0 0.0
    %6646 = vmatpush1.msra.mxu0 %v4218
    %6647 = vmatprep.subr.mxu0 0.0
    %6648 = vmatpush1.msra.mxu0 %v4219
    %6649 = vmatprep.subr.mxu0 0.0
    %6650 = vmatpush1.msra.mxu0 %v4220
    %6651 = vmatprep.subr.mxu0 0.0
    %6652 = vmatpush1.msra.mxu0 %v4221
    %6653 = vmatprep.subr.mxu0 0.0
    %6654 = vmatpush1.msra.mxu0 %v4222
    %6655 = vmatprep.subr.mxu0 0.0
    %6656 = vmatpush1.msra.mxu0 %v4223
    %6657 = vmatprep.subr.mxu0 0.0
    %6658 = vmatpush1.msra.mxu0 %v4224
    %6659 = vmatprep.subr.mxu0 0.0
    %6660 = vmatpush1.msra.mxu0 0.0
    %6661 = vmatprep.subr.mxu0 0.0
    %6662 = vmatpush1.msra.mxu0 0.0
    %6663 = vmatprep.subr.mxu0 0.0
    %6664 = vmatpush1.msra.mxu0 0.0
    %6665 = vmatprep.subr.mxu0 0.0
    %6666 = vmatpush1.msra.mxu0 0.0
    %6667 = vmatprep.subr.mxu0 0.0
    %6668 = vmatpush1.msra.mxu0 0.0
    %6669 = vmatprep.subr.mxu0 0.0
    %6670 = vmatpush1.msra.mxu0 0.0
    %6671 = vmatprep.subr.mxu0 0.0
    %6672 = vmatpush1.msra.mxu0 0.0
    %6673 = vmatprep.subr.mxu0 0.0
    %6674 = vmatpush1.msra.mxu0 0.0
    %6675 = vmatprep.subr.mxu0 0.0
    %6676 = vmatpush1.msra.mxu0 0.0
    %6677 = vmatprep.subr.mxu0 0.0
    %6678 = vmatpush1.msra.mxu0 0.0
    %6679 = vmatprep.subr.mxu0 0.0
    %6680 = vmatpush1.msra.mxu0 0.0
    %6681 = vmatprep.subr.mxu0 0.0
    %6682 = vmatpush1.msra.mxu0 0.0
    %6683 = vmatprep.subr.mxu0 0.0
    %6684 = vmatpush1.msra.mxu0 0.0
    %6685 = vmatprep.subr.mxu0 0.0
    %6686 = vmatpush1.msra.mxu0 0.0
    %6687 = vmatprep.subr.mxu0 0.0
    %6688 = vmatpush1.msra.mxu0 0.0
    %6689 = vmatprep.subr.mxu0 0.0
    %6690 = vmatpush1.msra.mxu0 0.0
    %6691 = vmatprep.subr.mxu0 0.0
    %6692 = vmatpush1.msra.mxu0 0.0
    %6693 = vmatprep.subr.mxu0 0.0
    %6694 = vmatpush1.msra.mxu0 0.0
    %6695 = vmatprep.subr.mxu0 0.0
    %6696 = vmatpush1.msra.mxu0 0.0
    %6697 = vmatprep.subr.mxu0 0.0
    %6698 = vmatpush1.msra.mxu0 0.0
    %6699 = vmatprep.subr.mxu0 0.0
    %6700 = vmatpush1.msra.mxu0 0.0
    %6701 = vmatprep.subr.mxu0 0.0
    %6702 = vmatpush1.msra.mxu0 0.0
    %6703 = vmatprep.subr.mxu0 0.0
    %6704 = vmatpush1.msra.mxu0 0.0
    %6705 = vmatprep.subr.mxu0 0.0
    %6706 = vmatpush1.msra.mxu0 0.0
    %6707 = vmatprep.mubr.f32.mxu0 0.0
    %6708 = vmatmul.mubr.f32.gmra.mrb[0].mxu0 %v6415
    %v6709 = vpop.f32.mrb[0].mxu0
    %v6710 = vadd.f32 %v6642, %v6709
    %v6711 = vpop.f32.mrb[0].mxu0
    %6712 = vdwg.mxu0
    %v6713 = vxor.u32 %v6710, 2147483648
    %v6714 = vmul.f32 %v6713, 1.442695
    %v6715 = vpow.pop %v6714
    %v6716 = vadd.f32 %v6715, 1.0
    %v6717 = vrcp.pop %v6716
    %v6718 = vmul.f32 1.0, %v6717
    %v6719 = vmul.f32 %v6569, %v6408
    %v6720 = vmul.f32 %v6492, %v6641
    %v6721 = vadd.f32 %v6719, %v6720
    %v6722 = vtanh.pop %v6721
    %v6723 = vmul.f32 %v6718, %v6722
    %6724 = vst.msk [vmem:[%s1209] sm:$0x3] %vm1207, %v6723
    %6725 = vst.msk [vmem:[#allocation3] sm:$0x3] %vm1210, %v6723
    %v6726 = vld [vmem:[#allocation3] sm:$0x3]
    %6727 = vst.msk [vmem:[#allocation4] sm:$0x3] %vm283, %v6726
    %v6728 = vld [vmem:[%s1523] sm:$0x3]
    %6729 = vst.msk [vmem:[#allocation4 + $0x2] sm:$0x3] %vm283, %v6728
    %v6730 = vld [vmem:[%s1838] sm:$0x3]
    %6731 = vst.msk [vmem:[#allocation4 + $0x4] sm:$0x3] %vm283, %v6730
    %v6732 = vld [vmem:[%s2153] sm:$0x3]
    %6733 = vst.msk [vmem:[#allocation4 + $0x6] sm:$0x3] %vm283, %v6732
    %v6734 = vld [vmem:[%s2155] sm:$0x3]
    %6735 = vst.msk [vmem:[#allocation4 + $0x8] sm:$0x3] %vm283, %v6734
    %v6736 = vld [vmem:[%s1840] sm:$0x3]
    %6737 = vst.msk [vmem:[#allocation4 + $0xa] sm:$0x3] %vm283, %v6736
    %v6738 = vld [vmem:[%s1525] sm:$0x3]
    %6739 = vst.msk [vmem:[#allocation4 + $0xc] sm:$0x3] %vm283, %v6738
    %v6740 = vld [vmem:[%s1209] sm:$0x3]
    %6741 = vst.msk [vmem:[#allocation4 + $0xe] sm:$0x3] %vm283, %v6740
    %v6742 = vld [vmem:[#allocation4] sm:$0xff]
    %v6743 = vld [vmem:[#allocation4 + $0x8] sm:$0xff]
    %v6744 = vmul.f32 %v6742, 0.5
    %v6745 = vmul.f32 %v6743, 0.5
    %v6746 = vmul.f32 %v6742, 0.70710677
    %v6747 = vmul.f32 %v6743, 0.70710677
    %v6748 = verf.f32.pop %v6746
    %v6749 = verf.f32.pop %v6747
    %v6750 = vadd.f32 %v6748, 1.0
    %v6751 = vadd.f32 %v6749, 1.0
    %v6752 = vmul.f32 %v6744, %v6750
    %v6753 = vmul.f32 %v6745, %v6751
    %v6754 = vld [vmem:[%s10] sm:$0xff]
    %v6755 = vld [vmem:[%s10 + $0x8] sm:$0xff]
    %v6756 = vld [vmem:[%s10 + $0x10] sm:$0xff]
    %v6757 = vld [vmem:[%s10 + $0x18] sm:$0xff]
    %v6758 = vld [vmem:[%s10 + $0x20] sm:$0xff]
    %v6759 = vld [vmem:[%s10 + $0x28] sm:$0xff]
    %v6760 = vld [vmem:[%s10 + $0x30] sm:$0xff]
    %v6761 = vld [vmem:[%s10 + $0x38] sm:$0xff]
    %v6762 = vld [vmem:[#allocation6] sm:$0x1]
    %v6764 = vlaneseq
    %v6765 = vshrl.u32 %v6764, 7
    %v6766 = vsub.s32 0, %v6765
    %v6767 = vrot.slane %v6762, %v6766
    %v6770 = vsel %vm896, %v6752, 0
    %v6773 = vsel %vm896, %v6753, 0
    %6775 = vmatprep.subr.mxu0 0.0
    %6776 = vmatpush1.msra.mxu0 %v6754
    %6777 = vmatprep.subr.mxu0 0.0
    %6778 = vmatpush1.msra.mxu0 %v6755
    %6779 = vmatprep.subr.mxu0 0.0
    %6780 = vmatpush1.msra.mxu0 %v6756
    %6781 = vmatprep.subr.mxu0 0.0
    %6782 = vmatpush1.msra.mxu0 %v6757
    %6783 = vmatprep.subr.mxu0 0.0
    %6784 = vmatpush1.msra.mxu0 %v6758
    %6785 = vmatprep.subr.mxu0 0.0
    %6786 = vmatpush1.msra.mxu0 %v6759
    %6787 = vmatprep.subr.mxu0 0.0
    %6788 = vmatpush1.msra.mxu0 %v6760
    %6789 = vmatprep.subr.mxu0 0.0
    %6790 = vmatpush1.msra.mxu0 %v6761
    %6791 = vmatprep.subr.mxu0 0.0
    %6792 = vmatpush1.msra.mxu0 0.0
    %6793 = vmatprep.subr.mxu0 0.0
    %6794 = vmatpush1.msra.mxu0 0.0
    %6795 = vmatprep.subr.mxu0 0.0
    %6796 = vmatpush1.msra.mxu0 0.0
    %6797 = vmatprep.subr.mxu0 0.0
    %6798 = vmatpush1.msra.mxu0 0.0
    %6799 = vmatprep.subr.mxu0 0.0
    %6800 = vmatpush1.msra.mxu0 0.0
    %6801 = vmatprep.subr.mxu0 0.0
    %6802 = vmatpush1.msra.mxu0 0.0
    %6803 = vmatprep.subr.mxu0 0.0
    %6804 = vmatpush1.msra.mxu0 0.0
    %6805 = vmatprep.subr.mxu0 0.0
    %6806 = vmatpush1.msra.mxu0 0.0
    %6807 = vmatprep.subr.mxu0 0.0
    %6808 = vmatpush1.msra.mxu0 0.0
    %6809 = vmatprep.subr.mxu0 0.0
    %6810 = vmatpush1.msra.mxu0 0.0
    %6811 = vmatprep.subr.mxu0 0.0
    %6812 = vmatpush1.msra.mxu0 0.0
    %6813 = vmatprep.subr.mxu0 0.0
    %6814 = vmatpush1.msra.mxu0 0.0
    %6815 = vmatprep.subr.mxu0 0.0
    %6816 = vmatpush1.msra.mxu0 0.0
    %6817 = vmatprep.subr.mxu0 0.0
    %6818 = vmatpush1.msra.mxu0 0.0
    %6819 = vmatprep.subr.mxu0 0.0
    %6820 = vmatpush1.msra.mxu0 0.0
    %6821 = vmatprep.subr.mxu0 0.0
    %6822 = vmatpush1.msra.mxu0 0.0
    %6823 = vmatprep.subr.mxu0 0.0
    %6824 = vmatpush1.msra.mxu0 0.0
    %6825 = vmatprep.subr.mxu0 0.0
    %6826 = vmatpush1.msra.mxu0 0.0
    %6827 = vmatprep.subr.mxu0 0.0
    %6828 = vmatpush1.msra.mxu0 0.0
    %6829 = vmatprep.subr.mxu0 0.0
    %6830 = vmatpush1.msra.mxu0 0.0
    %6831 = vmatprep.subr.mxu0 0.0
    %6832 = vmatpush1.msra.mxu0 0.0
    %6833 = vmatprep.subr.mxu0 0.0
    %6834 = vmatpush1.msra.mxu0 0.0
    %6835 = vmatprep.subr.mxu0 0.0
    %6836 = vmatpush1.msra.mxu0 0.0
    %6837 = vmatprep.subr.mxu0 0.0
    %6838 = vmatpush1.msra.mxu0 0.0
    %6839 = vmatprep.mubr.f32.mxu0 0.0
    %6840 = vmatmul.mubr.f32.gmra.mrb[0].mxu0 %v6770
    %v6841 = vpop.f32.mrb[0].mxu0
    %v6842 = vadd.f32 %v6767, %v6841
    %v6843 = vpop.f32.mrb[0].mxu0
    %6844 = vmatprep.mubr.f32.mxu0 0.0
    %6845 = vmatmul.mubr.f32.gmra.mrb[0].mxu0 %v6773
    %v6846 = vpop.f32.mrb[0].mxu0
    %v6847 = vadd.f32 %v6767, %v6846
    %v6848 = vpop.f32.mrb[0].mxu0
    %6849 = vdwg.mxu0
    %vm6850 = vcmask 7168
    %6851 = vst.msk [vmem:[%s12] sm:$0xff] %vm6850, %v6842
    %6852 = vst.msk [vmem:[%s12 + $0x8] sm:$0xff] %vm6850, %v6847
    // Predicated region
    $region66: #{tpu_custom_call.1} parent=1 // pred_check
      _
    $region67: #{tpu_custom_call.1} parent=1 // pred_check_branch
      %6854 = sbr.rel (0) target = $region69
    $region68: #{tpu_custom_call.1} parent=1 // pred_region
      _
    $region69: #{tpu_custom_call.1} parent=1 // pred_fallthru
      _
    // Predicated region
    $region70: #{tpu_custom_call.1} parent=1 // pred_check
      _
    $region71: #{tpu_custom_call.1} parent=1 // pred_check_branch
      %6856 = sbr.rel (0) target = $region73
    $region72: #{tpu_custom_call.1} parent=1 // pred_region
      _
    $region73: #{tpu_custom_call.1} parent=1 // pred_fallthru
      _
    %6857 = vsyncpa [#allocation8], 1
    %6858 = vsyncpa [#allocation10], 1
    %6859 = vsyncpa [#allocation13], 1

</llo_original>
